<compile_context>
chip_gen: v5e
topology: v5e:2x2
jax: 0.10.0
libtpu: 0.0.40
codegen_flags: <defaults>
</compile_context>

<pallas_src>
import math

import jax
import jax.numpy as jnp
import numpy as np
from jax.experimental import pallas as pl
from jax.experimental.pallas import tpu as pltpu


# ----------------------------------------------------------------------------
# Kernel: one grid step = one tb-row block of the batch.  Whole seq_len
# reduction is an unrolled in-kernel loop.
# ----------------------------------------------------------------------------
def make_msim_kernel(seq_len, compute_dtype):
    to_mxu = ((lambda x: x.astype(compute_dtype))
              if compute_dtype != jnp.float32 else (lambda x: x))

    def kernel(q_ref, kv_ref, wqin_ref, wqT_ref, bq_ref, wkvT_ref, bkv_ref,
               wo_ref, bout_ref, hm_ref, o_ref):
        d = q_ref.shape[-1]
        # cast q to the MXU operand dtype ONCE per block (not per s)
        q = to_mxu(q_ref[...])                                     # (tb, d)
        qp = jnp.dot(q, wqT_ref[...],
                     preferred_element_type=jnp.float32) + bq_ref[...]
        wkvT = wkvT_ref[...]                                       # (d, 2d)
        hm = hm_ref[...]                                           # (d, d)

        def body(s, acc):
            # kv_s = q @ Wqin_s^T + kv[s]   (bqin folded into bkv_s host-side)
            kv_s = jnp.dot(q, wqin_ref[s],
                           preferred_element_type=jnp.float32) + kv_ref[s]
            # fused K|V projection: one (tb,d)@(d,2d) matmul fills the 256-wide
            # MXU N dim on v6e/v7x and casts kv_s to the MXU dtype once.
            kkv = jnp.dot(to_mxu(kv_s), wkvT,
                          preferred_element_type=jnp.float32) + bkv_ref[s]
            k_s = kkv[:, :d]
            v_s = kkv[:, d:]
            # all-head similarity in ONE MXU matmul against the pre-scaled
            # block-diagonal ones mask; result is already broadcast over each
            # head's dh lanes.
            sim = jnp.dot(to_mxu(k_s * qp), hm,
                          preferred_element_type=jnp.float32)      # (tb, d)
            # Wout pre-reordered into per-s (d, d) blocks -> one full matmul.
            return acc + jnp.dot(to_mxu(v_s * sim), wo_ref[s],
                                 preferred_element_type=jnp.float32)

        acc = jax.lax.fori_loop(0, seq_len, body,
                                jnp.zeros(o_ref.shape, jnp.float32),
                                unroll=True)
        o_ref[...] = acc + bout_ref[...]

    return kernel


# ----------------------------------------------------------------------------
# One-time weight preprocessing (hoisted off the per-forward hot path)
# ----------------------------------------------------------------------------
def prep_params(p, compute_dtype=jnp.float32):
    Wqin, Wq, Wk, Wv, Wout = p['Wqin'], p['Wq'], p['Wk'], p['Wv'], p['Wout']
    d = Wq.shape[0]
    H = p['num_head']
    dh = d // H
    S = Wqin.shape[0] // d
    wdt = compute_dtype

    # block-diagonal "same head" mask, pre-scaled by dh ** -0.5
    row_h = jax.lax.broadcasted_iota(jnp.int32, (d, d), 0) // dh
    col_h = jax.lax.broadcasted_iota(jnp.int32, (d, d), 1) // dh
    headmask = jnp.where(row_h == col_h, float(dh) ** -0.5, 0.0).astype(wdt)

    # fold q_in_proj bias into per-s K/V biases (kernel drops the bqin add)
    bqin_s = p['bqin'].reshape(S, 1, d).astype(jnp.float32)
    bk_s = bqin_s @ Wk.T + p['bk'].reshape(1, d)
    bv_s = bqin_s @ Wv.T + p['bv'].reshape(1, d)
    bkv_s = jnp.concatenate([bk_s, bv_s], axis=-1)          # (S, 1, 2d)

    return dict(
        num_head=H, seq_len=S,
        # per-s (d, d) column blocks of q_in_proj.weight.T
        wqin_s=jnp.transpose(Wqin.reshape(S, d, d), (0, 2, 1)).astype(wdt),
        wqT=Wq.T.astype(wdt), bq=p['bq'].reshape(1, d).astype(jnp.float32),
        # fused K|V projection weight and per-s biases
        wkvT=jnp.concatenate([Wk.T, Wv.T], axis=1).astype(wdt),   # (d, 2d)
        bkv_s=bkv_s.astype(jnp.float32),
        # out_proj.weight columns are ordered (h, s, j); reorder once into
        # per-s (d, d) blocks with rows in (h*dh + j) order.
        wo_s=jnp.transpose(Wout.reshape(d, H, S, dh),
                           (2, 1, 3, 0)).reshape(S, d, d).astype(wdt),
        bout=p['bout'].reshape(1, d).astype(jnp.float32),
        headmask=headmask,
    )


def _pick_block_bs(bs):
    # Megacore-aware: keep >= 2 bs blocks so the "parallel" axis can shard
    # across v7x's two TensorCores; within that, take the largest tile to
    # amortize per-grid-step overhead (also best on single-TC v5e/v6e).
    for tb in (512, 256, 128, 64, 32, 16, 8):
        if bs % tb == 0 and bs // tb >= 2:
            return tb
    return bs  # tiny batch: single full block (block dims == array dims)


# ----------------------------------------------------------------------------
# Wrapper
# ----------------------------------------------------------------------------
def multihead_similarity(q, kv, pp, *, block_bs=None):
    bs, d = q.shape
    S = kv.shape[0]
    tb = block_bs or _pick_block_bs(bs)
    assert bs % tb == 0, "batch size must be divisible by the bs block"
    grid = (bs // tb,)

    compute_dtype = pp['wqT'].dtype
    kernel = make_msim_kernel(S, compute_dtype)

    res2 = lambda i: (0, 0)       # weights resident in VMEM (DMA'd once)
    res3 = lambda i: (0, 0, 0)

    in_specs = [
        pl.BlockSpec((tb, d), lambda i: (i, 0)),          # q
        pl.BlockSpec((S, tb, d), lambda i: (0, i, 0)),    # kv (all s resident)
        pl.BlockSpec((S, d, d), res3),                    # wqin_s
        pl.BlockSpec((d, d), res2),                       # Wq^T
        pl.BlockSpec((1, d), res2),                       # bq
        pl.BlockSpec((d, 2 * d), res2),                   # [Wk^T | Wv^T]
        pl.BlockSpec((S, 1, 2 * d), res3),                # fused per-s k/v bias
        pl.BlockSpec((S, d, d), res3),                    # wo_s
        pl.BlockSpec((1, d), res2),                       # bout
        pl.BlockSpec((d, d), res2),                       # headmask (scaled)
    ]
    out_specs = pl.BlockSpec((tb, d), lambda i: (i, 0))

    # TODO(synk): if production shapes grow (e.g. d=512, S=49 -> wqin_s+wo_s
    # ~100 MiB f32) the resident-over-S tiling exceeds v7x's 64 MiB VMEM;
    # re-introduce a streamed seq_len grid axis for that regime.
    return pl.pallas_call(
        kernel,
        out_shape=jax.ShapeDtypeStruct((bs, d), jnp.float32),
        grid_spec=pltpu.PrefetchScalarGridSpec(
            num_scalar_prefetch=0,
            grid=grid,
            in_specs=in_specs,
            out_specs=out_specs,
        ),
        compiler_params=pltpu.CompilerParams(
            dimension_semantics=("parallel",)),
    )(q, kv, pp['wqin_s'], pp['wqT'], pp['bq'], pp['wkvT'], pp['bkv_s'],
      pp['wo_s'], pp['bout'], pp['headmask'])


# ----------------------------------------------------------------------------
# Deterministic parameter init (same shapes as the nn.Module __init__)
# ----------------------------------------------------------------------------
def init_params(key, d_model, num_head, seq_len):
    ks = jax.random.split(key, 10)
    w = lambda k, shape, s=0.05: (s * jax.random.normal(k, shape)).astype(jnp.float32)
    return dict(
        num_head=num_head, seq_len=seq_len,
        Wqin=w(ks[0], (seq_len * d_model, d_model)),
        bqin=w(ks[1], (seq_len * d_model,), 0.02),
        Wq=w(ks[2], (d_model, d_model)), bq=w(ks[3], (d_model,), 0.02),
        Wk=w(ks[4], (d_model, d_model)), bk=w(ks[5], (d_model,), 0.02),
        Wv=w(ks[6], (d_model, d_model)), bv=w(ks[7], (d_model,), 0.02),
        Wout=w(ks[8], (d_model, seq_len * d_model)),
        bout=w(ks[9], (d_model,), 0.02),
    )


# ----------------------------------------------------------------------------
# Pure-JAX reference (mirrors the PyTorch forward exactly)
# ----------------------------------------------------------------------------
def reference_forward(q, kv, p):
    bs, d = q.shape
    S, H = p['seq_len'], p['num_head']
    dh = d // H
    q_in = (q @ p['Wqin'].T + p['bqin']).reshape(bs, S, d).transpose(1, 0, 2)
    kvn = q_in + kv                                               # (S, bs, d)
    qp = (q @ p['Wq'].T + p['bq']).reshape(bs * H, dh, 1)
    k = (kvn @ p['Wk'].T + p['bk']).reshape(S, bs * H, dh).transpose(1, 0, 2)
    sim = jnp.matmul(k, qp) * float(dh) ** -0.5                   # (bs*H, S, 1)
    v = (kvn @ p['Wv'].T + p['bv']).reshape(S, bs * H, dh).transpose(1, 0, 2)
    v = (v * sim).reshape(bs, H * S * dh)                         # (h, s, j) order
    return v @ p['Wout'].T + p['bout']


if __name__ == "__main__":
    # lane-dense config: d_model = 128 fills the 128-lane vregs,
    # seq_len = pooler_resolution**2 = 16; bs=256 -> two bs blocks (megacore).
    bs, d_model, num_head, seq_len = 256, 128, 8, 16

    key = jax.random.PRNGKey(0)
    kp, kq, kkv = jax.random.split(key, 3)
    p = init_params(kp, d_model, num_head, seq_len)

    q = jax.random.normal(kq, (bs, d_model), jnp.float32)
    kv = jax.random.normal(kkv, (seq_len, bs, d_model), jnp.float32)

    ref = reference_forward(q, kv, p)

    # f32 MXU-operand path: tight check against the f32 reference.
    pp32 = prep_params(p, compute_dtype=jnp.float32)
    out32 = multihead_similarity(q, kv, pp32)
    jax.block_until_ready(out32)
    np.testing.assert_allclose(np.asarray(out32), np.asarray(ref),
                               rtol=2e-3, atol=2e-3)

    # bf16 MXU-operand path (f32 accumulation) — the recommended production
    # setting on v6e/v7x; loose tolerance since the reference is f32.
    ppbf = prep_params(p, compute_dtype=jnp.bfloat16)
    outbf = multihead_similarity(q, kv, ppbf)
    jax.block_until_ready(outbf)
    np.testing.assert_allclose(np.asarray(outbf), np.asarray(ref),
                               rtol=5e-2, atol=5e-2)

    print("KERNEL_OK")
</pallas_src>

<mosaic_0001>
module attributes {stable_mosaic.version = 11 : i64} {
  func.func @kernel(%arg0: i32, %arg1: memref<128x128xf32, #tpu.memory_space<vmem>>, %arg2: memref<16x128x128xf32, #tpu.memory_space<vmem>>, %arg3: memref<16x128x128xf32, #tpu.memory_space<vmem>>, %arg4: memref<128x128xf32, #tpu.memory_space<vmem>>, %arg5: memref<1x128xf32, #tpu.memory_space<vmem>>, %arg6: memref<128x256xf32, #tpu.memory_space<vmem>>, %arg7: memref<16x1x256xf32, #tpu.memory_space<vmem>>, %arg8: memref<16x128x128xf32, #tpu.memory_space<vmem>>, %arg9: memref<1x128xf32, #tpu.memory_space<vmem>>, %arg10: memref<128x128xf32, #tpu.memory_space<vmem>>, %arg11: memref<128x128xf32, #tpu.memory_space<vmem>>) attributes {dimension_semantics = [#tpu.dimension_semantics<parallel>], iteration_bounds = array<i64: 2>, scalar_prefetch = 0 : i64, scratch_operands = 0 : i64, tpu.core_type = #tpu.core_type<tc>, window_params = [{transform_indices = @transform_0, window_bounds = array<i64: 128, 128>}, {transform_indices = @transform_1, window_bounds = array<i64: 16, 128, 128>}, {pipeline_mode = #tpu.pipeline_mode<synchronous>, transform_indices = @transform_2, window_bounds = array<i64: 16, 128, 128>}, {pipeline_mode = #tpu.pipeline_mode<synchronous>, transform_indices = @transform_3, window_bounds = array<i64: 128, 128>}, {pipeline_mode = #tpu.pipeline_mode<synchronous>, transform_indices = @transform_4, window_bounds = array<i64: 1, 128>}, {pipeline_mode = #tpu.pipeline_mode<synchronous>, transform_indices = @transform_5, window_bounds = array<i64: 128, 256>}, {pipeline_mode = #tpu.pipeline_mode<synchronous>, transform_indices = @transform_6, window_bounds = array<i64: 16, 1, 256>}, {pipeline_mode = #tpu.pipeline_mode<synchronous>, transform_indices = @transform_7, window_bounds = array<i64: 16, 128, 128>}, {pipeline_mode = #tpu.pipeline_mode<synchronous>, transform_indices = @transform_8, window_bounds = array<i64: 1, 128>}, {pipeline_mode = #tpu.pipeline_mode<synchronous>, transform_indices = @transform_9, window_bounds = array<i64: 128, 128>}, {transform_indices = @transform_10, window_bounds = array<i64: 128, 128>}]} {
    %c0 = arith.constant 0 : index
    %c0_0 = arith.constant 0 : index
    %0 = vector.load %arg1[%c0, %c0_0] : memref<128x128xf32, #tpu.memory_space<vmem>>, vector<128x128xf32>
    %c0_1 = arith.constant 0 : index
    %c0_2 = arith.constant 0 : index
    %1 = vector.load %arg4[%c0_1, %c0_2] : memref<128x128xf32, #tpu.memory_space<vmem>>, vector<128x128xf32>
    %cst = arith.constant dense<0.000000e+00> : vector<128x128xf32>
    %2 = tpu.matmul %0, %1, %cst {dimension_numbers = #tpu.dot_dimension_numbers<[1], [0], [0], [1], [0, 0, 1, 1], [], []>} : vector<128x128xf32>, vector<128x128xf32>, vector<128x128xf32> -> vector<128x128xf32>
    %c0_3 = arith.constant 0 : index
    %c0_4 = arith.constant 0 : index
    %3 = vector.load %arg5[%c0_3, %c0_4] : memref<1x128xf32, #tpu.memory_space<vmem>>, vector<1x128xf32>
    %4 = vector.broadcast %3 : vector<1x128xf32> to vector<128x128xf32>
    %5 = arith.addf %2, %4 : vector<128x128xf32>
    %c0_5 = arith.constant 0 : index
    %c0_6 = arith.constant 0 : index
    %6 = vector.load %arg6[%c0_5, %c0_6] : memref<128x256xf32, #tpu.memory_space<vmem>>, vector<128x256xf32>
    %c0_7 = arith.constant 0 : index
    %c0_8 = arith.constant 0 : index
    %7 = vector.load %arg10[%c0_7, %c0_8] : memref<128x128xf32, #tpu.memory_space<vmem>>, vector<128x128xf32>
    %cst_9 = arith.constant 0.000000e+00 : f32
    %8 = vector.broadcast %cst_9 : f32 to vector<128x128xf32>
    %c0_i32 = arith.constant 0 : i32
    %9 = arith.index_cast %c0_i32 : i32 to index
    %c0_10 = arith.constant 0 : index
    %c0_11 = arith.constant 0 : index
    %10 = vector.load %arg3[%9, %c0_10, %c0_11] : memref<16x128x128xf32, #tpu.memory_space<vmem>>, vector<1x128x128xf32>
    %11 = vector.shape_cast %10 : vector<1x128x128xf32> to vector<128x128xf32>
    %cst_12 = arith.constant dense<0.000000e+00> : vector<128x128xf32>
    %12 = tpu.matmul %0, %11, %cst_12 {dimension_numbers = #tpu.dot_dimension_numbers<[1], [0], [0], [1], [0, 0, 1, 1], [], []>} : vector<128x128xf32>, vector<128x128xf32>, vector<128x128xf32> -> vector<128x128xf32>
    %13 = arith.index_cast %c0_i32 : i32 to index
    %c0_13 = arith.constant 0 : index
    %c0_14 = arith.constant 0 : index
    %14 = vector.load %arg2[%13, %c0_13, %c0_14] : memref<16x128x128xf32, #tpu.memory_space<vmem>>, vector<1x128x128xf32>
    %15 = vector.shape_cast %14 : vector<1x128x128xf32> to vector<128x128xf32>
    %16 = arith.addf %12, %15 : vector<128x128xf32>
    %cst_15 = arith.constant dense<0.000000e+00> : vector<128x256xf32>
    %17 = tpu.matmul %16, %6, %cst_15 {dimension_numbers = #tpu.dot_dimension_numbers<[1], [0], [0], [1], [0, 0, 1, 1], [], []>} : vector<128x128xf32>, vector<128x256xf32>, vector<128x256xf32> -> vector<128x256xf32>
    %18 = arith.index_cast %c0_i32 : i32 to index
    %c0_16 = arith.constant 0 : index
    %c0_17 = arith.constant 0 : index
    %19 = vector.load %arg7[%18, %c0_16, %c0_17] : memref<16x1x256xf32, #tpu.memory_space<vmem>>, vector<1x1x256xf32>
    %20 = vector.shape_cast %19 : vector<1x1x256xf32> to vector<1x256xf32>
    %21 = vector.broadcast %20 : vector<1x256xf32> to vector<128x256xf32>
    %22 = arith.addf %17, %21 : vector<128x256xf32>
    %23 = vector.extract_strided_slice %22 {offsets = [0, 0], sizes = [128, 128], strides = [1, 1]} : vector<128x256xf32> to vector<128x128xf32>
    %24 = vector.extract_strided_slice %22 {offsets = [0, 128], sizes = [128, 128], strides = [1, 1]} : vector<128x256xf32> to vector<128x128xf32>
    %25 = arith.mulf %23, %5 : vector<128x128xf32>
    %cst_18 = arith.constant dense<0.000000e+00> : vector<128x128xf32>
    %26 = tpu.matmul %25, %7, %cst_18 {dimension_numbers = #tpu.dot_dimension_numbers<[1], [0], [0], [1], [0, 0, 1, 1], [], []>} : vector<128x128xf32>, vector<128x128xf32>, vector<128x128xf32> -> vector<128x128xf32>
    %27 = arith.mulf %24, %26 : vector<128x128xf32>
    %28 = arith.index_cast %c0_i32 : i32 to index
    %c0_19 = arith.constant 0 : index
    %c0_20 = arith.constant 0 : index
    %29 = vector.load %arg8[%28, %c0_19, %c0_20] : memref<16x128x128xf32, #tpu.memory_space<vmem>>, vector<1x128x128xf32>
    %30 = vector.shape_cast %29 : vector<1x128x128xf32> to vector<128x128xf32>
    %cst_21 = arith.constant dense<0.000000e+00> : vector<128x128xf32>
    %31 = tpu.matmul %27, %30, %cst_21 {dimension_numbers = #tpu.dot_dimension_numbers<[1], [0], [0], [1], [0, 0, 1, 1], [], []>} : vector<128x128xf32>, vector<128x128xf32>, vector<128x128xf32> -> vector<128x128xf32>
    %32 = arith.addf %8, %31 : vector<128x128xf32>
    %c1_i32 = arith.constant 1 : i32
    %33 = arith.index_cast %c1_i32 : i32 to index
    %c0_22 = arith.constant 0 : index
    %c0_23 = arith.constant 0 : index
    %34 = vector.load %arg3[%33, %c0_22, %c0_23] : memref<16x128x128xf32, #tpu.memory_space<vmem>>, vector<1x128x128xf32>
    %35 = vector.shape_cast %34 : vector<1x128x128xf32> to vector<128x128xf32>
    %cst_24 = arith.constant dense<0.000000e+00> : vector<128x128xf32>
    %36 = tpu.matmul %0, %35, %cst_24 {dimension_numbers = #tpu.dot_dimension_numbers<[1], [0], [0], [1], [0, 0, 1, 1], [], []>} : vector<128x128xf32>, vector<128x128xf32>, vector<128x128xf32> -> vector<128x128xf32>
    %37 = arith.index_cast %c1_i32 : i32 to index
    %c0_25 = arith.constant 0 : index
    %c0_26 = arith.constant 0 : index
    %38 = vector.load %arg2[%37, %c0_25, %c0_26] : memref<16x128x128xf32, #tpu.memory_space<vmem>>, vector<1x128x128xf32>
    %39 = vector.shape_cast %38 : vector<1x128x128xf32> to vector<128x128xf32>
    %40 = arith.addf %36, %39 : vector<128x128xf32>
    %cst_27 = arith.constant dense<0.000000e+00> : vector<128x256xf32>
    %41 = tpu.matmul %40, %6, %cst_27 {dimension_numbers = #tpu.dot_dimension_numbers<[1], [0], [0], [1], [0, 0, 1, 1], [], []>} : vector<128x128xf32>, vector<128x256xf32>, vector<128x256xf32> -> vector<128x256xf32>
    %42 = arith.index_cast %c1_i32 : i32 to index
    %c0_28 = arith.constant 0 : index
    %c0_29 = arith.constant 0 : index
    %43 = vector.load %arg7[%42, %c0_28, %c0_29] : memref<16x1x256xf32, #tpu.memory_space<vmem>>, vector<1x1x256xf32>
    %44 = vector.shape_cast %43 : vector<1x1x256xf32> to vector<1x256xf32>
    %45 = vector.broadcast %44 : vector<1x256xf32> to vector<128x256xf32>
    %46 = arith.addf %41, %45 : vector<128x256xf32>
    %47 = vector.extract_strided_slice %46 {offsets = [0, 0], sizes = [128, 128], strides = [1, 1]} : vector<128x256xf32> to vector<128x128xf32>
    %48 = vector.extract_strided_slice %46 {offsets = [0, 128], sizes = [128, 128], strides = [1, 1]} : vector<128x256xf32> to vector<128x128xf32>
    %49 = arith.mulf %47, %5 : vector<128x128xf32>
    %cst_30 = arith.constant dense<0.000000e+00> : vector<128x128xf32>
    %50 = tpu.matmul %49, %7, %cst_30 {dimension_numbers = #tpu.dot_dimension_numbers<[1], [0], [0], [1], [0, 0, 1, 1], [], []>} : vector<128x128xf32>, vector<128x128xf32>, vector<128x128xf32> -> vector<128x128xf32>
    %51 = arith.mulf %48, %50 : vector<128x128xf32>
    %52 = arith.index_cast %c1_i32 : i32 to index
    %c0_31 = arith.constant 0 : index
    %c0_32 = arith.constant 0 : index
    %53 = vector.load %arg8[%52, %c0_31, %c0_32] : memref<16x128x128xf32, #tpu.memory_space<vmem>>, vector<1x128x128xf32>
    %54 = vector.shape_cast %53 : vector<1x128x128xf32> to vector<128x128xf32>
    %cst_33 = arith.constant dense<0.000000e+00> : vector<128x128xf32>
    %55 = tpu.matmul %51, %54, %cst_33 {dimension_numbers = #tpu.dot_dimension_numbers<[1], [0], [0], [1], [0, 0, 1, 1], [], []>} : vector<128x128xf32>, vector<128x128xf32>, vector<128x128xf32> -> vector<128x128xf32>
    %56 = arith.addf %32, %55 : vector<128x128xf32>
    %c2_i32 = arith.constant 2 : i32
    %57 = arith.index_cast %c2_i32 : i32 to index
    %c0_34 = arith.constant 0 : index
    %c0_35 = arith.constant 0 : index
    %58 = vector.load %arg3[%57, %c0_34, %c0_35] : memref<16x128x128xf32, #tpu.memory_space<vmem>>, vector<1x128x128xf32>
    %59 = vector.shape_cast %58 : vector<1x128x128xf32> to vector<128x128xf32>
    %cst_36 = arith.constant dense<0.000000e+00> : vector<128x128xf32>
    %60 = tpu.matmul %0, %59, %cst_36 {dimension_numbers = #tpu.dot_dimension_numbers<[1], [0], [0], [1], [0, 0, 1, 1], [], []>} : vector<128x128xf32>, vector<128x128xf32>, vector<128x128xf32> -> vector<128x128xf32>
    %61 = arith.index_cast %c2_i32 : i32 to index
    %c0_37 = arith.constant 0 : index
    %c0_38 = arith.constant 0 : index
    %62 = vector.load %arg2[%61, %c0_37, %c0_38] : memref<16x128x128xf32, #tpu.memory_space<vmem>>, vector<1x128x128xf32>
    %63 = vector.shape_cast %62 : vector<1x128x128xf32> to vector<128x128xf32>
    %64 = arith.addf %60, %63 : vector<128x128xf32>
    %cst_39 = arith.constant dense<0.000000e+00> : vector<128x256xf32>
    %65 = tpu.matmul %64, %6, %cst_39 {dimension_numbers = #tpu.dot_dimension_numbers<[1], [0], [0], [1], [0, 0, 1, 1], [], []>} : vector<128x128xf32>, vector<128x256xf32>, vector<128x256xf32> -> vector<128x256xf32>
    %66 = arith.index_cast %c2_i32 : i32 to index
    %c0_40 = arith.constant 0 : index
    %c0_41 = arith.constant 0 : index
    %67 = vector.load %arg7[%66, %c0_40, %c0_41] : memref<16x1x256xf32, #tpu.memory_space<vmem>>, vector<1x1x256xf32>
    %68 = vector.shape_cast %67 : vector<1x1x256xf32> to vector<1x256xf32>
    %69 = vector.broadcast %68 : vector<1x256xf32> to vector<128x256xf32>
    %70 = arith.addf %65, %69 : vector<128x256xf32>
    %71 = vector.extract_strided_slice %70 {offsets = [0, 0], sizes = [128, 128], strides = [1, 1]} : vector<128x256xf32> to vector<128x128xf32>
    %72 = vector.extract_strided_slice %70 {offsets = [0, 128], sizes = [128, 128], strides = [1, 1]} : vector<128x256xf32> to vector<128x128xf32>
    %73 = arith.mulf %71, %5 : vector<128x128xf32>
    %cst_42 = arith.constant dense<0.000000e+00> : vector<128x128xf32>
    %74 = tpu.matmul %73, %7, %cst_42 {dimension_numbers = #tpu.dot_dimension_numbers<[1], [0], [0], [1], [0, 0, 1, 1], [], []>} : vector<128x128xf32>, vector<128x128xf32>, vector<128x128xf32> -> vector<128x128xf32>
    %75 = arith.mulf %72, %74 : vector<128x128xf32>
    %76 = arith.index_cast %c2_i32 : i32 to index
    %c0_43 = arith.constant 0 : index
    %c0_44 = arith.constant 0 : index
    %77 = vector.load %arg8[%76, %c0_43, %c0_44] : memref<16x128x128xf32, #tpu.memory_space<vmem>>, vector<1x128x128xf32>
    %78 = vector.shape_cast %77 : vector<1x128x128xf32> to vector<128x128xf32>
    %cst_45 = arith.constant dense<0.000000e+00> : vector<128x128xf32>
    %79 = tpu.matmul %75, %78, %cst_45 {dimension_numbers = #tpu.dot_dimension_numbers<[1], [0], [0], [1], [0, 0, 1, 1], [], []>} : vector<128x128xf32>, vector<128x128xf32>, vector<128x128xf32> -> vector<128x128xf32>
    %80 = arith.addf %56, %79 : vector<128x128xf32>
    %c3_i32 = arith.constant 3 : i32
    %81 = arith.index_cast %c3_i32 : i32 to index
    %c0_46 = arith.constant 0 : index
    %c0_47 = arith.constant 0 : index
    %82 = vector.load %arg3[%81, %c0_46, %c0_47] : memref<16x128x128xf32, #tpu.memory_space<vmem>>, vector<1x128x128xf32>
    %83 = vector.shape_cast %82 : vector<1x128x128xf32> to vector<128x128xf32>
    %cst_48 = arith.constant dense<0.000000e+00> : vector<128x128xf32>
    %84 = tpu.matmul %0, %83, %cst_48 {dimension_numbers = #tpu.dot_dimension_numbers<[1], [0], [0], [1], [0, 0, 1, 1], [], []>} : vector<128x128xf32>, vector<128x128xf32>, vector<128x128xf32> -> vector<128x128xf32>
    %85 = arith.index_cast %c3_i32 : i32 to index
    %c0_49 = arith.constant 0 : index
    %c0_50 = arith.constant 0 : index
    %86 = vector.load %arg2[%85, %c0_49, %c0_50] : memref<16x128x128xf32, #tpu.memory_space<vmem>>, vector<1x128x128xf32>
    %87 = vector.shape_cast %86 : vector<1x128x128xf32> to vector<128x128xf32>
    %88 = arith.addf %84, %87 : vector<128x128xf32>
    %cst_51 = arith.constant dense<0.000000e+00> : vector<128x256xf32>
    %89 = tpu.matmul %88, %6, %cst_51 {dimension_numbers = #tpu.dot_dimension_numbers<[1], [0], [0], [1], [0, 0, 1, 1], [], []>} : vector<128x128xf32>, vector<128x256xf32>, vector<128x256xf32> -> vector<128x256xf32>
    %90 = arith.index_cast %c3_i32 : i32 to index
    %c0_52 = arith.constant 0 : index
    %c0_53 = arith.constant 0 : index
    %91 = vector.load %arg7[%90, %c0_52, %c0_53] : memref<16x1x256xf32, #tpu.memory_space<vmem>>, vector<1x1x256xf32>
    %92 = vector.shape_cast %91 : vector<1x1x256xf32> to vector<1x256xf32>
    %93 = vector.broadcast %92 : vector<1x256xf32> to vector<128x256xf32>
    %94 = arith.addf %89, %93 : vector<128x256xf32>
    %95 = vector.extract_strided_slice %94 {offsets = [0, 0], sizes = [128, 128], strides = [1, 1]} : vector<128x256xf32> to vector<128x128xf32>
    %96 = vector.extract_strided_slice %94 {offsets = [0, 128], sizes = [128, 128], strides = [1, 1]} : vector<128x256xf32> to vector<128x128xf32>
    %97 = arith.mulf %95, %5 : vector<128x128xf32>
    %cst_54 = arith.constant dense<0.000000e+00> : vector<128x128xf32>
    %98 = tpu.matmul %97, %7, %cst_54 {dimension_numbers = #tpu.dot_dimension_numbers<[1], [0], [0], [1], [0, 0, 1, 1], [], []>} : vector<128x128xf32>, vector<128x128xf32>, vector<128x128xf32> -> vector<128x128xf32>
    %99 = arith.mulf %96, %98 : vector<128x128xf32>
    %100 = arith.index_cast %c3_i32 : i32 to index
    %c0_55 = arith.constant 0 : index
    %c0_56 = arith.constant 0 : index
    %101 = vector.load %arg8[%100, %c0_55, %c0_56] : memref<16x128x128xf32, #tpu.memory_space<vmem>>, vector<1x128x128xf32>
    %102 = vector.shape_cast %101 : vector<1x128x128xf32> to vector<128x128xf32>
    %cst_57 = arith.constant dense<0.000000e+00> : vector<128x128xf32>
    %103 = tpu.matmul %99, %102, %cst_57 {dimension_numbers = #tpu.dot_dimension_numbers<[1], [0], [0], [1], [0, 0, 1, 1], [], []>} : vector<128x128xf32>, vector<128x128xf32>, vector<128x128xf32> -> vector<128x128xf32>
    %104 = arith.addf %80, %103 : vector<128x128xf32>
    %c4_i32 = arith.constant 4 : i32
    %105 = arith.index_cast %c4_i32 : i32 to index
    %c0_58 = arith.constant 0 : index
    %c0_59 = arith.constant 0 : index
    %106 = vector.load %arg3[%105, %c0_58, %c0_59] : memref<16x128x128xf32, #tpu.memory_space<vmem>>, vector<1x128x128xf32>
    %107 = vector.shape_cast %106 : vector<1x128x128xf32> to vector<128x128xf32>
    %cst_60 = arith.constant dense<0.000000e+00> : vector<128x128xf32>
    %108 = tpu.matmul %0, %107, %cst_60 {dimension_numbers = #tpu.dot_dimension_numbers<[1], [0], [0], [1], [0, 0, 1, 1], [], []>} : vector<128x128xf32>, vector<128x128xf32>, vector<128x128xf32> -> vector<128x128xf32>
    %109 = arith.index_cast %c4_i32 : i32 to index
    %c0_61 = arith.constant 0 : index
    %c0_62 = arith.constant 0 : index
    %110 = vector.load %arg2[%109, %c0_61, %c0_62] : memref<16x128x128xf32, #tpu.memory_space<vmem>>, vector<1x128x128xf32>
    %111 = vector.shape_cast %110 : vector<1x128x128xf32> to vector<128x128xf32>
    %112 = arith.addf %108, %111 : vector<128x128xf32>
    %cst_63 = arith.constant dense<0.000000e+00> : vector<128x256xf32>
    %113 = tpu.matmul %112, %6, %cst_63 {dimension_numbers = #tpu.dot_dimension_numbers<[1], [0], [0], [1], [0, 0, 1, 1], [], []>} : vector<128x128xf32>, vector<128x256xf32>, vector<128x256xf32> -> vector<128x256xf32>
    %114 = arith.index_cast %c4_i32 : i32 to index
    %c0_64 = arith.constant 0 : index
    %c0_65 = arith.constant 0 : index
    %115 = vector.load %arg7[%114, %c0_64, %c0_65] : memref<16x1x256xf32, #tpu.memory_space<vmem>>, vector<1x1x256xf32>
    %116 = vector.shape_cast %115 : vector<1x1x256xf32> to vector<1x256xf32>
    %117 = vector.broadcast %116 : vector<1x256xf32> to vector<128x256xf32>
    %118 = arith.addf %113, %117 : vector<128x256xf32>
    %119 = vector.extract_strided_slice %118 {offsets = [0, 0], sizes = [128, 128], strides = [1, 1]} : vector<128x256xf32> to vector<128x128xf32>
    %120 = vector.extract_strided_slice %118 {offsets = [0, 128], sizes = [128, 128], strides = [1, 1]} : vector<128x256xf32> to vector<128x128xf32>
    %121 = arith.mulf %119, %5 : vector<128x128xf32>
    %cst_66 = arith.constant dense<0.000000e+00> : vector<128x128xf32>
    %122 = tpu.matmul %121, %7, %cst_66 {dimension_numbers = #tpu.dot_dimension_numbers<[1], [0], [0], [1], [0, 0, 1, 1], [], []>} : vector<128x128xf32>, vector<128x128xf32>, vector<128x128xf32> -> vector<128x128xf32>
    %123 = arith.mulf %120, %122 : vector<128x128xf32>
    %124 = arith.index_cast %c4_i32 : i32 to index
    %c0_67 = arith.constant 0 : index
    %c0_68 = arith.constant 0 : index
    %125 = vector.load %arg8[%124, %c0_67, %c0_68] : memref<16x128x128xf32, #tpu.memory_space<vmem>>, vector<1x128x128xf32>
    %126 = vector.shape_cast %125 : vector<1x128x128xf32> to vector<128x128xf32>
    %cst_69 = arith.constant dense<0.000000e+00> : vector<128x128xf32>
    %127 = tpu.matmul %123, %126, %cst_69 {dimension_numbers = #tpu.dot_dimension_numbers<[1], [0], [0], [1], [0, 0, 1, 1], [], []>} : vector<128x128xf32>, vector<128x128xf32>, vector<128x128xf32> -> vector<128x128xf32>
    %128 = arith.addf %104, %127 : vector<128x128xf32>
    %c5_i32 = arith.constant 5 : i32
    %129 = arith.index_cast %c5_i32 : i32 to index
    %c0_70 = arith.constant 0 : index
    %c0_71 = arith.constant 0 : index
    %130 = vector.load %arg3[%129, %c0_70, %c0_71] : memref<16x128x128xf32, #tpu.memory_space<vmem>>, vector<1x128x128xf32>
    %131 = vector.shape_cast %130 : vector<1x128x128xf32> to vector<128x128xf32>
    %cst_72 = arith.constant dense<0.000000e+00> : vector<128x128xf32>
    %132 = tpu.matmul %0, %131, %cst_72 {dimension_numbers = #tpu.dot_dimension_numbers<[1], [0], [0], [1], [0, 0, 1, 1], [], []>} : vector<128x128xf32>, vector<128x128xf32>, vector<128x128xf32> -> vector<128x128xf32>
    %133 = arith.index_cast %c5_i32 : i32 to index
    %c0_73 = arith.constant 0 : index
    %c0_74 = arith.constant 0 : index
    %134 = vector.load %arg2[%133, %c0_73, %c0_74] : memref<16x128x128xf32, #tpu.memory_space<vmem>>, vector<1x128x128xf32>
    %135 = vector.shape_cast %134 : vector<1x128x128xf32> to vector<128x128xf32>
    %136 = arith.addf %132, %135 : vector<128x128xf32>
    %cst_75 = arith.constant dense<0.000000e+00> : vector<128x256xf32>
    %137 = tpu.matmul %136, %6, %cst_75 {dimension_numbers = #tpu.dot_dimension_numbers<[1], [0], [0], [1], [0, 0, 1, 1], [], []>} : vector<128x128xf32>, vector<128x256xf32>, vector<128x256xf32> -> vector<128x256xf32>
    %138 = arith.index_cast %c5_i32 : i32 to index
    %c0_76 = arith.constant 0 : index
    %c0_77 = arith.constant 0 : index
    %139 = vector.load %arg7[%138, %c0_76, %c0_77] : memref<16x1x256xf32, #tpu.memory_space<vmem>>, vector<1x1x256xf32>
    %140 = vector.shape_cast %139 : vector<1x1x256xf32> to vector<1x256xf32>
    %141 = vector.broadcast %140 : vector<1x256xf32> to vector<128x256xf32>
    %142 = arith.addf %137, %141 : vector<128x256xf32>
    %143 = vector.extract_strided_slice %142 {offsets = [0, 0], sizes = [128, 128], strides = [1, 1]} : vector<128x256xf32> to vector<128x128xf32>
    %144 = vector.extract_strided_slice %142 {offsets = [0, 128], sizes = [128, 128], strides = [1, 1]} : vector<128x256xf32> to vector<128x128xf32>
    %145 = arith.mulf %143, %5 : vector<128x128xf32>
    %cst_78 = arith.constant dense<0.000000e+00> : vector<128x128xf32>
    %146 = tpu.matmul %145, %7, %cst_78 {dimension_numbers = #tpu.dot_dimension_numbers<[1], [0], [0], [1], [0, 0, 1, 1], [], []>} : vector<128x128xf32>, vector<128x128xf32>, vector<128x128xf32> -> vector<128x128xf32>
    %147 = arith.mulf %144, %146 : vector<128x128xf32>
    %148 = arith.index_cast %c5_i32 : i32 to index
    %c0_79 = arith.constant 0 : index
    %c0_80 = arith.constant 0 : index
    %149 = vector.load %arg8[%148, %c0_79, %c0_80] : memref<16x128x128xf32, #tpu.memory_space<vmem>>, vector<1x128x128xf32>
    %150 = vector.shape_cast %149 : vector<1x128x128xf32> to vector<128x128xf32>
    %cst_81 = arith.constant dense<0.000000e+00> : vector<128x128xf32>
    %151 = tpu.matmul %147, %150, %cst_81 {dimension_numbers = #tpu.dot_dimension_numbers<[1], [0], [0], [1], [0, 0, 1, 1], [], []>} : vector<128x128xf32>, vector<128x128xf32>, vector<128x128xf32> -> vector<128x128xf32>
    %152 = arith.addf %128, %151 : vector<128x128xf32>
    %c6_i32 = arith.constant 6 : i32
    %153 = arith.index_cast %c6_i32 : i32 to index
    %c0_82 = arith.constant 0 : index
    %c0_83 = arith.constant 0 : index
    %154 = vector.load %arg3[%153, %c0_82, %c0_83] : memref<16x128x128xf32, #tpu.memory_space<vmem>>, vector<1x128x128xf32>
    %155 = vector.shape_cast %154 : vector<1x128x128xf32> to vector<128x128xf32>
    %cst_84 = arith.constant dense<0.000000e+00> : vector<128x128xf32>
    %156 = tpu.matmul %0, %155, %cst_84 {dimension_numbers = #tpu.dot_dimension_numbers<[1], [0], [0], [1], [0, 0, 1, 1], [], []>} : vector<128x128xf32>, vector<128x128xf32>, vector<128x128xf32> -> vector<128x128xf32>
    %157 = arith.index_cast %c6_i32 : i32 to index
    %c0_85 = arith.constant 0 : index
    %c0_86 = arith.constant 0 : index
    %158 = vector.load %arg2[%157, %c0_85, %c0_86] : memref<16x128x128xf32, #tpu.memory_space<vmem>>, vector<1x128x128xf32>
    %159 = vector.shape_cast %158 : vector<1x128x128xf32> to vector<128x128xf32>
    %160 = arith.addf %156, %159 : vector<128x128xf32>
    %cst_87 = arith.constant dense<0.000000e+00> : vector<128x256xf32>
    %161 = tpu.matmul %160, %6, %cst_87 {dimension_numbers = #tpu.dot_dimension_numbers<[1], [0], [0], [1], [0, 0, 1, 1], [], []>} : vector<128x128xf32>, vector<128x256xf32>, vector<128x256xf32> -> vector<128x256xf32>
    %162 = arith.index_cast %c6_i32 : i32 to index
    %c0_88 = arith.constant 0 : index
    %c0_89 = arith.constant 0 : index
    %163 = vector.load %arg7[%162, %c0_88, %c0_89] : memref<16x1x256xf32, #tpu.memory_space<vmem>>, vector<1x1x256xf32>
    %164 = vector.shape_cast %163 : vector<1x1x256xf32> to vector<1x256xf32>
    %165 = vector.broadcast %164 : vector<1x256xf32> to vector<128x256xf32>
    %166 = arith.addf %161, %165 : vector<128x256xf32>
    %167 = vector.extract_strided_slice %166 {offsets = [0, 0], sizes = [128, 128], strides = [1, 1]} : vector<128x256xf32> to vector<128x128xf32>
    %168 = vector.extract_strided_slice %166 {offsets = [0, 128], sizes = [128, 128], strides = [1, 1]} : vector<128x256xf32> to vector<128x128xf32>
    %169 = arith.mulf %167, %5 : vector<128x128xf32>
    %cst_90 = arith.constant dense<0.000000e+00> : vector<128x128xf32>
    %170 = tpu.matmul %169, %7, %cst_90 {dimension_numbers = #tpu.dot_dimension_numbers<[1], [0], [0], [1], [0, 0, 1, 1], [], []>} : vector<128x128xf32>, vector<128x128xf32>, vector<128x128xf32> -> vector<128x128xf32>
    %171 = arith.mulf %168, %170 : vector<128x128xf32>
    %172 = arith.index_cast %c6_i32 : i32 to index
    %c0_91 = arith.constant 0 : index
    %c0_92 = arith.constant 0 : index
    %173 = vector.load %arg8[%172, %c0_91, %c0_92] : memref<16x128x128xf32, #tpu.memory_space<vmem>>, vector<1x128x128xf32>
    %174 = vector.shape_cast %173 : vector<1x128x128xf32> to vector<128x128xf32>
    %cst_93 = arith.constant dense<0.000000e+00> : vector<128x128xf32>
    %175 = tpu.matmul %171, %174, %cst_93 {dimension_numbers = #tpu.dot_dimension_numbers<[1], [0], [0], [1], [0, 0, 1, 1], [], []>} : vector<128x128xf32>, vector<128x128xf32>, vector<128x128xf32> -> vector<128x128xf32>
    %176 = arith.addf %152, %175 : vector<128x128xf32>
    %c7_i32 = arith.constant 7 : i32
    %177 = arith.index_cast %c7_i32 : i32 to index
    %c0_94 = arith.constant 0 : index
    %c0_95 = arith.constant 0 : index
    %178 = vector.load %arg3[%177, %c0_94, %c0_95] : memref<16x128x128xf32, #tpu.memory_space<vmem>>, vector<1x128x128xf32>
    %179 = vector.shape_cast %178 : vector<1x128x128xf32> to vector<128x128xf32>
    %cst_96 = arith.constant dense<0.000000e+00> : vector<128x128xf32>
    %180 = tpu.matmul %0, %179, %cst_96 {dimension_numbers = #tpu.dot_dimension_numbers<[1], [0], [0], [1], [0, 0, 1, 1], [], []>} : vector<128x128xf32>, vector<128x128xf32>, vector<128x128xf32> -> vector<128x128xf32>
    %181 = arith.index_cast %c7_i32 : i32 to index
    %c0_97 = arith.constant 0 : index
    %c0_98 = arith.constant 0 : index
    %182 = vector.load %arg2[%181, %c0_97, %c0_98] : memref<16x128x128xf32, #tpu.memory_space<vmem>>, vector<1x128x128xf32>
    %183 = vector.shape_cast %182 : vector<1x128x128xf32> to vector<128x128xf32>
    %184 = arith.addf %180, %183 : vector<128x128xf32>
    %cst_99 = arith.constant dense<0.000000e+00> : vector<128x256xf32>
    %185 = tpu.matmul %184, %6, %cst_99 {dimension_numbers = #tpu.dot_dimension_numbers<[1], [0], [0], [1], [0, 0, 1, 1], [], []>} : vector<128x128xf32>, vector<128x256xf32>, vector<128x256xf32> -> vector<128x256xf32>
    %186 = arith.index_cast %c7_i32 : i32 to index
    %c0_100 = arith.constant 0 : index
    %c0_101 = arith.constant 0 : index
    %187 = vector.load %arg7[%186, %c0_100, %c0_101] : memref<16x1x256xf32, #tpu.memory_space<vmem>>, vector<1x1x256xf32>
    %188 = vector.shape_cast %187 : vector<1x1x256xf32> to vector<1x256xf32>
    %189 = vector.broadcast %188 : vector<1x256xf32> to vector<128x256xf32>
    %190 = arith.addf %185, %189 : vector<128x256xf32>
    %191 = vector.extract_strided_slice %190 {offsets = [0, 0], sizes = [128, 128], strides = [1, 1]} : vector<128x256xf32> to vector<128x128xf32>
    %192 = vector.extract_strided_slice %190 {offsets = [0, 128], sizes = [128, 128], strides = [1, 1]} : vector<128x256xf32> to vector<128x128xf32>
    %193 = arith.mulf %191, %5 : vector<128x128xf32>
    %cst_102 = arith.constant dense<0.000000e+00> : vector<128x128xf32>
    %194 = tpu.matmul %193, %7, %cst_102 {dimension_numbers = #tpu.dot_dimension_numbers<[1], [0], [0], [1], [0, 0, 1, 1], [], []>} : vector<128x128xf32>, vector<128x128xf32>, vector<128x128xf32> -> vector<128x128xf32>
    %195 = arith.mulf %192, %194 : vector<128x128xf32>
    %196 = arith.index_cast %c7_i32 : i32 to index
    %c0_103 = arith.constant 0 : index
    %c0_104 = arith.constant 0 : index
    %197 = vector.load %arg8[%196, %c0_103, %c0_104] : memref<16x128x128xf32, #tpu.memory_space<vmem>>, vector<1x128x128xf32>
    %198 = vector.shape_cast %197 : vector<1x128x128xf32> to vector<128x128xf32>
    %cst_105 = arith.constant dense<0.000000e+00> : vector<128x128xf32>
    %199 = tpu.matmul %195, %198, %cst_105 {dimension_numbers = #tpu.dot_dimension_numbers<[1], [0], [0], [1], [0, 0, 1, 1], [], []>} : vector<128x128xf32>, vector<128x128xf32>, vector<128x128xf32> -> vector<128x128xf32>
    %200 = arith.addf %176, %199 : vector<128x128xf32>
    %c8_i32 = arith.constant 8 : i32
    %201 = arith.index_cast %c8_i32 : i32 to index
    %c0_106 = arith.constant 0 : index
    %c0_107 = arith.constant 0 : index
    %202 = vector.load %arg3[%201, %c0_106, %c0_107] : memref<16x128x128xf32, #tpu.memory_space<vmem>>, vector<1x128x128xf32>
    %203 = vector.shape_cast %202 : vector<1x128x128xf32> to vector<128x128xf32>
    %cst_108 = arith.constant dense<0.000000e+00> : vector<128x128xf32>
    %204 = tpu.matmul %0, %203, %cst_108 {dimension_numbers = #tpu.dot_dimension_numbers<[1], [0], [0], [1], [0, 0, 1, 1], [], []>} : vector<128x128xf32>, vector<128x128xf32>, vector<128x128xf32> -> vector<128x128xf32>
    %205 = arith.index_cast %c8_i32 : i32 to index
    %c0_109 = arith.constant 0 : index
    %c0_110 = arith.constant 0 : index
    %206 = vector.load %arg2[%205, %c0_109, %c0_110] : memref<16x128x128xf32, #tpu.memory_space<vmem>>, vector<1x128x128xf32>
    %207 = vector.shape_cast %206 : vector<1x128x128xf32> to vector<128x128xf32>
    %208 = arith.addf %204, %207 : vector<128x128xf32>
    %cst_111 = arith.constant dense<0.000000e+00> : vector<128x256xf32>
    %209 = tpu.matmul %208, %6, %cst_111 {dimension_numbers = #tpu.dot_dimension_numbers<[1], [0], [0], [1], [0, 0, 1, 1], [], []>} : vector<128x128xf32>, vector<128x256xf32>, vector<128x256xf32> -> vector<128x256xf32>
    %210 = arith.index_cast %c8_i32 : i32 to index
    %c0_112 = arith.constant 0 : index
    %c0_113 = arith.constant 0 : index
    %211 = vector.load %arg7[%210, %c0_112, %c0_113] : memref<16x1x256xf32, #tpu.memory_space<vmem>>, vector<1x1x256xf32>
    %212 = vector.shape_cast %211 : vector<1x1x256xf32> to vector<1x256xf32>
    %213 = vector.broadcast %212 : vector<1x256xf32> to vector<128x256xf32>
    %214 = arith.addf %209, %213 : vector<128x256xf32>
    %215 = vector.extract_strided_slice %214 {offsets = [0, 0], sizes = [128, 128], strides = [1, 1]} : vector<128x256xf32> to vector<128x128xf32>
    %216 = vector.extract_strided_slice %214 {offsets = [0, 128], sizes = [128, 128], strides = [1, 1]} : vector<128x256xf32> to vector<128x128xf32>
    %217 = arith.mulf %215, %5 : vector<128x128xf32>
    %cst_114 = arith.constant dense<0.000000e+00> : vector<128x128xf32>
    %218 = tpu.matmul %217, %7, %cst_114 {dimension_numbers = #tpu.dot_dimension_numbers<[1], [0], [0], [1], [0, 0, 1, 1], [], []>} : vector<128x128xf32>, vector<128x128xf32>, vector<128x128xf32> -> vector<128x128xf32>
    %219 = arith.mulf %216, %218 : vector<128x128xf32>
    %220 = arith.index_cast %c8_i32 : i32 to index
    %c0_115 = arith.constant 0 : index
    %c0_116 = arith.constant 0 : index
    %221 = vector.load %arg8[%220, %c0_115, %c0_116] : memref<16x128x128xf32, #tpu.memory_space<vmem>>, vector<1x128x128xf32>
    %222 = vector.shape_cast %221 : vector<1x128x128xf32> to vector<128x128xf32>
    %cst_117 = arith.constant dense<0.000000e+00> : vector<128x128xf32>
    %223 = tpu.matmul %219, %222, %cst_117 {dimension_numbers = #tpu.dot_dimension_numbers<[1], [0], [0], [1], [0, 0, 1, 1], [], []>} : vector<128x128xf32>, vector<128x128xf32>, vector<128x128xf32> -> vector<128x128xf32>
    %224 = arith.addf %200, %223 : vector<128x128xf32>
    %c9_i32 = arith.constant 9 : i32
    %225 = arith.index_cast %c9_i32 : i32 to index
    %c0_118 = arith.constant 0 : index
    %c0_119 = arith.constant 0 : index
    %226 = vector.load %arg3[%225, %c0_118, %c0_119] : memref<16x128x128xf32, #tpu.memory_space<vmem>>, vector<1x128x128xf32>
    %227 = vector.shape_cast %226 : vector<1x128x128xf32> to vector<128x128xf32>
    %cst_120 = arith.constant dense<0.000000e+00> : vector<128x128xf32>
    %228 = tpu.matmul %0, %227, %cst_120 {dimension_numbers = #tpu.dot_dimension_numbers<[1], [0], [0], [1], [0, 0, 1, 1], [], []>} : vector<128x128xf32>, vector<128x128xf32>, vector<128x128xf32> -> vector<128x128xf32>
    %229 = arith.index_cast %c9_i32 : i32 to index
    %c0_121 = arith.constant 0 : index
    %c0_122 = arith.constant 0 : index
    %230 = vector.load %arg2[%229, %c0_121, %c0_122] : memref<16x128x128xf32, #tpu.memory_space<vmem>>, vector<1x128x128xf32>
    %231 = vector.shape_cast %230 : vector<1x128x128xf32> to vector<128x128xf32>
    %232 = arith.addf %228, %231 : vector<128x128xf32>
    %cst_123 = arith.constant dense<0.000000e+00> : vector<128x256xf32>
    %233 = tpu.matmul %232, %6, %cst_123 {dimension_numbers = #tpu.dot_dimension_numbers<[1], [0], [0], [1], [0, 0, 1, 1], [], []>} : vector<128x128xf32>, vector<128x256xf32>, vector<128x256xf32> -> vector<128x256xf32>
    %234 = arith.index_cast %c9_i32 : i32 to index
    %c0_124 = arith.constant 0 : index
    %c0_125 = arith.constant 0 : index
    %235 = vector.load %arg7[%234, %c0_124, %c0_125] : memref<16x1x256xf32, #tpu.memory_space<vmem>>, vector<1x1x256xf32>
    %236 = vector.shape_cast %235 : vector<1x1x256xf32> to vector<1x256xf32>
    %237 = vector.broadcast %236 : vector<1x256xf32> to vector<128x256xf32>
    %238 = arith.addf %233, %237 : vector<128x256xf32>
    %239 = vector.extract_strided_slice %238 {offsets = [0, 0], sizes = [128, 128], strides = [1, 1]} : vector<128x256xf32> to vector<128x128xf32>
    %240 = vector.extract_strided_slice %238 {offsets = [0, 128], sizes = [128, 128], strides = [1, 1]} : vector<128x256xf32> to vector<128x128xf32>
    %241 = arith.mulf %239, %5 : vector<128x128xf32>
    %cst_126 = arith.constant dense<0.000000e+00> : vector<128x128xf32>
    %242 = tpu.matmul %241, %7, %cst_126 {dimension_numbers = #tpu.dot_dimension_numbers<[1], [0], [0], [1], [0, 0, 1, 1], [], []>} : vector<128x128xf32>, vector<128x128xf32>, vector<128x128xf32> -> vector<128x128xf32>
    %243 = arith.mulf %240, %242 : vector<128x128xf32>
    %244 = arith.index_cast %c9_i32 : i32 to index
    %c0_127 = arith.constant 0 : index
    %c0_128 = arith.constant 0 : index
    %245 = vector.load %arg8[%244, %c0_127, %c0_128] : memref<16x128x128xf32, #tpu.memory_space<vmem>>, vector<1x128x128xf32>
    %246 = vector.shape_cast %245 : vector<1x128x128xf32> to vector<128x128xf32>
    %cst_129 = arith.constant dense<0.000000e+00> : vector<128x128xf32>
    %247 = tpu.matmul %243, %246, %cst_129 {dimension_numbers = #tpu.dot_dimension_numbers<[1], [0], [0], [1], [0, 0, 1, 1], [], []>} : vector<128x128xf32>, vector<128x128xf32>, vector<128x128xf32> -> vector<128x128xf32>
    %248 = arith.addf %224, %247 : vector<128x128xf32>
    %c10_i32 = arith.constant 10 : i32
    %249 = arith.index_cast %c10_i32 : i32 to index
    %c0_130 = arith.constant 0 : index
    %c0_131 = arith.constant 0 : index
    %250 = vector.load %arg3[%249, %c0_130, %c0_131] : memref<16x128x128xf32, #tpu.memory_space<vmem>>, vector<1x128x128xf32>
    %251 = vector.shape_cast %250 : vector<1x128x128xf32> to vector<128x128xf32>
    %cst_132 = arith.constant dense<0.000000e+00> : vector<128x128xf32>
    %252 = tpu.matmul %0, %251, %cst_132 {dimension_numbers = #tpu.dot_dimension_numbers<[1], [0], [0], [1], [0, 0, 1, 1], [], []>} : vector<128x128xf32>, vector<128x128xf32>, vector<128x128xf32> -> vector<128x128xf32>
    %253 = arith.index_cast %c10_i32 : i32 to index
    %c0_133 = arith.constant 0 : index
    %c0_134 = arith.constant 0 : index
    %254 = vector.load %arg2[%253, %c0_133, %c0_134] : memref<16x128x128xf32, #tpu.memory_space<vmem>>, vector<1x128x128xf32>
    %255 = vector.shape_cast %254 : vector<1x128x128xf32> to vector<128x128xf32>
    %256 = arith.addf %252, %255 : vector<128x128xf32>
    %cst_135 = arith.constant dense<0.000000e+00> : vector<128x256xf32>
    %257 = tpu.matmul %256, %6, %cst_135 {dimension_numbers = #tpu.dot_dimension_numbers<[1], [0], [0], [1], [0, 0, 1, 1], [], []>} : vector<128x128xf32>, vector<128x256xf32>, vector<128x256xf32> -> vector<128x256xf32>
    %258 = arith.index_cast %c10_i32 : i32 to index
    %c0_136 = arith.constant 0 : index
    %c0_137 = arith.constant 0 : index
    %259 = vector.load %arg7[%258, %c0_136, %c0_137] : memref<16x1x256xf32, #tpu.memory_space<vmem>>, vector<1x1x256xf32>
    %260 = vector.shape_cast %259 : vector<1x1x256xf32> to vector<1x256xf32>
    %261 = vector.broadcast %260 : vector<1x256xf32> to vector<128x256xf32>
    %262 = arith.addf %257, %261 : vector<128x256xf32>
    %263 = vector.extract_strided_slice %262 {offsets = [0, 0], sizes = [128, 128], strides = [1, 1]} : vector<128x256xf32> to vector<128x128xf32>
    %264 = vector.extract_strided_slice %262 {offsets = [0, 128], sizes = [128, 128], strides = [1, 1]} : vector<128x256xf32> to vector<128x128xf32>
    %265 = arith.mulf %263, %5 : vector<128x128xf32>
    %cst_138 = arith.constant dense<0.000000e+00> : vector<128x128xf32>
    %266 = tpu.matmul %265, %7, %cst_138 {dimension_numbers = #tpu.dot_dimension_numbers<[1], [0], [0], [1], [0, 0, 1, 1], [], []>} : vector<128x128xf32>, vector<128x128xf32>, vector<128x128xf32> -> vector<128x128xf32>
    %267 = arith.mulf %264, %266 : vector<128x128xf32>
    %268 = arith.index_cast %c10_i32 : i32 to index
    %c0_139 = arith.constant 0 : index
    %c0_140 = arith.constant 0 : index
    %269 = vector.load %arg8[%268, %c0_139, %c0_140] : memref<16x128x128xf32, #tpu.memory_space<vmem>>, vector<1x128x128xf32>
    %270 = vector.shape_cast %269 : vector<1x128x128xf32> to vector<128x128xf32>
    %cst_141 = arith.constant dense<0.000000e+00> : vector<128x128xf32>
    %271 = tpu.matmul %267, %270, %cst_141 {dimension_numbers = #tpu.dot_dimension_numbers<[1], [0], [0], [1], [0, 0, 1, 1], [], []>} : vector<128x128xf32>, vector<128x128xf32>, vector<128x128xf32> -> vector<128x128xf32>
    %272 = arith.addf %248, %271 : vector<128x128xf32>
    %c11_i32 = arith.constant 11 : i32
    %273 = arith.index_cast %c11_i32 : i32 to index
    %c0_142 = arith.constant 0 : index
    %c0_143 = arith.constant 0 : index
    %274 = vector.load %arg3[%273, %c0_142, %c0_143] : memref<16x128x128xf32, #tpu.memory_space<vmem>>, vector<1x128x128xf32>
    %275 = vector.shape_cast %274 : vector<1x128x128xf32> to vector<128x128xf32>
    %cst_144 = arith.constant dense<0.000000e+00> : vector<128x128xf32>
    %276 = tpu.matmul %0, %275, %cst_144 {dimension_numbers = #tpu.dot_dimension_numbers<[1], [0], [0], [1], [0, 0, 1, 1], [], []>} : vector<128x128xf32>, vector<128x128xf32>, vector<128x128xf32> -> vector<128x128xf32>
    %277 = arith.index_cast %c11_i32 : i32 to index
    %c0_145 = arith.constant 0 : index
    %c0_146 = arith.constant 0 : index
    %278 = vector.load %arg2[%277, %c0_145, %c0_146] : memref<16x128x128xf32, #tpu.memory_space<vmem>>, vector<1x128x128xf32>
    %279 = vector.shape_cast %278 : vector<1x128x128xf32> to vector<128x128xf32>
    %280 = arith.addf %276, %279 : vector<128x128xf32>
    %cst_147 = arith.constant dense<0.000000e+00> : vector<128x256xf32>
    %281 = tpu.matmul %280, %6, %cst_147 {dimension_numbers = #tpu.dot_dimension_numbers<[1], [0], [0], [1], [0, 0, 1, 1], [], []>} : vector<128x128xf32>, vector<128x256xf32>, vector<128x256xf32> -> vector<128x256xf32>
    %282 = arith.index_cast %c11_i32 : i32 to index
    %c0_148 = arith.constant 0 : index
    %c0_149 = arith.constant 0 : index
    %283 = vector.load %arg7[%282, %c0_148, %c0_149] : memref<16x1x256xf32, #tpu.memory_space<vmem>>, vector<1x1x256xf32>
    %284 = vector.shape_cast %283 : vector<1x1x256xf32> to vector<1x256xf32>
    %285 = vector.broadcast %284 : vector<1x256xf32> to vector<128x256xf32>
    %286 = arith.addf %281, %285 : vector<128x256xf32>
    %287 = vector.extract_strided_slice %286 {offsets = [0, 0], sizes = [128, 128], strides = [1, 1]} : vector<128x256xf32> to vector<128x128xf32>
    %288 = vector.extract_strided_slice %286 {offsets = [0, 128], sizes = [128, 128], strides = [1, 1]} : vector<128x256xf32> to vector<128x128xf32>
    %289 = arith.mulf %287, %5 : vector<128x128xf32>
    %cst_150 = arith.constant dense<0.000000e+00> : vector<128x128xf32>
    %290 = tpu.matmul %289, %7, %cst_150 {dimension_numbers = #tpu.dot_dimension_numbers<[1], [0], [0], [1], [0, 0, 1, 1], [], []>} : vector<128x128xf32>, vector<128x128xf32>, vector<128x128xf32> -> vector<128x128xf32>
    %291 = arith.mulf %288, %290 : vector<128x128xf32>
    %292 = arith.index_cast %c11_i32 : i32 to index
    %c0_151 = arith.constant 0 : index
    %c0_152 = arith.constant 0 : index
    %293 = vector.load %arg8[%292, %c0_151, %c0_152] : memref<16x128x128xf32, #tpu.memory_space<vmem>>, vector<1x128x128xf32>
    %294 = vector.shape_cast %293 : vector<1x128x128xf32> to vector<128x128xf32>
    %cst_153 = arith.constant dense<0.000000e+00> : vector<128x128xf32>
    %295 = tpu.matmul %291, %294, %cst_153 {dimension_numbers = #tpu.dot_dimension_numbers<[1], [0], [0], [1], [0, 0, 1, 1], [], []>} : vector<128x128xf32>, vector<128x128xf32>, vector<128x128xf32> -> vector<128x128xf32>
    %296 = arith.addf %272, %295 : vector<128x128xf32>
    %c12_i32 = arith.constant 12 : i32
    %297 = arith.index_cast %c12_i32 : i32 to index
    %c0_154 = arith.constant 0 : index
    %c0_155 = arith.constant 0 : index
    %298 = vector.load %arg3[%297, %c0_154, %c0_155] : memref<16x128x128xf32, #tpu.memory_space<vmem>>, vector<1x128x128xf32>
    %299 = vector.shape_cast %298 : vector<1x128x128xf32> to vector<128x128xf32>
    %cst_156 = arith.constant dense<0.000000e+00> : vector<128x128xf32>
    %300 = tpu.matmul %0, %299, %cst_156 {dimension_numbers = #tpu.dot_dimension_numbers<[1], [0], [0], [1], [0, 0, 1, 1], [], []>} : vector<128x128xf32>, vector<128x128xf32>, vector<128x128xf32> -> vector<128x128xf32>
    %301 = arith.index_cast %c12_i32 : i32 to index
    %c0_157 = arith.constant 0 : index
    %c0_158 = arith.constant 0 : index
    %302 = vector.load %arg2[%301, %c0_157, %c0_158] : memref<16x128x128xf32, #tpu.memory_space<vmem>>, vector<1x128x128xf32>
    %303 = vector.shape_cast %302 : vector<1x128x128xf32> to vector<128x128xf32>
    %304 = arith.addf %300, %303 : vector<128x128xf32>
    %cst_159 = arith.constant dense<0.000000e+00> : vector<128x256xf32>
    %305 = tpu.matmul %304, %6, %cst_159 {dimension_numbers = #tpu.dot_dimension_numbers<[1], [0], [0], [1], [0, 0, 1, 1], [], []>} : vector<128x128xf32>, vector<128x256xf32>, vector<128x256xf32> -> vector<128x256xf32>
    %306 = arith.index_cast %c12_i32 : i32 to index
    %c0_160 = arith.constant 0 : index
    %c0_161 = arith.constant 0 : index
    %307 = vector.load %arg7[%306, %c0_160, %c0_161] : memref<16x1x256xf32, #tpu.memory_space<vmem>>, vector<1x1x256xf32>
    %308 = vector.shape_cast %307 : vector<1x1x256xf32> to vector<1x256xf32>
    %309 = vector.broadcast %308 : vector<1x256xf32> to vector<128x256xf32>
    %310 = arith.addf %305, %309 : vector<128x256xf32>
    %311 = vector.extract_strided_slice %310 {offsets = [0, 0], sizes = [128, 128], strides = [1, 1]} : vector<128x256xf32> to vector<128x128xf32>
    %312 = vector.extract_strided_slice %310 {offsets = [0, 128], sizes = [128, 128], strides = [1, 1]} : vector<128x256xf32> to vector<128x128xf32>
    %313 = arith.mulf %311, %5 : vector<128x128xf32>
    %cst_162 = arith.constant dense<0.000000e+00> : vector<128x128xf32>
    %314 = tpu.matmul %313, %7, %cst_162 {dimension_numbers = #tpu.dot_dimension_numbers<[1], [0], [0], [1], [0, 0, 1, 1], [], []>} : vector<128x128xf32>, vector<128x128xf32>, vector<128x128xf32> -> vector<128x128xf32>
    %315 = arith.mulf %312, %314 : vector<128x128xf32>
    %316 = arith.index_cast %c12_i32 : i32 to index
    %c0_163 = arith.constant 0 : index
    %c0_164 = arith.constant 0 : index
    %317 = vector.load %arg8[%316, %c0_163, %c0_164] : memref<16x128x128xf32, #tpu.memory_space<vmem>>, vector<1x128x128xf32>
    %318 = vector.shape_cast %317 : vector<1x128x128xf32> to vector<128x128xf32>
    %cst_165 = arith.constant dense<0.000000e+00> : vector<128x128xf32>
    %319 = tpu.matmul %315, %318, %cst_165 {dimension_numbers = #tpu.dot_dimension_numbers<[1], [0], [0], [1], [0, 0, 1, 1], [], []>} : vector<128x128xf32>, vector<128x128xf32>, vector<128x128xf32> -> vector<128x128xf32>
    %320 = arith.addf %296, %319 : vector<128x128xf32>
    %c13_i32 = arith.constant 13 : i32
    %321 = arith.index_cast %c13_i32 : i32 to index
    %c0_166 = arith.constant 0 : index
    %c0_167 = arith.constant 0 : index
    %322 = vector.load %arg3[%321, %c0_166, %c0_167] : memref<16x128x128xf32, #tpu.memory_space<vmem>>, vector<1x128x128xf32>
    %323 = vector.shape_cast %322 : vector<1x128x128xf32> to vector<128x128xf32>
    %cst_168 = arith.constant dense<0.000000e+00> : vector<128x128xf32>
    %324 = tpu.matmul %0, %323, %cst_168 {dimension_numbers = #tpu.dot_dimension_numbers<[1], [0], [0], [1], [0, 0, 1, 1], [], []>} : vector<128x128xf32>, vector<128x128xf32>, vector<128x128xf32> -> vector<128x128xf32>
    %325 = arith.index_cast %c13_i32 : i32 to index
    %c0_169 = arith.constant 0 : index
    %c0_170 = arith.constant 0 : index
    %326 = vector.load %arg2[%325, %c0_169, %c0_170] : memref<16x128x128xf32, #tpu.memory_space<vmem>>, vector<1x128x128xf32>
    %327 = vector.shape_cast %326 : vector<1x128x128xf32> to vector<128x128xf32>
    %328 = arith.addf %324, %327 : vector<128x128xf32>
    %cst_171 = arith.constant dense<0.000000e+00> : vector<128x256xf32>
    %329 = tpu.matmul %328, %6, %cst_171 {dimension_numbers = #tpu.dot_dimension_numbers<[1], [0], [0], [1], [0, 0, 1, 1], [], []>} : vector<128x128xf32>, vector<128x256xf32>, vector<128x256xf32> -> vector<128x256xf32>
    %330 = arith.index_cast %c13_i32 : i32 to index
    %c0_172 = arith.constant 0 : index
    %c0_173 = arith.constant 0 : index
    %331 = vector.load %arg7[%330, %c0_172, %c0_173] : memref<16x1x256xf32, #tpu.memory_space<vmem>>, vector<1x1x256xf32>
    %332 = vector.shape_cast %331 : vector<1x1x256xf32> to vector<1x256xf32>
    %333 = vector.broadcast %332 : vector<1x256xf32> to vector<128x256xf32>
    %334 = arith.addf %329, %333 : vector<128x256xf32>
    %335 = vector.extract_strided_slice %334 {offsets = [0, 0], sizes = [128, 128], strides = [1, 1]} : vector<128x256xf32> to vector<128x128xf32>
    %336 = vector.extract_strided_slice %334 {offsets = [0, 128], sizes = [128, 128], strides = [1, 1]} : vector<128x256xf32> to vector<128x128xf32>
    %337 = arith.mulf %335, %5 : vector<128x128xf32>
    %cst_174 = arith.constant dense<0.000000e+00> : vector<128x128xf32>
    %338 = tpu.matmul %337, %7, %cst_174 {dimension_numbers = #tpu.dot_dimension_numbers<[1], [0], [0], [1], [0, 0, 1, 1], [], []>} : vector<128x128xf32>, vector<128x128xf32>, vector<128x128xf32> -> vector<128x128xf32>
    %339 = arith.mulf %336, %338 : vector<128x128xf32>
    %340 = arith.index_cast %c13_i32 : i32 to index
    %c0_175 = arith.constant 0 : index
    %c0_176 = arith.constant 0 : index
    %341 = vector.load %arg8[%340, %c0_175, %c0_176] : memref<16x128x128xf32, #tpu.memory_space<vmem>>, vector<1x128x128xf32>
    %342 = vector.shape_cast %341 : vector<1x128x128xf32> to vector<128x128xf32>
    %cst_177 = arith.constant dense<0.000000e+00> : vector<128x128xf32>
    %343 = tpu.matmul %339, %342, %cst_177 {dimension_numbers = #tpu.dot_dimension_numbers<[1], [0], [0], [1], [0, 0, 1, 1], [], []>} : vector<128x128xf32>, vector<128x128xf32>, vector<128x128xf32> -> vector<128x128xf32>
    %344 = arith.addf %320, %343 : vector<128x128xf32>
    %c14_i32 = arith.constant 14 : i32
    %345 = arith.index_cast %c14_i32 : i32 to index
    %c0_178 = arith.constant 0 : index
    %c0_179 = arith.constant 0 : index
    %346 = vector.load %arg3[%345, %c0_178, %c0_179] : memref<16x128x128xf32, #tpu.memory_space<vmem>>, vector<1x128x128xf32>
    %347 = vector.shape_cast %346 : vector<1x128x128xf32> to vector<128x128xf32>
    %cst_180 = arith.constant dense<0.000000e+00> : vector<128x128xf32>
    %348 = tpu.matmul %0, %347, %cst_180 {dimension_numbers = #tpu.dot_dimension_numbers<[1], [0], [0], [1], [0, 0, 1, 1], [], []>} : vector<128x128xf32>, vector<128x128xf32>, vector<128x128xf32> -> vector<128x128xf32>
    %349 = arith.index_cast %c14_i32 : i32 to index
    %c0_181 = arith.constant 0 : index
    %c0_182 = arith.constant 0 : index
    %350 = vector.load %arg2[%349, %c0_181, %c0_182] : memref<16x128x128xf32, #tpu.memory_space<vmem>>, vector<1x128x128xf32>
    %351 = vector.shape_cast %350 : vector<1x128x128xf32> to vector<128x128xf32>
    %352 = arith.addf %348, %351 : vector<128x128xf32>
    %cst_183 = arith.constant dense<0.000000e+00> : vector<128x256xf32>
    %353 = tpu.matmul %352, %6, %cst_183 {dimension_numbers = #tpu.dot_dimension_numbers<[1], [0], [0], [1], [0, 0, 1, 1], [], []>} : vector<128x128xf32>, vector<128x256xf32>, vector<128x256xf32> -> vector<128x256xf32>
    %354 = arith.index_cast %c14_i32 : i32 to index
    %c0_184 = arith.constant 0 : index
    %c0_185 = arith.constant 0 : index
    %355 = vector.load %arg7[%354, %c0_184, %c0_185] : memref<16x1x256xf32, #tpu.memory_space<vmem>>, vector<1x1x256xf32>
    %356 = vector.shape_cast %355 : vector<1x1x256xf32> to vector<1x256xf32>
    %357 = vector.broadcast %356 : vector<1x256xf32> to vector<128x256xf32>
    %358 = arith.addf %353, %357 : vector<128x256xf32>
    %359 = vector.extract_strided_slice %358 {offsets = [0, 0], sizes = [128, 128], strides = [1, 1]} : vector<128x256xf32> to vector<128x128xf32>
    %360 = vector.extract_strided_slice %358 {offsets = [0, 128], sizes = [128, 128], strides = [1, 1]} : vector<128x256xf32> to vector<128x128xf32>
    %361 = arith.mulf %359, %5 : vector<128x128xf32>
    %cst_186 = arith.constant dense<0.000000e+00> : vector<128x128xf32>
    %362 = tpu.matmul %361, %7, %cst_186 {dimension_numbers = #tpu.dot_dimension_numbers<[1], [0], [0], [1], [0, 0, 1, 1], [], []>} : vector<128x128xf32>, vector<128x128xf32>, vector<128x128xf32> -> vector<128x128xf32>
    %363 = arith.mulf %360, %362 : vector<128x128xf32>
    %364 = arith.index_cast %c14_i32 : i32 to index
    %c0_187 = arith.constant 0 : index
    %c0_188 = arith.constant 0 : index
    %365 = vector.load %arg8[%364, %c0_187, %c0_188] : memref<16x128x128xf32, #tpu.memory_space<vmem>>, vector<1x128x128xf32>
    %366 = vector.shape_cast %365 : vector<1x128x128xf32> to vector<128x128xf32>
    %cst_189 = arith.constant dense<0.000000e+00> : vector<128x128xf32>
    %367 = tpu.matmul %363, %366, %cst_189 {dimension_numbers = #tpu.dot_dimension_numbers<[1], [0], [0], [1], [0, 0, 1, 1], [], []>} : vector<128x128xf32>, vector<128x128xf32>, vector<128x128xf32> -> vector<128x128xf32>
    %368 = arith.addf %344, %367 : vector<128x128xf32>
    %c15_i32 = arith.constant 15 : i32
    %369 = arith.index_cast %c15_i32 : i32 to index
    %c0_190 = arith.constant 0 : index
    %c0_191 = arith.constant 0 : index
    %370 = vector.load %arg3[%369, %c0_190, %c0_191] : memref<16x128x128xf32, #tpu.memory_space<vmem>>, vector<1x128x128xf32>
    %371 = vector.shape_cast %370 : vector<1x128x128xf32> to vector<128x128xf32>
    %cst_192 = arith.constant dense<0.000000e+00> : vector<128x128xf32>
    %372 = tpu.matmul %0, %371, %cst_192 {dimension_numbers = #tpu.dot_dimension_numbers<[1], [0], [0], [1], [0, 0, 1, 1], [], []>} : vector<128x128xf32>, vector<128x128xf32>, vector<128x128xf32> -> vector<128x128xf32>
    %373 = arith.index_cast %c15_i32 : i32 to index
    %c0_193 = arith.constant 0 : index
    %c0_194 = arith.constant 0 : index
    %374 = vector.load %arg2[%373, %c0_193, %c0_194] : memref<16x128x128xf32, #tpu.memory_space<vmem>>, vector<1x128x128xf32>
    %375 = vector.shape_cast %374 : vector<1x128x128xf32> to vector<128x128xf32>
    %376 = arith.addf %372, %375 : vector<128x128xf32>
    %cst_195 = arith.constant dense<0.000000e+00> : vector<128x256xf32>
    %377 = tpu.matmul %376, %6, %cst_195 {dimension_numbers = #tpu.dot_dimension_numbers<[1], [0], [0], [1], [0, 0, 1, 1], [], []>} : vector<128x128xf32>, vector<128x256xf32>, vector<128x256xf32> -> vector<128x256xf32>
    %378 = arith.index_cast %c15_i32 : i32 to index
    %c0_196 = arith.constant 0 : index
    %c0_197 = arith.constant 0 : index
    %379 = vector.load %arg7[%378, %c0_196, %c0_197] : memref<16x1x256xf32, #tpu.memory_space<vmem>>, vector<1x1x256xf32>
    %380 = vector.shape_cast %379 : vector<1x1x256xf32> to vector<1x256xf32>
    %381 = vector.broadcast %380 : vector<1x256xf32> to vector<128x256xf32>
    %382 = arith.addf %377, %381 : vector<128x256xf32>
    %383 = vector.extract_strided_slice %382 {offsets = [0, 0], sizes = [128, 128], strides = [1, 1]} : vector<128x256xf32> to vector<128x128xf32>
    %384 = vector.extract_strided_slice %382 {offsets = [0, 128], sizes = [128, 128], strides = [1, 1]} : vector<128x256xf32> to vector<128x128xf32>
    %385 = arith.mulf %383, %5 : vector<128x128xf32>
    %cst_198 = arith.constant dense<0.000000e+00> : vector<128x128xf32>
    %386 = tpu.matmul %385, %7, %cst_198 {dimension_numbers = #tpu.dot_dimension_numbers<[1], [0], [0], [1], [0, 0, 1, 1], [], []>} : vector<128x128xf32>, vector<128x128xf32>, vector<128x128xf32> -> vector<128x128xf32>
    %387 = arith.mulf %384, %386 : vector<128x128xf32>
    %388 = arith.index_cast %c15_i32 : i32 to index
    %c0_199 = arith.constant 0 : index
    %c0_200 = arith.constant 0 : index
    %389 = vector.load %arg8[%388, %c0_199, %c0_200] : memref<16x128x128xf32, #tpu.memory_space<vmem>>, vector<1x128x128xf32>
    %390 = vector.shape_cast %389 : vector<1x128x128xf32> to vector<128x128xf32>
    %cst_201 = arith.constant dense<0.000000e+00> : vector<128x128xf32>
    %391 = tpu.matmul %387, %390, %cst_201 {dimension_numbers = #tpu.dot_dimension_numbers<[1], [0], [0], [1], [0, 0, 1, 1], [], []>} : vector<128x128xf32>, vector<128x128xf32>, vector<128x128xf32> -> vector<128x128xf32>
    %392 = arith.addf %368, %391 : vector<128x128xf32>
    %c16_i32 = arith.constant 16 : i32
    %c0_202 = arith.constant 0 : index
    %c0_203 = arith.constant 0 : index
    %393 = vector.load %arg9[%c0_202, %c0_203] : memref<1x128xf32, #tpu.memory_space<vmem>>, vector<1x128xf32>
    %394 = vector.broadcast %393 : vector<1x128xf32> to vector<128x128xf32>
    %395 = arith.addf %392, %394 : vector<128x128xf32>
    %c0_204 = arith.constant 0 : index
    %c0_205 = arith.constant 0 : index
    %396 = vector.load %arg11[%c0_204, %c0_205] : memref<128x128xf32, #tpu.memory_space<vmem>>, vector<128x128xf32>
    tpu.vector_store %arg11[%c0_204, %c0_205], %395 {strides = array<i32>} : memref<128x128xf32, #tpu.memory_space<vmem>>, vector<128x128xf32>,
    return
  }
  func.func @transform_0(%arg0: i32) -> (i32, i32) {
    %c0_i32 = arith.constant 0 : i32
    %c0_i32_0 = arith.constant 0 : i32
    return %arg0, %c0_i32 : i32, i32
  }
  func.func @transform_1(%arg0: i32) -> (i32, i32, i32) {
    %c0_i32 = arith.constant 0 : i32
    %c0_i32_0 = arith.constant 0 : i32
    %c0_i32_1 = arith.constant 0 : i32
    return %c0_i32, %arg0, %c0_i32_0 : i32, i32, i32
  }
  func.func @transform_2(%arg0: i32) -> (i32, i32, i32) {
    %c0_i32 = arith.constant 0 : i32
    %c0_i32_0 = arith.constant 0 : i32
    %c0_i32_1 = arith.constant 0 : i32
    %c0_i32_2 = arith.constant 0 : i32
    return %c0_i32, %c0_i32_0, %c0_i32_1 : i32, i32, i32
  }
  func.func @transform_3(%arg0: i32) -> (i32, i32) {
    %c0_i32 = arith.constant 0 : i32
    %c0_i32_0 = arith.constant 0 : i32
    %c0_i32_1 = arith.constant 0 : i32
    return %c0_i32, %c0_i32_0 : i32, i32
  }
  func.func @transform_4(%arg0: i32) -> (i32, i32) {
    %c0_i32 = arith.constant 0 : i32
    %c0_i32_0 = arith.constant 0 : i32
    %c0_i32_1 = arith.constant 0 : i32
    return %c0_i32, %c0_i32_0 : i32, i32
  }
  func.func @transform_5(%arg0: i32) -> (i32, i32) {
    %c0_i32 = arith.constant 0 : i32
    %c0_i32_0 = arith.constant 0 : i32
    %c0_i32_1 = arith.constant 0 : i32
    return %c0_i32, %c0_i32_0 : i32, i32
  }
  func.func @transform_6(%arg0: i32) -> (i32, i32, i32) {
    %c0_i32 = arith.constant 0 : i32
    %c0_i32_0 = arith.constant 0 : i32
    %c0_i32_1 = arith.constant 0 : i32
    %c0_i32_2 = arith.constant 0 : i32
    return %c0_i32, %c0_i32_0, %c0_i32_1 : i32, i32, i32
  }
  func.func @transform_7(%arg0: i32) -> (i32, i32, i32) {
    %c0_i32 = arith.constant 0 : i32
    %c0_i32_0 = arith.constant 0 : i32
    %c0_i32_1 = arith.constant 0 : i32
    %c0_i32_2 = arith.constant 0 : i32
    return %c0_i32, %c0_i32_0, %c0_i32_1 : i32, i32, i32
  }
  func.func @transform_8(%arg0: i32) -> (i32, i32) {
    %c0_i32 = arith.constant 0 : i32
    %c0_i32_0 = arith.constant 0 : i32
    %c0_i32_1 = arith.constant 0 : i32
    return %c0_i32, %c0_i32_0 : i32, i32
  }
  func.func @transform_9(%arg0: i32) -> (i32, i32) {
    %c0_i32 = arith.constant 0 : i32
    %c0_i32_0 = arith.constant 0 : i32
    %c0_i32_1 = arith.constant 0 : i32
    return %c0_i32, %c0_i32_0 : i32, i32
  }
  func.func @transform_10(%arg0: i32) -> (i32, i32) {
    %c0_i32 = arith.constant 0 : i32
    %c0_i32_0 = arith.constant 0 : i32
    return %arg0, %c0_i32 : i32, i32
  }
}

</mosaic_0001>

<llo_original>
// kernel: tpu_custom_call.1
$region0: #{tpu_custom_call.1}
  #allocation0 [shape = 'u32[]', space=smem, size = 0x4, offset = 0x4, fixed_abs, tag = 'smem constant byte address 0x4 - core index']
  #allocation1 [shape = 'u32[72,128]{1,0:T(1,128)}', space=vmem, size = 0x9000, scoped, tag = 'internal scratch']
  #allocation20 [shape = 's32[]', space=sflag, size = 0x4, offset = 0, fixed_abs, tag = 'sflag constant byte address 0x0 - dummy sync flag']
  %s0 = inlined_call_operand.hbm [shape: f32[256,128], index: 0, kind: input, shape index: {}]
  %s1 = inlined_call_operand.hbm [shape: f32[16,256,128], index: 1, kind: input, shape index: {}]
  %s2 = inlined_call_operand.hbm [shape: f32[16,128,128], index: 2, kind: input, shape index: {}]
  %s3 = inlined_call_operand.hbm [shape: f32[128,128], index: 3, kind: input, shape index: {}]
  %s4 = inlined_call_operand.hbm [shape: f32[1,128], index: 4, kind: input, shape index: {}]
  %s5 = inlined_call_operand.hbm [shape: f32[128,256], index: 5, kind: input, shape index: {}]
  %s6 = inlined_call_operand.hbm [shape: f32[16,1,256], index: 6, kind: input, shape index: {}]
  %s7 = inlined_call_operand.hbm [shape: f32[16,128,128], index: 7, kind: input, shape index: {}]
  %s8 = inlined_call_operand.hbm [shape: f32[1,128], index: 8, kind: input, shape index: {}]
  %s9 = inlined_call_operand.hbm [shape: f32[128,128], index: 9, kind: input, shape index: {}]
  %s10 = inlined_call_operand.hbm [shape: f32[256,128], index: 10, kind: output, shape index: {}]
  %s11 = sld [smem:[#allocation0]]
  $region113: #{tpu_custom_call.1} parent=0
    _
  %s13 = ssub.s32 1, %s11
  %s14 = scalar_select 0, %s13, %s11
  $region1: #{tpu_custom_call.1} parent=0
    #allocation2 [shape = 'u8[131072]{0}', space=vmem, size = 0x20000, scoped, tag = 'input window, operand 0']
    #allocation3 [shape = 's32[2]{0}', space=sflag, size = 0x8, scoped, tag = 'scoped memory for tpu_custom_call.1']
    #allocation4 [shape = 's32[2]{0}', space=sflag, size = 0x8, scoped, tag = 'scoped memory for tpu_custom_call.1']
    #allocation5 [shape = 'u8[2097152]{0}', space=vmem, size = 0x200000, scoped, tag = 'input window, operand 1']
    #allocation6 [shape = 's32[2]{0}', space=sflag, size = 0x8, scoped, tag = 'scoped memory for tpu_custom_call.1']
    #allocation7 [shape = 'u8[1048576]{0}', space=vmem, size = 0x100000, scoped, tag = 'input window, operand 2, single buffered']
    #allocation8 [shape = 'u8[65536]{0}', space=vmem, size = 0x10000, scoped, tag = 'input window, operand 3, single buffered']
    #allocation9 [shape = 's32[1]{0}', space=sflag, size = 0x4, scoped, tag = 'scoped memory for tpu_custom_call.1']
    #allocation10 [shape = 'u8[512]{0}', space=vmem, size = 0x400, scoped, tag = 'input window, operand 4, single buffered']
    #allocation11 [shape = 'u8[131072]{0}', space=vmem, size = 0x20000, scoped, tag = 'input window, operand 5, single buffered']
    #allocation12 [shape = 's32[1]{0}', space=sflag, size = 0x4, scoped, tag = 'scoped memory for tpu_custom_call.1']
    #allocation13 [shape = 'u8[16384]{0}', space=vmem, size = 0x4000, scoped, tag = 'input window, operand 6, single buffered']
    #allocation14 [shape = 'u8[1048576]{0}', space=vmem, size = 0x100000, scoped, tag = 'input window, operand 7, single buffered']
    #allocation15 [shape = 's32[1]{0}', space=sflag, size = 0x4, scoped, tag = 'scoped memory for tpu_custom_call.1']
    #allocation16 [shape = 'u8[512]{0}', space=vmem, size = 0x400, scoped, tag = 'input window, operand 8, single buffered']
    #allocation17 [shape = 'u8[65536]{0}', space=vmem, size = 0x10000, scoped, tag = 'input window, operand 9, single buffered']
    #allocation18 [shape = 's32[1]{0}', space=sflag, size = 0x4, scoped, tag = 'scoped memory for tpu_custom_call.1']
    #allocation19 [shape = 'u8[131072]{0}', space=vmem, size = 0x20000, scoped, tag = 'output window, operand 0']
    %15 = vsyncpa [#allocation3], 0
    %s16 = scalar_lea.sflag [#allocation3], 1
    %17 = vsyncpa %s16, 0
    %18 = vsyncpa [#allocation6], 0
    %s19 = scalar_lea.sflag [#allocation6], 1
    %20 = vsyncpa %s19, 0
    %21 = vsyncpa [#allocation9], 0
    %22 = vsyncpa [#allocation12], 0
    %23 = vsyncpa [#allocation15], 0
    %24 = vsyncpa [#allocation18], 0
    %25 = vsyncpa [#allocation4], 0
    %s26 = scalar_lea.sflag [#allocation4], 1
    %27 = vsyncpa %s26, 0
    loop: start=0, step=1, limit=4
    $region2: #{tpu_custom_call.1} parent=1 // loop_pre_header
      _
    $region3: #{tpu_custom_call.1} parent=1 // loop_header
      %s29 = sphi 0, %s33
      %p30 = scmp.ge.s32.totalorder %s29, 4
      %s39 = sphi 0, %s41
      %s42 = sphi 0, %s39
      %s43 = sphi 0, %s42
      %s59 = sphi 0, %s43
      %s65 = sphi 0, %s67
      %s68 = sphi 0, %s65
      %s69 = sphi 0, %s68
      %s85 = sphi 0, %s69
      %s89 = sphi 0, %s89
      %s91 = sphi 0, %s89
      %s92 = sphi 0, %s91
      %s106 = sphi 0, %s92
      %s110 = sphi 0, %s110
      %s112 = sphi 0, %s110
      %s113 = sphi 0, %s112
      %s127 = sphi 0, %s113
      %s131 = sphi 0, %s131
      %s133 = sphi 0, %s131
      %s134 = sphi 0, %s133
      %s148 = sphi 0, %s134
      %s152 = sphi 0, %s152
      %s154 = sphi 0, %s152
      %s155 = sphi 0, %s154
      %s169 = sphi 0, %s155
      %s173 = sphi 0, %s173
      %s175 = sphi 0, %s173
      %s176 = sphi 0, %s175
      %s190 = sphi 0, %s176
      %s194 = sphi 0, %s194
      %s196 = sphi 0, %s194
      %s197 = sphi 0, %s196
      %s211 = sphi 0, %s197
      %s215 = sphi 0, %s215
      %s217 = sphi 0, %s215
      %s218 = sphi 0, %s217
      %s232 = sphi 0, %s218
      %s236 = sphi 0, %s236
      %s238 = sphi 0, %s236
      %s239 = sphi 0, %s238
      %s253 = sphi 0, %s239
      %s259 = sphi 0, %s261
      %s262 = sphi 0, %s259
      %s263 = sphi 0, %s262
      %s279 = sphi 0, %s263
    $region4: #{tpu_custom_call.1} parent=1 // loop_header_branch
      %32 = sbr.rel (%p30) target = $region8
    $region5: #{tpu_custom_call.1} parent=1 // loop_body
      %s34 = ssub.s32 %s29, 1
      %s35 = ssub.s32 %s29, 2
      %s36 = sadd.s32 %s29, 1
      %s37 = ssub.s32 %s29, %s36
      %p38 = scmp.eq.s32.totalorder %s37, 0
      %s40 = sadd.s32 %s39, 1
      %s41 = scalar_select %p38, %s39, %s40
      %p44 = pneg %p38
      %p45 = scmp.eq.s32.totalorder %s29, 1
      %p46 = por %p44, %p45
      %p47 = scmp.ne.s32.totalorder %s39, %s42
      %p48 = scmp.eq.s32.totalorder %s29, 0
      %p49 = por %p47, %p48
      %p50 = scmp.ne.s32.totalorder %s39, %s42
      %p51 = scmp.eq.s32.totalorder %s34, 1
      %p52 = por %p50, %p51
      %p53 = scmp.ne.s32.totalorder %s42, %s43
      %p54 = scmp.eq.s32.totalorder %s34, 0
      %p55 = por %p53, %p54
      %p56 = scmp.ne.s32.totalorder %s42, %s43
      %p57 = scmp.eq.s32.totalorder %s35, 1
      %p58 = por %p56, %p57
      %p60 = scmp.ne.s32.totalorder %s43, %s59
      %p61 = scmp.eq.s32.totalorder %s35, 0
      %p62 = por %p60, %p61
      %s63 = ssub.s32 %s29, %s36
      %p64 = scmp.eq.s32.totalorder %s63, 0
      %s66 = sadd.s32 %s65, 1
      %s67 = scalar_select %p64, %s65, %s66
      %p70 = pneg %p64
      %p71 = scmp.eq.s32.totalorder %s29, 1
      %p72 = por %p70, %p71
      %p73 = scmp.ne.s32.totalorder %s65, %s68
      %p74 = scmp.eq.s32.totalorder %s29, 0
      %p75 = por %p73, %p74
      %p76 = scmp.ne.s32.totalorder %s65, %s68
      %p77 = scmp.eq.s32.totalorder %s34, 1
      %p78 = por %p76, %p77
      %p79 = scmp.ne.s32.totalorder %s68, %s69
      %p80 = scmp.eq.s32.totalorder %s34, 0
      %p81 = por %p79, %p80
      %p82 = scmp.ne.s32.totalorder %s68, %s69
      %p83 = scmp.eq.s32.totalorder %s35, 1
      %p84 = por %p82, %p83
      %p86 = scmp.ne.s32.totalorder %s69, %s85
      %p87 = scmp.eq.s32.totalorder %s35, 0
      %p88 = por %p86, %p87
      %s90 = sadd.s32 %s89, 1
      %p93 = scmp.eq.s32.totalorder %s29, 1
      %p94 = scmp.ne.s32.totalorder %s89, %s91
      %p95 = scmp.eq.s32.totalorder %s29, 0
      %p96 = por %p94, %p95
      %p97 = scmp.ne.s32.totalorder %s89, %s91
      %p98 = scmp.eq.s32.totalorder %s34, 1
      %p99 = por %p97, %p98
      %p100 = scmp.ne.s32.totalorder %s91, %s92
      %p101 = scmp.eq.s32.totalorder %s34, 0
      %p102 = por %p100, %p101
      %p103 = scmp.ne.s32.totalorder %s91, %s92
      %p104 = scmp.eq.s32.totalorder %s35, 1
      %p105 = por %p103, %p104
      %p107 = scmp.ne.s32.totalorder %s92, %s106
      %p108 = scmp.eq.s32.totalorder %s35, 0
      %p109 = por %p107, %p108
      %s111 = sadd.s32 %s110, 1
      %p114 = scmp.eq.s32.totalorder %s29, 1
      %p115 = scmp.ne.s32.totalorder %s110, %s112
      %p116 = scmp.eq.s32.totalorder %s29, 0
      %p117 = por %p115, %p116
      %p118 = scmp.ne.s32.totalorder %s110, %s112
      %p119 = scmp.eq.s32.totalorder %s34, 1
      %p120 = por %p118, %p119
      %p121 = scmp.ne.s32.totalorder %s112, %s113
      %p122 = scmp.eq.s32.totalorder %s34, 0
      %p123 = por %p121, %p122
      %p124 = scmp.ne.s32.totalorder %s112, %s113
      %p125 = scmp.eq.s32.totalorder %s35, 1
      %p126 = por %p124, %p125
      %p128 = scmp.ne.s32.totalorder %s113, %s127
      %p129 = scmp.eq.s32.totalorder %s35, 0
      %p130 = por %p128, %p129
      %s132 = sadd.s32 %s131, 1
      %p135 = scmp.eq.s32.totalorder %s29, 1
      %p136 = scmp.ne.s32.totalorder %s131, %s133
      %p137 = scmp.eq.s32.totalorder %s29, 0
      %p138 = por %p136, %p137
      %p139 = scmp.ne.s32.totalorder %s131, %s133
      %p140 = scmp.eq.s32.totalorder %s34, 1
      %p141 = por %p139, %p140
      %p142 = scmp.ne.s32.totalorder %s133, %s134
      %p143 = scmp.eq.s32.totalorder %s34, 0
      %p144 = por %p142, %p143
      %p145 = scmp.ne.s32.totalorder %s133, %s134
      %p146 = scmp.eq.s32.totalorder %s35, 1
      %p147 = por %p145, %p146
      %p149 = scmp.ne.s32.totalorder %s134, %s148
      %p150 = scmp.eq.s32.totalorder %s35, 0
      %p151 = por %p149, %p150
      %s153 = sadd.s32 %s152, 1
      %p156 = scmp.eq.s32.totalorder %s29, 1
      %p157 = scmp.ne.s32.totalorder %s152, %s154
      %p158 = scmp.eq.s32.totalorder %s29, 0
      %p159 = por %p157, %p158
      %p160 = scmp.ne.s32.totalorder %s152, %s154
      %p161 = scmp.eq.s32.totalorder %s34, 1
      %p162 = por %p160, %p161
      %p163 = scmp.ne.s32.totalorder %s154, %s155
      %p164 = scmp.eq.s32.totalorder %s34, 0
      %p165 = por %p163, %p164
      %p166 = scmp.ne.s32.totalorder %s154, %s155
      %p167 = scmp.eq.s32.totalorder %s35, 1
      %p168 = por %p166, %p167
      %p170 = scmp.ne.s32.totalorder %s155, %s169
      %p171 = scmp.eq.s32.totalorder %s35, 0
      %p172 = por %p170, %p171
      %s174 = sadd.s32 %s173, 1
      %p177 = scmp.eq.s32.totalorder %s29, 1
      %p178 = scmp.ne.s32.totalorder %s173, %s175
      %p179 = scmp.eq.s32.totalorder %s29, 0
      %p180 = por %p178, %p179
      %p181 = scmp.ne.s32.totalorder %s173, %s175
      %p182 = scmp.eq.s32.totalorder %s34, 1
      %p183 = por %p181, %p182
      %p184 = scmp.ne.s32.totalorder %s175, %s176
      %p185 = scmp.eq.s32.totalorder %s34, 0
      %p186 = por %p184, %p185
      %p187 = scmp.ne.s32.totalorder %s175, %s176
      %p188 = scmp.eq.s32.totalorder %s35, 1
      %p189 = por %p187, %p188
      %p191 = scmp.ne.s32.totalorder %s176, %s190
      %p192 = scmp.eq.s32.totalorder %s35, 0
      %p193 = por %p191, %p192
      %s195 = sadd.s32 %s194, 1
      %p198 = scmp.eq.s32.totalorder %s29, 1
      %p199 = scmp.ne.s32.totalorder %s194, %s196
      %p200 = scmp.eq.s32.totalorder %s29, 0
      %p201 = por %p199, %p200
      %p202 = scmp.ne.s32.totalorder %s194, %s196
      %p203 = scmp.eq.s32.totalorder %s34, 1
      %p204 = por %p202, %p203
      %p205 = scmp.ne.s32.totalorder %s196, %s197
      %p206 = scmp.eq.s32.totalorder %s34, 0
      %p207 = por %p205, %p206
      %p208 = scmp.ne.s32.totalorder %s196, %s197
      %p209 = scmp.eq.s32.totalorder %s35, 1
      %p210 = por %p208, %p209
      %p212 = scmp.ne.s32.totalorder %s197, %s211
      %p213 = scmp.eq.s32.totalorder %s35, 0
      %p214 = por %p212, %p213
      %s216 = sadd.s32 %s215, 1
      %p219 = scmp.eq.s32.totalorder %s29, 1
      %p220 = scmp.ne.s32.totalorder %s215, %s217
      %p221 = scmp.eq.s32.totalorder %s29, 0
      %p222 = por %p220, %p221
      %p223 = scmp.ne.s32.totalorder %s215, %s217
      %p224 = scmp.eq.s32.totalorder %s34, 1
      %p225 = por %p223, %p224
      %p226 = scmp.ne.s32.totalorder %s217, %s218
      %p227 = scmp.eq.s32.totalorder %s34, 0
      %p228 = por %p226, %p227
      %p229 = scmp.ne.s32.totalorder %s217, %s218
      %p230 = scmp.eq.s32.totalorder %s35, 1
      %p231 = por %p229, %p230
      %p233 = scmp.ne.s32.totalorder %s218, %s232
      %p234 = scmp.eq.s32.totalorder %s35, 0
      %p235 = por %p233, %p234
      %s237 = sadd.s32 %s236, 1
      %p240 = scmp.eq.s32.totalorder %s29, 1
      %p241 = scmp.ne.s32.totalorder %s236, %s238
      %p242 = scmp.eq.s32.totalorder %s29, 0
      %p243 = por %p241, %p242
      %p244 = scmp.ne.s32.totalorder %s236, %s238
      %p245 = scmp.eq.s32.totalorder %s34, 1
      %p246 = por %p244, %p245
      %p247 = scmp.ne.s32.totalorder %s238, %s239
      %p248 = scmp.eq.s32.totalorder %s34, 0
      %p249 = por %p247, %p248
      %p250 = scmp.ne.s32.totalorder %s238, %s239
      %p251 = scmp.eq.s32.totalorder %s35, 1
      %p252 = por %p250, %p251
      %p254 = scmp.ne.s32.totalorder %s239, %s253
      %p255 = scmp.eq.s32.totalorder %s35, 0
      %p256 = por %p254, %p255
      %s257 = ssub.s32 %s29, %s36
      %p258 = scmp.eq.s32.totalorder %s257, 0
      %s260 = sadd.s32 %s259, 1
      %s261 = scalar_select %p258, %s259, %s260
      %p264 = pneg %p258
      %p265 = scmp.eq.s32.totalorder %s29, 1
      %p266 = por %p264, %p265
      %p267 = scmp.ne.s32.totalorder %s259, %s262
      %p268 = scmp.eq.s32.totalorder %s29, 0
      %p269 = por %p267, %p268
      %p270 = scmp.ne.s32.totalorder %s259, %s262
      %p271 = scmp.eq.s32.totalorder %s34, 1
      %p272 = por %p270, %p271
      %p273 = scmp.ne.s32.totalorder %s262, %s263
      %p274 = scmp.eq.s32.totalorder %s34, 0
      %p275 = por %p273, %p274
      %p276 = scmp.ne.s32.totalorder %s262, %s263
      %p277 = scmp.eq.s32.totalorder %s35, 1
      %p278 = por %p276, %p277
      %p280 = scmp.ne.s32.totalorder %s263, %s279
      %p281 = scmp.eq.s32.totalorder %s35, 0
      %p282 = por %p280, %p281
      %p283 = scmp.le.s32.totalorder 1, %s29
      %p284 = scmp.lt.s32.totalorder %s29, 3
      %p285 = pnand %p283, %p284
      %p286 = pneg %p285
      // Predicated region
      $region9: #{tpu_custom_call.1} parent=5 // pred_check
        _
      $region10: #{tpu_custom_call.1} parent=5 // pred_check_branch
        %288 = sbr.rel (%p285) target = $region12
      $region11: #{tpu_custom_call.1} parent=5 // pred_region
        %s289 = ssub.s32 %s29, 1
        // Predicated region
        $region13: #{tpu_custom_call.1} parent=11 // pred_check
          %p290 = pneg %p102
        $region14: #{tpu_custom_call.1} parent=11 // pred_check_branch
          %292 = sbr.rel (%p290) target = $region16
        $region15: #{tpu_custom_call.1} parent=11 // pred_region
          %294 = vsyncadd [#allocation6], 0
          %s295 = sshll.u32 %s2, 4
          %s296 = int_to_ptr.hbm [resolvable:$true] %s295
          %s297 = sshll.u32 [#allocation7], 4
          %s298 = int_to_ptr.vmem [resolvable:$true] %s297
          %303 = dma.hbm_to_vmem [thread:$0]  %s296, 32768, %s298, [#allocation6], 128, 128, 8
        $region16: #{tpu_custom_call.1} parent=11 // pred_fallthru
          _
        // Predicated region
        $region17: #{tpu_custom_call.1} parent=11 // pred_check
          %p304 = pneg %p123
        $region18: #{tpu_custom_call.1} parent=11 // pred_check_branch
          %306 = sbr.rel (%p304) target = $region20
        $region19: #{tpu_custom_call.1} parent=11 // pred_region
          %308 = vsyncadd [#allocation9], 0
          %s309 = sshll.u32 %s3, 4
          %s310 = int_to_ptr.hbm [resolvable:$true] %s309
          %s311 = sshll.u32 [#allocation8], 4
          %s312 = int_to_ptr.vmem [resolvable:$true] %s311
          %317 = dma.hbm_to_vmem [thread:$0]  %s310, 2048, %s312, [#allocation9], 128, 128, 8
        $region20: #{tpu_custom_call.1} parent=11 // pred_fallthru
          _
        // Predicated region
        $region21: #{tpu_custom_call.1} parent=11 // pred_check
          %p318 = pneg %p144
        $region22: #{tpu_custom_call.1} parent=11 // pred_check_branch
          %320 = sbr.rel (%p318) target = $region24
        $region23: #{tpu_custom_call.1} parent=11 // pred_region
          %322 = vsyncadd [#allocation9], 0
          %s324 = sshll.u32 %s4, 4
          %s325 = int_to_ptr.hbm [resolvable:$true] %s324
          %s326 = sshll.u32 [#allocation10], 4
          %s327 = int_to_ptr.vmem [resolvable:$true] %s326
          %329 = dma.hbm_to_vmem [thread:$0]  %s325, 16, %s327, [#allocation9]
        $region24: #{tpu_custom_call.1} parent=11 // pred_fallthru
          _
        // Predicated region
        $region25: #{tpu_custom_call.1} parent=11 // pred_check
          %p330 = pneg %p165
        $region26: #{tpu_custom_call.1} parent=11 // pred_check_branch
          %332 = sbr.rel (%p330) target = $region28
        $region27: #{tpu_custom_call.1} parent=11 // pred_region
          %334 = vsyncadd [#allocation12], 0
          %s335 = sshll.u32 %s5, 4
          %s336 = int_to_ptr.hbm [resolvable:$true] %s335
          %s337 = sshll.u32 [#allocation11], 4
          %s338 = int_to_ptr.vmem [resolvable:$true] %s337
          %343 = dma.hbm_to_vmem [thread:$0]  %s336, 4096, %s338, [#allocation12], 256, 256, 16
        $region28: #{tpu_custom_call.1} parent=11 // pred_fallthru
          _
        // Predicated region
        $region29: #{tpu_custom_call.1} parent=11 // pred_check
          %p344 = pneg %p186
        $region30: #{tpu_custom_call.1} parent=11 // pred_check_branch
          %346 = sbr.rel (%p344) target = $region32
        $region31: #{tpu_custom_call.1} parent=11 // pred_region
          %348 = vsyncadd [#allocation12], 0
          %s349 = sshll.u32 %s6, 4
          %s350 = int_to_ptr.hbm [resolvable:$true] %s349
          %s351 = sshll.u32 [#allocation13], 4
          %s352 = int_to_ptr.vmem [resolvable:$true] %s351
          %357 = dma.hbm_to_vmem [thread:$0]  %s350, 512, %s352, [#allocation12], 32, 32, 2
        $region32: #{tpu_custom_call.1} parent=11 // pred_fallthru
          _
        // Predicated region
        $region33: #{tpu_custom_call.1} parent=11 // pred_check
          %p358 = pneg %p207
        $region34: #{tpu_custom_call.1} parent=11 // pred_check_branch
          %360 = sbr.rel (%p358) target = $region36
        $region35: #{tpu_custom_call.1} parent=11 // pred_region
          %362 = vsyncadd [#allocation15], 0
          %s363 = sshll.u32 %s7, 4
          %s364 = int_to_ptr.hbm [resolvable:$true] %s363
          %s365 = sshll.u32 [#allocation14], 4
          %s366 = int_to_ptr.vmem [resolvable:$true] %s365
          %371 = dma.hbm_to_vmem [thread:$0]  %s364, 32768, %s366, [#allocation15], 128, 128, 8
        $region36: #{tpu_custom_call.1} parent=11 // pred_fallthru
          _
        // Predicated region
        $region37: #{tpu_custom_call.1} parent=11 // pred_check
          %p372 = pneg %p228
        $region38: #{tpu_custom_call.1} parent=11 // pred_check_branch
          %374 = sbr.rel (%p372) target = $region40
        $region39: #{tpu_custom_call.1} parent=11 // pred_region
          %376 = vsyncadd [#allocation15], 0
          %s378 = sshll.u32 %s8, 4
          %s379 = int_to_ptr.hbm [resolvable:$true] %s378
          %s380 = sshll.u32 [#allocation16], 4
          %s381 = int_to_ptr.vmem [resolvable:$true] %s380
          %383 = dma.hbm_to_vmem [thread:$0]  %s379, 16, %s381, [#allocation15]
        $region40: #{tpu_custom_call.1} parent=11 // pred_fallthru
          _
        // Predicated region
        $region41: #{tpu_custom_call.1} parent=11 // pred_check
          %p384 = pneg %p249
        $region42: #{tpu_custom_call.1} parent=11 // pred_check_branch
          %386 = sbr.rel (%p384) target = $region44
        $region43: #{tpu_custom_call.1} parent=11 // pred_region
          %388 = vsyncadd [#allocation18], 0
          %s389 = sshll.u32 %s9, 4
          %s390 = int_to_ptr.hbm [resolvable:$true] %s389
          %s391 = sshll.u32 [#allocation17], 4
          %s392 = int_to_ptr.vmem [resolvable:$true] %s391
          %397 = dma.hbm_to_vmem [thread:$0]  %s390, 2048, %s392, [#allocation18], 128, 128, 8
        $region44: #{tpu_custom_call.1} parent=11 // pred_fallthru
          _
      $region12: #{tpu_custom_call.1} parent=5 // pred_fallthru
        _
      %p398 = scmp.lt.s32.totalorder %s29, 2
      // Predicated region
      $region45: #{tpu_custom_call.1} parent=5 // pred_check
        %p399 = pneg %p398
      $region46: #{tpu_custom_call.1} parent=5 // pred_check_branch
        %401 = sbr.rel (%p399) target = $region48
      $region47: #{tpu_custom_call.1} parent=5 // pred_region
        // Predicated region
        $region49: #{tpu_custom_call.1} parent=47 // pred_check
          %p402 = pneg %p49
        $region50: #{tpu_custom_call.1} parent=47 // pred_check_branch
          %404 = sbr.rel (%p402) target = $region52
        $region51: #{tpu_custom_call.1} parent=47 // pred_region
          %s405 = sand.u32 %s39, 1
          %s406 = scalar_lea.sflag [#allocation3], %s405
          %s407 = sand.u32 %s39, 1
          %s408 = smul.addr %s407, 128
          %s409 = scalar_lea.vmem [#allocation2], %s408
          %s410 = smul.u32 16, %s29
          %412 = vsyncadd %s406, 0
          %s413 = smul.addr %s410, 8
          %s414 = scalar_lea.hbm %s0, %s413
          %s415 = sshll.u32 %s414, 4
          %s416 = int_to_ptr.hbm [resolvable:$true] %s415
          %s417 = sshll.u32 %s409, 4
          %s418 = int_to_ptr.vmem [resolvable:$true] %s417
          %423 = dma.hbm_to_vmem [thread:$0]  %s416, 2048, %s418, %s406, 128, 128, 8
        $region52: #{tpu_custom_call.1} parent=47 // pred_fallthru
          _
        // Predicated region
        $region53: #{tpu_custom_call.1} parent=47 // pred_check
          %p424 = pneg %p75
        $region54: #{tpu_custom_call.1} parent=47 // pred_check_branch
          %426 = sbr.rel (%p424) target = $region56
        $region55: #{tpu_custom_call.1} parent=47 // pred_region
          #allocation21 [shape = 'u32[6]{0}', space=smem, size = 0x18, scoped, tag = 'DMA stride descriptor']
          %s427 = sand.u32 %s29, 1
          %s428 = scalar_lea.sflag [#allocation6], %s427
          %s429 = sand.u32 %s65, 1
          %s430 = smul.addr %s429, 2048
          %s431 = scalar_lea.vmem [#allocation5], %s430
          %s432 = smul.u32 16, %s29
          %434 = vsyncadd %s428, 0
          %s435 = smul.addr %s432, 8
          %s436 = scalar_lea.hbm %s1, %s435
          %s438 = sshll.u32 1, 14
          %s439 = sxor.u32 4294967295, %s438
          %s441 = sld [smem:[#allocation0]]
          %s442 = sadd.s32 2, %s441
          %s444 = sshll.u32 7, 26
          %s445 = sxor.u32 4294967295, %s444
          %s446 = sand.u32 0, %s445
          %s447 = sshll.u32 %s442, 26
          %s448 = sor.u32 %s446, %s447
          %s449 = sshll.u32 %s436, 4
          %s450 = int_to_ptr.hbm [resolvable:$true] %s449
          %s451 = sshll.u32 %s431, 4
          %s452 = int_to_ptr.vmem [resolvable:$true] %s451
          %458 = sst [smem:[#allocation21]] 4096
          %s459 = scalar_lea.smem [#allocation21], 1
          %460 = sst [smem:[%s459]] 2048
          %s461 = scalar_lea.smem [#allocation21], 2
          %462 = sst [smem:[%s461]] 16
          %s463 = scalar_lea.smem [#allocation21], 3
          %464 = sst [smem:[%s463]] 128
          %s465 = scalar_lea.smem [#allocation21], 4
          %466 = sst [smem:[%s465]] 128
          %s467 = scalar_lea.smem [#allocation21], 5
          %468 = sst [smem:[%s467]] 8
          %470 = dma.general %s450, 32768, %s452, %s428, [#allocation20], [#allocation21], %s448, 0
        $region56: #{tpu_custom_call.1} parent=47 // pred_fallthru
          _
      $region48: #{tpu_custom_call.1} parent=5 // pred_fallthru
        _
      %p471 = scmp.le.s32.totalorder 1, %s29
      %p472 = scmp.lt.s32.totalorder %s29, 3
      %p473 = pnand %p471, %p472
      %p474 = pneg %p473
      // Predicated region
      $region57: #{tpu_custom_call.1} parent=5 // pred_check
        _
      $region58: #{tpu_custom_call.1} parent=5 // pred_check_branch
        %476 = sbr.rel (%p473) target = $region60
      $region59: #{tpu_custom_call.1} parent=5 // pred_region
        %s477 = ssub.s32 %s29, 1
        %s478 = sand.u32 %s42, 1
        %s479 = scalar_lea.sflag [#allocation3], %s478
        %s480 = sand.u32 %s42, 1
        %s481 = smul.addr %s480, 128
        %s482 = scalar_lea.vmem [#allocation2], %s481
        // Predicated region
        $region61: #{tpu_custom_call.1} parent=59 // pred_check
          %p483 = pneg %p55
        $region62: #{tpu_custom_call.1} parent=59 // pred_check_branch
          %485 = sbr.rel (%p483) target = $region64
        $region63: #{tpu_custom_call.1} parent=59 // pred_region
          %487 = dma.done %s479, 2048
        $region64: #{tpu_custom_call.1} parent=59 // pred_fallthru
          _
        %s488 = sand.u32 %s34, 1
        %s489 = scalar_lea.sflag [#allocation6], %s488
        %s490 = sand.u32 %s68, 1
        %s491 = smul.addr %s490, 2048
        %s492 = scalar_lea.vmem [#allocation5], %s491
        // Predicated region
        $region65: #{tpu_custom_call.1} parent=59 // pred_check
          %p493 = pneg %p81
        $region66: #{tpu_custom_call.1} parent=59 // pred_check_branch
          %495 = sbr.rel (%p493) target = $region68
        $region67: #{tpu_custom_call.1} parent=59 // pred_region
          %497 = dma.done %s489, 32768
        $region68: #{tpu_custom_call.1} parent=59 // pred_fallthru
          _
        // Predicated region
        $region69: #{tpu_custom_call.1} parent=59 // pred_check
          %p498 = pneg %p102
        $region70: #{tpu_custom_call.1} parent=59 // pred_check_branch
          %500 = sbr.rel (%p498) target = $region72
        $region71: #{tpu_custom_call.1} parent=59 // pred_region
          %502 = dma.done [#allocation6], 32768
        $region72: #{tpu_custom_call.1} parent=59 // pred_fallthru
          _
        // Predicated region
        $region73: #{tpu_custom_call.1} parent=59 // pred_check
          %p503 = pneg %p123
        $region74: #{tpu_custom_call.1} parent=59 // pred_check_branch
          %505 = sbr.rel (%p503) target = $region76
        $region75: #{tpu_custom_call.1} parent=59 // pred_region
          %507 = dma.done [#allocation9], 2048
        $region76: #{tpu_custom_call.1} parent=59 // pred_fallthru
          _
        // Predicated region
        $region77: #{tpu_custom_call.1} parent=59 // pred_check
          %p508 = pneg %p144
        $region78: #{tpu_custom_call.1} parent=59 // pred_check_branch
          %510 = sbr.rel (%p508) target = $region80
        $region79: #{tpu_custom_call.1} parent=59 // pred_region
          %512 = dma.done [#allocation9], 16
        $region80: #{tpu_custom_call.1} parent=59 // pred_fallthru
          _
        // Predicated region
        $region81: #{tpu_custom_call.1} parent=59 // pred_check
          %p513 = pneg %p165
        $region82: #{tpu_custom_call.1} parent=59 // pred_check_branch
          %515 = sbr.rel (%p513) target = $region84
        $region83: #{tpu_custom_call.1} parent=59 // pred_region
          %517 = dma.done [#allocation12], 4096
        $region84: #{tpu_custom_call.1} parent=59 // pred_fallthru
          _
        // Predicated region
        $region85: #{tpu_custom_call.1} parent=59 // pred_check
          %p518 = pneg %p186
        $region86: #{tpu_custom_call.1} parent=59 // pred_check_branch
          %520 = sbr.rel (%p518) target = $region88
        $region87: #{tpu_custom_call.1} parent=59 // pred_region
          %522 = dma.done [#allocation12], 512
        $region88: #{tpu_custom_call.1} parent=59 // pred_fallthru
          _
        // Predicated region
        $region89: #{tpu_custom_call.1} parent=59 // pred_check
          %p523 = pneg %p207
        $region90: #{tpu_custom_call.1} parent=59 // pred_check_branch
          %525 = sbr.rel (%p523) target = $region92
        $region91: #{tpu_custom_call.1} parent=59 // pred_region
          %527 = dma.done [#allocation15], 32768
        $region92: #{tpu_custom_call.1} parent=59 // pred_fallthru
          _
        // Predicated region
        $region93: #{tpu_custom_call.1} parent=59 // pred_check
          %p528 = pneg %p228
        $region94: #{tpu_custom_call.1} parent=59 // pred_check_branch
          %530 = sbr.rel (%p528) target = $region96
        $region95: #{tpu_custom_call.1} parent=59 // pred_region
          %532 = dma.done [#allocation15], 16
        $region96: #{tpu_custom_call.1} parent=59 // pred_fallthru
          _
        // Predicated region
        $region97: #{tpu_custom_call.1} parent=59 // pred_check
          %p533 = pneg %p249
        $region98: #{tpu_custom_call.1} parent=59 // pred_check_branch
          %535 = sbr.rel (%p533) target = $region100
        $region99: #{tpu_custom_call.1} parent=59 // pred_region
          %537 = dma.done [#allocation18], 2048
        $region100: #{tpu_custom_call.1} parent=59 // pred_fallthru
          _
        %s538 = sand.u32 %s42, 1
        %s539 = scalar_lea.sflag [#allocation3], %s538
        %s540 = sand.u32 %s42, 1
        %s541 = smul.addr %s540, 128
        %s542 = scalar_lea.vmem [#allocation2], %s541
        %p543 = pneg %p55
        %p544 = pneg %p52
        %s545 = sand.u32 %s34, 1
        %s546 = scalar_lea.sflag [#allocation6], %s545
        %s547 = sand.u32 %s68, 1
        %s548 = smul.addr %s547, 2048
        %s549 = scalar_lea.vmem [#allocation5], %s548
        %p550 = pneg %p81
        %p551 = pneg %p78
        %p552 = pneg %p102
        %p553 = pneg %p99
        %p554 = pneg %p123
        %p555 = pneg %p120
        %p556 = pneg %p144
        %p557 = pneg %p141
        %p558 = pneg %p165
        %p559 = pneg %p162
        %p560 = pneg %p186
        %p561 = pneg %p183
        %p562 = pneg %p207
        %p563 = pneg %p204
        %p564 = pneg %p228
        %p565 = pneg %p225
        %p566 = pneg %p249
        %p567 = pneg %p246
        %p568 = pneg %p275
        %p569 = pneg %p272
        %s570 = sand.u32 %s262, 1
        %s571 = scalar_lea.sflag [#allocation4], %s570
        %s572 = sand.u32 %s262, 1
        %s573 = smul.addr %s572, 128
        %s574 = scalar_lea.vmem [#allocation19], %s573
        %s575 = smul.u32 16, %s34
        %s576 = smul.u32 16, %s34
        %s577 = smul.u32 16, %s34
        %v578 = vld [vmem:[%s482] sm:$0xff]
        %v579 = vld [vmem:[%s482 + $0x8] sm:$0xff]
        %v580 = vld [vmem:[%s482 + $0x10] sm:$0xff]
        %v581 = vld [vmem:[%s482 + $0x18] sm:$0xff]
        %v582 = vld [vmem:[%s482 + $0x20] sm:$0xff]
        %v583 = vld [vmem:[%s482 + $0x28] sm:$0xff]
        %v584 = vld [vmem:[%s482 + $0x30] sm:$0xff]
        %v585 = vld [vmem:[%s482 + $0x38] sm:$0xff]
        %v586 = vld [vmem:[%s482 + $0x40] sm:$0xff]
        %v587 = vld [vmem:[%s482 + $0x48] sm:$0xff]
        %v588 = vld [vmem:[%s482 + $0x50] sm:$0xff]
        %v589 = vld [vmem:[%s482 + $0x58] sm:$0xff]
        %v590 = vld [vmem:[%s482 + $0x60] sm:$0xff]
        %v591 = vld [vmem:[%s482 + $0x68] sm:$0xff]
        %v592 = vld [vmem:[%s482 + $0x70] sm:$0xff]
        %v593 = vld [vmem:[%s482 + $0x78] sm:$0xff]
        %v594 = vld [vmem:[#allocation8] sm:$0xff]
        %v595 = vld [vmem:[#allocation8 + $0x8] sm:$0xff]
        %v596 = vld [vmem:[#allocation8 + $0x10] sm:$0xff]
        %v597 = vld [vmem:[#allocation8 + $0x18] sm:$0xff]
        %v598 = vld [vmem:[#allocation8 + $0x20] sm:$0xff]
        %v599 = vld [vmem:[#allocation8 + $0x28] sm:$0xff]
        %v600 = vld [vmem:[#allocation8 + $0x30] sm:$0xff]
        %v601 = vld [vmem:[#allocation8 + $0x38] sm:$0xff]
        %v602 = vld [vmem:[#allocation8 + $0x40] sm:$0xff]
        %v603 = vld [vmem:[#allocation8 + $0x48] sm:$0xff]
        %v604 = vld [vmem:[#allocation8 + $0x50] sm:$0xff]
        %v605 = vld [vmem:[#allocation8 + $0x58] sm:$0xff]
        %v606 = vld [vmem:[#allocation8 + $0x60] sm:$0xff]
        %v607 = vld [vmem:[#allocation8 + $0x68] sm:$0xff]
        %v608 = vld [vmem:[#allocation8 + $0x70] sm:$0xff]
        %v609 = vld [vmem:[#allocation8 + $0x78] sm:$0xff]
        %v610 = vld [vmem:[#allocation10] sm:$0x1]
        %v612 = vperm.slane %v610, 0
        %614 = vmatpush.msra.mxu0 %v609
        %615 = vmatpush.msra.mxu0 %v608
        %616 = vmatpush.msra.mxu0 %v607
        %617 = vmatpush.msra.mxu0 %v606
        %618 = vmatpush.msra.mxu0 %v605
        %619 = vmatpush.msra.mxu0 %v604
        %620 = vmatpush.msra.mxu0 %v603
        %621 = vmatpush.msra.mxu0 %v602
        %622 = vmatpush.msra.mxu0 %v601
        %623 = vmatpush.msra.mxu0 %v600
        %624 = vmatpush.msra.mxu0 %v599
        %625 = vmatpush.msra.mxu0 %v598
        %626 = vmatpush.msra.mxu0 %v597
        %627 = vmatpush.msra.mxu0 %v596
        %628 = vmatpush.msra.mxu0 %v595
        %629 = vmatpush.msra.mxu0 %v594
        %630 = vmatmul.f32.gmra.mxu0 %v578
        %v631 = vpop.f32.mrf.mxu0
        %v632 = vadd.f32 %v612, %v631
        %633 = vmatmul.f32.gmra.mxu0 %v579
        %v634 = vpop.f32.mrf.mxu0
        %v635 = vadd.f32 %v612, %v634
        %636 = vmatmul.f32.gmra.mxu0 %v580
        %v637 = vpop.f32.mrf.mxu0
        %v638 = vadd.f32 %v612, %v637
        %639 = vmatmul.f32.gmra.mxu0 %v581
        %v640 = vpop.f32.mrf.mxu0
        %v641 = vadd.f32 %v612, %v640
        %642 = vmatmul.f32.gmra.mxu0 %v582
        %v643 = vpop.f32.mrf.mxu0
        %v644 = vadd.f32 %v612, %v643
        %645 = vmatmul.f32.gmra.mxu0 %v583
        %v646 = vpop.f32.mrf.mxu0
        %v647 = vadd.f32 %v612, %v646
        %648 = vmatmul.f32.gmra.mxu0 %v584
        %v649 = vpop.f32.mrf.mxu0
        %v650 = vadd.f32 %v612, %v649
        %651 = vmatmul.f32.gmra.mxu0 %v585
        %v652 = vpop.f32.mrf.mxu0
        %v653 = vadd.f32 %v612, %v652
        %654 = vmatmul.f32.gmra.mxu0 %v586
        %v655 = vpop.f32.mrf.mxu0
        %v656 = vadd.f32 %v612, %v655
        %657 = vmatmul.f32.gmra.mxu0 %v587
        %v658 = vpop.f32.mrf.mxu0
        %v659 = vadd.f32 %v612, %v658
        %660 = vmatmul.f32.gmra.mxu0 %v588
        %v661 = vpop.f32.mrf.mxu0
        %v662 = vadd.f32 %v612, %v661
        %663 = vmatmul.f32.gmra.mxu0 %v589
        %v664 = vpop.f32.mrf.mxu0
        %v665 = vadd.f32 %v612, %v664
        %666 = vmatmul.f32.gmra.mxu0 %v590
        %v667 = vpop.f32.mrf.mxu0
        %v668 = vadd.f32 %v612, %v667
        %669 = vmatmul.f32.gmra.mxu0 %v591
        %v670 = vpop.f32.mrf.mxu0
        %v671 = vadd.f32 %v612, %v670
        %672 = vmatmul.f32.gmra.mxu0 %v592
        %v673 = vpop.f32.mrf.mxu0
        %v674 = vadd.f32 %v612, %v673
        %675 = vmatmul.f32.gmra.mxu0 %v593
        %v676 = vpop.f32.mrf.mxu0
        %v677 = vadd.f32 %v612, %v676
        %678 = vdwg.mxu0
        %v679 = vld [vmem:[#allocation11] sm:$0xff]
        %v680 = vld [vmem:[#allocation11 + $0x8] sm:$0xff]
        %v681 = vld [vmem:[#allocation11 + $0x10] sm:$0xff]
        %v682 = vld [vmem:[#allocation11 + $0x18] sm:$0xff]
        %v683 = vld [vmem:[#allocation11 + $0x20] sm:$0xff]
        %v684 = vld [vmem:[#allocation11 + $0x28] sm:$0xff]
        %v685 = vld [vmem:[#allocation11 + $0x30] sm:$0xff]
        %v686 = vld [vmem:[#allocation11 + $0x38] sm:$0xff]
        %v687 = vld [vmem:[#allocation11 + $0x40] sm:$0xff]
        %v688 = vld [vmem:[#allocation11 + $0x48] sm:$0xff]
        %v689 = vld [vmem:[#allocation11 + $0x50] sm:$0xff]
        %v690 = vld [vmem:[#allocation11 + $0x58] sm:$0xff]
        %v691 = vld [vmem:[#allocation11 + $0x60] sm:$0xff]
        %v692 = vld [vmem:[#allocation11 + $0x68] sm:$0xff]
        %v693 = vld [vmem:[#allocation11 + $0x70] sm:$0xff]
        %v694 = vld [vmem:[#allocation11 + $0x78] sm:$0xff]
        %v695 = vld [vmem:[#allocation11 + $0x80] sm:$0xff]
        %v696 = vld [vmem:[#allocation11 + $0x88] sm:$0xff]
        %v697 = vld [vmem:[#allocation11 + $0x90] sm:$0xff]
        %v698 = vld [vmem:[#allocation11 + $0x98] sm:$0xff]
        %v699 = vld [vmem:[#allocation11 + $0xa0] sm:$0xff]
        %v700 = vld [vmem:[#allocation11 + $0xa8] sm:$0xff]
        %v701 = vld [vmem:[#allocation11 + $0xb0] sm:$0xff]
        %v702 = vld [vmem:[#allocation11 + $0xb8] sm:$0xff]
        %v703 = vld [vmem:[#allocation11 + $0xc0] sm:$0xff]
        %v704 = vld [vmem:[#allocation11 + $0xc8] sm:$0xff]
        %v705 = vld [vmem:[#allocation11 + $0xd0] sm:$0xff]
        %v706 = vld [vmem:[#allocation11 + $0xd8] sm:$0xff]
        %v707 = vld [vmem:[#allocation11 + $0xe0] sm:$0xff]
        %v708 = vld [vmem:[#allocation11 + $0xe8] sm:$0xff]
        %v709 = vld [vmem:[#allocation11 + $0xf0] sm:$0xff]
        %v710 = vld [vmem:[#allocation11 + $0xf8] sm:$0xff]
        %v711 = vld [vmem:[#allocation17] sm:$0xff]
        %v712 = vld [vmem:[#allocation17 + $0x8] sm:$0xff]
        %v713 = vld [vmem:[#allocation17 + $0x10] sm:$0xff]
        %v714 = vld [vmem:[#allocation17 + $0x18] sm:$0xff]
        %v715 = vld [vmem:[#allocation17 + $0x20] sm:$0xff]
        %v716 = vld [vmem:[#allocation17 + $0x28] sm:$0xff]
        %v717 = vld [vmem:[#allocation17 + $0x30] sm:$0xff]
        %v718 = vld [vmem:[#allocation17 + $0x38] sm:$0xff]
        %v719 = vld [vmem:[#allocation17 + $0x40] sm:$0xff]
        %v720 = vld [vmem:[#allocation17 + $0x48] sm:$0xff]
        %v721 = vld [vmem:[#allocation17 + $0x50] sm:$0xff]
        %v722 = vld [vmem:[#allocation17 + $0x58] sm:$0xff]
        %v723 = vld [vmem:[#allocation17 + $0x60] sm:$0xff]
        %v724 = vld [vmem:[#allocation17 + $0x68] sm:$0xff]
        %v725 = vld [vmem:[#allocation17 + $0x70] sm:$0xff]
        %v726 = vld [vmem:[#allocation17 + $0x78] sm:$0xff]
        %v727 = vld [vmem:[#allocation7] sm:$0xff]
        %v728 = vld [vmem:[#allocation7 + $0x8] sm:$0xff]
        %v729 = vld [vmem:[#allocation7 + $0x10] sm:$0xff]
        %v730 = vld [vmem:[#allocation7 + $0x18] sm:$0xff]
        %v731 = vld [vmem:[#allocation7 + $0x20] sm:$0xff]
        %v732 = vld [vmem:[#allocation7 + $0x28] sm:$0xff]
        %v733 = vld [vmem:[#allocation7 + $0x30] sm:$0xff]
        %v734 = vld [vmem:[#allocation7 + $0x38] sm:$0xff]
        %v735 = vld [vmem:[#allocation7 + $0x40] sm:$0xff]
        %v736 = vld [vmem:[#allocation7 + $0x48] sm:$0xff]
        %v737 = vld [vmem:[#allocation7 + $0x50] sm:$0xff]
        %v738 = vld [vmem:[#allocation7 + $0x58] sm:$0xff]
        %v739 = vld [vmem:[#allocation7 + $0x60] sm:$0xff]
        %v740 = vld [vmem:[#allocation7 + $0x68] sm:$0xff]
        %v741 = vld [vmem:[#allocation7 + $0x70] sm:$0xff]
        %v742 = vld [vmem:[#allocation7 + $0x78] sm:$0xff]
        %v743 = vld [vmem:[%s492] sm:$0xff]
        %v744 = vld [vmem:[%s492 + $0x8] sm:$0xff]
        %v745 = vld [vmem:[%s492 + $0x10] sm:$0xff]
        %v746 = vld [vmem:[%s492 + $0x18] sm:$0xff]
        %v747 = vld [vmem:[%s492 + $0x20] sm:$0xff]
        %v748 = vld [vmem:[%s492 + $0x28] sm:$0xff]
        %v749 = vld [vmem:[%s492 + $0x30] sm:$0xff]
        %v750 = vld [vmem:[%s492 + $0x38] sm:$0xff]
        %v751 = vld [vmem:[%s492 + $0x40] sm:$0xff]
        %v752 = vld [vmem:[%s492 + $0x48] sm:$0xff]
        %v753 = vld [vmem:[%s492 + $0x50] sm:$0xff]
        %v754 = vld [vmem:[%s492 + $0x58] sm:$0xff]
        %v755 = vld [vmem:[%s492 + $0x60] sm:$0xff]
        %v756 = vld [vmem:[%s492 + $0x68] sm:$0xff]
        %v757 = vld [vmem:[%s492 + $0x70] sm:$0xff]
        %v758 = vld [vmem:[%s492 + $0x78] sm:$0xff]
        %759 = vmatpush.msra.mxu0 %v742
        %760 = vmatpush.msra.mxu0 %v741
        %761 = vmatpush.msra.mxu0 %v740
        %762 = vmatpush.msra.mxu0 %v739
        %763 = vmatpush.msra.mxu0 %v738
        %764 = vmatpush.msra.mxu0 %v737
        %765 = vmatpush.msra.mxu0 %v736
        %766 = vmatpush.msra.mxu0 %v735
        %767 = vmatpush.msra.mxu0 %v734
        %768 = vmatpush.msra.mxu0 %v733
        %769 = vmatpush.msra.mxu0 %v732
        %770 = vmatpush.msra.mxu0 %v731
        %771 = vmatpush.msra.mxu0 %v730
        %772 = vmatpush.msra.mxu0 %v729
        %773 = vmatpush.msra.mxu0 %v728
        %774 = vmatpush.msra.mxu0 %v727
        %775 = vmatmul.f32.gmra.mxu0 %v578
        %v776 = vpop.f32.mrf.mxu0
        %v777 = vadd.f32 %v743, %v776
        %778 = vmatmul.f32.gmra.mxu0 %v579
        %v779 = vpop.f32.mrf.mxu0
        %v780 = vadd.f32 %v744, %v779
        %781 = vmatmul.f32.gmra.mxu0 %v580
        %v782 = vpop.f32.mrf.mxu0
        %v783 = vadd.f32 %v745, %v782
        %784 = vmatmul.f32.gmra.mxu0 %v581
        %v785 = vpop.f32.mrf.mxu0
        %v786 = vadd.f32 %v746, %v785
        %787 = vmatmul.f32.gmra.mxu0 %v582
        %v788 = vpop.f32.mrf.mxu0
        %v789 = vadd.f32 %v747, %v788
        %790 = vmatmul.f32.gmra.mxu0 %v583
        %v791 = vpop.f32.mrf.mxu0
        %v792 = vadd.f32 %v748, %v791
        %793 = vmatmul.f32.gmra.mxu0 %v584
        %v794 = vpop.f32.mrf.mxu0
        %v795 = vadd.f32 %v749, %v794
        %796 = vmatmul.f32.gmra.mxu0 %v585
        %v797 = vpop.f32.mrf.mxu0
        %v798 = vadd.f32 %v750, %v797
        %799 = vmatmul.f32.gmra.mxu0 %v586
        %v800 = vpop.f32.mrf.mxu0
        %v801 = vadd.f32 %v751, %v800
        %802 = vmatmul.f32.gmra.mxu0 %v587
        %v803 = vpop.f32.mrf.mxu0
        %v804 = vadd.f32 %v752, %v803
        %805 = vmatmul.f32.gmra.mxu0 %v588
        %v806 = vpop.f32.mrf.mxu0
        %v807 = vadd.f32 %v753, %v806
        %808 = vmatmul.f32.gmra.mxu0 %v589
        %v809 = vpop.f32.mrf.mxu0
        %v810 = vadd.f32 %v754, %v809
        %811 = vmatmul.f32.gmra.mxu0 %v590
        %v812 = vpop.f32.mrf.mxu0
        %v813 = vadd.f32 %v755, %v812
        %814 = vmatmul.f32.gmra.mxu0 %v591
        %v815 = vpop.f32.mrf.mxu0
        %v816 = vadd.f32 %v756, %v815
        %817 = vmatmul.f32.gmra.mxu0 %v592
        %v818 = vpop.f32.mrf.mxu0
        %v819 = vadd.f32 %v757, %v818
        %820 = vmatmul.f32.gmra.mxu0 %v593
        %v821 = vpop.f32.mrf.mxu0
        %v822 = vadd.f32 %v758, %v821
        %823 = vdwg.mxu0
        %v824 = vld [vmem:[#allocation13] sm:$0x3]
        %v826 = vperm.slane %v824, 0
        %v827 = vperm.slane %v824, 1
        %830 = vmatpush.msra.mxu0 %v709
        %831 = vmatpush.msra.mxu0 %v707
        %832 = vmatpush.msra.mxu0 %v705
        %833 = vmatpush.msra.mxu0 %v703
        %834 = vmatpush.msra.mxu0 %v701
        %835 = vmatpush.msra.mxu0 %v699
        %836 = vmatpush.msra.mxu0 %v697
        %837 = vmatpush.msra.mxu0 %v695
        %838 = vmatpush.msra.mxu0 %v693
        %839 = vmatpush.msra.mxu0 %v691
        %840 = vmatpush.msra.mxu0 %v689
        %841 = vmatpush.msra.mxu0 %v687
        %842 = vmatpush.msra.mxu0 %v685
        %843 = vmatpush.msra.mxu0 %v683
        %844 = vmatpush.msra.mxu0 %v681
        %845 = vmatpush.msra.mxu0 %v679
        %846 = vmatmul.f32.gmra.mxu0 %v777
        %v847 = vpop.f32.mrf.mxu0
        %v848 = vadd.f32 %v826, %v847
        %849 = vmatmul.f32.gmra.mxu0 %v780
        %v850 = vpop.f32.mrf.mxu0
        %v851 = vadd.f32 %v826, %v850
        %852 = vmatmul.f32.gmra.mxu0 %v783
        %v853 = vpop.f32.mrf.mxu0
        %v854 = vadd.f32 %v826, %v853
        %855 = vmatmul.f32.gmra.mxu0 %v786
        %v856 = vpop.f32.mrf.mxu0
        %v857 = vadd.f32 %v826, %v856
        %858 = vmatmul.f32.gmra.mxu0 %v789
        %v859 = vpop.f32.mrf.mxu0
        %v860 = vadd.f32 %v826, %v859
        %861 = vmatmul.f32.gmra.mxu0 %v792
        %v862 = vpop.f32.mrf.mxu0
        %v863 = vadd.f32 %v826, %v862
        %864 = vmatmul.f32.gmra.mxu0 %v795
        %v865 = vpop.f32.mrf.mxu0
        %v866 = vadd.f32 %v826, %v865
        %867 = vmatmul.f32.gmra.mxu0 %v798
        %v868 = vpop.f32.mrf.mxu0
        %v869 = vadd.f32 %v826, %v868
        %870 = vmatmul.f32.gmra.mxu0 %v801
        %v871 = vpop.f32.mrf.mxu0
        %v872 = vadd.f32 %v826, %v871
        %873 = vmatmul.f32.gmra.mxu0 %v804
        %v874 = vpop.f32.mrf.mxu0
        %v875 = vadd.f32 %v826, %v874
        %876 = vmatmul.f32.gmra.mxu0 %v807
        %v877 = vpop.f32.mrf.mxu0
        %v878 = vadd.f32 %v826, %v877
        %879 = vmatmul.f32.gmra.mxu0 %v810
        %v880 = vpop.f32.mrf.mxu0
        %v881 = vadd.f32 %v826, %v880
        %882 = vmatmul.f32.gmra.mxu0 %v813
        %v883 = vpop.f32.mrf.mxu0
        %v884 = vadd.f32 %v826, %v883
        %885 = vmatmul.f32.gmra.mxu0 %v816
        %v886 = vpop.f32.mrf.mxu0
        %v887 = vadd.f32 %v826, %v886
        %888 = vmatmul.f32.gmra.mxu0 %v819
        %v889 = vpop.f32.mrf.mxu0
        %v890 = vadd.f32 %v826, %v889
        %891 = vmatmul.f32.gmra.mxu0 %v822
        %v892 = vpop.f32.mrf.mxu0
        %v893 = vadd.f32 %v826, %v892
        %894 = vdwg.mxu0
        %895 = vmatpush.msra.mxu0 %v710
        %896 = vmatpush.msra.mxu0 %v708
        %897 = vmatpush.msra.mxu0 %v706
        %898 = vmatpush.msra.mxu0 %v704
        %899 = vmatpush.msra.mxu0 %v702
        %900 = vmatpush.msra.mxu0 %v700
        %901 = vmatpush.msra.mxu0 %v698
        %902 = vmatpush.msra.mxu0 %v696
        %903 = vmatpush.msra.mxu0 %v694
        %904 = vmatpush.msra.mxu0 %v692
        %905 = vmatpush.msra.mxu0 %v690
        %906 = vmatpush.msra.mxu0 %v688
        %907 = vmatpush.msra.mxu0 %v686
        %908 = vmatpush.msra.mxu0 %v684
        %909 = vmatpush.msra.mxu0 %v682
        %910 = vmatpush.msra.mxu0 %v680
        %911 = vmatmul.f32.gmra.mxu0 %v777
        %v912 = vpop.f32.mrf.mxu0
        %v913 = vadd.f32 %v827, %v912
        %914 = vmatmul.f32.gmra.mxu0 %v780
        %v915 = vpop.f32.mrf.mxu0
        %v916 = vadd.f32 %v827, %v915
        %917 = vmatmul.f32.gmra.mxu0 %v783
        %v918 = vpop.f32.mrf.mxu0
        %v919 = vadd.f32 %v827, %v918
        %920 = vmatmul.f32.gmra.mxu0 %v786
        %v921 = vpop.f32.mrf.mxu0
        %v922 = vadd.f32 %v827, %v921
        %923 = vmatmul.f32.gmra.mxu0 %v789
        %v924 = vpop.f32.mrf.mxu0
        %v925 = vadd.f32 %v827, %v924
        %926 = vmatmul.f32.gmra.mxu0 %v792
        %v927 = vpop.f32.mrf.mxu0
        %v928 = vadd.f32 %v827, %v927
        %929 = vmatmul.f32.gmra.mxu0 %v795
        %v930 = vpop.f32.mrf.mxu0
        %v931 = vadd.f32 %v827, %v930
        %932 = vmatmul.f32.gmra.mxu0 %v798
        %v933 = vpop.f32.mrf.mxu0
        %v934 = vadd.f32 %v827, %v933
        %935 = vmatmul.f32.gmra.mxu0 %v801
        %v936 = vpop.f32.mrf.mxu0
        %v937 = vadd.f32 %v827, %v936
        %938 = vmatmul.f32.gmra.mxu0 %v804
        %v939 = vpop.f32.mrf.mxu0
        %v940 = vadd.f32 %v827, %v939
        %941 = vmatmul.f32.gmra.mxu0 %v807
        %v942 = vpop.f32.mrf.mxu0
        %v943 = vadd.f32 %v827, %v942
        %944 = vmatmul.f32.gmra.mxu0 %v810
        %v945 = vpop.f32.mrf.mxu0
        %v946 = vadd.f32 %v827, %v945
        %947 = vmatmul.f32.gmra.mxu0 %v813
        %v948 = vpop.f32.mrf.mxu0
        %v949 = vadd.f32 %v827, %v948
        %950 = vmatmul.f32.gmra.mxu0 %v816
        %v951 = vpop.f32.mrf.mxu0
        %v952 = vadd.f32 %v827, %v951
        %953 = vmatmul.f32.gmra.mxu0 %v819
        %v954 = vpop.f32.mrf.mxu0
        %v955 = vadd.f32 %v827, %v954
        %956 = vmatmul.f32.gmra.mxu0 %v822
        %v957 = vpop.f32.mrf.mxu0
        %v958 = vadd.f32 %v827, %v957
        %959 = vdwg.mxu0
        %v960 = vmul.f32 %v848, %v632
        %v961 = vmul.f32 %v851, %v635
        %v962 = vmul.f32 %v854, %v638
        %v963 = vmul.f32 %v857, %v641
        %v964 = vmul.f32 %v860, %v644
        %v965 = vmul.f32 %v863, %v647
        %v966 = vmul.f32 %v866, %v650
        %v967 = vmul.f32 %v869, %v653
        %v968 = vmul.f32 %v872, %v656
        %v969 = vmul.f32 %v875, %v659
        %v970 = vmul.f32 %v878, %v662
        %v971 = vmul.f32 %v881, %v665
        %v972 = vmul.f32 %v884, %v668
        %v973 = vmul.f32 %v887, %v671
        %v974 = vmul.f32 %v890, %v674
        %v975 = vmul.f32 %v893, %v677
        %976 = vmatpush.msra.mxu0 %v726
        %977 = vmatpush.msra.mxu0 %v725
        %978 = vmatpush.msra.mxu0 %v724
        %979 = vmatpush.msra.mxu0 %v723
        %980 = vmatpush.msra.mxu0 %v722
        %981 = vmatpush.msra.mxu0 %v721
        %982 = vmatpush.msra.mxu0 %v720
        %983 = vmatpush.msra.mxu0 %v719
        %984 = vmatpush.msra.mxu0 %v718
        %985 = vmatpush.msra.mxu0 %v717
        %986 = vmatpush.msra.mxu0 %v716
        %987 = vmatpush.msra.mxu0 %v715
        %988 = vmatpush.msra.mxu0 %v714
        %989 = vmatpush.msra.mxu0 %v713
        %990 = vmatpush.msra.mxu0 %v712
        %991 = vmatpush.msra.mxu0 %v711
        %992 = vmatmul.f32.gmra.mxu0 %v960
        %v993 = vpop.f32.mrf.mxu0
        %v994 = vadd.f32 0.0, %v993
        %995 = vmatmul.f32.gmra.mxu0 %v961
        %v996 = vpop.f32.mrf.mxu0
        %v997 = vadd.f32 0.0, %v996
        %998 = vmatmul.f32.gmra.mxu0 %v962
        %v999 = vpop.f32.mrf.mxu0
        %v1000 = vadd.f32 0.0, %v999
        %1001 = vmatmul.f32.gmra.mxu0 %v963
        %v1002 = vpop.f32.mrf.mxu0
        %v1003 = vadd.f32 0.0, %v1002
        %1004 = vmatmul.f32.gmra.mxu0 %v964
        %v1005 = vpop.f32.mrf.mxu0
        %v1006 = vadd.f32 0.0, %v1005
        %1007 = vmatmul.f32.gmra.mxu0 %v965
        %v1008 = vpop.f32.mrf.mxu0
        %v1009 = vadd.f32 0.0, %v1008
        %1010 = vmatmul.f32.gmra.mxu0 %v966
        %v1011 = vpop.f32.mrf.mxu0
        %v1012 = vadd.f32 0.0, %v1011
        %1013 = vmatmul.f32.gmra.mxu0 %v967
        %v1014 = vpop.f32.mrf.mxu0
        %v1015 = vadd.f32 0.0, %v1014
        %1016 = vmatmul.f32.gmra.mxu0 %v968
        %v1017 = vpop.f32.mrf.mxu0
        %v1018 = vadd.f32 0.0, %v1017
        %1019 = vmatmul.f32.gmra.mxu0 %v969
        %v1020 = vpop.f32.mrf.mxu0
        %v1021 = vadd.f32 0.0, %v1020
        %1022 = vmatmul.f32.gmra.mxu0 %v970
        %v1023 = vpop.f32.mrf.mxu0
        %v1024 = vadd.f32 0.0, %v1023
        %1025 = vmatmul.f32.gmra.mxu0 %v971
        %v1026 = vpop.f32.mrf.mxu0
        %v1027 = vadd.f32 0.0, %v1026
        %1028 = vmatmul.f32.gmra.mxu0 %v972
        %v1029 = vpop.f32.mrf.mxu0
        %v1030 = vadd.f32 0.0, %v1029
        %1031 = vmatmul.f32.gmra.mxu0 %v973
        %v1032 = vpop.f32.mrf.mxu0
        %v1033 = vadd.f32 0.0, %v1032
        %1034 = vmatmul.f32.gmra.mxu0 %v974
        %v1035 = vpop.f32.mrf.mxu0
        %v1036 = vadd.f32 0.0, %v1035
        %1037 = vmatmul.f32.gmra.mxu0 %v975
        %v1038 = vpop.f32.mrf.mxu0
        %v1039 = vadd.f32 0.0, %v1038
        %1040 = vdwg.mxu0
        %v1041 = vmul.f32 %v913, %v994
        %v1042 = vmul.f32 %v916, %v997
        %v1043 = vmul.f32 %v919, %v1000
        %v1044 = vmul.f32 %v922, %v1003
        %v1045 = vmul.f32 %v925, %v1006
        %v1046 = vmul.f32 %v928, %v1009
        %v1047 = vmul.f32 %v931, %v1012
        %v1048 = vmul.f32 %v934, %v1015
        %v1049 = vmul.f32 %v937, %v1018
        %v1050 = vmul.f32 %v940, %v1021
        %v1051 = vmul.f32 %v943, %v1024
        %v1052 = vmul.f32 %v946, %v1027
        %v1053 = vmul.f32 %v949, %v1030
        %v1054 = vmul.f32 %v952, %v1033
        %v1055 = vmul.f32 %v955, %v1036
        %v1056 = vmul.f32 %v958, %v1039
        %v1057 = vld [vmem:[#allocation14] sm:$0xff]
        %v1058 = vld [vmem:[#allocation14 + $0x8] sm:$0xff]
        %v1059 = vld [vmem:[#allocation14 + $0x10] sm:$0xff]
        %v1060 = vld [vmem:[#allocation14 + $0x18] sm:$0xff]
        %v1061 = vld [vmem:[#allocation14 + $0x20] sm:$0xff]
        %v1062 = vld [vmem:[#allocation14 + $0x28] sm:$0xff]
        %v1063 = vld [vmem:[#allocation14 + $0x30] sm:$0xff]
        %v1064 = vld [vmem:[#allocation14 + $0x38] sm:$0xff]
        %v1065 = vld [vmem:[#allocation14 + $0x40] sm:$0xff]
        %v1066 = vld [vmem:[#allocation14 + $0x48] sm:$0xff]
        %v1067 = vld [vmem:[#allocation14 + $0x50] sm:$0xff]
        %v1068 = vld [vmem:[#allocation14 + $0x58] sm:$0xff]
        %v1069 = vld [vmem:[#allocation14 + $0x60] sm:$0xff]
        %v1070 = vld [vmem:[#allocation14 + $0x68] sm:$0xff]
        %v1071 = vld [vmem:[#allocation14 + $0x70] sm:$0xff]
        %v1072 = vld [vmem:[#allocation14 + $0x78] sm:$0xff]
        %s1073 = scalar_lea.vmem [#allocation7], 128
        %v1074 = vld [vmem:[%s1073] sm:$0xff]
        %v1075 = vld [vmem:[%s1073 + $0x8] sm:$0xff]
        %v1076 = vld [vmem:[%s1073 + $0x10] sm:$0xff]
        %v1077 = vld [vmem:[%s1073 + $0x18] sm:$0xff]
        %v1078 = vld [vmem:[%s1073 + $0x20] sm:$0xff]
        %v1079 = vld [vmem:[%s1073 + $0x28] sm:$0xff]
        %v1080 = vld [vmem:[%s1073 + $0x30] sm:$0xff]
        %v1081 = vld [vmem:[%s1073 + $0x38] sm:$0xff]
        %v1082 = vld [vmem:[%s1073 + $0x40] sm:$0xff]
        %v1083 = vld [vmem:[%s1073 + $0x48] sm:$0xff]
        %v1084 = vld [vmem:[%s1073 + $0x50] sm:$0xff]
        %v1085 = vld [vmem:[%s1073 + $0x58] sm:$0xff]
        %v1086 = vld [vmem:[%s1073 + $0x60] sm:$0xff]
        %v1087 = vld [vmem:[%s1073 + $0x68] sm:$0xff]
        %v1088 = vld [vmem:[%s1073 + $0x70] sm:$0xff]
        %v1089 = vld [vmem:[%s1073 + $0x78] sm:$0xff]
        %s1090 = scalar_lea.vmem %s492, 128 [#allocation5]
        %v1091 = vld [vmem:[%s1090] sm:$0xff]
        %v1092 = vld [vmem:[%s1090 + $0x8] sm:$0xff]
        %v1093 = vld [vmem:[%s1090 + $0x10] sm:$0xff]
        %v1094 = vld [vmem:[%s1090 + $0x18] sm:$0xff]
        %v1095 = vld [vmem:[%s1090 + $0x20] sm:$0xff]
        %v1096 = vld [vmem:[%s1090 + $0x28] sm:$0xff]
        %v1097 = vld [vmem:[%s1090 + $0x30] sm:$0xff]
        %v1098 = vld [vmem:[%s1090 + $0x38] sm:$0xff]
        %v1099 = vld [vmem:[%s1090 + $0x40] sm:$0xff]
        %v1100 = vld [vmem:[%s1090 + $0x48] sm:$0xff]
        %v1101 = vld [vmem:[%s1090 + $0x50] sm:$0xff]
        %v1102 = vld [vmem:[%s1090 + $0x58] sm:$0xff]
        %v1103 = vld [vmem:[%s1090 + $0x60] sm:$0xff]
        %v1104 = vld [vmem:[%s1090 + $0x68] sm:$0xff]
        %v1105 = vld [vmem:[%s1090 + $0x70] sm:$0xff]
        %v1106 = vld [vmem:[%s1090 + $0x78] sm:$0xff]
        %1107 = vmatpush.msra.mxu0 %v1089
        %1108 = vmatpush.msra.mxu0 %v1088
        %1109 = vmatpush.msra.mxu0 %v1087
        %1110 = vmatpush.msra.mxu0 %v1086
        %1111 = vmatpush.msra.mxu0 %v1085
        %1112 = vmatpush.msra.mxu0 %v1084
        %1113 = vmatpush.msra.mxu0 %v1083
        %1114 = vmatpush.msra.mxu0 %v1082
        %1115 = vmatpush.msra.mxu0 %v1081
        %1116 = vmatpush.msra.mxu0 %v1080
        %1117 = vmatpush.msra.mxu0 %v1079
        %1118 = vmatpush.msra.mxu0 %v1078
        %1119 = vmatpush.msra.mxu0 %v1077
        %1120 = vmatpush.msra.mxu0 %v1076
        %1121 = vmatpush.msra.mxu0 %v1075
        %1122 = vmatpush.msra.mxu0 %v1074
        %1123 = vmatmul.f32.gmra.mxu0 %v578
        %v1124 = vpop.f32.mrf.mxu0
        %v1125 = vadd.f32 %v1091, %v1124
        %1126 = vmatmul.f32.gmra.mxu0 %v579
        %v1127 = vpop.f32.mrf.mxu0
        %v1128 = vadd.f32 %v1092, %v1127
        %1129 = vmatmul.f32.gmra.mxu0 %v580
        %v1130 = vpop.f32.mrf.mxu0
        %v1131 = vadd.f32 %v1093, %v1130
        %1132 = vmatmul.f32.gmra.mxu0 %v581
        %v1133 = vpop.f32.mrf.mxu0
        %v1134 = vadd.f32 %v1094, %v1133
        %1135 = vmatmul.f32.gmra.mxu0 %v582
        %v1136 = vpop.f32.mrf.mxu0
        %v1137 = vadd.f32 %v1095, %v1136
        %1138 = vmatmul.f32.gmra.mxu0 %v583
        %v1139 = vpop.f32.mrf.mxu0
        %v1140 = vadd.f32 %v1096, %v1139
        %1141 = vmatmul.f32.gmra.mxu0 %v584
        %v1142 = vpop.f32.mrf.mxu0
        %v1143 = vadd.f32 %v1097, %v1142
        %1144 = vmatmul.f32.gmra.mxu0 %v585
        %v1145 = vpop.f32.mrf.mxu0
        %v1146 = vadd.f32 %v1098, %v1145
        %1147 = vmatmul.f32.gmra.mxu0 %v586
        %v1148 = vpop.f32.mrf.mxu0
        %v1149 = vadd.f32 %v1099, %v1148
        %1150 = vmatmul.f32.gmra.mxu0 %v587
        %v1151 = vpop.f32.mrf.mxu0
        %v1152 = vadd.f32 %v1100, %v1151
        %1153 = vmatmul.f32.gmra.mxu0 %v588
        %v1154 = vpop.f32.mrf.mxu0
        %v1155 = vadd.f32 %v1101, %v1154
        %1156 = vmatmul.f32.gmra.mxu0 %v589
        %v1157 = vpop.f32.mrf.mxu0
        %v1158 = vadd.f32 %v1102, %v1157
        %1159 = vmatmul.f32.gmra.mxu0 %v590
        %v1160 = vpop.f32.mrf.mxu0
        %v1161 = vadd.f32 %v1103, %v1160
        %1162 = vmatmul.f32.gmra.mxu0 %v591
        %v1163 = vpop.f32.mrf.mxu0
        %v1164 = vadd.f32 %v1104, %v1163
        %1165 = vmatmul.f32.gmra.mxu0 %v592
        %v1166 = vpop.f32.mrf.mxu0
        %v1167 = vadd.f32 %v1105, %v1166
        %1168 = vmatmul.f32.gmra.mxu0 %v593
        %v1169 = vpop.f32.mrf.mxu0
        %v1170 = vadd.f32 %v1106, %v1169
        %1171 = vdwg.mxu0
        %s1172 = scalar_lea.vmem [#allocation13], 2
        %v1173 = vld [vmem:[%s1172] sm:$0x3]
        %v1175 = vperm.slane %v1173, 0
        %v1176 = vperm.slane %v1173, 1
        %1179 = vmatpush.msra.mxu0 %v709
        %1180 = vmatpush.msra.mxu0 %v707
        %1181 = vmatpush.msra.mxu0 %v705
        %1182 = vmatpush.msra.mxu0 %v703
        %1183 = vmatpush.msra.mxu0 %v701
        %1184 = vmatpush.msra.mxu0 %v699
        %1185 = vmatpush.msra.mxu0 %v697
        %1186 = vmatpush.msra.mxu0 %v695
        %1187 = vmatpush.msra.mxu0 %v693
        %1188 = vmatpush.msra.mxu0 %v691
        %1189 = vmatpush.msra.mxu0 %v689
        %1190 = vmatpush.msra.mxu0 %v687
        %1191 = vmatpush.msra.mxu0 %v685
        %1192 = vmatpush.msra.mxu0 %v683
        %1193 = vmatpush.msra.mxu0 %v681
        %1194 = vmatpush.msra.mxu0 %v679
        %1195 = vmatmul.f32.gmra.mxu0 %v1125
        %v1196 = vpop.f32.mrf.mxu0
        %v1197 = vadd.f32 %v1175, %v1196
        %1198 = vmatmul.f32.gmra.mxu0 %v1128
        %v1199 = vpop.f32.mrf.mxu0
        %v1200 = vadd.f32 %v1175, %v1199
        %1201 = vmatmul.f32.gmra.mxu0 %v1131
        %v1202 = vpop.f32.mrf.mxu0
        %v1203 = vadd.f32 %v1175, %v1202
        %1204 = vmatmul.f32.gmra.mxu0 %v1134
        %v1205 = vpop.f32.mrf.mxu0
        %v1206 = vadd.f32 %v1175, %v1205
        %1207 = vmatmul.f32.gmra.mxu0 %v1137
        %v1208 = vpop.f32.mrf.mxu0
        %v1209 = vadd.f32 %v1175, %v1208
        %1210 = vmatmul.f32.gmra.mxu0 %v1140
        %v1211 = vpop.f32.mrf.mxu0
        %v1212 = vadd.f32 %v1175, %v1211
        %1213 = vmatmul.f32.gmra.mxu0 %v1143
        %v1214 = vpop.f32.mrf.mxu0
        %v1215 = vadd.f32 %v1175, %v1214
        %1216 = vmatmul.f32.gmra.mxu0 %v1146
        %v1217 = vpop.f32.mrf.mxu0
        %v1218 = vadd.f32 %v1175, %v1217
        %1219 = vmatmul.f32.gmra.mxu0 %v1149
        %v1220 = vpop.f32.mrf.mxu0
        %v1221 = vadd.f32 %v1175, %v1220
        %1222 = vmatmul.f32.gmra.mxu0 %v1152
        %v1223 = vpop.f32.mrf.mxu0
        %v1224 = vadd.f32 %v1175, %v1223
        %1225 = vmatmul.f32.gmra.mxu0 %v1155
        %v1226 = vpop.f32.mrf.mxu0
        %v1227 = vadd.f32 %v1175, %v1226
        %1228 = vmatmul.f32.gmra.mxu0 %v1158
        %v1229 = vpop.f32.mrf.mxu0
        %v1230 = vadd.f32 %v1175, %v1229
        %1231 = vmatmul.f32.gmra.mxu0 %v1161
        %v1232 = vpop.f32.mrf.mxu0
        %v1233 = vadd.f32 %v1175, %v1232
        %1234 = vmatmul.f32.gmra.mxu0 %v1164
        %v1235 = vpop.f32.mrf.mxu0
        %v1236 = vadd.f32 %v1175, %v1235
        %1237 = vmatmul.f32.gmra.mxu0 %v1167
        %v1238 = vpop.f32.mrf.mxu0
        %v1239 = vadd.f32 %v1175, %v1238
        %1240 = vmatmul.f32.gmra.mxu0 %v1170
        %v1241 = vpop.f32.mrf.mxu0
        %v1242 = vadd.f32 %v1175, %v1241
        %1243 = vdwg.mxu0
        %1244 = vmatpush.msra.mxu0 %v710
        %1245 = vmatpush.msra.mxu0 %v708
        %1246 = vmatpush.msra.mxu0 %v706
        %1247 = vmatpush.msra.mxu0 %v704
        %1248 = vmatpush.msra.mxu0 %v702
        %1249 = vmatpush.msra.mxu0 %v700
        %1250 = vmatpush.msra.mxu0 %v698
        %1251 = vmatpush.msra.mxu0 %v696
        %1252 = vmatpush.msra.mxu0 %v694
        %1253 = vmatpush.msra.mxu0 %v692
        %1254 = vmatpush.msra.mxu0 %v690
        %1255 = vmatpush.msra.mxu0 %v688
        %1256 = vmatpush.msra.mxu0 %v686
        %1257 = vmatpush.msra.mxu0 %v684
        %1258 = vmatpush.msra.mxu0 %v682
        %1259 = vmatpush.msra.mxu0 %v680
        %1260 = vmatmul.f32.gmra.mxu0 %v1125
        %v1261 = vpop.f32.mrf.mxu0
        %v1262 = vadd.f32 %v1176, %v1261
        %1263 = vmatmul.f32.gmra.mxu0 %v1128
        %v1264 = vpop.f32.mrf.mxu0
        %v1265 = vadd.f32 %v1176, %v1264
        %1266 = vmatmul.f32.gmra.mxu0 %v1131
        %v1267 = vpop.f32.mrf.mxu0
        %v1268 = vadd.f32 %v1176, %v1267
        %1269 = vmatmul.f32.gmra.mxu0 %v1134
        %v1270 = vpop.f32.mrf.mxu0
        %v1271 = vadd.f32 %v1176, %v1270
        %1272 = vmatmul.f32.gmra.mxu0 %v1137
        %v1273 = vpop.f32.mrf.mxu0
        %v1274 = vadd.f32 %v1176, %v1273
        %1275 = vmatmul.f32.gmra.mxu0 %v1140
        %v1276 = vpop.f32.mrf.mxu0
        %v1277 = vadd.f32 %v1176, %v1276
        %1278 = vmatmul.f32.gmra.mxu0 %v1143
        %v1279 = vpop.f32.mrf.mxu0
        %v1280 = vadd.f32 %v1176, %v1279
        %1281 = vmatmul.f32.gmra.mxu0 %v1146
        %v1282 = vpop.f32.mrf.mxu0
        %v1283 = vadd.f32 %v1176, %v1282
        %1284 = vmatmul.f32.gmra.mxu0 %v1149
        %v1285 = vpop.f32.mrf.mxu0
        %v1286 = vadd.f32 %v1176, %v1285
        %1287 = vmatmul.f32.gmra.mxu0 %v1152
        %v1288 = vpop.f32.mrf.mxu0
        %v1289 = vadd.f32 %v1176, %v1288
        %1290 = vmatmul.f32.gmra.mxu0 %v1155
        %v1291 = vpop.f32.mrf.mxu0
        %v1292 = vadd.f32 %v1176, %v1291
        %1293 = vmatmul.f32.gmra.mxu0 %v1158
        %v1294 = vpop.f32.mrf.mxu0
        %v1295 = vadd.f32 %v1176, %v1294
        %1296 = vmatmul.f32.gmra.mxu0 %v1161
        %v1297 = vpop.f32.mrf.mxu0
        %v1298 = vadd.f32 %v1176, %v1297
        %1299 = vmatmul.f32.gmra.mxu0 %v1164
        %v1300 = vpop.f32.mrf.mxu0
        %v1301 = vadd.f32 %v1176, %v1300
        %1302 = vmatmul.f32.gmra.mxu0 %v1167
        %v1303 = vpop.f32.mrf.mxu0
        %v1304 = vadd.f32 %v1176, %v1303
        %1305 = vmatmul.f32.gmra.mxu0 %v1170
        %v1306 = vpop.f32.mrf.mxu0
        %v1307 = vadd.f32 %v1176, %v1306
        %1308 = vdwg.mxu0
        %v1309 = vmul.f32 %v1197, %v632
        %v1310 = vmul.f32 %v1200, %v635
        %v1311 = vmul.f32 %v1203, %v638
        %v1312 = vmul.f32 %v1206, %v641
        %v1313 = vmul.f32 %v1209, %v644
        %v1314 = vmul.f32 %v1212, %v647
        %v1315 = vmul.f32 %v1215, %v650
        %v1316 = vmul.f32 %v1218, %v653
        %v1317 = vmul.f32 %v1221, %v656
        %v1318 = vmul.f32 %v1224, %v659
        %v1319 = vmul.f32 %v1227, %v662
        %v1320 = vmul.f32 %v1230, %v665
        %v1321 = vmul.f32 %v1233, %v668
        %v1322 = vmul.f32 %v1236, %v671
        %v1323 = vmul.f32 %v1239, %v674
        %v1324 = vmul.f32 %v1242, %v677
        %1325 = vmatpush.msra.mxu0 %v726
        %1326 = vmatpush.msra.mxu0 %v725
        %1327 = vmatpush.msra.mxu0 %v724
        %1328 = vmatpush.msra.mxu0 %v723
        %1329 = vmatpush.msra.mxu0 %v722
        %1330 = vmatpush.msra.mxu0 %v721
        %1331 = vmatpush.msra.mxu0 %v720
        %1332 = vmatpush.msra.mxu0 %v719
        %1333 = vmatpush.msra.mxu0 %v718
        %1334 = vmatpush.msra.mxu0 %v717
        %1335 = vmatpush.msra.mxu0 %v716
        %1336 = vmatpush.msra.mxu0 %v715
        %1337 = vmatpush.msra.mxu0 %v714
        %1338 = vmatpush.msra.mxu0 %v713
        %1339 = vmatpush.msra.mxu0 %v712
        %1340 = vmatpush.msra.mxu0 %v711
        %1341 = vmatmul.f32.gmra.mxu0 %v1309
        %v1342 = vpop.f32.mrf.mxu0
        %v1343 = vadd.f32 0.0, %v1342
        %1344 = vmatmul.f32.gmra.mxu0 %v1310
        %v1345 = vpop.f32.mrf.mxu0
        %v1346 = vadd.f32 0.0, %v1345
        %1347 = vmatmul.f32.gmra.mxu0 %v1311
        %v1348 = vpop.f32.mrf.mxu0
        %v1349 = vadd.f32 0.0, %v1348
        %1350 = vmatmul.f32.gmra.mxu0 %v1312
        %v1351 = vpop.f32.mrf.mxu0
        %v1352 = vadd.f32 0.0, %v1351
        %1353 = vmatmul.f32.gmra.mxu0 %v1313
        %v1354 = vpop.f32.mrf.mxu0
        %v1355 = vadd.f32 0.0, %v1354
        %1356 = vmatmul.f32.gmra.mxu0 %v1314
        %v1357 = vpop.f32.mrf.mxu0
        %v1358 = vadd.f32 0.0, %v1357
        %1359 = vmatmul.f32.gmra.mxu0 %v1315
        %v1360 = vpop.f32.mrf.mxu0
        %v1361 = vadd.f32 0.0, %v1360
        %1362 = vmatmul.f32.gmra.mxu0 %v1316
        %v1363 = vpop.f32.mrf.mxu0
        %v1364 = vadd.f32 0.0, %v1363
        %1365 = vmatmul.f32.gmra.mxu0 %v1317
        %v1366 = vpop.f32.mrf.mxu0
        %v1367 = vadd.f32 0.0, %v1366
        %1368 = vmatmul.f32.gmra.mxu0 %v1318
        %v1369 = vpop.f32.mrf.mxu0
        %v1370 = vadd.f32 0.0, %v1369
        %1371 = vmatmul.f32.gmra.mxu0 %v1319
        %v1372 = vpop.f32.mrf.mxu0
        %v1373 = vadd.f32 0.0, %v1372
        %1374 = vmatmul.f32.gmra.mxu0 %v1320
        %v1375 = vpop.f32.mrf.mxu0
        %v1376 = vadd.f32 0.0, %v1375
        %1377 = vmatmul.f32.gmra.mxu0 %v1321
        %v1378 = vpop.f32.mrf.mxu0
        %v1379 = vadd.f32 0.0, %v1378
        %1380 = vmatmul.f32.gmra.mxu0 %v1322
        %v1381 = vpop.f32.mrf.mxu0
        %v1382 = vadd.f32 0.0, %v1381
        %1383 = vmatmul.f32.gmra.mxu0 %v1323
        %v1384 = vpop.f32.mrf.mxu0
        %v1385 = vadd.f32 0.0, %v1384
        %1386 = vmatmul.f32.gmra.mxu0 %v1324
        %v1387 = vpop.f32.mrf.mxu0
        %v1388 = vadd.f32 0.0, %v1387
        %1389 = vdwg.mxu0
        %v1390 = vmul.f32 %v1262, %v1343
        %v1391 = vmul.f32 %v1265, %v1346
        %v1392 = vmul.f32 %v1268, %v1349
        %v1393 = vmul.f32 %v1271, %v1352
        %v1394 = vmul.f32 %v1274, %v1355
        %v1395 = vmul.f32 %v1277, %v1358
        %v1396 = vmul.f32 %v1280, %v1361
        %v1397 = vmul.f32 %v1283, %v1364
        %v1398 = vmul.f32 %v1286, %v1367
        %v1399 = vmul.f32 %v1289, %v1370
        %v1400 = vmul.f32 %v1292, %v1373
        %v1401 = vmul.f32 %v1295, %v1376
        %v1402 = vmul.f32 %v1298, %v1379
        %v1403 = vmul.f32 %v1301, %v1382
        %v1404 = vmul.f32 %v1304, %v1385
        %v1405 = vmul.f32 %v1307, %v1388
        %s1406 = scalar_lea.vmem [#allocation14], 128
        %v1407 = vld [vmem:[%s1406] sm:$0xff]
        %v1408 = vld [vmem:[%s1406 + $0x8] sm:$0xff]
        %v1409 = vld [vmem:[%s1406 + $0x10] sm:$0xff]
        %v1410 = vld [vmem:[%s1406 + $0x18] sm:$0xff]
        %v1411 = vld [vmem:[%s1406 + $0x20] sm:$0xff]
        %v1412 = vld [vmem:[%s1406 + $0x28] sm:$0xff]
        %v1413 = vld [vmem:[%s1406 + $0x30] sm:$0xff]
        %v1414 = vld [vmem:[%s1406 + $0x38] sm:$0xff]
        %v1415 = vld [vmem:[%s1406 + $0x40] sm:$0xff]
        %v1416 = vld [vmem:[%s1406 + $0x48] sm:$0xff]
        %v1417 = vld [vmem:[%s1406 + $0x50] sm:$0xff]
        %v1418 = vld [vmem:[%s1406 + $0x58] sm:$0xff]
        %v1419 = vld [vmem:[%s1406 + $0x60] sm:$0xff]
        %v1420 = vld [vmem:[%s1406 + $0x68] sm:$0xff]
        %v1421 = vld [vmem:[%s1406 + $0x70] sm:$0xff]
        %v1422 = vld [vmem:[%s1406 + $0x78] sm:$0xff]
        %1423 = vmatpush.msra.mxu0 %v1422
        %1424 = vmatpush.msra.mxu0 %v1421
        %1425 = vmatpush.msra.mxu0 %v1420
        %1426 = vmatpush.msra.mxu0 %v1419
        %1427 = vmatpush.msra.mxu0 %v1418
        %1428 = vmatpush.msra.mxu0 %v1417
        %1429 = vmatpush.msra.mxu0 %v1416
        %1430 = vmatpush.msra.mxu0 %v1415
        %1431 = vmatpush.msra.mxu0 %v1414
        %1432 = vmatpush.msra.mxu0 %v1413
        %1433 = vmatpush.msra.mxu0 %v1412
        %1434 = vmatpush.msra.mxu0 %v1411
        %1435 = vmatpush.msra.mxu0 %v1410
        %1436 = vmatpush.msra.mxu0 %v1409
        %1437 = vmatpush.msra.mxu0 %v1408
        %1438 = vmatpush.msra.mxu0 %v1407
        %1439 = vmatmul.f32.gmra.mxu0 %v1390
        %v1440 = vpop.f32.mrf.mxu0
        %v1441 = vadd.f32 0.0, %v1440
        %1442 = vmatmul.f32.gmra.mxu0 %v1391
        %v1443 = vpop.f32.mrf.mxu0
        %v1444 = vadd.f32 0.0, %v1443
        %1445 = vmatmul.f32.gmra.mxu0 %v1392
        %v1446 = vpop.f32.mrf.mxu0
        %v1447 = vadd.f32 0.0, %v1446
        %1448 = vmatmul.f32.gmra.mxu0 %v1393
        %v1449 = vpop.f32.mrf.mxu0
        %v1450 = vadd.f32 0.0, %v1449
        %1451 = vmatmul.f32.gmra.mxu0 %v1394
        %v1452 = vpop.f32.mrf.mxu0
        %v1453 = vadd.f32 0.0, %v1452
        %1454 = vmatmul.f32.gmra.mxu0 %v1395
        %v1455 = vpop.f32.mrf.mxu0
        %v1456 = vadd.f32 0.0, %v1455
        %1457 = vmatmul.f32.gmra.mxu0 %v1396
        %v1458 = vpop.f32.mrf.mxu0
        %v1459 = vadd.f32 0.0, %v1458
        %1460 = vmatmul.f32.gmra.mxu0 %v1397
        %v1461 = vpop.f32.mrf.mxu0
        %v1462 = vadd.f32 0.0, %v1461
        %1463 = vmatmul.f32.gmra.mxu0 %v1398
        %v1464 = vpop.f32.mrf.mxu0
        %v1465 = vadd.f32 0.0, %v1464
        %1466 = vmatmul.f32.gmra.mxu0 %v1399
        %v1467 = vpop.f32.mrf.mxu0
        %v1468 = vadd.f32 0.0, %v1467
        %1469 = vmatmul.f32.gmra.mxu0 %v1400
        %v1470 = vpop.f32.mrf.mxu0
        %v1471 = vadd.f32 0.0, %v1470
        %1472 = vmatmul.f32.gmra.mxu0 %v1401
        %v1473 = vpop.f32.mrf.mxu0
        %v1474 = vadd.f32 0.0, %v1473
        %1475 = vmatmul.f32.gmra.mxu0 %v1402
        %v1476 = vpop.f32.mrf.mxu0
        %v1477 = vadd.f32 0.0, %v1476
        %1478 = vmatmul.f32.gmra.mxu0 %v1403
        %v1479 = vpop.f32.mrf.mxu0
        %v1480 = vadd.f32 0.0, %v1479
        %1481 = vmatmul.f32.gmra.mxu0 %v1404
        %v1482 = vpop.f32.mrf.mxu0
        %v1483 = vadd.f32 0.0, %v1482
        %1484 = vmatmul.f32.gmra.mxu0 %v1405
        %v1485 = vpop.f32.mrf.mxu0
        %v1486 = vadd.f32 0.0, %v1485
        %1487 = vdwg.mxu0
        %1488 = vmatpush.msra.mxu0 %v1072
        %1489 = vmatpush.msra.mxu0 %v1071
        %1490 = vmatpush.msra.mxu0 %v1070
        %1491 = vmatpush.msra.mxu0 %v1069
        %1492 = vmatpush.msra.mxu0 %v1068
        %1493 = vmatpush.msra.mxu0 %v1067
        %1494 = vmatpush.msra.mxu0 %v1066
        %1495 = vmatpush.msra.mxu0 %v1065
        %1496 = vmatpush.msra.mxu0 %v1064
        %1497 = vmatpush.msra.mxu0 %v1063
        %1498 = vmatpush.msra.mxu0 %v1062
        %1499 = vmatpush.msra.mxu0 %v1061
        %1500 = vmatpush.msra.mxu0 %v1060
        %1501 = vmatpush.msra.mxu0 %v1059
        %1502 = vmatpush.msra.mxu0 %v1058
        %1503 = vmatpush.msra.mxu0 %v1057
        %1504 = vmatmul.f32.gmra.mxu0 %v1041
        %v1505 = vpop.f32.mrf.mxu0
        %v1506 = vadd.f32 %v1441, %v1505
        %1507 = vmatmul.f32.gmra.mxu0 %v1042
        %v1508 = vpop.f32.mrf.mxu0
        %v1509 = vadd.f32 %v1444, %v1508
        %1510 = vmatmul.f32.gmra.mxu0 %v1043
        %v1511 = vpop.f32.mrf.mxu0
        %v1512 = vadd.f32 %v1447, %v1511
        %1513 = vmatmul.f32.gmra.mxu0 %v1044
        %v1514 = vpop.f32.mrf.mxu0
        %v1515 = vadd.f32 %v1450, %v1514
        %1516 = vmatmul.f32.gmra.mxu0 %v1045
        %v1517 = vpop.f32.mrf.mxu0
        %v1518 = vadd.f32 %v1453, %v1517
        %1519 = vmatmul.f32.gmra.mxu0 %v1046
        %v1520 = vpop.f32.mrf.mxu0
        %v1521 = vadd.f32 %v1456, %v1520
        %1522 = vmatmul.f32.gmra.mxu0 %v1047
        %v1523 = vpop.f32.mrf.mxu0
        %v1524 = vadd.f32 %v1459, %v1523
        %1525 = vmatmul.f32.gmra.mxu0 %v1048
        %v1526 = vpop.f32.mrf.mxu0
        %v1527 = vadd.f32 %v1462, %v1526
        %1528 = vmatmul.f32.gmra.mxu0 %v1049
        %v1529 = vpop.f32.mrf.mxu0
        %v1530 = vadd.f32 %v1465, %v1529
        %1531 = vmatmul.f32.gmra.mxu0 %v1050
        %v1532 = vpop.f32.mrf.mxu0
        %v1533 = vadd.f32 %v1468, %v1532
        %1534 = vmatmul.f32.gmra.mxu0 %v1051
        %v1535 = vpop.f32.mrf.mxu0
        %v1536 = vadd.f32 %v1471, %v1535
        %1537 = vmatmul.f32.gmra.mxu0 %v1052
        %v1538 = vpop.f32.mrf.mxu0
        %v1539 = vadd.f32 %v1474, %v1538
        %1540 = vmatmul.f32.gmra.mxu0 %v1053
        %v1541 = vpop.f32.mrf.mxu0
        %v1542 = vadd.f32 %v1477, %v1541
        %1543 = vmatmul.f32.gmra.mxu0 %v1054
        %v1544 = vpop.f32.mrf.mxu0
        %v1545 = vadd.f32 %v1480, %v1544
        %1546 = vmatmul.f32.gmra.mxu0 %v1055
        %v1547 = vpop.f32.mrf.mxu0
        %v1548 = vadd.f32 %v1483, %v1547
        %1549 = vmatmul.f32.gmra.mxu0 %v1056
        %v1550 = vpop.f32.mrf.mxu0
        %v1551 = vadd.f32 %v1486, %v1550
        %1552 = vdwg.mxu0
        %s1553 = scalar_lea.vmem [#allocation7], 256
        %v1554 = vld [vmem:[%s1553] sm:$0xff]
        %v1555 = vld [vmem:[%s1553 + $0x8] sm:$0xff]
        %v1556 = vld [vmem:[%s1553 + $0x10] sm:$0xff]
        %v1557 = vld [vmem:[%s1553 + $0x18] sm:$0xff]
        %v1558 = vld [vmem:[%s1553 + $0x20] sm:$0xff]
        %v1559 = vld [vmem:[%s1553 + $0x28] sm:$0xff]
        %v1560 = vld [vmem:[%s1553 + $0x30] sm:$0xff]
        %v1561 = vld [vmem:[%s1553 + $0x38] sm:$0xff]
        %v1562 = vld [vmem:[%s1553 + $0x40] sm:$0xff]
        %v1563 = vld [vmem:[%s1553 + $0x48] sm:$0xff]
        %v1564 = vld [vmem:[%s1553 + $0x50] sm:$0xff]
        %v1565 = vld [vmem:[%s1553 + $0x58] sm:$0xff]
        %v1566 = vld [vmem:[%s1553 + $0x60] sm:$0xff]
        %v1567 = vld [vmem:[%s1553 + $0x68] sm:$0xff]
        %v1568 = vld [vmem:[%s1553 + $0x70] sm:$0xff]
        %v1569 = vld [vmem:[%s1553 + $0x78] sm:$0xff]
        %s1570 = scalar_lea.vmem %s492, 256 [#allocation5]
        %v1571 = vld [vmem:[%s1570] sm:$0xff]
        %v1572 = vld [vmem:[%s1570 + $0x8] sm:$0xff]
        %v1573 = vld [vmem:[%s1570 + $0x10] sm:$0xff]
        %v1574 = vld [vmem:[%s1570 + $0x18] sm:$0xff]
        %v1575 = vld [vmem:[%s1570 + $0x20] sm:$0xff]
        %v1576 = vld [vmem:[%s1570 + $0x28] sm:$0xff]
        %v1577 = vld [vmem:[%s1570 + $0x30] sm:$0xff]
        %v1578 = vld [vmem:[%s1570 + $0x38] sm:$0xff]
        %v1579 = vld [vmem:[%s1570 + $0x40] sm:$0xff]
        %v1580 = vld [vmem:[%s1570 + $0x48] sm:$0xff]
        %v1581 = vld [vmem:[%s1570 + $0x50] sm:$0xff]
        %v1582 = vld [vmem:[%s1570 + $0x58] sm:$0xff]
        %v1583 = vld [vmem:[%s1570 + $0x60] sm:$0xff]
        %v1584 = vld [vmem:[%s1570 + $0x68] sm:$0xff]
        %v1585 = vld [vmem:[%s1570 + $0x70] sm:$0xff]
        %v1586 = vld [vmem:[%s1570 + $0x78] sm:$0xff]
        %1587 = vmatpush.msra.mxu0 %v1569
        %1588 = vmatpush.msra.mxu0 %v1568
        %1589 = vmatpush.msra.mxu0 %v1567
        %1590 = vmatpush.msra.mxu0 %v1566
        %1591 = vmatpush.msra.mxu0 %v1565
        %1592 = vmatpush.msra.mxu0 %v1564
        %1593 = vmatpush.msra.mxu0 %v1563
        %1594 = vmatpush.msra.mxu0 %v1562
        %1595 = vmatpush.msra.mxu0 %v1561
        %1596 = vmatpush.msra.mxu0 %v1560
        %1597 = vmatpush.msra.mxu0 %v1559
        %1598 = vmatpush.msra.mxu0 %v1558
        %1599 = vmatpush.msra.mxu0 %v1557
        %1600 = vmatpush.msra.mxu0 %v1556
        %1601 = vmatpush.msra.mxu0 %v1555
        %1602 = vmatpush.msra.mxu0 %v1554
        %1603 = vmatmul.f32.gmra.mxu0 %v578
        %v1604 = vpop.f32.mrf.mxu0
        %v1605 = vadd.f32 %v1571, %v1604
        %1606 = vmatmul.f32.gmra.mxu0 %v579
        %v1607 = vpop.f32.mrf.mxu0
        %v1608 = vadd.f32 %v1572, %v1607
        %1609 = vmatmul.f32.gmra.mxu0 %v580
        %v1610 = vpop.f32.mrf.mxu0
        %v1611 = vadd.f32 %v1573, %v1610
        %1612 = vmatmul.f32.gmra.mxu0 %v581
        %v1613 = vpop.f32.mrf.mxu0
        %v1614 = vadd.f32 %v1574, %v1613
        %1615 = vmatmul.f32.gmra.mxu0 %v582
        %v1616 = vpop.f32.mrf.mxu0
        %v1617 = vadd.f32 %v1575, %v1616
        %1618 = vmatmul.f32.gmra.mxu0 %v583
        %v1619 = vpop.f32.mrf.mxu0
        %v1620 = vadd.f32 %v1576, %v1619
        %1621 = vmatmul.f32.gmra.mxu0 %v584
        %v1622 = vpop.f32.mrf.mxu0
        %v1623 = vadd.f32 %v1577, %v1622
        %1624 = vmatmul.f32.gmra.mxu0 %v585
        %v1625 = vpop.f32.mrf.mxu0
        %v1626 = vadd.f32 %v1578, %v1625
        %1627 = vmatmul.f32.gmra.mxu0 %v586
        %v1628 = vpop.f32.mrf.mxu0
        %v1629 = vadd.f32 %v1579, %v1628
        %1630 = vmatmul.f32.gmra.mxu0 %v587
        %v1631 = vpop.f32.mrf.mxu0
        %v1632 = vadd.f32 %v1580, %v1631
        %1633 = vmatmul.f32.gmra.mxu0 %v588
        %v1634 = vpop.f32.mrf.mxu0
        %v1635 = vadd.f32 %v1581, %v1634
        %1636 = vmatmul.f32.gmra.mxu0 %v589
        %v1637 = vpop.f32.mrf.mxu0
        %v1638 = vadd.f32 %v1582, %v1637
        %1639 = vmatmul.f32.gmra.mxu0 %v590
        %v1640 = vpop.f32.mrf.mxu0
        %v1641 = vadd.f32 %v1583, %v1640
        %1642 = vmatmul.f32.gmra.mxu0 %v591
        %v1643 = vpop.f32.mrf.mxu0
        %v1644 = vadd.f32 %v1584, %v1643
        %1645 = vmatmul.f32.gmra.mxu0 %v592
        %v1646 = vpop.f32.mrf.mxu0
        %v1647 = vadd.f32 %v1585, %v1646
        %1648 = vmatmul.f32.gmra.mxu0 %v593
        %v1649 = vpop.f32.mrf.mxu0
        %v1650 = vadd.f32 %v1586, %v1649
        %1651 = vdwg.mxu0
        %s1652 = scalar_lea.vmem [#allocation13], 4
        %v1653 = vld [vmem:[%s1652] sm:$0x3]
        %v1655 = vperm.slane %v1653, 0
        %v1656 = vperm.slane %v1653, 1
        %1659 = vmatpush.msra.mxu0 %v709
        %1660 = vmatpush.msra.mxu0 %v707
        %1661 = vmatpush.msra.mxu0 %v705
        %1662 = vmatpush.msra.mxu0 %v703
        %1663 = vmatpush.msra.mxu0 %v701
        %1664 = vmatpush.msra.mxu0 %v699
        %1665 = vmatpush.msra.mxu0 %v697
        %1666 = vmatpush.msra.mxu0 %v695
        %1667 = vmatpush.msra.mxu0 %v693
        %1668 = vmatpush.msra.mxu0 %v691
        %1669 = vmatpush.msra.mxu0 %v689
        %1670 = vmatpush.msra.mxu0 %v687
        %1671 = vmatpush.msra.mxu0 %v685
        %1672 = vmatpush.msra.mxu0 %v683
        %1673 = vmatpush.msra.mxu0 %v681
        %1674 = vmatpush.msra.mxu0 %v679
        %1675 = vmatmul.f32.gmra.mxu0 %v1605
        %v1676 = vpop.f32.mrf.mxu0
        %v1677 = vadd.f32 %v1655, %v1676
        %1678 = vmatmul.f32.gmra.mxu0 %v1608
        %v1679 = vpop.f32.mrf.mxu0
        %v1680 = vadd.f32 %v1655, %v1679
        %1681 = vmatmul.f32.gmra.mxu0 %v1611
        %v1682 = vpop.f32.mrf.mxu0
        %v1683 = vadd.f32 %v1655, %v1682
        %1684 = vmatmul.f32.gmra.mxu0 %v1614
        %v1685 = vpop.f32.mrf.mxu0
        %v1686 = vadd.f32 %v1655, %v1685
        %1687 = vmatmul.f32.gmra.mxu0 %v1617
        %v1688 = vpop.f32.mrf.mxu0
        %v1689 = vadd.f32 %v1655, %v1688
        %1690 = vmatmul.f32.gmra.mxu0 %v1620
        %v1691 = vpop.f32.mrf.mxu0
        %v1692 = vadd.f32 %v1655, %v1691
        %1693 = vmatmul.f32.gmra.mxu0 %v1623
        %v1694 = vpop.f32.mrf.mxu0
        %v1695 = vadd.f32 %v1655, %v1694
        %1696 = vmatmul.f32.gmra.mxu0 %v1626
        %v1697 = vpop.f32.mrf.mxu0
        %v1698 = vadd.f32 %v1655, %v1697
        %1699 = vmatmul.f32.gmra.mxu0 %v1629
        %v1700 = vpop.f32.mrf.mxu0
        %v1701 = vadd.f32 %v1655, %v1700
        %1702 = vmatmul.f32.gmra.mxu0 %v1632
        %v1703 = vpop.f32.mrf.mxu0
        %v1704 = vadd.f32 %v1655, %v1703
        %1705 = vmatmul.f32.gmra.mxu0 %v1635
        %v1706 = vpop.f32.mrf.mxu0
        %v1707 = vadd.f32 %v1655, %v1706
        %1708 = vmatmul.f32.gmra.mxu0 %v1638
        %v1709 = vpop.f32.mrf.mxu0
        %v1710 = vadd.f32 %v1655, %v1709
        %1711 = vmatmul.f32.gmra.mxu0 %v1641
        %v1712 = vpop.f32.mrf.mxu0
        %v1713 = vadd.f32 %v1655, %v1712
        %1714 = vmatmul.f32.gmra.mxu0 %v1644
        %v1715 = vpop.f32.mrf.mxu0
        %v1716 = vadd.f32 %v1655, %v1715
        %1717 = vmatmul.f32.gmra.mxu0 %v1647
        %v1718 = vpop.f32.mrf.mxu0
        %v1719 = vadd.f32 %v1655, %v1718
        %1720 = vmatmul.f32.gmra.mxu0 %v1650
        %v1721 = vpop.f32.mrf.mxu0
        %v1722 = vadd.f32 %v1655, %v1721
        %1723 = vdwg.mxu0
        %1724 = vmatpush.msra.mxu0 %v710
        %1725 = vmatpush.msra.mxu0 %v708
        %1726 = vmatpush.msra.mxu0 %v706
        %1727 = vmatpush.msra.mxu0 %v704
        %1728 = vmatpush.msra.mxu0 %v702
        %1729 = vmatpush.msra.mxu0 %v700
        %1730 = vmatpush.msra.mxu0 %v698
        %1731 = vmatpush.msra.mxu0 %v696
        %1732 = vmatpush.msra.mxu0 %v694
        %1733 = vmatpush.msra.mxu0 %v692
        %1734 = vmatpush.msra.mxu0 %v690
        %1735 = vmatpush.msra.mxu0 %v688
        %1736 = vmatpush.msra.mxu0 %v686
        %1737 = vmatpush.msra.mxu0 %v684
        %1738 = vmatpush.msra.mxu0 %v682
        %1739 = vmatpush.msra.mxu0 %v680
        %1740 = vmatmul.f32.gmra.mxu0 %v1605
        %v1741 = vpop.f32.mrf.mxu0
        %v1742 = vadd.f32 %v1656, %v1741
        %1743 = vmatmul.f32.gmra.mxu0 %v1608
        %v1744 = vpop.f32.mrf.mxu0
        %v1745 = vadd.f32 %v1656, %v1744
        %1746 = vmatmul.f32.gmra.mxu0 %v1611
        %v1747 = vpop.f32.mrf.mxu0
        %v1748 = vadd.f32 %v1656, %v1747
        %1749 = vmatmul.f32.gmra.mxu0 %v1614
        %v1750 = vpop.f32.mrf.mxu0
        %v1751 = vadd.f32 %v1656, %v1750
        %1752 = vmatmul.f32.gmra.mxu0 %v1617
        %v1753 = vpop.f32.mrf.mxu0
        %v1754 = vadd.f32 %v1656, %v1753
        %1755 = vmatmul.f32.gmra.mxu0 %v1620
        %v1756 = vpop.f32.mrf.mxu0
        %v1757 = vadd.f32 %v1656, %v1756
        %1758 = vmatmul.f32.gmra.mxu0 %v1623
        %v1759 = vpop.f32.mrf.mxu0
        %v1760 = vadd.f32 %v1656, %v1759
        %1761 = vmatmul.f32.gmra.mxu0 %v1626
        %v1762 = vpop.f32.mrf.mxu0
        %v1763 = vadd.f32 %v1656, %v1762
        %1764 = vmatmul.f32.gmra.mxu0 %v1629
        %v1765 = vpop.f32.mrf.mxu0
        %v1766 = vadd.f32 %v1656, %v1765
        %1767 = vmatmul.f32.gmra.mxu0 %v1632
        %v1768 = vpop.f32.mrf.mxu0
        %v1769 = vadd.f32 %v1656, %v1768
        %1770 = vmatmul.f32.gmra.mxu0 %v1635
        %v1771 = vpop.f32.mrf.mxu0
        %v1772 = vadd.f32 %v1656, %v1771
        %1773 = vmatmul.f32.gmra.mxu0 %v1638
        %v1774 = vpop.f32.mrf.mxu0
        %v1775 = vadd.f32 %v1656, %v1774
        %1776 = vmatmul.f32.gmra.mxu0 %v1641
        %v1777 = vpop.f32.mrf.mxu0
        %v1778 = vadd.f32 %v1656, %v1777
        %1779 = vmatmul.f32.gmra.mxu0 %v1644
        %v1780 = vpop.f32.mrf.mxu0
        %v1781 = vadd.f32 %v1656, %v1780
        %1782 = vmatmul.f32.gmra.mxu0 %v1647
        %v1783 = vpop.f32.mrf.mxu0
        %v1784 = vadd.f32 %v1656, %v1783
        %1785 = vmatmul.f32.gmra.mxu0 %v1650
        %v1786 = vpop.f32.mrf.mxu0
        %v1787 = vadd.f32 %v1656, %v1786
        %1788 = vdwg.mxu0
        %v1789 = vmul.f32 %v1677, %v632
        %v1790 = vmul.f32 %v1680, %v635
        %v1791 = vmul.f32 %v1683, %v638
        %v1792 = vmul.f32 %v1686, %v641
        %v1793 = vmul.f32 %v1689, %v644
        %v1794 = vmul.f32 %v1692, %v647
        %v1795 = vmul.f32 %v1695, %v650
        %v1796 = vmul.f32 %v1698, %v653
        %v1797 = vmul.f32 %v1701, %v656
        %v1798 = vmul.f32 %v1704, %v659
        %v1799 = vmul.f32 %v1707, %v662
        %v1800 = vmul.f32 %v1710, %v665
        %v1801 = vmul.f32 %v1713, %v668
        %v1802 = vmul.f32 %v1716, %v671
        %v1803 = vmul.f32 %v1719, %v674
        %v1804 = vmul.f32 %v1722, %v677
        %1805 = vmatpush.msra.mxu0 %v726
        %1806 = vmatpush.msra.mxu0 %v725
        %1807 = vmatpush.msra.mxu0 %v724
        %1808 = vmatpush.msra.mxu0 %v723
        %1809 = vmatpush.msra.mxu0 %v722
        %1810 = vmatpush.msra.mxu0 %v721
        %1811 = vmatpush.msra.mxu0 %v720
        %1812 = vmatpush.msra.mxu0 %v719
        %1813 = vmatpush.msra.mxu0 %v718
        %1814 = vmatpush.msra.mxu0 %v717
        %1815 = vmatpush.msra.mxu0 %v716
        %1816 = vmatpush.msra.mxu0 %v715
        %1817 = vmatpush.msra.mxu0 %v714
        %1818 = vmatpush.msra.mxu0 %v713
        %1819 = vmatpush.msra.mxu0 %v712
        %1820 = vmatpush.msra.mxu0 %v711
        %1821 = vmatmul.f32.gmra.mxu0 %v1789
        %v1822 = vpop.f32.mrf.mxu0
        %v1823 = vadd.f32 0.0, %v1822
        %1824 = vmatmul.f32.gmra.mxu0 %v1790
        %v1825 = vpop.f32.mrf.mxu0
        %v1826 = vadd.f32 0.0, %v1825
        %1827 = vmatmul.f32.gmra.mxu0 %v1791
        %v1828 = vpop.f32.mrf.mxu0
        %v1829 = vadd.f32 0.0, %v1828
        %1830 = vmatmul.f32.gmra.mxu0 %v1792
        %v1831 = vpop.f32.mrf.mxu0
        %v1832 = vadd.f32 0.0, %v1831
        %1833 = vmatmul.f32.gmra.mxu0 %v1793
        %v1834 = vpop.f32.mrf.mxu0
        %v1835 = vadd.f32 0.0, %v1834
        %1836 = vmatmul.f32.gmra.mxu0 %v1794
        %v1837 = vpop.f32.mrf.mxu0
        %v1838 = vadd.f32 0.0, %v1837
        %1839 = vmatmul.f32.gmra.mxu0 %v1795
        %v1840 = vpop.f32.mrf.mxu0
        %v1841 = vadd.f32 0.0, %v1840
        %1842 = vmatmul.f32.gmra.mxu0 %v1796
        %v1843 = vpop.f32.mrf.mxu0
        %v1844 = vadd.f32 0.0, %v1843
        %1845 = vmatmul.f32.gmra.mxu0 %v1797
        %v1846 = vpop.f32.mrf.mxu0
        %v1847 = vadd.f32 0.0, %v1846
        %1848 = vmatmul.f32.gmra.mxu0 %v1798
        %v1849 = vpop.f32.mrf.mxu0
        %v1850 = vadd.f32 0.0, %v1849
        %1851 = vmatmul.f32.gmra.mxu0 %v1799
        %v1852 = vpop.f32.mrf.mxu0
        %v1853 = vadd.f32 0.0, %v1852
        %1854 = vmatmul.f32.gmra.mxu0 %v1800
        %v1855 = vpop.f32.mrf.mxu0
        %v1856 = vadd.f32 0.0, %v1855
        %1857 = vmatmul.f32.gmra.mxu0 %v1801
        %v1858 = vpop.f32.mrf.mxu0
        %v1859 = vadd.f32 0.0, %v1858
        %1860 = vmatmul.f32.gmra.mxu0 %v1802
        %v1861 = vpop.f32.mrf.mxu0
        %v1862 = vadd.f32 0.0, %v1861
        %1863 = vmatmul.f32.gmra.mxu0 %v1803
        %v1864 = vpop.f32.mrf.mxu0
        %v1865 = vadd.f32 0.0, %v1864
        %1866 = vmatmul.f32.gmra.mxu0 %v1804
        %v1867 = vpop.f32.mrf.mxu0
        %v1868 = vadd.f32 0.0, %v1867
        %1869 = vdwg.mxu0
        %v1870 = vmul.f32 %v1742, %v1823
        %v1871 = vmul.f32 %v1745, %v1826
        %v1872 = vmul.f32 %v1748, %v1829
        %v1873 = vmul.f32 %v1751, %v1832
        %v1874 = vmul.f32 %v1754, %v1835
        %v1875 = vmul.f32 %v1757, %v1838
        %v1876 = vmul.f32 %v1760, %v1841
        %v1877 = vmul.f32 %v1763, %v1844
        %v1878 = vmul.f32 %v1766, %v1847
        %v1879 = vmul.f32 %v1769, %v1850
        %v1880 = vmul.f32 %v1772, %v1853
        %v1881 = vmul.f32 %v1775, %v1856
        %v1882 = vmul.f32 %v1778, %v1859
        %v1883 = vmul.f32 %v1781, %v1862
        %v1884 = vmul.f32 %v1784, %v1865
        %v1885 = vmul.f32 %v1787, %v1868
        %s1886 = scalar_lea.vmem [#allocation14], 256
        %v1887 = vld [vmem:[%s1886] sm:$0xff]
        %v1888 = vld [vmem:[%s1886 + $0x8] sm:$0xff]
        %v1889 = vld [vmem:[%s1886 + $0x10] sm:$0xff]
        %v1890 = vld [vmem:[%s1886 + $0x18] sm:$0xff]
        %v1891 = vld [vmem:[%s1886 + $0x20] sm:$0xff]
        %v1892 = vld [vmem:[%s1886 + $0x28] sm:$0xff]
        %v1893 = vld [vmem:[%s1886 + $0x30] sm:$0xff]
        %v1894 = vld [vmem:[%s1886 + $0x38] sm:$0xff]
        %v1895 = vld [vmem:[%s1886 + $0x40] sm:$0xff]
        %v1896 = vld [vmem:[%s1886 + $0x48] sm:$0xff]
        %v1897 = vld [vmem:[%s1886 + $0x50] sm:$0xff]
        %v1898 = vld [vmem:[%s1886 + $0x58] sm:$0xff]
        %v1899 = vld [vmem:[%s1886 + $0x60] sm:$0xff]
        %v1900 = vld [vmem:[%s1886 + $0x68] sm:$0xff]
        %v1901 = vld [vmem:[%s1886 + $0x70] sm:$0xff]
        %v1902 = vld [vmem:[%s1886 + $0x78] sm:$0xff]
        %1903 = vmatpush.msra.mxu0 %v1902
        %1904 = vmatpush.msra.mxu0 %v1901
        %1905 = vmatpush.msra.mxu0 %v1900
        %1906 = vmatpush.msra.mxu0 %v1899
        %1907 = vmatpush.msra.mxu0 %v1898
        %1908 = vmatpush.msra.mxu0 %v1897
        %1909 = vmatpush.msra.mxu0 %v1896
        %1910 = vmatpush.msra.mxu0 %v1895
        %1911 = vmatpush.msra.mxu0 %v1894
        %1912 = vmatpush.msra.mxu0 %v1893
        %1913 = vmatpush.msra.mxu0 %v1892
        %1914 = vmatpush.msra.mxu0 %v1891
        %1915 = vmatpush.msra.mxu0 %v1890
        %1916 = vmatpush.msra.mxu0 %v1889
        %1917 = vmatpush.msra.mxu0 %v1888
        %1918 = vmatpush.msra.mxu0 %v1887
        %1919 = vmatmul.f32.gmra.mxu0 %v1870
        %v1920 = vpop.f32.mrf.mxu0
        %v1921 = vadd.f32 0.0, %v1920
        %1922 = vmatmul.f32.gmra.mxu0 %v1871
        %v1923 = vpop.f32.mrf.mxu0
        %v1924 = vadd.f32 0.0, %v1923
        %1925 = vmatmul.f32.gmra.mxu0 %v1872
        %v1926 = vpop.f32.mrf.mxu0
        %v1927 = vadd.f32 0.0, %v1926
        %1928 = vmatmul.f32.gmra.mxu0 %v1873
        %v1929 = vpop.f32.mrf.mxu0
        %v1930 = vadd.f32 0.0, %v1929
        %1931 = vmatmul.f32.gmra.mxu0 %v1874
        %v1932 = vpop.f32.mrf.mxu0
        %v1933 = vadd.f32 0.0, %v1932
        %1934 = vmatmul.f32.gmra.mxu0 %v1875
        %v1935 = vpop.f32.mrf.mxu0
        %v1936 = vadd.f32 0.0, %v1935
        %1937 = vmatmul.f32.gmra.mxu0 %v1876
        %v1938 = vpop.f32.mrf.mxu0
        %v1939 = vadd.f32 0.0, %v1938
        %1940 = vmatmul.f32.gmra.mxu0 %v1877
        %v1941 = vpop.f32.mrf.mxu0
        %v1942 = vadd.f32 0.0, %v1941
        %1943 = vmatmul.f32.gmra.mxu0 %v1878
        %v1944 = vpop.f32.mrf.mxu0
        %v1945 = vadd.f32 0.0, %v1944
        %1946 = vmatmul.f32.gmra.mxu0 %v1879
        %v1947 = vpop.f32.mrf.mxu0
        %v1948 = vadd.f32 0.0, %v1947
        %1949 = vmatmul.f32.gmra.mxu0 %v1880
        %v1950 = vpop.f32.mrf.mxu0
        %v1951 = vadd.f32 0.0, %v1950
        %1952 = vmatmul.f32.gmra.mxu0 %v1881
        %v1953 = vpop.f32.mrf.mxu0
        %v1954 = vadd.f32 0.0, %v1953
        %1955 = vmatmul.f32.gmra.mxu0 %v1882
        %v1956 = vpop.f32.mrf.mxu0
        %v1957 = vadd.f32 0.0, %v1956
        %1958 = vmatmul.f32.gmra.mxu0 %v1883
        %v1959 = vpop.f32.mrf.mxu0
        %v1960 = vadd.f32 0.0, %v1959
        %1961 = vmatmul.f32.gmra.mxu0 %v1884
        %v1962 = vpop.f32.mrf.mxu0
        %v1963 = vadd.f32 0.0, %v1962
        %1964 = vmatmul.f32.gmra.mxu0 %v1885
        %v1965 = vpop.f32.mrf.mxu0
        %v1966 = vadd.f32 0.0, %v1965
        %1967 = vdwg.mxu0
        %v1968 = vadd.f32 %v1506, %v1921
        %v1969 = vadd.f32 %v1509, %v1924
        %v1970 = vadd.f32 %v1512, %v1927
        %v1971 = vadd.f32 %v1515, %v1930
        %v1972 = vadd.f32 %v1518, %v1933
        %v1973 = vadd.f32 %v1521, %v1936
        %v1974 = vadd.f32 %v1524, %v1939
        %v1975 = vadd.f32 %v1527, %v1942
        %v1976 = vadd.f32 %v1530, %v1945
        %v1977 = vadd.f32 %v1533, %v1948
        %v1978 = vadd.f32 %v1536, %v1951
        %v1979 = vadd.f32 %v1539, %v1954
        %v1980 = vadd.f32 %v1542, %v1957
        %v1981 = vadd.f32 %v1545, %v1960
        %v1982 = vadd.f32 %v1548, %v1963
        %v1983 = vadd.f32 %v1551, %v1966
        %s1984 = scalar_lea.vmem [#allocation7], 384
        %v1985 = vld [vmem:[%s1984] sm:$0xff]
        %v1986 = vld [vmem:[%s1984 + $0x8] sm:$0xff]
        %v1987 = vld [vmem:[%s1984 + $0x10] sm:$0xff]
        %v1988 = vld [vmem:[%s1984 + $0x18] sm:$0xff]
        %v1989 = vld [vmem:[%s1984 + $0x20] sm:$0xff]
        %v1990 = vld [vmem:[%s1984 + $0x28] sm:$0xff]
        %v1991 = vld [vmem:[%s1984 + $0x30] sm:$0xff]
        %v1992 = vld [vmem:[%s1984 + $0x38] sm:$0xff]
        %v1993 = vld [vmem:[%s1984 + $0x40] sm:$0xff]
        %v1994 = vld [vmem:[%s1984 + $0x48] sm:$0xff]
        %v1995 = vld [vmem:[%s1984 + $0x50] sm:$0xff]
        %v1996 = vld [vmem:[%s1984 + $0x58] sm:$0xff]
        %v1997 = vld [vmem:[%s1984 + $0x60] sm:$0xff]
        %v1998 = vld [vmem:[%s1984 + $0x68] sm:$0xff]
        %v1999 = vld [vmem:[%s1984 + $0x70] sm:$0xff]
        %v2000 = vld [vmem:[%s1984 + $0x78] sm:$0xff]
        %s2001 = scalar_lea.vmem %s492, 384 [#allocation5]
        %v2002 = vld [vmem:[%s2001] sm:$0xff]
        %v2003 = vld [vmem:[%s2001 + $0x8] sm:$0xff]
        %v2004 = vld [vmem:[%s2001 + $0x10] sm:$0xff]
        %v2005 = vld [vmem:[%s2001 + $0x18] sm:$0xff]
        %v2006 = vld [vmem:[%s2001 + $0x20] sm:$0xff]
        %v2007 = vld [vmem:[%s2001 + $0x28] sm:$0xff]
        %v2008 = vld [vmem:[%s2001 + $0x30] sm:$0xff]
        %v2009 = vld [vmem:[%s2001 + $0x38] sm:$0xff]
        %v2010 = vld [vmem:[%s2001 + $0x40] sm:$0xff]
        %v2011 = vld [vmem:[%s2001 + $0x48] sm:$0xff]
        %v2012 = vld [vmem:[%s2001 + $0x50] sm:$0xff]
        %v2013 = vld [vmem:[%s2001 + $0x58] sm:$0xff]
        %v2014 = vld [vmem:[%s2001 + $0x60] sm:$0xff]
        %v2015 = vld [vmem:[%s2001 + $0x68] sm:$0xff]
        %v2016 = vld [vmem:[%s2001 + $0x70] sm:$0xff]
        %v2017 = vld [vmem:[%s2001 + $0x78] sm:$0xff]
        %2018 = vmatpush.msra.mxu0 %v2000
        %2019 = vmatpush.msra.mxu0 %v1999
        %2020 = vmatpush.msra.mxu0 %v1998
        %2021 = vmatpush.msra.mxu0 %v1997
        %2022 = vmatpush.msra.mxu0 %v1996
        %2023 = vmatpush.msra.mxu0 %v1995
        %2024 = vmatpush.msra.mxu0 %v1994
        %2025 = vmatpush.msra.mxu0 %v1993
        %2026 = vmatpush.msra.mxu0 %v1992
        %2027 = vmatpush.msra.mxu0 %v1991
        %2028 = vmatpush.msra.mxu0 %v1990
        %2029 = vmatpush.msra.mxu0 %v1989
        %2030 = vmatpush.msra.mxu0 %v1988
        %2031 = vmatpush.msra.mxu0 %v1987
        %2032 = vmatpush.msra.mxu0 %v1986
        %2033 = vmatpush.msra.mxu0 %v1985
        %2034 = vmatmul.f32.gmra.mxu0 %v578
        %v2035 = vpop.f32.mrf.mxu0
        %v2036 = vadd.f32 %v2002, %v2035
        %2037 = vmatmul.f32.gmra.mxu0 %v579
        %v2038 = vpop.f32.mrf.mxu0
        %v2039 = vadd.f32 %v2003, %v2038
        %2040 = vmatmul.f32.gmra.mxu0 %v580
        %v2041 = vpop.f32.mrf.mxu0
        %v2042 = vadd.f32 %v2004, %v2041
        %2043 = vmatmul.f32.gmra.mxu0 %v581
        %v2044 = vpop.f32.mrf.mxu0
        %v2045 = vadd.f32 %v2005, %v2044
        %2046 = vmatmul.f32.gmra.mxu0 %v582
        %v2047 = vpop.f32.mrf.mxu0
        %v2048 = vadd.f32 %v2006, %v2047
        %2049 = vmatmul.f32.gmra.mxu0 %v583
        %v2050 = vpop.f32.mrf.mxu0
        %v2051 = vadd.f32 %v2007, %v2050
        %2052 = vmatmul.f32.gmra.mxu0 %v584
        %v2053 = vpop.f32.mrf.mxu0
        %v2054 = vadd.f32 %v2008, %v2053
        %2055 = vmatmul.f32.gmra.mxu0 %v585
        %v2056 = vpop.f32.mrf.mxu0
        %v2057 = vadd.f32 %v2009, %v2056
        %2058 = vmatmul.f32.gmra.mxu0 %v586
        %v2059 = vpop.f32.mrf.mxu0
        %v2060 = vadd.f32 %v2010, %v2059
        %2061 = vmatmul.f32.gmra.mxu0 %v587
        %v2062 = vpop.f32.mrf.mxu0
        %v2063 = vadd.f32 %v2011, %v2062
        %2064 = vmatmul.f32.gmra.mxu0 %v588
        %v2065 = vpop.f32.mrf.mxu0
        %v2066 = vadd.f32 %v2012, %v2065
        %2067 = vmatmul.f32.gmra.mxu0 %v589
        %v2068 = vpop.f32.mrf.mxu0
        %v2069 = vadd.f32 %v2013, %v2068
        %2070 = vmatmul.f32.gmra.mxu0 %v590
        %v2071 = vpop.f32.mrf.mxu0
        %v2072 = vadd.f32 %v2014, %v2071
        %2073 = vmatmul.f32.gmra.mxu0 %v591
        %v2074 = vpop.f32.mrf.mxu0
        %v2075 = vadd.f32 %v2015, %v2074
        %2076 = vmatmul.f32.gmra.mxu0 %v592
        %v2077 = vpop.f32.mrf.mxu0
        %v2078 = vadd.f32 %v2016, %v2077
        %2079 = vmatmul.f32.gmra.mxu0 %v593
        %v2080 = vpop.f32.mrf.mxu0
        %v2081 = vadd.f32 %v2017, %v2080
        %2082 = vdwg.mxu0
        %s2083 = scalar_lea.vmem [#allocation13], 6
        %v2084 = vld [vmem:[%s2083] sm:$0x3]
        %v2086 = vperm.slane %v2084, 0
        %v2087 = vperm.slane %v2084, 1
        %2090 = vmatpush.msra.mxu0 %v709
        %2091 = vmatpush.msra.mxu0 %v707
        %2092 = vmatpush.msra.mxu0 %v705
        %2093 = vmatpush.msra.mxu0 %v703
        %2094 = vmatpush.msra.mxu0 %v701
        %2095 = vmatpush.msra.mxu0 %v699
        %2096 = vmatpush.msra.mxu0 %v697
        %2097 = vmatpush.msra.mxu0 %v695
        %2098 = vmatpush.msra.mxu0 %v693
        %2099 = vmatpush.msra.mxu0 %v691
        %2100 = vmatpush.msra.mxu0 %v689
        %2101 = vmatpush.msra.mxu0 %v687
        %2102 = vmatpush.msra.mxu0 %v685
        %2103 = vmatpush.msra.mxu0 %v683
        %2104 = vmatpush.msra.mxu0 %v681
        %2105 = vmatpush.msra.mxu0 %v679
        %2106 = vmatmul.f32.gmra.mxu0 %v2036
        %v2107 = vpop.f32.mrf.mxu0
        %v2108 = vadd.f32 %v2086, %v2107
        %2109 = vmatmul.f32.gmra.mxu0 %v2039
        %v2110 = vpop.f32.mrf.mxu0
        %v2111 = vadd.f32 %v2086, %v2110
        %2112 = vmatmul.f32.gmra.mxu0 %v2042
        %v2113 = vpop.f32.mrf.mxu0
        %v2114 = vadd.f32 %v2086, %v2113
        %2115 = vmatmul.f32.gmra.mxu0 %v2045
        %v2116 = vpop.f32.mrf.mxu0
        %v2117 = vadd.f32 %v2086, %v2116
        %2118 = vmatmul.f32.gmra.mxu0 %v2048
        %v2119 = vpop.f32.mrf.mxu0
        %v2120 = vadd.f32 %v2086, %v2119
        %2121 = vmatmul.f32.gmra.mxu0 %v2051
        %v2122 = vpop.f32.mrf.mxu0
        %v2123 = vadd.f32 %v2086, %v2122
        %2124 = vmatmul.f32.gmra.mxu0 %v2054
        %v2125 = vpop.f32.mrf.mxu0
        %v2126 = vadd.f32 %v2086, %v2125
        %2127 = vmatmul.f32.gmra.mxu0 %v2057
        %v2128 = vpop.f32.mrf.mxu0
        %v2129 = vadd.f32 %v2086, %v2128
        %2130 = vmatmul.f32.gmra.mxu0 %v2060
        %v2131 = vpop.f32.mrf.mxu0
        %v2132 = vadd.f32 %v2086, %v2131
        %2133 = vmatmul.f32.gmra.mxu0 %v2063
        %v2134 = vpop.f32.mrf.mxu0
        %v2135 = vadd.f32 %v2086, %v2134
        %2136 = vmatmul.f32.gmra.mxu0 %v2066
        %v2137 = vpop.f32.mrf.mxu0
        %v2138 = vadd.f32 %v2086, %v2137
        %2139 = vmatmul.f32.gmra.mxu0 %v2069
        %v2140 = vpop.f32.mrf.mxu0
        %v2141 = vadd.f32 %v2086, %v2140
        %2142 = vmatmul.f32.gmra.mxu0 %v2072
        %v2143 = vpop.f32.mrf.mxu0
        %v2144 = vadd.f32 %v2086, %v2143
        %2145 = vmatmul.f32.gmra.mxu0 %v2075
        %v2146 = vpop.f32.mrf.mxu0
        %v2147 = vadd.f32 %v2086, %v2146
        %2148 = vmatmul.f32.gmra.mxu0 %v2078
        %v2149 = vpop.f32.mrf.mxu0
        %v2150 = vadd.f32 %v2086, %v2149
        %2151 = vmatmul.f32.gmra.mxu0 %v2081
        %v2152 = vpop.f32.mrf.mxu0
        %v2153 = vadd.f32 %v2086, %v2152
        %2154 = vdwg.mxu0
        %2155 = vmatpush.msra.mxu0 %v710
        %2156 = vmatpush.msra.mxu0 %v708
        %2157 = vmatpush.msra.mxu0 %v706
        %2158 = vmatpush.msra.mxu0 %v704
        %2159 = vmatpush.msra.mxu0 %v702
        %2160 = vmatpush.msra.mxu0 %v700
        %2161 = vmatpush.msra.mxu0 %v698
        %2162 = vmatpush.msra.mxu0 %v696
        %2163 = vmatpush.msra.mxu0 %v694
        %2164 = vmatpush.msra.mxu0 %v692
        %2165 = vmatpush.msra.mxu0 %v690
        %2166 = vmatpush.msra.mxu0 %v688
        %2167 = vmatpush.msra.mxu0 %v686
        %2168 = vmatpush.msra.mxu0 %v684
        %2169 = vmatpush.msra.mxu0 %v682
        %2170 = vmatpush.msra.mxu0 %v680
        %2171 = vmatmul.f32.gmra.mxu0 %v2036
        %v2172 = vpop.f32.mrf.mxu0
        %v2173 = vadd.f32 %v2087, %v2172
        %2174 = vmatmul.f32.gmra.mxu0 %v2039
        %v2175 = vpop.f32.mrf.mxu0
        %v2176 = vadd.f32 %v2087, %v2175
        %2177 = vmatmul.f32.gmra.mxu0 %v2042
        %v2178 = vpop.f32.mrf.mxu0
        %v2179 = vadd.f32 %v2087, %v2178
        %2180 = vmatmul.f32.gmra.mxu0 %v2045
        %v2181 = vpop.f32.mrf.mxu0
        %v2182 = vadd.f32 %v2087, %v2181
        %2183 = vmatmul.f32.gmra.mxu0 %v2048
        %v2184 = vpop.f32.mrf.mxu0
        %v2185 = vadd.f32 %v2087, %v2184
        %2186 = vmatmul.f32.gmra.mxu0 %v2051
        %v2187 = vpop.f32.mrf.mxu0
        %v2188 = vadd.f32 %v2087, %v2187
        %2189 = vmatmul.f32.gmra.mxu0 %v2054
        %v2190 = vpop.f32.mrf.mxu0
        %v2191 = vadd.f32 %v2087, %v2190
        %2192 = vmatmul.f32.gmra.mxu0 %v2057
        %v2193 = vpop.f32.mrf.mxu0
        %v2194 = vadd.f32 %v2087, %v2193
        %2195 = vmatmul.f32.gmra.mxu0 %v2060
        %v2196 = vpop.f32.mrf.mxu0
        %v2197 = vadd.f32 %v2087, %v2196
        %2198 = vmatmul.f32.gmra.mxu0 %v2063
        %v2199 = vpop.f32.mrf.mxu0
        %v2200 = vadd.f32 %v2087, %v2199
        %2201 = vmatmul.f32.gmra.mxu0 %v2066
        %v2202 = vpop.f32.mrf.mxu0
        %v2203 = vadd.f32 %v2087, %v2202
        %2204 = vmatmul.f32.gmra.mxu0 %v2069
        %v2205 = vpop.f32.mrf.mxu0
        %v2206 = vadd.f32 %v2087, %v2205
        %2207 = vmatmul.f32.gmra.mxu0 %v2072
        %v2208 = vpop.f32.mrf.mxu0
        %v2209 = vadd.f32 %v2087, %v2208
        %2210 = vmatmul.f32.gmra.mxu0 %v2075
        %v2211 = vpop.f32.mrf.mxu0
        %v2212 = vadd.f32 %v2087, %v2211
        %2213 = vmatmul.f32.gmra.mxu0 %v2078
        %v2214 = vpop.f32.mrf.mxu0
        %v2215 = vadd.f32 %v2087, %v2214
        %2216 = vmatmul.f32.gmra.mxu0 %v2081
        %v2217 = vpop.f32.mrf.mxu0
        %v2218 = vadd.f32 %v2087, %v2217
        %2219 = vdwg.mxu0
        %v2220 = vmul.f32 %v2108, %v632
        %v2221 = vmul.f32 %v2111, %v635
        %v2222 = vmul.f32 %v2114, %v638
        %v2223 = vmul.f32 %v2117, %v641
        %v2224 = vmul.f32 %v2120, %v644
        %v2225 = vmul.f32 %v2123, %v647
        %v2226 = vmul.f32 %v2126, %v650
        %v2227 = vmul.f32 %v2129, %v653
        %v2228 = vmul.f32 %v2132, %v656
        %v2229 = vmul.f32 %v2135, %v659
        %v2230 = vmul.f32 %v2138, %v662
        %v2231 = vmul.f32 %v2141, %v665
        %v2232 = vmul.f32 %v2144, %v668
        %v2233 = vmul.f32 %v2147, %v671
        %v2234 = vmul.f32 %v2150, %v674
        %v2235 = vmul.f32 %v2153, %v677
        %2236 = vmatpush.msra.mxu0 %v726
        %2237 = vmatpush.msra.mxu0 %v725
        %2238 = vmatpush.msra.mxu0 %v724
        %2239 = vmatpush.msra.mxu0 %v723
        %2240 = vmatpush.msra.mxu0 %v722
        %2241 = vmatpush.msra.mxu0 %v721
        %2242 = vmatpush.msra.mxu0 %v720
        %2243 = vmatpush.msra.mxu0 %v719
        %2244 = vmatpush.msra.mxu0 %v718
        %2245 = vmatpush.msra.mxu0 %v717
        %2246 = vmatpush.msra.mxu0 %v716
        %2247 = vmatpush.msra.mxu0 %v715
        %2248 = vmatpush.msra.mxu0 %v714
        %2249 = vmatpush.msra.mxu0 %v713
        %2250 = vmatpush.msra.mxu0 %v712
        %2251 = vmatpush.msra.mxu0 %v711
        %2252 = vmatmul.f32.gmra.mxu0 %v2220
        %v2253 = vpop.f32.mrf.mxu0
        %v2254 = vadd.f32 0.0, %v2253
        %2255 = vmatmul.f32.gmra.mxu0 %v2221
        %v2256 = vpop.f32.mrf.mxu0
        %v2257 = vadd.f32 0.0, %v2256
        %2258 = vmatmul.f32.gmra.mxu0 %v2222
        %v2259 = vpop.f32.mrf.mxu0
        %v2260 = vadd.f32 0.0, %v2259
        %2261 = vmatmul.f32.gmra.mxu0 %v2223
        %v2262 = vpop.f32.mrf.mxu0
        %v2263 = vadd.f32 0.0, %v2262
        %2264 = vmatmul.f32.gmra.mxu0 %v2224
        %v2265 = vpop.f32.mrf.mxu0
        %v2266 = vadd.f32 0.0, %v2265
        %2267 = vmatmul.f32.gmra.mxu0 %v2225
        %v2268 = vpop.f32.mrf.mxu0
        %v2269 = vadd.f32 0.0, %v2268
        %2270 = vmatmul.f32.gmra.mxu0 %v2226
        %v2271 = vpop.f32.mrf.mxu0
        %v2272 = vadd.f32 0.0, %v2271
        %2273 = vmatmul.f32.gmra.mxu0 %v2227
        %v2274 = vpop.f32.mrf.mxu0
        %v2275 = vadd.f32 0.0, %v2274
        %2276 = vmatmul.f32.gmra.mxu0 %v2228
        %v2277 = vpop.f32.mrf.mxu0
        %v2278 = vadd.f32 0.0, %v2277
        %2279 = vmatmul.f32.gmra.mxu0 %v2229
        %v2280 = vpop.f32.mrf.mxu0
        %v2281 = vadd.f32 0.0, %v2280
        %2282 = vmatmul.f32.gmra.mxu0 %v2230
        %v2283 = vpop.f32.mrf.mxu0
        %v2284 = vadd.f32 0.0, %v2283
        %2285 = vmatmul.f32.gmra.mxu0 %v2231
        %v2286 = vpop.f32.mrf.mxu0
        %v2287 = vadd.f32 0.0, %v2286
        %2288 = vmatmul.f32.gmra.mxu0 %v2232
        %v2289 = vpop.f32.mrf.mxu0
        %v2290 = vadd.f32 0.0, %v2289
        %2291 = vmatmul.f32.gmra.mxu0 %v2233
        %v2292 = vpop.f32.mrf.mxu0
        %v2293 = vadd.f32 0.0, %v2292
        %2294 = vmatmul.f32.gmra.mxu0 %v2234
        %v2295 = vpop.f32.mrf.mxu0
        %v2296 = vadd.f32 0.0, %v2295
        %2297 = vmatmul.f32.gmra.mxu0 %v2235
        %v2298 = vpop.f32.mrf.mxu0
        %v2299 = vadd.f32 0.0, %v2298
        %2300 = vdwg.mxu0
        %v2301 = vmul.f32 %v2173, %v2254
        %v2302 = vmul.f32 %v2176, %v2257
        %v2303 = vmul.f32 %v2179, %v2260
        %v2304 = vmul.f32 %v2182, %v2263
        %v2305 = vmul.f32 %v2185, %v2266
        %v2306 = vmul.f32 %v2188, %v2269
        %v2307 = vmul.f32 %v2191, %v2272
        %v2308 = vmul.f32 %v2194, %v2275
        %v2309 = vmul.f32 %v2197, %v2278
        %v2310 = vmul.f32 %v2200, %v2281
        %v2311 = vmul.f32 %v2203, %v2284
        %v2312 = vmul.f32 %v2206, %v2287
        %v2313 = vmul.f32 %v2209, %v2290
        %v2314 = vmul.f32 %v2212, %v2293
        %v2315 = vmul.f32 %v2215, %v2296
        %v2316 = vmul.f32 %v2218, %v2299
        %s2317 = scalar_lea.vmem [#allocation14], 384
        %v2318 = vld [vmem:[%s2317] sm:$0xff]
        %v2319 = vld [vmem:[%s2317 + $0x8] sm:$0xff]
        %v2320 = vld [vmem:[%s2317 + $0x10] sm:$0xff]
        %v2321 = vld [vmem:[%s2317 + $0x18] sm:$0xff]
        %v2322 = vld [vmem:[%s2317 + $0x20] sm:$0xff]
        %v2323 = vld [vmem:[%s2317 + $0x28] sm:$0xff]
        %v2324 = vld [vmem:[%s2317 + $0x30] sm:$0xff]
        %v2325 = vld [vmem:[%s2317 + $0x38] sm:$0xff]
        %v2326 = vld [vmem:[%s2317 + $0x40] sm:$0xff]
        %v2327 = vld [vmem:[%s2317 + $0x48] sm:$0xff]
        %v2328 = vld [vmem:[%s2317 + $0x50] sm:$0xff]
        %v2329 = vld [vmem:[%s2317 + $0x58] sm:$0xff]
        %v2330 = vld [vmem:[%s2317 + $0x60] sm:$0xff]
        %v2331 = vld [vmem:[%s2317 + $0x68] sm:$0xff]
        %v2332 = vld [vmem:[%s2317 + $0x70] sm:$0xff]
        %v2333 = vld [vmem:[%s2317 + $0x78] sm:$0xff]
        %2334 = vmatpush.msra.mxu0 %v2333
        %2335 = vmatpush.msra.mxu0 %v2332
        %2336 = vmatpush.msra.mxu0 %v2331
        %2337 = vmatpush.msra.mxu0 %v2330
        %2338 = vmatpush.msra.mxu0 %v2329
        %2339 = vmatpush.msra.mxu0 %v2328
        %2340 = vmatpush.msra.mxu0 %v2327
        %2341 = vmatpush.msra.mxu0 %v2326
        %2342 = vmatpush.msra.mxu0 %v2325
        %2343 = vmatpush.msra.mxu0 %v2324
        %2344 = vmatpush.msra.mxu0 %v2323
        %2345 = vmatpush.msra.mxu0 %v2322
        %2346 = vmatpush.msra.mxu0 %v2321
        %2347 = vmatpush.msra.mxu0 %v2320
        %2348 = vmatpush.msra.mxu0 %v2319
        %2349 = vmatpush.msra.mxu0 %v2318
        %2350 = vmatmul.f32.gmra.mxu0 %v2301
        %v2351 = vpop.f32.mrf.mxu0
        %v2352 = vadd.f32 0.0, %v2351
        %2353 = vmatmul.f32.gmra.mxu0 %v2302
        %v2354 = vpop.f32.mrf.mxu0
        %v2355 = vadd.f32 0.0, %v2354
        %2356 = vmatmul.f32.gmra.mxu0 %v2303
        %v2357 = vpop.f32.mrf.mxu0
        %v2358 = vadd.f32 0.0, %v2357
        %2359 = vmatmul.f32.gmra.mxu0 %v2304
        %v2360 = vpop.f32.mrf.mxu0
        %v2361 = vadd.f32 0.0, %v2360
        %2362 = vmatmul.f32.gmra.mxu0 %v2305
        %v2363 = vpop.f32.mrf.mxu0
        %v2364 = vadd.f32 0.0, %v2363
        %2365 = vmatmul.f32.gmra.mxu0 %v2306
        %v2366 = vpop.f32.mrf.mxu0
        %v2367 = vadd.f32 0.0, %v2366
        %2368 = vmatmul.f32.gmra.mxu0 %v2307
        %v2369 = vpop.f32.mrf.mxu0
        %v2370 = vadd.f32 0.0, %v2369
        %2371 = vmatmul.f32.gmra.mxu0 %v2308
        %v2372 = vpop.f32.mrf.mxu0
        %v2373 = vadd.f32 0.0, %v2372
        %2374 = vmatmul.f32.gmra.mxu0 %v2309
        %v2375 = vpop.f32.mrf.mxu0
        %v2376 = vadd.f32 0.0, %v2375
        %2377 = vmatmul.f32.gmra.mxu0 %v2310
        %v2378 = vpop.f32.mrf.mxu0
        %v2379 = vadd.f32 0.0, %v2378
        %2380 = vmatmul.f32.gmra.mxu0 %v2311
        %v2381 = vpop.f32.mrf.mxu0
        %v2382 = vadd.f32 0.0, %v2381
        %2383 = vmatmul.f32.gmra.mxu0 %v2312
        %v2384 = vpop.f32.mrf.mxu0
        %v2385 = vadd.f32 0.0, %v2384
        %2386 = vmatmul.f32.gmra.mxu0 %v2313
        %v2387 = vpop.f32.mrf.mxu0
        %v2388 = vadd.f32 0.0, %v2387
        %2389 = vmatmul.f32.gmra.mxu0 %v2314
        %v2390 = vpop.f32.mrf.mxu0
        %v2391 = vadd.f32 0.0, %v2390
        %2392 = vmatmul.f32.gmra.mxu0 %v2315
        %v2393 = vpop.f32.mrf.mxu0
        %v2394 = vadd.f32 0.0, %v2393
        %2395 = vmatmul.f32.gmra.mxu0 %v2316
        %v2396 = vpop.f32.mrf.mxu0
        %v2397 = vadd.f32 0.0, %v2396
        %2398 = vdwg.mxu0
        %v2399 = vadd.f32 %v1968, %v2352
        %v2400 = vadd.f32 %v1969, %v2355
        %v2401 = vadd.f32 %v1970, %v2358
        %v2402 = vadd.f32 %v1971, %v2361
        %v2403 = vadd.f32 %v1972, %v2364
        %v2404 = vadd.f32 %v1973, %v2367
        %v2405 = vadd.f32 %v1974, %v2370
        %v2406 = vadd.f32 %v1975, %v2373
        %v2407 = vadd.f32 %v1976, %v2376
        %v2408 = vadd.f32 %v1977, %v2379
        %v2409 = vadd.f32 %v1978, %v2382
        %v2410 = vadd.f32 %v1979, %v2385
        %v2411 = vadd.f32 %v1980, %v2388
        %v2412 = vadd.f32 %v1981, %v2391
        %v2413 = vadd.f32 %v1982, %v2394
        %v2414 = vadd.f32 %v1983, %v2397
        %s2415 = scalar_lea.vmem [#allocation7], 512
        %v2416 = vld [vmem:[%s2415] sm:$0xff]
        %v2417 = vld [vmem:[%s2415 + $0x8] sm:$0xff]
        %v2418 = vld [vmem:[%s2415 + $0x10] sm:$0xff]
        %v2419 = vld [vmem:[%s2415 + $0x18] sm:$0xff]
        %v2420 = vld [vmem:[%s2415 + $0x20] sm:$0xff]
        %v2421 = vld [vmem:[%s2415 + $0x28] sm:$0xff]
        %v2422 = vld [vmem:[%s2415 + $0x30] sm:$0xff]
        %v2423 = vld [vmem:[%s2415 + $0x38] sm:$0xff]
        %v2424 = vld [vmem:[%s2415 + $0x40] sm:$0xff]
        %v2425 = vld [vmem:[%s2415 + $0x48] sm:$0xff]
        %v2426 = vld [vmem:[%s2415 + $0x50] sm:$0xff]
        %v2427 = vld [vmem:[%s2415 + $0x58] sm:$0xff]
        %v2428 = vld [vmem:[%s2415 + $0x60] sm:$0xff]
        %v2429 = vld [vmem:[%s2415 + $0x68] sm:$0xff]
        %v2430 = vld [vmem:[%s2415 + $0x70] sm:$0xff]
        %v2431 = vld [vmem:[%s2415 + $0x78] sm:$0xff]
        %s2432 = scalar_lea.vmem %s492, 512 [#allocation5]
        %v2433 = vld [vmem:[%s2432] sm:$0xff]
        %v2434 = vld [vmem:[%s2432 + $0x8] sm:$0xff]
        %v2435 = vld [vmem:[%s2432 + $0x10] sm:$0xff]
        %v2436 = vld [vmem:[%s2432 + $0x18] sm:$0xff]
        %v2437 = vld [vmem:[%s2432 + $0x20] sm:$0xff]
        %v2438 = vld [vmem:[%s2432 + $0x28] sm:$0xff]
        %v2439 = vld [vmem:[%s2432 + $0x30] sm:$0xff]
        %v2440 = vld [vmem:[%s2432 + $0x38] sm:$0xff]
        %v2441 = vld [vmem:[%s2432 + $0x40] sm:$0xff]
        %v2442 = vld [vmem:[%s2432 + $0x48] sm:$0xff]
        %v2443 = vld [vmem:[%s2432 + $0x50] sm:$0xff]
        %v2444 = vld [vmem:[%s2432 + $0x58] sm:$0xff]
        %v2445 = vld [vmem:[%s2432 + $0x60] sm:$0xff]
        %v2446 = vld [vmem:[%s2432 + $0x68] sm:$0xff]
        %v2447 = vld [vmem:[%s2432 + $0x70] sm:$0xff]
        %v2448 = vld [vmem:[%s2432 + $0x78] sm:$0xff]
        %2449 = vmatpush.msra.mxu0 %v2431
        %2450 = vmatpush.msra.mxu0 %v2430
        %2451 = vmatpush.msra.mxu0 %v2429
        %2452 = vmatpush.msra.mxu0 %v2428
        %2453 = vmatpush.msra.mxu0 %v2427
        %2454 = vmatpush.msra.mxu0 %v2426
        %2455 = vmatpush.msra.mxu0 %v2425
        %2456 = vmatpush.msra.mxu0 %v2424
        %2457 = vmatpush.msra.mxu0 %v2423
        %2458 = vmatpush.msra.mxu0 %v2422
        %2459 = vmatpush.msra.mxu0 %v2421
        %2460 = vmatpush.msra.mxu0 %v2420
        %2461 = vmatpush.msra.mxu0 %v2419
        %2462 = vmatpush.msra.mxu0 %v2418
        %2463 = vmatpush.msra.mxu0 %v2417
        %2464 = vmatpush.msra.mxu0 %v2416
        %2465 = vmatmul.f32.gmra.mxu0 %v578
        %v2466 = vpop.f32.mrf.mxu0
        %v2467 = vadd.f32 %v2433, %v2466
        %2468 = vmatmul.f32.gmra.mxu0 %v579
        %v2469 = vpop.f32.mrf.mxu0
        %v2470 = vadd.f32 %v2434, %v2469
        %2471 = vmatmul.f32.gmra.mxu0 %v580
        %v2472 = vpop.f32.mrf.mxu0
        %v2473 = vadd.f32 %v2435, %v2472
        %2474 = vmatmul.f32.gmra.mxu0 %v581
        %v2475 = vpop.f32.mrf.mxu0
        %v2476 = vadd.f32 %v2436, %v2475
        %2477 = vmatmul.f32.gmra.mxu0 %v582
        %v2478 = vpop.f32.mrf.mxu0
        %v2479 = vadd.f32 %v2437, %v2478
        %2480 = vmatmul.f32.gmra.mxu0 %v583
        %v2481 = vpop.f32.mrf.mxu0
        %v2482 = vadd.f32 %v2438, %v2481
        %2483 = vmatmul.f32.gmra.mxu0 %v584
        %v2484 = vpop.f32.mrf.mxu0
        %v2485 = vadd.f32 %v2439, %v2484
        %2486 = vmatmul.f32.gmra.mxu0 %v585
        %v2487 = vpop.f32.mrf.mxu0
        %v2488 = vadd.f32 %v2440, %v2487
        %2489 = vmatmul.f32.gmra.mxu0 %v586
        %v2490 = vpop.f32.mrf.mxu0
        %v2491 = vadd.f32 %v2441, %v2490
        %2492 = vmatmul.f32.gmra.mxu0 %v587
        %v2493 = vpop.f32.mrf.mxu0
        %v2494 = vadd.f32 %v2442, %v2493
        %2495 = vmatmul.f32.gmra.mxu0 %v588
        %v2496 = vpop.f32.mrf.mxu0
        %v2497 = vadd.f32 %v2443, %v2496
        %2498 = vmatmul.f32.gmra.mxu0 %v589
        %v2499 = vpop.f32.mrf.mxu0
        %v2500 = vadd.f32 %v2444, %v2499
        %2501 = vmatmul.f32.gmra.mxu0 %v590
        %v2502 = vpop.f32.mrf.mxu0
        %v2503 = vadd.f32 %v2445, %v2502
        %2504 = vmatmul.f32.gmra.mxu0 %v591
        %v2505 = vpop.f32.mrf.mxu0
        %v2506 = vadd.f32 %v2446, %v2505
        %2507 = vmatmul.f32.gmra.mxu0 %v592
        %v2508 = vpop.f32.mrf.mxu0
        %v2509 = vadd.f32 %v2447, %v2508
        %2510 = vmatmul.f32.gmra.mxu0 %v593
        %v2511 = vpop.f32.mrf.mxu0
        %v2512 = vadd.f32 %v2448, %v2511
        %2513 = vdwg.mxu0
        %s2514 = scalar_lea.vmem [#allocation13], 8
        %v2515 = vld [vmem:[%s2514] sm:$0x3]
        %v2517 = vperm.slane %v2515, 0
        %v2518 = vperm.slane %v2515, 1
        %2521 = vmatpush.msra.mxu0 %v709
        %2522 = vmatpush.msra.mxu0 %v707
        %2523 = vmatpush.msra.mxu0 %v705
        %2524 = vmatpush.msra.mxu0 %v703
        %2525 = vmatpush.msra.mxu0 %v701
        %2526 = vmatpush.msra.mxu0 %v699
        %2527 = vmatpush.msra.mxu0 %v697
        %2528 = vmatpush.msra.mxu0 %v695
        %2529 = vmatpush.msra.mxu0 %v693
        %2530 = vmatpush.msra.mxu0 %v691
        %2531 = vmatpush.msra.mxu0 %v689
        %2532 = vmatpush.msra.mxu0 %v687
        %2533 = vmatpush.msra.mxu0 %v685
        %2534 = vmatpush.msra.mxu0 %v683
        %2535 = vmatpush.msra.mxu0 %v681
        %2536 = vmatpush.msra.mxu0 %v679
        %2537 = vmatmul.f32.gmra.mxu0 %v2467
        %v2538 = vpop.f32.mrf.mxu0
        %v2539 = vadd.f32 %v2517, %v2538
        %2540 = vmatmul.f32.gmra.mxu0 %v2470
        %v2541 = vpop.f32.mrf.mxu0
        %v2542 = vadd.f32 %v2517, %v2541
        %2543 = vmatmul.f32.gmra.mxu0 %v2473
        %v2544 = vpop.f32.mrf.mxu0
        %v2545 = vadd.f32 %v2517, %v2544
        %2546 = vmatmul.f32.gmra.mxu0 %v2476
        %v2547 = vpop.f32.mrf.mxu0
        %v2548 = vadd.f32 %v2517, %v2547
        %2549 = vmatmul.f32.gmra.mxu0 %v2479
        %v2550 = vpop.f32.mrf.mxu0
        %v2551 = vadd.f32 %v2517, %v2550
        %2552 = vmatmul.f32.gmra.mxu0 %v2482
        %v2553 = vpop.f32.mrf.mxu0
        %v2554 = vadd.f32 %v2517, %v2553
        %2555 = vmatmul.f32.gmra.mxu0 %v2485
        %v2556 = vpop.f32.mrf.mxu0
        %v2557 = vadd.f32 %v2517, %v2556
        %2558 = vmatmul.f32.gmra.mxu0 %v2488
        %v2559 = vpop.f32.mrf.mxu0
        %v2560 = vadd.f32 %v2517, %v2559
        %2561 = vmatmul.f32.gmra.mxu0 %v2491
        %v2562 = vpop.f32.mrf.mxu0
        %v2563 = vadd.f32 %v2517, %v2562
        %2564 = vmatmul.f32.gmra.mxu0 %v2494
        %v2565 = vpop.f32.mrf.mxu0
        %v2566 = vadd.f32 %v2517, %v2565
        %2567 = vmatmul.f32.gmra.mxu0 %v2497
        %v2568 = vpop.f32.mrf.mxu0
        %v2569 = vadd.f32 %v2517, %v2568
        %2570 = vmatmul.f32.gmra.mxu0 %v2500
        %v2571 = vpop.f32.mrf.mxu0
        %v2572 = vadd.f32 %v2517, %v2571
        %2573 = vmatmul.f32.gmra.mxu0 %v2503
        %v2574 = vpop.f32.mrf.mxu0
        %v2575 = vadd.f32 %v2517, %v2574
        %2576 = vmatmul.f32.gmra.mxu0 %v2506
        %v2577 = vpop.f32.mrf.mxu0
        %v2578 = vadd.f32 %v2517, %v2577
        %2579 = vmatmul.f32.gmra.mxu0 %v2509
        %v2580 = vpop.f32.mrf.mxu0
        %v2581 = vadd.f32 %v2517, %v2580
        %2582 = vmatmul.f32.gmra.mxu0 %v2512
        %v2583 = vpop.f32.mrf.mxu0
        %v2584 = vadd.f32 %v2517, %v2583
        %2585 = vdwg.mxu0
        %2586 = vmatpush.msra.mxu0 %v710
        %2587 = vmatpush.msra.mxu0 %v708
        %2588 = vmatpush.msra.mxu0 %v706
        %2589 = vmatpush.msra.mxu0 %v704
        %2590 = vmatpush.msra.mxu0 %v702
        %2591 = vmatpush.msra.mxu0 %v700
        %2592 = vmatpush.msra.mxu0 %v698
        %2593 = vmatpush.msra.mxu0 %v696
        %2594 = vmatpush.msra.mxu0 %v694
        %2595 = vmatpush.msra.mxu0 %v692
        %2596 = vmatpush.msra.mxu0 %v690
        %2597 = vmatpush.msra.mxu0 %v688
        %2598 = vmatpush.msra.mxu0 %v686
        %2599 = vmatpush.msra.mxu0 %v684
        %2600 = vmatpush.msra.mxu0 %v682
        %2601 = vmatpush.msra.mxu0 %v680
        %2602 = vmatmul.f32.gmra.mxu0 %v2467
        %v2603 = vpop.f32.mrf.mxu0
        %v2604 = vadd.f32 %v2518, %v2603
        %2605 = vmatmul.f32.gmra.mxu0 %v2470
        %v2606 = vpop.f32.mrf.mxu0
        %v2607 = vadd.f32 %v2518, %v2606
        %2608 = vmatmul.f32.gmra.mxu0 %v2473
        %v2609 = vpop.f32.mrf.mxu0
        %v2610 = vadd.f32 %v2518, %v2609
        %2611 = vmatmul.f32.gmra.mxu0 %v2476
        %v2612 = vpop.f32.mrf.mxu0
        %v2613 = vadd.f32 %v2518, %v2612
        %2614 = vmatmul.f32.gmra.mxu0 %v2479
        %v2615 = vpop.f32.mrf.mxu0
        %v2616 = vadd.f32 %v2518, %v2615
        %2617 = vmatmul.f32.gmra.mxu0 %v2482
        %v2618 = vpop.f32.mrf.mxu0
        %v2619 = vadd.f32 %v2518, %v2618
        %2620 = vmatmul.f32.gmra.mxu0 %v2485
        %v2621 = vpop.f32.mrf.mxu0
        %v2622 = vadd.f32 %v2518, %v2621
        %2623 = vmatmul.f32.gmra.mxu0 %v2488
        %v2624 = vpop.f32.mrf.mxu0
        %v2625 = vadd.f32 %v2518, %v2624
        %2626 = vmatmul.f32.gmra.mxu0 %v2491
        %v2627 = vpop.f32.mrf.mxu0
        %v2628 = vadd.f32 %v2518, %v2627
        %2629 = vmatmul.f32.gmra.mxu0 %v2494
        %v2630 = vpop.f32.mrf.mxu0
        %v2631 = vadd.f32 %v2518, %v2630
        %2632 = vmatmul.f32.gmra.mxu0 %v2497
        %v2633 = vpop.f32.mrf.mxu0
        %v2634 = vadd.f32 %v2518, %v2633
        %2635 = vmatmul.f32.gmra.mxu0 %v2500
        %v2636 = vpop.f32.mrf.mxu0
        %v2637 = vadd.f32 %v2518, %v2636
        %2638 = vmatmul.f32.gmra.mxu0 %v2503
        %v2639 = vpop.f32.mrf.mxu0
        %v2640 = vadd.f32 %v2518, %v2639
        %2641 = vmatmul.f32.gmra.mxu0 %v2506
        %v2642 = vpop.f32.mrf.mxu0
        %v2643 = vadd.f32 %v2518, %v2642
        %2644 = vmatmul.f32.gmra.mxu0 %v2509
        %v2645 = vpop.f32.mrf.mxu0
        %v2646 = vadd.f32 %v2518, %v2645
        %2647 = vmatmul.f32.gmra.mxu0 %v2512
        %v2648 = vpop.f32.mrf.mxu0
        %v2649 = vadd.f32 %v2518, %v2648
        %2650 = vdwg.mxu0
        %v2651 = vmul.f32 %v2539, %v632
        %v2652 = vmul.f32 %v2542, %v635
        %v2653 = vmul.f32 %v2545, %v638
        %v2654 = vmul.f32 %v2548, %v641
        %v2655 = vmul.f32 %v2551, %v644
        %v2656 = vmul.f32 %v2554, %v647
        %v2657 = vmul.f32 %v2557, %v650
        %v2658 = vmul.f32 %v2560, %v653
        %v2659 = vmul.f32 %v2563, %v656
        %v2660 = vmul.f32 %v2566, %v659
        %v2661 = vmul.f32 %v2569, %v662
        %v2662 = vmul.f32 %v2572, %v665
        %v2663 = vmul.f32 %v2575, %v668
        %v2664 = vmul.f32 %v2578, %v671
        %v2665 = vmul.f32 %v2581, %v674
        %v2666 = vmul.f32 %v2584, %v677
        %2667 = vmatpush.msra.mxu0 %v726
        %2668 = vmatpush.msra.mxu0 %v725
        %2669 = vmatpush.msra.mxu0 %v724
        %2670 = vmatpush.msra.mxu0 %v723
        %2671 = vmatpush.msra.mxu0 %v722
        %2672 = vmatpush.msra.mxu0 %v721
        %2673 = vmatpush.msra.mxu0 %v720
        %2674 = vmatpush.msra.mxu0 %v719
        %2675 = vmatpush.msra.mxu0 %v718
        %2676 = vmatpush.msra.mxu0 %v717
        %2677 = vmatpush.msra.mxu0 %v716
        %2678 = vmatpush.msra.mxu0 %v715
        %2679 = vmatpush.msra.mxu0 %v714
        %2680 = vmatpush.msra.mxu0 %v713
        %2681 = vmatpush.msra.mxu0 %v712
        %2682 = vmatpush.msra.mxu0 %v711
        %2683 = vmatmul.f32.gmra.mxu0 %v2651
        %v2684 = vpop.f32.mrf.mxu0
        %v2685 = vadd.f32 0.0, %v2684
        %2686 = vmatmul.f32.gmra.mxu0 %v2652
        %v2687 = vpop.f32.mrf.mxu0
        %v2688 = vadd.f32 0.0, %v2687
        %2689 = vmatmul.f32.gmra.mxu0 %v2653
        %v2690 = vpop.f32.mrf.mxu0
        %v2691 = vadd.f32 0.0, %v2690
        %2692 = vmatmul.f32.gmra.mxu0 %v2654
        %v2693 = vpop.f32.mrf.mxu0
        %v2694 = vadd.f32 0.0, %v2693
        %2695 = vmatmul.f32.gmra.mxu0 %v2655
        %v2696 = vpop.f32.mrf.mxu0
        %v2697 = vadd.f32 0.0, %v2696
        %2698 = vmatmul.f32.gmra.mxu0 %v2656
        %v2699 = vpop.f32.mrf.mxu0
        %v2700 = vadd.f32 0.0, %v2699
        %2701 = vmatmul.f32.gmra.mxu0 %v2657
        %v2702 = vpop.f32.mrf.mxu0
        %v2703 = vadd.f32 0.0, %v2702
        %2704 = vmatmul.f32.gmra.mxu0 %v2658
        %v2705 = vpop.f32.mrf.mxu0
        %v2706 = vadd.f32 0.0, %v2705
        %2707 = vmatmul.f32.gmra.mxu0 %v2659
        %v2708 = vpop.f32.mrf.mxu0
        %v2709 = vadd.f32 0.0, %v2708
        %2710 = vmatmul.f32.gmra.mxu0 %v2660
        %v2711 = vpop.f32.mrf.mxu0
        %v2712 = vadd.f32 0.0, %v2711
        %2713 = vmatmul.f32.gmra.mxu0 %v2661
        %v2714 = vpop.f32.mrf.mxu0
        %v2715 = vadd.f32 0.0, %v2714
        %2716 = vmatmul.f32.gmra.mxu0 %v2662
        %v2717 = vpop.f32.mrf.mxu0
        %v2718 = vadd.f32 0.0, %v2717
        %2719 = vmatmul.f32.gmra.mxu0 %v2663
        %v2720 = vpop.f32.mrf.mxu0
        %v2721 = vadd.f32 0.0, %v2720
        %2722 = vmatmul.f32.gmra.mxu0 %v2664
        %v2723 = vpop.f32.mrf.mxu0
        %v2724 = vadd.f32 0.0, %v2723
        %2725 = vmatmul.f32.gmra.mxu0 %v2665
        %v2726 = vpop.f32.mrf.mxu0
        %v2727 = vadd.f32 0.0, %v2726
        %2728 = vmatmul.f32.gmra.mxu0 %v2666
        %v2729 = vpop.f32.mrf.mxu0
        %v2730 = vadd.f32 0.0, %v2729
        %2731 = vdwg.mxu0
        %v2732 = vmul.f32 %v2604, %v2685
        %v2733 = vmul.f32 %v2607, %v2688
        %v2734 = vmul.f32 %v2610, %v2691
        %v2735 = vmul.f32 %v2613, %v2694
        %v2736 = vmul.f32 %v2616, %v2697
        %v2737 = vmul.f32 %v2619, %v2700
        %v2738 = vmul.f32 %v2622, %v2703
        %v2739 = vmul.f32 %v2625, %v2706
        %v2740 = vmul.f32 %v2628, %v2709
        %v2741 = vmul.f32 %v2631, %v2712
        %v2742 = vmul.f32 %v2634, %v2715
        %v2743 = vmul.f32 %v2637, %v2718
        %v2744 = vmul.f32 %v2640, %v2721
        %v2745 = vmul.f32 %v2643, %v2724
        %v2746 = vmul.f32 %v2646, %v2727
        %v2747 = vmul.f32 %v2649, %v2730
        %s2748 = scalar_lea.vmem [#allocation14], 512
        %v2749 = vld [vmem:[%s2748] sm:$0xff]
        %v2750 = vld [vmem:[%s2748 + $0x8] sm:$0xff]
        %v2751 = vld [vmem:[%s2748 + $0x10] sm:$0xff]
        %v2752 = vld [vmem:[%s2748 + $0x18] sm:$0xff]
        %v2753 = vld [vmem:[%s2748 + $0x20] sm:$0xff]
        %v2754 = vld [vmem:[%s2748 + $0x28] sm:$0xff]
        %v2755 = vld [vmem:[%s2748 + $0x30] sm:$0xff]
        %v2756 = vld [vmem:[%s2748 + $0x38] sm:$0xff]
        %v2757 = vld [vmem:[%s2748 + $0x40] sm:$0xff]
        %v2758 = vld [vmem:[%s2748 + $0x48] sm:$0xff]
        %v2759 = vld [vmem:[%s2748 + $0x50] sm:$0xff]
        %v2760 = vld [vmem:[%s2748 + $0x58] sm:$0xff]
        %v2761 = vld [vmem:[%s2748 + $0x60] sm:$0xff]
        %v2762 = vld [vmem:[%s2748 + $0x68] sm:$0xff]
        %v2763 = vld [vmem:[%s2748 + $0x70] sm:$0xff]
        %v2764 = vld [vmem:[%s2748 + $0x78] sm:$0xff]
        %2765 = vmatpush.msra.mxu0 %v2764
        %2766 = vmatpush.msra.mxu0 %v2763
        %2767 = vmatpush.msra.mxu0 %v2762
        %2768 = vmatpush.msra.mxu0 %v2761
        %2769 = vmatpush.msra.mxu0 %v2760
        %2770 = vmatpush.msra.mxu0 %v2759
        %2771 = vmatpush.msra.mxu0 %v2758
        %2772 = vmatpush.msra.mxu0 %v2757
        %2773 = vmatpush.msra.mxu0 %v2756
        %2774 = vmatpush.msra.mxu0 %v2755
        %2775 = vmatpush.msra.mxu0 %v2754
        %2776 = vmatpush.msra.mxu0 %v2753
        %2777 = vmatpush.msra.mxu0 %v2752
        %2778 = vmatpush.msra.mxu0 %v2751
        %2779 = vmatpush.msra.mxu0 %v2750
        %2780 = vmatpush.msra.mxu0 %v2749
        %2781 = vmatmul.f32.gmra.mxu0 %v2732
        %v2782 = vpop.f32.mrf.mxu0
        %v2783 = vadd.f32 0.0, %v2782
        %2784 = vmatmul.f32.gmra.mxu0 %v2733
        %v2785 = vpop.f32.mrf.mxu0
        %v2786 = vadd.f32 0.0, %v2785
        %2787 = vmatmul.f32.gmra.mxu0 %v2734
        %v2788 = vpop.f32.mrf.mxu0
        %v2789 = vadd.f32 0.0, %v2788
        %2790 = vmatmul.f32.gmra.mxu0 %v2735
        %v2791 = vpop.f32.mrf.mxu0
        %v2792 = vadd.f32 0.0, %v2791
        %2793 = vmatmul.f32.gmra.mxu0 %v2736
        %v2794 = vpop.f32.mrf.mxu0
        %v2795 = vadd.f32 0.0, %v2794
        %2796 = vmatmul.f32.gmra.mxu0 %v2737
        %v2797 = vpop.f32.mrf.mxu0
        %v2798 = vadd.f32 0.0, %v2797
        %2799 = vmatmul.f32.gmra.mxu0 %v2738
        %v2800 = vpop.f32.mrf.mxu0
        %v2801 = vadd.f32 0.0, %v2800
        %2802 = vmatmul.f32.gmra.mxu0 %v2739
        %v2803 = vpop.f32.mrf.mxu0
        %v2804 = vadd.f32 0.0, %v2803
        %2805 = vmatmul.f32.gmra.mxu0 %v2740
        %v2806 = vpop.f32.mrf.mxu0
        %v2807 = vadd.f32 0.0, %v2806
        %2808 = vmatmul.f32.gmra.mxu0 %v2741
        %v2809 = vpop.f32.mrf.mxu0
        %v2810 = vadd.f32 0.0, %v2809
        %2811 = vmatmul.f32.gmra.mxu0 %v2742
        %v2812 = vpop.f32.mrf.mxu0
        %v2813 = vadd.f32 0.0, %v2812
        %2814 = vmatmul.f32.gmra.mxu0 %v2743
        %v2815 = vpop.f32.mrf.mxu0
        %v2816 = vadd.f32 0.0, %v2815
        %2817 = vmatmul.f32.gmra.mxu0 %v2744
        %v2818 = vpop.f32.mrf.mxu0
        %v2819 = vadd.f32 0.0, %v2818
        %2820 = vmatmul.f32.gmra.mxu0 %v2745
        %v2821 = vpop.f32.mrf.mxu0
        %v2822 = vadd.f32 0.0, %v2821
        %2823 = vmatmul.f32.gmra.mxu0 %v2746
        %v2824 = vpop.f32.mrf.mxu0
        %v2825 = vadd.f32 0.0, %v2824
        %2826 = vmatmul.f32.gmra.mxu0 %v2747
        %v2827 = vpop.f32.mrf.mxu0
        %v2828 = vadd.f32 0.0, %v2827
        %2829 = vdwg.mxu0
        %v2830 = vadd.f32 %v2399, %v2783
        %v2831 = vadd.f32 %v2400, %v2786
        %v2832 = vadd.f32 %v2401, %v2789
        %v2833 = vadd.f32 %v2402, %v2792
        %v2834 = vadd.f32 %v2403, %v2795
        %v2835 = vadd.f32 %v2404, %v2798
        %v2836 = vadd.f32 %v2405, %v2801
        %v2837 = vadd.f32 %v2406, %v2804
        %v2838 = vadd.f32 %v2407, %v2807
        %v2839 = vadd.f32 %v2408, %v2810
        %v2840 = vadd.f32 %v2409, %v2813
        %v2841 = vadd.f32 %v2410, %v2816
        %v2842 = vadd.f32 %v2411, %v2819
        %v2843 = vadd.f32 %v2412, %v2822
        %v2844 = vadd.f32 %v2413, %v2825
        %v2845 = vadd.f32 %v2414, %v2828
        %s2846 = scalar_lea.vmem [#allocation7], 640
        %v2847 = vld [vmem:[%s2846] sm:$0xff]
        %v2848 = vld [vmem:[%s2846 + $0x8] sm:$0xff]
        %v2849 = vld [vmem:[%s2846 + $0x10] sm:$0xff]
        %v2850 = vld [vmem:[%s2846 + $0x18] sm:$0xff]
        %v2851 = vld [vmem:[%s2846 + $0x20] sm:$0xff]
        %v2852 = vld [vmem:[%s2846 + $0x28] sm:$0xff]
        %v2853 = vld [vmem:[%s2846 + $0x30] sm:$0xff]
        %v2854 = vld [vmem:[%s2846 + $0x38] sm:$0xff]
        %v2855 = vld [vmem:[%s2846 + $0x40] sm:$0xff]
        %v2856 = vld [vmem:[%s2846 + $0x48] sm:$0xff]
        %v2857 = vld [vmem:[%s2846 + $0x50] sm:$0xff]
        %v2858 = vld [vmem:[%s2846 + $0x58] sm:$0xff]
        %v2859 = vld [vmem:[%s2846 + $0x60] sm:$0xff]
        %v2860 = vld [vmem:[%s2846 + $0x68] sm:$0xff]
        %v2861 = vld [vmem:[%s2846 + $0x70] sm:$0xff]
        %v2862 = vld [vmem:[%s2846 + $0x78] sm:$0xff]
        %s2863 = scalar_lea.vmem %s492, 640 [#allocation5]
        %v2864 = vld [vmem:[%s2863] sm:$0xff]
        %v2865 = vld [vmem:[%s2863 + $0x8] sm:$0xff]
        %v2866 = vld [vmem:[%s2863 + $0x10] sm:$0xff]
        %v2867 = vld [vmem:[%s2863 + $0x18] sm:$0xff]
        %v2868 = vld [vmem:[%s2863 + $0x20] sm:$0xff]
        %v2869 = vld [vmem:[%s2863 + $0x28] sm:$0xff]
        %v2870 = vld [vmem:[%s2863 + $0x30] sm:$0xff]
        %v2871 = vld [vmem:[%s2863 + $0x38] sm:$0xff]
        %v2872 = vld [vmem:[%s2863 + $0x40] sm:$0xff]
        %v2873 = vld [vmem:[%s2863 + $0x48] sm:$0xff]
        %v2874 = vld [vmem:[%s2863 + $0x50] sm:$0xff]
        %v2875 = vld [vmem:[%s2863 + $0x58] sm:$0xff]
        %v2876 = vld [vmem:[%s2863 + $0x60] sm:$0xff]
        %v2877 = vld [vmem:[%s2863 + $0x68] sm:$0xff]
        %v2878 = vld [vmem:[%s2863 + $0x70] sm:$0xff]
        %v2879 = vld [vmem:[%s2863 + $0x78] sm:$0xff]
        %2880 = vmatpush.msra.mxu0 %v2862
        %2881 = vmatpush.msra.mxu0 %v2861
        %2882 = vmatpush.msra.mxu0 %v2860
        %2883 = vmatpush.msra.mxu0 %v2859
        %2884 = vmatpush.msra.mxu0 %v2858
        %2885 = vmatpush.msra.mxu0 %v2857
        %2886 = vmatpush.msra.mxu0 %v2856
        %2887 = vmatpush.msra.mxu0 %v2855
        %2888 = vmatpush.msra.mxu0 %v2854
        %2889 = vmatpush.msra.mxu0 %v2853
        %2890 = vmatpush.msra.mxu0 %v2852
        %2891 = vmatpush.msra.mxu0 %v2851
        %2892 = vmatpush.msra.mxu0 %v2850
        %2893 = vmatpush.msra.mxu0 %v2849
        %2894 = vmatpush.msra.mxu0 %v2848
        %2895 = vmatpush.msra.mxu0 %v2847
        %2896 = vmatmul.f32.gmra.mxu0 %v578
        %v2897 = vpop.f32.mrf.mxu0
        %v2898 = vadd.f32 %v2864, %v2897
        %2899 = vmatmul.f32.gmra.mxu0 %v579
        %v2900 = vpop.f32.mrf.mxu0
        %v2901 = vadd.f32 %v2865, %v2900
        %2902 = vmatmul.f32.gmra.mxu0 %v580
        %v2903 = vpop.f32.mrf.mxu0
        %v2904 = vadd.f32 %v2866, %v2903
        %2905 = vmatmul.f32.gmra.mxu0 %v581
        %v2906 = vpop.f32.mrf.mxu0
        %v2907 = vadd.f32 %v2867, %v2906
        %2908 = vmatmul.f32.gmra.mxu0 %v582
        %v2909 = vpop.f32.mrf.mxu0
        %v2910 = vadd.f32 %v2868, %v2909
        %2911 = vmatmul.f32.gmra.mxu0 %v583
        %v2912 = vpop.f32.mrf.mxu0
        %v2913 = vadd.f32 %v2869, %v2912
        %2914 = vmatmul.f32.gmra.mxu0 %v584
        %v2915 = vpop.f32.mrf.mxu0
        %v2916 = vadd.f32 %v2870, %v2915
        %2917 = vmatmul.f32.gmra.mxu0 %v585
        %v2918 = vpop.f32.mrf.mxu0
        %v2919 = vadd.f32 %v2871, %v2918
        %2920 = vmatmul.f32.gmra.mxu0 %v586
        %v2921 = vpop.f32.mrf.mxu0
        %v2922 = vadd.f32 %v2872, %v2921
        %2923 = vmatmul.f32.gmra.mxu0 %v587
        %v2924 = vpop.f32.mrf.mxu0
        %v2925 = vadd.f32 %v2873, %v2924
        %2926 = vmatmul.f32.gmra.mxu0 %v588
        %v2927 = vpop.f32.mrf.mxu0
        %v2928 = vadd.f32 %v2874, %v2927
        %2929 = vmatmul.f32.gmra.mxu0 %v589
        %v2930 = vpop.f32.mrf.mxu0
        %v2931 = vadd.f32 %v2875, %v2930
        %2932 = vmatmul.f32.gmra.mxu0 %v590
        %v2933 = vpop.f32.mrf.mxu0
        %v2934 = vadd.f32 %v2876, %v2933
        %2935 = vmatmul.f32.gmra.mxu0 %v591
        %v2936 = vpop.f32.mrf.mxu0
        %v2937 = vadd.f32 %v2877, %v2936
        %2938 = vmatmul.f32.gmra.mxu0 %v592
        %v2939 = vpop.f32.mrf.mxu0
        %v2940 = vadd.f32 %v2878, %v2939
        %2941 = vmatmul.f32.gmra.mxu0 %v593
        %v2942 = vpop.f32.mrf.mxu0
        %v2943 = vadd.f32 %v2879, %v2942
        %2944 = vdwg.mxu0
        %s2945 = scalar_lea.vmem [#allocation13], 10
        %v2946 = vld [vmem:[%s2945] sm:$0x3]
        %v2948 = vperm.slane %v2946, 0
        %v2949 = vperm.slane %v2946, 1
        %2952 = vmatpush.msra.mxu0 %v709
        %2953 = vmatpush.msra.mxu0 %v707
        %2954 = vmatpush.msra.mxu0 %v705
        %2955 = vmatpush.msra.mxu0 %v703
        %2956 = vmatpush.msra.mxu0 %v701
        %2957 = vmatpush.msra.mxu0 %v699
        %2958 = vmatpush.msra.mxu0 %v697
        %2959 = vmatpush.msra.mxu0 %v695
        %2960 = vmatpush.msra.mxu0 %v693
        %2961 = vmatpush.msra.mxu0 %v691
        %2962 = vmatpush.msra.mxu0 %v689
        %2963 = vmatpush.msra.mxu0 %v687
        %2964 = vmatpush.msra.mxu0 %v685
        %2965 = vmatpush.msra.mxu0 %v683
        %2966 = vmatpush.msra.mxu0 %v681
        %2967 = vmatpush.msra.mxu0 %v679
        %2968 = vmatmul.f32.gmra.mxu0 %v2898
        %v2969 = vpop.f32.mrf.mxu0
        %v2970 = vadd.f32 %v2948, %v2969
        %2971 = vmatmul.f32.gmra.mxu0 %v2901
        %v2972 = vpop.f32.mrf.mxu0
        %v2973 = vadd.f32 %v2948, %v2972
        %2974 = vmatmul.f32.gmra.mxu0 %v2904
        %v2975 = vpop.f32.mrf.mxu0
        %v2976 = vadd.f32 %v2948, %v2975
        %2977 = vmatmul.f32.gmra.mxu0 %v2907
        %v2978 = vpop.f32.mrf.mxu0
        %v2979 = vadd.f32 %v2948, %v2978
        %2980 = vmatmul.f32.gmra.mxu0 %v2910
        %v2981 = vpop.f32.mrf.mxu0
        %v2982 = vadd.f32 %v2948, %v2981
        %2983 = vmatmul.f32.gmra.mxu0 %v2913
        %v2984 = vpop.f32.mrf.mxu0
        %v2985 = vadd.f32 %v2948, %v2984
        %2986 = vmatmul.f32.gmra.mxu0 %v2916
        %v2987 = vpop.f32.mrf.mxu0
        %v2988 = vadd.f32 %v2948, %v2987
        %2989 = vmatmul.f32.gmra.mxu0 %v2919
        %v2990 = vpop.f32.mrf.mxu0
        %v2991 = vadd.f32 %v2948, %v2990
        %2992 = vmatmul.f32.gmra.mxu0 %v2922
        %v2993 = vpop.f32.mrf.mxu0
        %v2994 = vadd.f32 %v2948, %v2993
        %2995 = vmatmul.f32.gmra.mxu0 %v2925
        %v2996 = vpop.f32.mrf.mxu0
        %v2997 = vadd.f32 %v2948, %v2996
        %2998 = vmatmul.f32.gmra.mxu0 %v2928
        %v2999 = vpop.f32.mrf.mxu0
        %v3000 = vadd.f32 %v2948, %v2999
        %3001 = vmatmul.f32.gmra.mxu0 %v2931
        %v3002 = vpop.f32.mrf.mxu0
        %v3003 = vadd.f32 %v2948, %v3002
        %3004 = vmatmul.f32.gmra.mxu0 %v2934
        %v3005 = vpop.f32.mrf.mxu0
        %v3006 = vadd.f32 %v2948, %v3005
        %3007 = vmatmul.f32.gmra.mxu0 %v2937
        %v3008 = vpop.f32.mrf.mxu0
        %v3009 = vadd.f32 %v2948, %v3008
        %3010 = vmatmul.f32.gmra.mxu0 %v2940
        %v3011 = vpop.f32.mrf.mxu0
        %v3012 = vadd.f32 %v2948, %v3011
        %3013 = vmatmul.f32.gmra.mxu0 %v2943
        %v3014 = vpop.f32.mrf.mxu0
        %v3015 = vadd.f32 %v2948, %v3014
        %3016 = vdwg.mxu0
        %3017 = vmatpush.msra.mxu0 %v710
        %3018 = vmatpush.msra.mxu0 %v708
        %3019 = vmatpush.msra.mxu0 %v706
        %3020 = vmatpush.msra.mxu0 %v704
        %3021 = vmatpush.msra.mxu0 %v702
        %3022 = vmatpush.msra.mxu0 %v700
        %3023 = vmatpush.msra.mxu0 %v698
        %3024 = vmatpush.msra.mxu0 %v696
        %3025 = vmatpush.msra.mxu0 %v694
        %3026 = vmatpush.msra.mxu0 %v692
        %3027 = vmatpush.msra.mxu0 %v690
        %3028 = vmatpush.msra.mxu0 %v688
        %3029 = vmatpush.msra.mxu0 %v686
        %3030 = vmatpush.msra.mxu0 %v684
        %3031 = vmatpush.msra.mxu0 %v682
        %3032 = vmatpush.msra.mxu0 %v680
        %3033 = vmatmul.f32.gmra.mxu0 %v2898
        %v3034 = vpop.f32.mrf.mxu0
        %v3035 = vadd.f32 %v2949, %v3034
        %3036 = vmatmul.f32.gmra.mxu0 %v2901
        %v3037 = vpop.f32.mrf.mxu0
        %v3038 = vadd.f32 %v2949, %v3037
        %3039 = vmatmul.f32.gmra.mxu0 %v2904
        %v3040 = vpop.f32.mrf.mxu0
        %v3041 = vadd.f32 %v2949, %v3040
        %3042 = vmatmul.f32.gmra.mxu0 %v2907
        %v3043 = vpop.f32.mrf.mxu0
        %v3044 = vadd.f32 %v2949, %v3043
        %3045 = vmatmul.f32.gmra.mxu0 %v2910
        %v3046 = vpop.f32.mrf.mxu0
        %v3047 = vadd.f32 %v2949, %v3046
        %3048 = vmatmul.f32.gmra.mxu0 %v2913
        %v3049 = vpop.f32.mrf.mxu0
        %v3050 = vadd.f32 %v2949, %v3049
        %3051 = vmatmul.f32.gmra.mxu0 %v2916
        %v3052 = vpop.f32.mrf.mxu0
        %v3053 = vadd.f32 %v2949, %v3052
        %3054 = vmatmul.f32.gmra.mxu0 %v2919
        %v3055 = vpop.f32.mrf.mxu0
        %v3056 = vadd.f32 %v2949, %v3055
        %3057 = vmatmul.f32.gmra.mxu0 %v2922
        %v3058 = vpop.f32.mrf.mxu0
        %v3059 = vadd.f32 %v2949, %v3058
        %3060 = vmatmul.f32.gmra.mxu0 %v2925
        %v3061 = vpop.f32.mrf.mxu0
        %v3062 = vadd.f32 %v2949, %v3061
        %3063 = vmatmul.f32.gmra.mxu0 %v2928
        %v3064 = vpop.f32.mrf.mxu0
        %v3065 = vadd.f32 %v2949, %v3064
        %3066 = vmatmul.f32.gmra.mxu0 %v2931
        %v3067 = vpop.f32.mrf.mxu0
        %v3068 = vadd.f32 %v2949, %v3067
        %3069 = vmatmul.f32.gmra.mxu0 %v2934
        %v3070 = vpop.f32.mrf.mxu0
        %v3071 = vadd.f32 %v2949, %v3070
        %3072 = vmatmul.f32.gmra.mxu0 %v2937
        %v3073 = vpop.f32.mrf.mxu0
        %v3074 = vadd.f32 %v2949, %v3073
        %3075 = vmatmul.f32.gmra.mxu0 %v2940
        %v3076 = vpop.f32.mrf.mxu0
        %v3077 = vadd.f32 %v2949, %v3076
        %3078 = vmatmul.f32.gmra.mxu0 %v2943
        %v3079 = vpop.f32.mrf.mxu0
        %v3080 = vadd.f32 %v2949, %v3079
        %3081 = vdwg.mxu0
        %v3082 = vmul.f32 %v2970, %v632
        %v3083 = vmul.f32 %v2973, %v635
        %v3084 = vmul.f32 %v2976, %v638
        %v3085 = vmul.f32 %v2979, %v641
        %v3086 = vmul.f32 %v2982, %v644
        %v3087 = vmul.f32 %v2985, %v647
        %v3088 = vmul.f32 %v2988, %v650
        %v3089 = vmul.f32 %v2991, %v653
        %v3090 = vmul.f32 %v2994, %v656
        %v3091 = vmul.f32 %v2997, %v659
        %v3092 = vmul.f32 %v3000, %v662
        %v3093 = vmul.f32 %v3003, %v665
        %v3094 = vmul.f32 %v3006, %v668
        %v3095 = vmul.f32 %v3009, %v671
        %v3096 = vmul.f32 %v3012, %v674
        %v3097 = vmul.f32 %v3015, %v677
        %3098 = vmatpush.msra.mxu0 %v726
        %3099 = vmatpush.msra.mxu0 %v725
        %3100 = vmatpush.msra.mxu0 %v724
        %3101 = vmatpush.msra.mxu0 %v723
        %3102 = vmatpush.msra.mxu0 %v722
        %3103 = vmatpush.msra.mxu0 %v721
        %3104 = vmatpush.msra.mxu0 %v720
        %3105 = vmatpush.msra.mxu0 %v719
        %3106 = vmatpush.msra.mxu0 %v718
        %3107 = vmatpush.msra.mxu0 %v717
        %3108 = vmatpush.msra.mxu0 %v716
        %3109 = vmatpush.msra.mxu0 %v715
        %3110 = vmatpush.msra.mxu0 %v714
        %3111 = vmatpush.msra.mxu0 %v713
        %3112 = vmatpush.msra.mxu0 %v712
        %3113 = vmatpush.msra.mxu0 %v711
        %3114 = vmatmul.f32.gmra.mxu0 %v3082
        %v3115 = vpop.f32.mrf.mxu0
        %v3116 = vadd.f32 0.0, %v3115
        %3117 = vmatmul.f32.gmra.mxu0 %v3083
        %v3118 = vpop.f32.mrf.mxu0
        %v3119 = vadd.f32 0.0, %v3118
        %3120 = vmatmul.f32.gmra.mxu0 %v3084
        %v3121 = vpop.f32.mrf.mxu0
        %v3122 = vadd.f32 0.0, %v3121
        %3123 = vmatmul.f32.gmra.mxu0 %v3085
        %v3124 = vpop.f32.mrf.mxu0
        %v3125 = vadd.f32 0.0, %v3124
        %3126 = vmatmul.f32.gmra.mxu0 %v3086
        %v3127 = vpop.f32.mrf.mxu0
        %v3128 = vadd.f32 0.0, %v3127
        %3129 = vmatmul.f32.gmra.mxu0 %v3087
        %v3130 = vpop.f32.mrf.mxu0
        %v3131 = vadd.f32 0.0, %v3130
        %3132 = vmatmul.f32.gmra.mxu0 %v3088
        %v3133 = vpop.f32.mrf.mxu0
        %v3134 = vadd.f32 0.0, %v3133
        %3135 = vmatmul.f32.gmra.mxu0 %v3089
        %v3136 = vpop.f32.mrf.mxu0
        %v3137 = vadd.f32 0.0, %v3136
        %3138 = vmatmul.f32.gmra.mxu0 %v3090
        %v3139 = vpop.f32.mrf.mxu0
        %v3140 = vadd.f32 0.0, %v3139
        %3141 = vmatmul.f32.gmra.mxu0 %v3091
        %v3142 = vpop.f32.mrf.mxu0
        %v3143 = vadd.f32 0.0, %v3142
        %3144 = vmatmul.f32.gmra.mxu0 %v3092
        %v3145 = vpop.f32.mrf.mxu0
        %v3146 = vadd.f32 0.0, %v3145
        %3147 = vmatmul.f32.gmra.mxu0 %v3093
        %v3148 = vpop.f32.mrf.mxu0
        %v3149 = vadd.f32 0.0, %v3148
        %3150 = vmatmul.f32.gmra.mxu0 %v3094
        %v3151 = vpop.f32.mrf.mxu0
        %v3152 = vadd.f32 0.0, %v3151
        %3153 = vmatmul.f32.gmra.mxu0 %v3095
        %v3154 = vpop.f32.mrf.mxu0
        %v3155 = vadd.f32 0.0, %v3154
        %3156 = vmatmul.f32.gmra.mxu0 %v3096
        %v3157 = vpop.f32.mrf.mxu0
        %v3158 = vadd.f32 0.0, %v3157
        %3159 = vmatmul.f32.gmra.mxu0 %v3097
        %v3160 = vpop.f32.mrf.mxu0
        %v3161 = vadd.f32 0.0, %v3160
        %3162 = vdwg.mxu0
        %v3163 = vmul.f32 %v3035, %v3116
        %v3164 = vmul.f32 %v3038, %v3119
        %v3165 = vmul.f32 %v3041, %v3122
        %v3166 = vmul.f32 %v3044, %v3125
        %v3167 = vmul.f32 %v3047, %v3128
        %v3168 = vmul.f32 %v3050, %v3131
        %v3169 = vmul.f32 %v3053, %v3134
        %v3170 = vmul.f32 %v3056, %v3137
        %v3171 = vmul.f32 %v3059, %v3140
        %v3172 = vmul.f32 %v3062, %v3143
        %v3173 = vmul.f32 %v3065, %v3146
        %v3174 = vmul.f32 %v3068, %v3149
        %v3175 = vmul.f32 %v3071, %v3152
        %v3176 = vmul.f32 %v3074, %v3155
        %v3177 = vmul.f32 %v3077, %v3158
        %v3178 = vmul.f32 %v3080, %v3161
        %s3179 = scalar_lea.vmem [#allocation14], 640
        %v3180 = vld [vmem:[%s3179] sm:$0xff]
        %v3181 = vld [vmem:[%s3179 + $0x8] sm:$0xff]
        %v3182 = vld [vmem:[%s3179 + $0x10] sm:$0xff]
        %v3183 = vld [vmem:[%s3179 + $0x18] sm:$0xff]
        %v3184 = vld [vmem:[%s3179 + $0x20] sm:$0xff]
        %v3185 = vld [vmem:[%s3179 + $0x28] sm:$0xff]
        %v3186 = vld [vmem:[%s3179 + $0x30] sm:$0xff]
        %v3187 = vld [vmem:[%s3179 + $0x38] sm:$0xff]
        %v3188 = vld [vmem:[%s3179 + $0x40] sm:$0xff]
        %v3189 = vld [vmem:[%s3179 + $0x48] sm:$0xff]
        %v3190 = vld [vmem:[%s3179 + $0x50] sm:$0xff]
        %v3191 = vld [vmem:[%s3179 + $0x58] sm:$0xff]
        %v3192 = vld [vmem:[%s3179 + $0x60] sm:$0xff]
        %v3193 = vld [vmem:[%s3179 + $0x68] sm:$0xff]
        %v3194 = vld [vmem:[%s3179 + $0x70] sm:$0xff]
        %v3195 = vld [vmem:[%s3179 + $0x78] sm:$0xff]
        %3196 = vmatpush.msra.mxu0 %v3195
        %3197 = vmatpush.msra.mxu0 %v3194
        %3198 = vmatpush.msra.mxu0 %v3193
        %3199 = vmatpush.msra.mxu0 %v3192
        %3200 = vmatpush.msra.mxu0 %v3191
        %3201 = vmatpush.msra.mxu0 %v3190
        %3202 = vmatpush.msra.mxu0 %v3189
        %3203 = vmatpush.msra.mxu0 %v3188
        %3204 = vmatpush.msra.mxu0 %v3187
        %3205 = vmatpush.msra.mxu0 %v3186
        %3206 = vmatpush.msra.mxu0 %v3185
        %3207 = vmatpush.msra.mxu0 %v3184
        %3208 = vmatpush.msra.mxu0 %v3183
        %3209 = vmatpush.msra.mxu0 %v3182
        %3210 = vmatpush.msra.mxu0 %v3181
        %3211 = vmatpush.msra.mxu0 %v3180
        %3212 = vmatmul.f32.gmra.mxu0 %v3163
        %v3213 = vpop.f32.mrf.mxu0
        %v3214 = vadd.f32 0.0, %v3213
        %3215 = vmatmul.f32.gmra.mxu0 %v3164
        %v3216 = vpop.f32.mrf.mxu0
        %v3217 = vadd.f32 0.0, %v3216
        %3218 = vmatmul.f32.gmra.mxu0 %v3165
        %v3219 = vpop.f32.mrf.mxu0
        %v3220 = vadd.f32 0.0, %v3219
        %3221 = vmatmul.f32.gmra.mxu0 %v3166
        %v3222 = vpop.f32.mrf.mxu0
        %v3223 = vadd.f32 0.0, %v3222
        %3224 = vmatmul.f32.gmra.mxu0 %v3167
        %v3225 = vpop.f32.mrf.mxu0
        %v3226 = vadd.f32 0.0, %v3225
        %3227 = vmatmul.f32.gmra.mxu0 %v3168
        %v3228 = vpop.f32.mrf.mxu0
        %v3229 = vadd.f32 0.0, %v3228
        %3230 = vmatmul.f32.gmra.mxu0 %v3169
        %v3231 = vpop.f32.mrf.mxu0
        %v3232 = vadd.f32 0.0, %v3231
        %3233 = vmatmul.f32.gmra.mxu0 %v3170
        %v3234 = vpop.f32.mrf.mxu0
        %v3235 = vadd.f32 0.0, %v3234
        %3236 = vmatmul.f32.gmra.mxu0 %v3171
        %v3237 = vpop.f32.mrf.mxu0
        %v3238 = vadd.f32 0.0, %v3237
        %3239 = vmatmul.f32.gmra.mxu0 %v3172
        %v3240 = vpop.f32.mrf.mxu0
        %v3241 = vadd.f32 0.0, %v3240
        %3242 = vmatmul.f32.gmra.mxu0 %v3173
        %v3243 = vpop.f32.mrf.mxu0
        %v3244 = vadd.f32 0.0, %v3243
        %3245 = vmatmul.f32.gmra.mxu0 %v3174
        %v3246 = vpop.f32.mrf.mxu0
        %v3247 = vadd.f32 0.0, %v3246
        %3248 = vmatmul.f32.gmra.mxu0 %v3175
        %v3249 = vpop.f32.mrf.mxu0
        %v3250 = vadd.f32 0.0, %v3249
        %3251 = vmatmul.f32.gmra.mxu0 %v3176
        %v3252 = vpop.f32.mrf.mxu0
        %v3253 = vadd.f32 0.0, %v3252
        %3254 = vmatmul.f32.gmra.mxu0 %v3177
        %v3255 = vpop.f32.mrf.mxu0
        %v3256 = vadd.f32 0.0, %v3255
        %3257 = vmatmul.f32.gmra.mxu0 %v3178
        %v3258 = vpop.f32.mrf.mxu0
        %v3259 = vadd.f32 0.0, %v3258
        %3260 = vdwg.mxu0
        %v3261 = vadd.f32 %v2830, %v3214
        %v3262 = vadd.f32 %v2831, %v3217
        %v3263 = vadd.f32 %v2832, %v3220
        %v3264 = vadd.f32 %v2833, %v3223
        %v3265 = vadd.f32 %v2834, %v3226
        %v3266 = vadd.f32 %v2835, %v3229
        %v3267 = vadd.f32 %v2836, %v3232
        %v3268 = vadd.f32 %v2837, %v3235
        %v3269 = vadd.f32 %v2838, %v3238
        %v3270 = vadd.f32 %v2839, %v3241
        %v3271 = vadd.f32 %v2840, %v3244
        %v3272 = vadd.f32 %v2841, %v3247
        %v3273 = vadd.f32 %v2842, %v3250
        %v3274 = vadd.f32 %v2843, %v3253
        %v3275 = vadd.f32 %v2844, %v3256
        %v3276 = vadd.f32 %v2845, %v3259
        %s3277 = scalar_lea.vmem [#allocation7], 768
        %v3278 = vld [vmem:[%s3277] sm:$0xff]
        %v3279 = vld [vmem:[%s3277 + $0x8] sm:$0xff]
        %v3280 = vld [vmem:[%s3277 + $0x10] sm:$0xff]
        %v3281 = vld [vmem:[%s3277 + $0x18] sm:$0xff]
        %v3282 = vld [vmem:[%s3277 + $0x20] sm:$0xff]
        %v3283 = vld [vmem:[%s3277 + $0x28] sm:$0xff]
        %v3284 = vld [vmem:[%s3277 + $0x30] sm:$0xff]
        %v3285 = vld [vmem:[%s3277 + $0x38] sm:$0xff]
        %v3286 = vld [vmem:[%s3277 + $0x40] sm:$0xff]
        %v3287 = vld [vmem:[%s3277 + $0x48] sm:$0xff]
        %v3288 = vld [vmem:[%s3277 + $0x50] sm:$0xff]
        %v3289 = vld [vmem:[%s3277 + $0x58] sm:$0xff]
        %v3290 = vld [vmem:[%s3277 + $0x60] sm:$0xff]
        %v3291 = vld [vmem:[%s3277 + $0x68] sm:$0xff]
        %v3292 = vld [vmem:[%s3277 + $0x70] sm:$0xff]
        %v3293 = vld [vmem:[%s3277 + $0x78] sm:$0xff]
        %s3294 = scalar_lea.vmem %s492, 768 [#allocation5]
        %v3295 = vld [vmem:[%s3294] sm:$0xff]
        %v3296 = vld [vmem:[%s3294 + $0x8] sm:$0xff]
        %v3297 = vld [vmem:[%s3294 + $0x10] sm:$0xff]
        %v3298 = vld [vmem:[%s3294 + $0x18] sm:$0xff]
        %v3299 = vld [vmem:[%s3294 + $0x20] sm:$0xff]
        %v3300 = vld [vmem:[%s3294 + $0x28] sm:$0xff]
        %v3301 = vld [vmem:[%s3294 + $0x30] sm:$0xff]
        %v3302 = vld [vmem:[%s3294 + $0x38] sm:$0xff]
        %v3303 = vld [vmem:[%s3294 + $0x40] sm:$0xff]
        %v3304 = vld [vmem:[%s3294 + $0x48] sm:$0xff]
        %v3305 = vld [vmem:[%s3294 + $0x50] sm:$0xff]
        %v3306 = vld [vmem:[%s3294 + $0x58] sm:$0xff]
        %v3307 = vld [vmem:[%s3294 + $0x60] sm:$0xff]
        %v3308 = vld [vmem:[%s3294 + $0x68] sm:$0xff]
        %v3309 = vld [vmem:[%s3294 + $0x70] sm:$0xff]
        %v3310 = vld [vmem:[%s3294 + $0x78] sm:$0xff]
        %3311 = vmatpush.msra.mxu0 %v3293
        %3312 = vmatpush.msra.mxu0 %v3292
        %3313 = vmatpush.msra.mxu0 %v3291
        %3314 = vmatpush.msra.mxu0 %v3290
        %3315 = vmatpush.msra.mxu0 %v3289
        %3316 = vmatpush.msra.mxu0 %v3288
        %3317 = vmatpush.msra.mxu0 %v3287
        %3318 = vmatpush.msra.mxu0 %v3286
        %3319 = vmatpush.msra.mxu0 %v3285
        %3320 = vmatpush.msra.mxu0 %v3284
        %3321 = vmatpush.msra.mxu0 %v3283
        %3322 = vmatpush.msra.mxu0 %v3282
        %3323 = vmatpush.msra.mxu0 %v3281
        %3324 = vmatpush.msra.mxu0 %v3280
        %3325 = vmatpush.msra.mxu0 %v3279
        %3326 = vmatpush.msra.mxu0 %v3278
        %3327 = vmatmul.f32.gmra.mxu0 %v578
        %v3328 = vpop.f32.mrf.mxu0
        %v3329 = vadd.f32 %v3295, %v3328
        %3330 = vmatmul.f32.gmra.mxu0 %v579
        %v3331 = vpop.f32.mrf.mxu0
        %v3332 = vadd.f32 %v3296, %v3331
        %3333 = vmatmul.f32.gmra.mxu0 %v580
        %v3334 = vpop.f32.mrf.mxu0
        %v3335 = vadd.f32 %v3297, %v3334
        %3336 = vmatmul.f32.gmra.mxu0 %v581
        %v3337 = vpop.f32.mrf.mxu0
        %v3338 = vadd.f32 %v3298, %v3337
        %3339 = vmatmul.f32.gmra.mxu0 %v582
        %v3340 = vpop.f32.mrf.mxu0
        %v3341 = vadd.f32 %v3299, %v3340
        %3342 = vmatmul.f32.gmra.mxu0 %v583
        %v3343 = vpop.f32.mrf.mxu0
        %v3344 = vadd.f32 %v3300, %v3343
        %3345 = vmatmul.f32.gmra.mxu0 %v584
        %v3346 = vpop.f32.mrf.mxu0
        %v3347 = vadd.f32 %v3301, %v3346
        %3348 = vmatmul.f32.gmra.mxu0 %v585
        %v3349 = vpop.f32.mrf.mxu0
        %v3350 = vadd.f32 %v3302, %v3349
        %3351 = vmatmul.f32.gmra.mxu0 %v586
        %v3352 = vpop.f32.mrf.mxu0
        %v3353 = vadd.f32 %v3303, %v3352
        %3354 = vmatmul.f32.gmra.mxu0 %v587
        %v3355 = vpop.f32.mrf.mxu0
        %v3356 = vadd.f32 %v3304, %v3355
        %3357 = vmatmul.f32.gmra.mxu0 %v588
        %v3358 = vpop.f32.mrf.mxu0
        %v3359 = vadd.f32 %v3305, %v3358
        %3360 = vmatmul.f32.gmra.mxu0 %v589
        %v3361 = vpop.f32.mrf.mxu0
        %v3362 = vadd.f32 %v3306, %v3361
        %3363 = vmatmul.f32.gmra.mxu0 %v590
        %v3364 = vpop.f32.mrf.mxu0
        %v3365 = vadd.f32 %v3307, %v3364
        %3366 = vmatmul.f32.gmra.mxu0 %v591
        %v3367 = vpop.f32.mrf.mxu0
        %v3368 = vadd.f32 %v3308, %v3367
        %3369 = vmatmul.f32.gmra.mxu0 %v592
        %v3370 = vpop.f32.mrf.mxu0
        %v3371 = vadd.f32 %v3309, %v3370
        %3372 = vmatmul.f32.gmra.mxu0 %v593
        %v3373 = vpop.f32.mrf.mxu0
        %v3374 = vadd.f32 %v3310, %v3373
        %3375 = vdwg.mxu0
        %s3376 = scalar_lea.vmem [#allocation13], 12
        %v3377 = vld [vmem:[%s3376] sm:$0x3]
        %v3379 = vperm.slane %v3377, 0
        %v3380 = vperm.slane %v3377, 1
        %3383 = vmatpush.msra.mxu0 %v709
        %3384 = vmatpush.msra.mxu0 %v707
        %3385 = vmatpush.msra.mxu0 %v705
        %3386 = vmatpush.msra.mxu0 %v703
        %3387 = vmatpush.msra.mxu0 %v701
        %3388 = vmatpush.msra.mxu0 %v699
        %3389 = vmatpush.msra.mxu0 %v697
        %3390 = vmatpush.msra.mxu0 %v695
        %3391 = vmatpush.msra.mxu0 %v693
        %3392 = vmatpush.msra.mxu0 %v691
        %3393 = vmatpush.msra.mxu0 %v689
        %3394 = vmatpush.msra.mxu0 %v687
        %3395 = vmatpush.msra.mxu0 %v685
        %3396 = vmatpush.msra.mxu0 %v683
        %3397 = vmatpush.msra.mxu0 %v681
        %3398 = vmatpush.msra.mxu0 %v679
        %3399 = vmatmul.f32.gmra.mxu0 %v3329
        %v3400 = vpop.f32.mrf.mxu0
        %v3401 = vadd.f32 %v3379, %v3400
        %3402 = vmatmul.f32.gmra.mxu0 %v3332
        %v3403 = vpop.f32.mrf.mxu0
        %v3404 = vadd.f32 %v3379, %v3403
        %3405 = vmatmul.f32.gmra.mxu0 %v3335
        %v3406 = vpop.f32.mrf.mxu0
        %v3407 = vadd.f32 %v3379, %v3406
        %3408 = vmatmul.f32.gmra.mxu0 %v3338
        %v3409 = vpop.f32.mrf.mxu0
        %v3410 = vadd.f32 %v3379, %v3409
        %3411 = vmatmul.f32.gmra.mxu0 %v3341
        %v3412 = vpop.f32.mrf.mxu0
        %v3413 = vadd.f32 %v3379, %v3412
        %3414 = vmatmul.f32.gmra.mxu0 %v3344
        %v3415 = vpop.f32.mrf.mxu0
        %v3416 = vadd.f32 %v3379, %v3415
        %3417 = vmatmul.f32.gmra.mxu0 %v3347
        %v3418 = vpop.f32.mrf.mxu0
        %v3419 = vadd.f32 %v3379, %v3418
        %3420 = vmatmul.f32.gmra.mxu0 %v3350
        %v3421 = vpop.f32.mrf.mxu0
        %v3422 = vadd.f32 %v3379, %v3421
        %3423 = vmatmul.f32.gmra.mxu0 %v3353
        %v3424 = vpop.f32.mrf.mxu0
        %v3425 = vadd.f32 %v3379, %v3424
        %3426 = vmatmul.f32.gmra.mxu0 %v3356
        %v3427 = vpop.f32.mrf.mxu0
        %v3428 = vadd.f32 %v3379, %v3427
        %3429 = vmatmul.f32.gmra.mxu0 %v3359
        %v3430 = vpop.f32.mrf.mxu0
        %v3431 = vadd.f32 %v3379, %v3430
        %3432 = vmatmul.f32.gmra.mxu0 %v3362
        %v3433 = vpop.f32.mrf.mxu0
        %v3434 = vadd.f32 %v3379, %v3433
        %3435 = vmatmul.f32.gmra.mxu0 %v3365
        %v3436 = vpop.f32.mrf.mxu0
        %v3437 = vadd.f32 %v3379, %v3436
        %3438 = vmatmul.f32.gmra.mxu0 %v3368
        %v3439 = vpop.f32.mrf.mxu0
        %v3440 = vadd.f32 %v3379, %v3439
        %3441 = vmatmul.f32.gmra.mxu0 %v3371
        %v3442 = vpop.f32.mrf.mxu0
        %v3443 = vadd.f32 %v3379, %v3442
        %3444 = vmatmul.f32.gmra.mxu0 %v3374
        %v3445 = vpop.f32.mrf.mxu0
        %v3446 = vadd.f32 %v3379, %v3445
        %3447 = vdwg.mxu0
        %3448 = vmatpush.msra.mxu0 %v710
        %3449 = vmatpush.msra.mxu0 %v708
        %3450 = vmatpush.msra.mxu0 %v706
        %3451 = vmatpush.msra.mxu0 %v704
        %3452 = vmatpush.msra.mxu0 %v702
        %3453 = vmatpush.msra.mxu0 %v700
        %3454 = vmatpush.msra.mxu0 %v698
        %3455 = vmatpush.msra.mxu0 %v696
        %3456 = vmatpush.msra.mxu0 %v694
        %3457 = vmatpush.msra.mxu0 %v692
        %3458 = vmatpush.msra.mxu0 %v690
        %3459 = vmatpush.msra.mxu0 %v688
        %3460 = vmatpush.msra.mxu0 %v686
        %3461 = vmatpush.msra.mxu0 %v684
        %3462 = vmatpush.msra.mxu0 %v682
        %3463 = vmatpush.msra.mxu0 %v680
        %3464 = vmatmul.f32.gmra.mxu0 %v3329
        %v3465 = vpop.f32.mrf.mxu0
        %v3466 = vadd.f32 %v3380, %v3465
        %3467 = vmatmul.f32.gmra.mxu0 %v3332
        %v3468 = vpop.f32.mrf.mxu0
        %v3469 = vadd.f32 %v3380, %v3468
        %3470 = vmatmul.f32.gmra.mxu0 %v3335
        %v3471 = vpop.f32.mrf.mxu0
        %v3472 = vadd.f32 %v3380, %v3471
        %3473 = vmatmul.f32.gmra.mxu0 %v3338
        %v3474 = vpop.f32.mrf.mxu0
        %v3475 = vadd.f32 %v3380, %v3474
        %3476 = vmatmul.f32.gmra.mxu0 %v3341
        %v3477 = vpop.f32.mrf.mxu0
        %v3478 = vadd.f32 %v3380, %v3477
        %3479 = vmatmul.f32.gmra.mxu0 %v3344
        %v3480 = vpop.f32.mrf.mxu0
        %v3481 = vadd.f32 %v3380, %v3480
        %3482 = vmatmul.f32.gmra.mxu0 %v3347
        %v3483 = vpop.f32.mrf.mxu0
        %v3484 = vadd.f32 %v3380, %v3483
        %3485 = vmatmul.f32.gmra.mxu0 %v3350
        %v3486 = vpop.f32.mrf.mxu0
        %v3487 = vadd.f32 %v3380, %v3486
        %3488 = vmatmul.f32.gmra.mxu0 %v3353
        %v3489 = vpop.f32.mrf.mxu0
        %v3490 = vadd.f32 %v3380, %v3489
        %3491 = vmatmul.f32.gmra.mxu0 %v3356
        %v3492 = vpop.f32.mrf.mxu0
        %v3493 = vadd.f32 %v3380, %v3492
        %3494 = vmatmul.f32.gmra.mxu0 %v3359
        %v3495 = vpop.f32.mrf.mxu0
        %v3496 = vadd.f32 %v3380, %v3495
        %3497 = vmatmul.f32.gmra.mxu0 %v3362
        %v3498 = vpop.f32.mrf.mxu0
        %v3499 = vadd.f32 %v3380, %v3498
        %3500 = vmatmul.f32.gmra.mxu0 %v3365
        %v3501 = vpop.f32.mrf.mxu0
        %v3502 = vadd.f32 %v3380, %v3501
        %3503 = vmatmul.f32.gmra.mxu0 %v3368
        %v3504 = vpop.f32.mrf.mxu0
        %v3505 = vadd.f32 %v3380, %v3504
        %3506 = vmatmul.f32.gmra.mxu0 %v3371
        %v3507 = vpop.f32.mrf.mxu0
        %v3508 = vadd.f32 %v3380, %v3507
        %3509 = vmatmul.f32.gmra.mxu0 %v3374
        %v3510 = vpop.f32.mrf.mxu0
        %v3511 = vadd.f32 %v3380, %v3510
        %3512 = vdwg.mxu0
        %v3513 = vmul.f32 %v3401, %v632
        %v3514 = vmul.f32 %v3404, %v635
        %v3515 = vmul.f32 %v3407, %v638
        %v3516 = vmul.f32 %v3410, %v641
        %v3517 = vmul.f32 %v3413, %v644
        %v3518 = vmul.f32 %v3416, %v647
        %v3519 = vmul.f32 %v3419, %v650
        %v3520 = vmul.f32 %v3422, %v653
        %v3521 = vmul.f32 %v3425, %v656
        %v3522 = vmul.f32 %v3428, %v659
        %v3523 = vmul.f32 %v3431, %v662
        %v3524 = vmul.f32 %v3434, %v665
        %v3525 = vmul.f32 %v3437, %v668
        %v3526 = vmul.f32 %v3440, %v671
        %v3527 = vmul.f32 %v3443, %v674
        %v3528 = vmul.f32 %v3446, %v677
        %3529 = vmatpush.msra.mxu0 %v726
        %3530 = vmatpush.msra.mxu0 %v725
        %3531 = vmatpush.msra.mxu0 %v724
        %3532 = vmatpush.msra.mxu0 %v723
        %3533 = vmatpush.msra.mxu0 %v722
        %3534 = vmatpush.msra.mxu0 %v721
        %3535 = vmatpush.msra.mxu0 %v720
        %3536 = vmatpush.msra.mxu0 %v719
        %3537 = vmatpush.msra.mxu0 %v718
        %3538 = vmatpush.msra.mxu0 %v717
        %3539 = vmatpush.msra.mxu0 %v716
        %3540 = vmatpush.msra.mxu0 %v715
        %3541 = vmatpush.msra.mxu0 %v714
        %3542 = vmatpush.msra.mxu0 %v713
        %3543 = vmatpush.msra.mxu0 %v712
        %3544 = vmatpush.msra.mxu0 %v711
        %3545 = vmatmul.f32.gmra.mxu0 %v3513
        %v3546 = vpop.f32.mrf.mxu0
        %v3547 = vadd.f32 0.0, %v3546
        %3548 = vmatmul.f32.gmra.mxu0 %v3514
        %v3549 = vpop.f32.mrf.mxu0
        %v3550 = vadd.f32 0.0, %v3549
        %3551 = vmatmul.f32.gmra.mxu0 %v3515
        %v3552 = vpop.f32.mrf.mxu0
        %v3553 = vadd.f32 0.0, %v3552
        %3554 = vmatmul.f32.gmra.mxu0 %v3516
        %v3555 = vpop.f32.mrf.mxu0
        %v3556 = vadd.f32 0.0, %v3555
        %3557 = vmatmul.f32.gmra.mxu0 %v3517
        %v3558 = vpop.f32.mrf.mxu0
        %v3559 = vadd.f32 0.0, %v3558
        %3560 = vmatmul.f32.gmra.mxu0 %v3518
        %v3561 = vpop.f32.mrf.mxu0
        %v3562 = vadd.f32 0.0, %v3561
        %3563 = vmatmul.f32.gmra.mxu0 %v3519
        %v3564 = vpop.f32.mrf.mxu0
        %v3565 = vadd.f32 0.0, %v3564
        %3566 = vmatmul.f32.gmra.mxu0 %v3520
        %v3567 = vpop.f32.mrf.mxu0
        %v3568 = vadd.f32 0.0, %v3567
        %3569 = vmatmul.f32.gmra.mxu0 %v3521
        %v3570 = vpop.f32.mrf.mxu0
        %v3571 = vadd.f32 0.0, %v3570
        %3572 = vmatmul.f32.gmra.mxu0 %v3522
        %v3573 = vpop.f32.mrf.mxu0
        %v3574 = vadd.f32 0.0, %v3573
        %3575 = vmatmul.f32.gmra.mxu0 %v3523
        %v3576 = vpop.f32.mrf.mxu0
        %v3577 = vadd.f32 0.0, %v3576
        %3578 = vmatmul.f32.gmra.mxu0 %v3524
        %v3579 = vpop.f32.mrf.mxu0
        %v3580 = vadd.f32 0.0, %v3579
        %3581 = vmatmul.f32.gmra.mxu0 %v3525
        %v3582 = vpop.f32.mrf.mxu0
        %v3583 = vadd.f32 0.0, %v3582
        %3584 = vmatmul.f32.gmra.mxu0 %v3526
        %v3585 = vpop.f32.mrf.mxu0
        %v3586 = vadd.f32 0.0, %v3585
        %3587 = vmatmul.f32.gmra.mxu0 %v3527
        %v3588 = vpop.f32.mrf.mxu0
        %v3589 = vadd.f32 0.0, %v3588
        %3590 = vmatmul.f32.gmra.mxu0 %v3528
        %v3591 = vpop.f32.mrf.mxu0
        %v3592 = vadd.f32 0.0, %v3591
        %3593 = vdwg.mxu0
        %v3594 = vmul.f32 %v3466, %v3547
        %v3595 = vmul.f32 %v3469, %v3550
        %v3596 = vmul.f32 %v3472, %v3553
        %v3597 = vmul.f32 %v3475, %v3556
        %v3598 = vmul.f32 %v3478, %v3559
        %v3599 = vmul.f32 %v3481, %v3562
        %v3600 = vmul.f32 %v3484, %v3565
        %v3601 = vmul.f32 %v3487, %v3568
        %v3602 = vmul.f32 %v3490, %v3571
        %v3603 = vmul.f32 %v3493, %v3574
        %v3604 = vmul.f32 %v3496, %v3577
        %v3605 = vmul.f32 %v3499, %v3580
        %v3606 = vmul.f32 %v3502, %v3583
        %v3607 = vmul.f32 %v3505, %v3586
        %v3608 = vmul.f32 %v3508, %v3589
        %v3609 = vmul.f32 %v3511, %v3592
        %s3610 = scalar_lea.vmem [#allocation14], 768
        %v3611 = vld [vmem:[%s3610] sm:$0xff]
        %v3612 = vld [vmem:[%s3610 + $0x8] sm:$0xff]
        %v3613 = vld [vmem:[%s3610 + $0x10] sm:$0xff]
        %v3614 = vld [vmem:[%s3610 + $0x18] sm:$0xff]
        %v3615 = vld [vmem:[%s3610 + $0x20] sm:$0xff]
        %v3616 = vld [vmem:[%s3610 + $0x28] sm:$0xff]
        %v3617 = vld [vmem:[%s3610 + $0x30] sm:$0xff]
        %v3618 = vld [vmem:[%s3610 + $0x38] sm:$0xff]
        %v3619 = vld [vmem:[%s3610 + $0x40] sm:$0xff]
        %v3620 = vld [vmem:[%s3610 + $0x48] sm:$0xff]
        %v3621 = vld [vmem:[%s3610 + $0x50] sm:$0xff]
        %v3622 = vld [vmem:[%s3610 + $0x58] sm:$0xff]
        %v3623 = vld [vmem:[%s3610 + $0x60] sm:$0xff]
        %v3624 = vld [vmem:[%s3610 + $0x68] sm:$0xff]
        %v3625 = vld [vmem:[%s3610 + $0x70] sm:$0xff]
        %v3626 = vld [vmem:[%s3610 + $0x78] sm:$0xff]
        %3627 = vmatpush.msra.mxu0 %v3626
        %3628 = vmatpush.msra.mxu0 %v3625
        %3629 = vmatpush.msra.mxu0 %v3624
        %3630 = vmatpush.msra.mxu0 %v3623
        %3631 = vmatpush.msra.mxu0 %v3622
        %3632 = vmatpush.msra.mxu0 %v3621
        %3633 = vmatpush.msra.mxu0 %v3620
        %3634 = vmatpush.msra.mxu0 %v3619
        %3635 = vmatpush.msra.mxu0 %v3618
        %3636 = vmatpush.msra.mxu0 %v3617
        %3637 = vmatpush.msra.mxu0 %v3616
        %3638 = vmatpush.msra.mxu0 %v3615
        %3639 = vmatpush.msra.mxu0 %v3614
        %3640 = vmatpush.msra.mxu0 %v3613
        %3641 = vmatpush.msra.mxu0 %v3612
        %3642 = vmatpush.msra.mxu0 %v3611
        %3643 = vmatmul.f32.gmra.mxu0 %v3594
        %v3644 = vpop.f32.mrf.mxu0
        %v3645 = vadd.f32 0.0, %v3644
        %3646 = vmatmul.f32.gmra.mxu0 %v3595
        %v3647 = vpop.f32.mrf.mxu0
        %v3648 = vadd.f32 0.0, %v3647
        %3649 = vmatmul.f32.gmra.mxu0 %v3596
        %v3650 = vpop.f32.mrf.mxu0
        %v3651 = vadd.f32 0.0, %v3650
        %3652 = vmatmul.f32.gmra.mxu0 %v3597
        %v3653 = vpop.f32.mrf.mxu0
        %v3654 = vadd.f32 0.0, %v3653
        %3655 = vmatmul.f32.gmra.mxu0 %v3598
        %v3656 = vpop.f32.mrf.mxu0
        %v3657 = vadd.f32 0.0, %v3656
        %3658 = vmatmul.f32.gmra.mxu0 %v3599
        %v3659 = vpop.f32.mrf.mxu0
        %v3660 = vadd.f32 0.0, %v3659
        %3661 = vmatmul.f32.gmra.mxu0 %v3600
        %v3662 = vpop.f32.mrf.mxu0
        %v3663 = vadd.f32 0.0, %v3662
        %3664 = vmatmul.f32.gmra.mxu0 %v3601
        %v3665 = vpop.f32.mrf.mxu0
        %v3666 = vadd.f32 0.0, %v3665
        %3667 = vmatmul.f32.gmra.mxu0 %v3602
        %v3668 = vpop.f32.mrf.mxu0
        %v3669 = vadd.f32 0.0, %v3668
        %3670 = vmatmul.f32.gmra.mxu0 %v3603
        %v3671 = vpop.f32.mrf.mxu0
        %v3672 = vadd.f32 0.0, %v3671
        %3673 = vmatmul.f32.gmra.mxu0 %v3604
        %v3674 = vpop.f32.mrf.mxu0
        %v3675 = vadd.f32 0.0, %v3674
        %3676 = vmatmul.f32.gmra.mxu0 %v3605
        %v3677 = vpop.f32.mrf.mxu0
        %v3678 = vadd.f32 0.0, %v3677
        %3679 = vmatmul.f32.gmra.mxu0 %v3606
        %v3680 = vpop.f32.mrf.mxu0
        %v3681 = vadd.f32 0.0, %v3680
        %3682 = vmatmul.f32.gmra.mxu0 %v3607
        %v3683 = vpop.f32.mrf.mxu0
        %v3684 = vadd.f32 0.0, %v3683
        %3685 = vmatmul.f32.gmra.mxu0 %v3608
        %v3686 = vpop.f32.mrf.mxu0
        %v3687 = vadd.f32 0.0, %v3686
        %3688 = vmatmul.f32.gmra.mxu0 %v3609
        %v3689 = vpop.f32.mrf.mxu0
        %v3690 = vadd.f32 0.0, %v3689
        %3691 = vdwg.mxu0
        %v3692 = vadd.f32 %v3261, %v3645
        %v3693 = vadd.f32 %v3262, %v3648
        %v3694 = vadd.f32 %v3263, %v3651
        %v3695 = vadd.f32 %v3264, %v3654
        %v3696 = vadd.f32 %v3265, %v3657
        %v3697 = vadd.f32 %v3266, %v3660
        %v3698 = vadd.f32 %v3267, %v3663
        %v3699 = vadd.f32 %v3268, %v3666
        %v3700 = vadd.f32 %v3269, %v3669
        %v3701 = vadd.f32 %v3270, %v3672
        %v3702 = vadd.f32 %v3271, %v3675
        %v3703 = vadd.f32 %v3272, %v3678
        %v3704 = vadd.f32 %v3273, %v3681
        %v3705 = vadd.f32 %v3274, %v3684
        %v3706 = vadd.f32 %v3275, %v3687
        %v3707 = vadd.f32 %v3276, %v3690
        %s3708 = scalar_lea.vmem [#allocation7], 896
        %v3709 = vld [vmem:[%s3708] sm:$0xff]
        %v3710 = vld [vmem:[%s3708 + $0x8] sm:$0xff]
        %v3711 = vld [vmem:[%s3708 + $0x10] sm:$0xff]
        %v3712 = vld [vmem:[%s3708 + $0x18] sm:$0xff]
        %v3713 = vld [vmem:[%s3708 + $0x20] sm:$0xff]
        %v3714 = vld [vmem:[%s3708 + $0x28] sm:$0xff]
        %v3715 = vld [vmem:[%s3708 + $0x30] sm:$0xff]
        %v3716 = vld [vmem:[%s3708 + $0x38] sm:$0xff]
        %v3717 = vld [vmem:[%s3708 + $0x40] sm:$0xff]
        %v3718 = vld [vmem:[%s3708 + $0x48] sm:$0xff]
        %v3719 = vld [vmem:[%s3708 + $0x50] sm:$0xff]
        %v3720 = vld [vmem:[%s3708 + $0x58] sm:$0xff]
        %v3721 = vld [vmem:[%s3708 + $0x60] sm:$0xff]
        %v3722 = vld [vmem:[%s3708 + $0x68] sm:$0xff]
        %v3723 = vld [vmem:[%s3708 + $0x70] sm:$0xff]
        %v3724 = vld [vmem:[%s3708 + $0x78] sm:$0xff]
        %s3725 = scalar_lea.vmem %s492, 896 [#allocation5]
        %v3726 = vld [vmem:[%s3725] sm:$0xff]
        %v3727 = vld [vmem:[%s3725 + $0x8] sm:$0xff]
        %v3728 = vld [vmem:[%s3725 + $0x10] sm:$0xff]
        %v3729 = vld [vmem:[%s3725 + $0x18] sm:$0xff]
        %v3730 = vld [vmem:[%s3725 + $0x20] sm:$0xff]
        %v3731 = vld [vmem:[%s3725 + $0x28] sm:$0xff]
        %v3732 = vld [vmem:[%s3725 + $0x30] sm:$0xff]
        %v3733 = vld [vmem:[%s3725 + $0x38] sm:$0xff]
        %v3734 = vld [vmem:[%s3725 + $0x40] sm:$0xff]
        %v3735 = vld [vmem:[%s3725 + $0x48] sm:$0xff]
        %v3736 = vld [vmem:[%s3725 + $0x50] sm:$0xff]
        %v3737 = vld [vmem:[%s3725 + $0x58] sm:$0xff]
        %v3738 = vld [vmem:[%s3725 + $0x60] sm:$0xff]
        %v3739 = vld [vmem:[%s3725 + $0x68] sm:$0xff]
        %v3740 = vld [vmem:[%s3725 + $0x70] sm:$0xff]
        %v3741 = vld [vmem:[%s3725 + $0x78] sm:$0xff]
        %3742 = vmatpush.msra.mxu0 %v3724
        %3743 = vmatpush.msra.mxu0 %v3723
        %3744 = vmatpush.msra.mxu0 %v3722
        %3745 = vmatpush.msra.mxu0 %v3721
        %3746 = vmatpush.msra.mxu0 %v3720
        %3747 = vmatpush.msra.mxu0 %v3719
        %3748 = vmatpush.msra.mxu0 %v3718
        %3749 = vmatpush.msra.mxu0 %v3717
        %3750 = vmatpush.msra.mxu0 %v3716
        %3751 = vmatpush.msra.mxu0 %v3715
        %3752 = vmatpush.msra.mxu0 %v3714
        %3753 = vmatpush.msra.mxu0 %v3713
        %3754 = vmatpush.msra.mxu0 %v3712
        %3755 = vmatpush.msra.mxu0 %v3711
        %3756 = vmatpush.msra.mxu0 %v3710
        %3757 = vmatpush.msra.mxu0 %v3709
        %3758 = vmatmul.f32.gmra.mxu0 %v578
        %v3759 = vpop.f32.mrf.mxu0
        %v3760 = vadd.f32 %v3726, %v3759
        %3761 = vmatmul.f32.gmra.mxu0 %v579
        %v3762 = vpop.f32.mrf.mxu0
        %v3763 = vadd.f32 %v3727, %v3762
        %3764 = vmatmul.f32.gmra.mxu0 %v580
        %v3765 = vpop.f32.mrf.mxu0
        %v3766 = vadd.f32 %v3728, %v3765
        %3767 = vmatmul.f32.gmra.mxu0 %v581
        %v3768 = vpop.f32.mrf.mxu0
        %v3769 = vadd.f32 %v3729, %v3768
        %3770 = vmatmul.f32.gmra.mxu0 %v582
        %v3771 = vpop.f32.mrf.mxu0
        %v3772 = vadd.f32 %v3730, %v3771
        %3773 = vmatmul.f32.gmra.mxu0 %v583
        %v3774 = vpop.f32.mrf.mxu0
        %v3775 = vadd.f32 %v3731, %v3774
        %3776 = vmatmul.f32.gmra.mxu0 %v584
        %v3777 = vpop.f32.mrf.mxu0
        %v3778 = vadd.f32 %v3732, %v3777
        %3779 = vmatmul.f32.gmra.mxu0 %v585
        %v3780 = vpop.f32.mrf.mxu0
        %v3781 = vadd.f32 %v3733, %v3780
        %3782 = vmatmul.f32.gmra.mxu0 %v586
        %v3783 = vpop.f32.mrf.mxu0
        %v3784 = vadd.f32 %v3734, %v3783
        %3785 = vmatmul.f32.gmra.mxu0 %v587
        %v3786 = vpop.f32.mrf.mxu0
        %v3787 = vadd.f32 %v3735, %v3786
        %3788 = vmatmul.f32.gmra.mxu0 %v588
        %v3789 = vpop.f32.mrf.mxu0
        %v3790 = vadd.f32 %v3736, %v3789
        %3791 = vmatmul.f32.gmra.mxu0 %v589
        %v3792 = vpop.f32.mrf.mxu0
        %v3793 = vadd.f32 %v3737, %v3792
        %3794 = vmatmul.f32.gmra.mxu0 %v590
        %v3795 = vpop.f32.mrf.mxu0
        %v3796 = vadd.f32 %v3738, %v3795
        %3797 = vmatmul.f32.gmra.mxu0 %v591
        %v3798 = vpop.f32.mrf.mxu0
        %v3799 = vadd.f32 %v3739, %v3798
        %3800 = vmatmul.f32.gmra.mxu0 %v592
        %v3801 = vpop.f32.mrf.mxu0
        %v3802 = vadd.f32 %v3740, %v3801
        %3803 = vmatmul.f32.gmra.mxu0 %v593
        %v3804 = vpop.f32.mrf.mxu0
        %v3805 = vadd.f32 %v3741, %v3804
        %3806 = vdwg.mxu0
        %s3807 = scalar_lea.vmem [#allocation13], 14
        %v3808 = vld [vmem:[%s3807] sm:$0x3]
        %v3810 = vperm.slane %v3808, 0
        %v3811 = vperm.slane %v3808, 1
        %3814 = vmatpush.msra.mxu0 %v709
        %3815 = vmatpush.msra.mxu0 %v707
        %3816 = vmatpush.msra.mxu0 %v705
        %3817 = vmatpush.msra.mxu0 %v703
        %3818 = vmatpush.msra.mxu0 %v701
        %3819 = vmatpush.msra.mxu0 %v699
        %3820 = vmatpush.msra.mxu0 %v697
        %3821 = vmatpush.msra.mxu0 %v695
        %3822 = vmatpush.msra.mxu0 %v693
        %3823 = vmatpush.msra.mxu0 %v691
        %3824 = vmatpush.msra.mxu0 %v689
        %3825 = vmatpush.msra.mxu0 %v687
        %3826 = vmatpush.msra.mxu0 %v685
        %3827 = vmatpush.msra.mxu0 %v683
        %3828 = vmatpush.msra.mxu0 %v681
        %3829 = vmatpush.msra.mxu0 %v679
        %3830 = vmatmul.f32.gmra.mxu0 %v3760
        %v3831 = vpop.f32.mrf.mxu0
        %v3832 = vadd.f32 %v3810, %v3831
        %3833 = vmatmul.f32.gmra.mxu0 %v3763
        %v3834 = vpop.f32.mrf.mxu0
        %v3835 = vadd.f32 %v3810, %v3834
        %3836 = vmatmul.f32.gmra.mxu0 %v3766
        %v3837 = vpop.f32.mrf.mxu0
        %v3838 = vadd.f32 %v3810, %v3837
        %3839 = vmatmul.f32.gmra.mxu0 %v3769
        %v3840 = vpop.f32.mrf.mxu0
        %v3841 = vadd.f32 %v3810, %v3840
        %3842 = vmatmul.f32.gmra.mxu0 %v3772
        %v3843 = vpop.f32.mrf.mxu0
        %v3844 = vadd.f32 %v3810, %v3843
        %3845 = vmatmul.f32.gmra.mxu0 %v3775
        %v3846 = vpop.f32.mrf.mxu0
        %v3847 = vadd.f32 %v3810, %v3846
        %3848 = vmatmul.f32.gmra.mxu0 %v3778
        %v3849 = vpop.f32.mrf.mxu0
        %v3850 = vadd.f32 %v3810, %v3849
        %3851 = vmatmul.f32.gmra.mxu0 %v3781
        %v3852 = vpop.f32.mrf.mxu0
        %v3853 = vadd.f32 %v3810, %v3852
        %3854 = vmatmul.f32.gmra.mxu0 %v3784
        %v3855 = vpop.f32.mrf.mxu0
        %v3856 = vadd.f32 %v3810, %v3855
        %3857 = vmatmul.f32.gmra.mxu0 %v3787
        %v3858 = vpop.f32.mrf.mxu0
        %v3859 = vadd.f32 %v3810, %v3858
        %3860 = vmatmul.f32.gmra.mxu0 %v3790
        %v3861 = vpop.f32.mrf.mxu0
        %v3862 = vadd.f32 %v3810, %v3861
        %3863 = vmatmul.f32.gmra.mxu0 %v3793
        %v3864 = vpop.f32.mrf.mxu0
        %v3865 = vadd.f32 %v3810, %v3864
        %3866 = vmatmul.f32.gmra.mxu0 %v3796
        %v3867 = vpop.f32.mrf.mxu0
        %v3868 = vadd.f32 %v3810, %v3867
        %3869 = vmatmul.f32.gmra.mxu0 %v3799
        %v3870 = vpop.f32.mrf.mxu0
        %v3871 = vadd.f32 %v3810, %v3870
        %3872 = vmatmul.f32.gmra.mxu0 %v3802
        %v3873 = vpop.f32.mrf.mxu0
        %v3874 = vadd.f32 %v3810, %v3873
        %3875 = vmatmul.f32.gmra.mxu0 %v3805
        %v3876 = vpop.f32.mrf.mxu0
        %v3877 = vadd.f32 %v3810, %v3876
        %3878 = vdwg.mxu0
        %3879 = vmatpush.msra.mxu0 %v710
        %3880 = vmatpush.msra.mxu0 %v708
        %3881 = vmatpush.msra.mxu0 %v706
        %3882 = vmatpush.msra.mxu0 %v704
        %3883 = vmatpush.msra.mxu0 %v702
        %3884 = vmatpush.msra.mxu0 %v700
        %3885 = vmatpush.msra.mxu0 %v698
        %3886 = vmatpush.msra.mxu0 %v696
        %3887 = vmatpush.msra.mxu0 %v694
        %3888 = vmatpush.msra.mxu0 %v692
        %3889 = vmatpush.msra.mxu0 %v690
        %3890 = vmatpush.msra.mxu0 %v688
        %3891 = vmatpush.msra.mxu0 %v686
        %3892 = vmatpush.msra.mxu0 %v684
        %3893 = vmatpush.msra.mxu0 %v682
        %3894 = vmatpush.msra.mxu0 %v680
        %3895 = vmatmul.f32.gmra.mxu0 %v3760
        %v3896 = vpop.f32.mrf.mxu0
        %v3897 = vadd.f32 %v3811, %v3896
        %3898 = vmatmul.f32.gmra.mxu0 %v3763
        %v3899 = vpop.f32.mrf.mxu0
        %v3900 = vadd.f32 %v3811, %v3899
        %3901 = vmatmul.f32.gmra.mxu0 %v3766
        %v3902 = vpop.f32.mrf.mxu0
        %v3903 = vadd.f32 %v3811, %v3902
        %3904 = vmatmul.f32.gmra.mxu0 %v3769
        %v3905 = vpop.f32.mrf.mxu0
        %v3906 = vadd.f32 %v3811, %v3905
        %3907 = vmatmul.f32.gmra.mxu0 %v3772
        %v3908 = vpop.f32.mrf.mxu0
        %v3909 = vadd.f32 %v3811, %v3908
        %3910 = vmatmul.f32.gmra.mxu0 %v3775
        %v3911 = vpop.f32.mrf.mxu0
        %v3912 = vadd.f32 %v3811, %v3911
        %3913 = vmatmul.f32.gmra.mxu0 %v3778
        %v3914 = vpop.f32.mrf.mxu0
        %v3915 = vadd.f32 %v3811, %v3914
        %3916 = vmatmul.f32.gmra.mxu0 %v3781
        %v3917 = vpop.f32.mrf.mxu0
        %v3918 = vadd.f32 %v3811, %v3917
        %3919 = vmatmul.f32.gmra.mxu0 %v3784
        %v3920 = vpop.f32.mrf.mxu0
        %v3921 = vadd.f32 %v3811, %v3920
        %3922 = vmatmul.f32.gmra.mxu0 %v3787
        %v3923 = vpop.f32.mrf.mxu0
        %v3924 = vadd.f32 %v3811, %v3923
        %3925 = vmatmul.f32.gmra.mxu0 %v3790
        %v3926 = vpop.f32.mrf.mxu0
        %v3927 = vadd.f32 %v3811, %v3926
        %3928 = vmatmul.f32.gmra.mxu0 %v3793
        %v3929 = vpop.f32.mrf.mxu0
        %v3930 = vadd.f32 %v3811, %v3929
        %3931 = vmatmul.f32.gmra.mxu0 %v3796
        %v3932 = vpop.f32.mrf.mxu0
        %v3933 = vadd.f32 %v3811, %v3932
        %3934 = vmatmul.f32.gmra.mxu0 %v3799
        %v3935 = vpop.f32.mrf.mxu0
        %v3936 = vadd.f32 %v3811, %v3935
        %3937 = vmatmul.f32.gmra.mxu0 %v3802
        %v3938 = vpop.f32.mrf.mxu0
        %v3939 = vadd.f32 %v3811, %v3938
        %3940 = vmatmul.f32.gmra.mxu0 %v3805
        %v3941 = vpop.f32.mrf.mxu0
        %v3942 = vadd.f32 %v3811, %v3941
        %3943 = vdwg.mxu0
        %v3944 = vmul.f32 %v3832, %v632
        %v3945 = vmul.f32 %v3835, %v635
        %v3946 = vmul.f32 %v3838, %v638
        %v3947 = vmul.f32 %v3841, %v641
        %v3948 = vmul.f32 %v3844, %v644
        %v3949 = vmul.f32 %v3847, %v647
        %v3950 = vmul.f32 %v3850, %v650
        %v3951 = vmul.f32 %v3853, %v653
        %v3952 = vmul.f32 %v3856, %v656
        %v3953 = vmul.f32 %v3859, %v659
        %v3954 = vmul.f32 %v3862, %v662
        %v3955 = vmul.f32 %v3865, %v665
        %v3956 = vmul.f32 %v3868, %v668
        %v3957 = vmul.f32 %v3871, %v671
        %v3958 = vmul.f32 %v3874, %v674
        %v3959 = vmul.f32 %v3877, %v677
        %3960 = vmatpush.msra.mxu0 %v726
        %3961 = vmatpush.msra.mxu0 %v725
        %3962 = vmatpush.msra.mxu0 %v724
        %3963 = vmatpush.msra.mxu0 %v723
        %3964 = vmatpush.msra.mxu0 %v722
        %3965 = vmatpush.msra.mxu0 %v721
        %3966 = vmatpush.msra.mxu0 %v720
        %3967 = vmatpush.msra.mxu0 %v719
        %3968 = vmatpush.msra.mxu0 %v718
        %3969 = vmatpush.msra.mxu0 %v717
        %3970 = vmatpush.msra.mxu0 %v716
        %3971 = vmatpush.msra.mxu0 %v715
        %3972 = vmatpush.msra.mxu0 %v714
        %3973 = vmatpush.msra.mxu0 %v713
        %3974 = vmatpush.msra.mxu0 %v712
        %3975 = vmatpush.msra.mxu0 %v711
        %3976 = vmatmul.f32.gmra.mxu0 %v3944
        %v3977 = vpop.f32.mrf.mxu0
        %v3978 = vadd.f32 0.0, %v3977
        %3979 = vmatmul.f32.gmra.mxu0 %v3945
        %v3980 = vpop.f32.mrf.mxu0
        %v3981 = vadd.f32 0.0, %v3980
        %3982 = vmatmul.f32.gmra.mxu0 %v3946
        %v3983 = vpop.f32.mrf.mxu0
        %v3984 = vadd.f32 0.0, %v3983
        %3985 = vmatmul.f32.gmra.mxu0 %v3947
        %v3986 = vpop.f32.mrf.mxu0
        %v3987 = vadd.f32 0.0, %v3986
        %3988 = vmatmul.f32.gmra.mxu0 %v3948
        %v3989 = vpop.f32.mrf.mxu0
        %v3990 = vadd.f32 0.0, %v3989
        %3991 = vmatmul.f32.gmra.mxu0 %v3949
        %v3992 = vpop.f32.mrf.mxu0
        %v3993 = vadd.f32 0.0, %v3992
        %3994 = vmatmul.f32.gmra.mxu0 %v3950
        %v3995 = vpop.f32.mrf.mxu0
        %v3996 = vadd.f32 0.0, %v3995
        %3997 = vmatmul.f32.gmra.mxu0 %v3951
        %v3998 = vpop.f32.mrf.mxu0
        %v3999 = vadd.f32 0.0, %v3998
        %4000 = vmatmul.f32.gmra.mxu0 %v3952
        %v4001 = vpop.f32.mrf.mxu0
        %v4002 = vadd.f32 0.0, %v4001
        %4003 = vmatmul.f32.gmra.mxu0 %v3953
        %v4004 = vpop.f32.mrf.mxu0
        %v4005 = vadd.f32 0.0, %v4004
        %4006 = vmatmul.f32.gmra.mxu0 %v3954
        %v4007 = vpop.f32.mrf.mxu0
        %v4008 = vadd.f32 0.0, %v4007
        %4009 = vmatmul.f32.gmra.mxu0 %v3955
        %v4010 = vpop.f32.mrf.mxu0
        %v4011 = vadd.f32 0.0, %v4010
        %4012 = vmatmul.f32.gmra.mxu0 %v3956
        %v4013 = vpop.f32.mrf.mxu0
        %v4014 = vadd.f32 0.0, %v4013
        %4015 = vmatmul.f32.gmra.mxu0 %v3957
        %v4016 = vpop.f32.mrf.mxu0
        %v4017 = vadd.f32 0.0, %v4016
        %4018 = vmatmul.f32.gmra.mxu0 %v3958
        %v4019 = vpop.f32.mrf.mxu0
        %v4020 = vadd.f32 0.0, %v4019
        %4021 = vmatmul.f32.gmra.mxu0 %v3959
        %v4022 = vpop.f32.mrf.mxu0
        %v4023 = vadd.f32 0.0, %v4022
        %4024 = vdwg.mxu0
        %v4025 = vmul.f32 %v3897, %v3978
        %v4026 = vmul.f32 %v3900, %v3981
        %v4027 = vmul.f32 %v3903, %v3984
        %v4028 = vmul.f32 %v3906, %v3987
        %v4029 = vmul.f32 %v3909, %v3990
        %v4030 = vmul.f32 %v3912, %v3993
        %v4031 = vmul.f32 %v3915, %v3996
        %v4032 = vmul.f32 %v3918, %v3999
        %v4033 = vmul.f32 %v3921, %v4002
        %v4034 = vmul.f32 %v3924, %v4005
        %v4035 = vmul.f32 %v3927, %v4008
        %v4036 = vmul.f32 %v3930, %v4011
        %v4037 = vmul.f32 %v3933, %v4014
        %v4038 = vmul.f32 %v3936, %v4017
        %v4039 = vmul.f32 %v3939, %v4020
        %v4040 = vmul.f32 %v3942, %v4023
        %s4041 = scalar_lea.vmem [#allocation14], 896
        %v4042 = vld [vmem:[%s4041] sm:$0xff]
        %v4043 = vld [vmem:[%s4041 + $0x8] sm:$0xff]
        %v4044 = vld [vmem:[%s4041 + $0x10] sm:$0xff]
        %v4045 = vld [vmem:[%s4041 + $0x18] sm:$0xff]
        %v4046 = vld [vmem:[%s4041 + $0x20] sm:$0xff]
        %v4047 = vld [vmem:[%s4041 + $0x28] sm:$0xff]
        %v4048 = vld [vmem:[%s4041 + $0x30] sm:$0xff]
        %v4049 = vld [vmem:[%s4041 + $0x38] sm:$0xff]
        %v4050 = vld [vmem:[%s4041 + $0x40] sm:$0xff]
        %v4051 = vld [vmem:[%s4041 + $0x48] sm:$0xff]
        %v4052 = vld [vmem:[%s4041 + $0x50] sm:$0xff]
        %v4053 = vld [vmem:[%s4041 + $0x58] sm:$0xff]
        %v4054 = vld [vmem:[%s4041 + $0x60] sm:$0xff]
        %v4055 = vld [vmem:[%s4041 + $0x68] sm:$0xff]
        %v4056 = vld [vmem:[%s4041 + $0x70] sm:$0xff]
        %v4057 = vld [vmem:[%s4041 + $0x78] sm:$0xff]
        %4058 = vmatpush.msra.mxu0 %v4057
        %4059 = vmatpush.msra.mxu0 %v4056
        %4060 = vmatpush.msra.mxu0 %v4055
        %4061 = vmatpush.msra.mxu0 %v4054
        %4062 = vmatpush.msra.mxu0 %v4053
        %4063 = vmatpush.msra.mxu0 %v4052
        %4064 = vmatpush.msra.mxu0 %v4051
        %4065 = vmatpush.msra.mxu0 %v4050
        %4066 = vmatpush.msra.mxu0 %v4049
        %4067 = vmatpush.msra.mxu0 %v4048
        %4068 = vmatpush.msra.mxu0 %v4047
        %4069 = vmatpush.msra.mxu0 %v4046
        %4070 = vmatpush.msra.mxu0 %v4045
        %4071 = vmatpush.msra.mxu0 %v4044
        %4072 = vmatpush.msra.mxu0 %v4043
        %4073 = vmatpush.msra.mxu0 %v4042
        %4074 = vmatmul.f32.gmra.mxu0 %v4025
        %v4075 = vpop.f32.mrf.mxu0
        %v4076 = vadd.f32 0.0, %v4075
        %4077 = vmatmul.f32.gmra.mxu0 %v4026
        %v4078 = vpop.f32.mrf.mxu0
        %v4079 = vadd.f32 0.0, %v4078
        %4080 = vmatmul.f32.gmra.mxu0 %v4027
        %v4081 = vpop.f32.mrf.mxu0
        %v4082 = vadd.f32 0.0, %v4081
        %4083 = vmatmul.f32.gmra.mxu0 %v4028
        %v4084 = vpop.f32.mrf.mxu0
        %v4085 = vadd.f32 0.0, %v4084
        %4086 = vmatmul.f32.gmra.mxu0 %v4029
        %v4087 = vpop.f32.mrf.mxu0
        %v4088 = vadd.f32 0.0, %v4087
        %4089 = vmatmul.f32.gmra.mxu0 %v4030
        %v4090 = vpop.f32.mrf.mxu0
        %v4091 = vadd.f32 0.0, %v4090
        %4092 = vmatmul.f32.gmra.mxu0 %v4031
        %v4093 = vpop.f32.mrf.mxu0
        %v4094 = vadd.f32 0.0, %v4093
        %4095 = vmatmul.f32.gmra.mxu0 %v4032
        %v4096 = vpop.f32.mrf.mxu0
        %v4097 = vadd.f32 0.0, %v4096
        %4098 = vmatmul.f32.gmra.mxu0 %v4033
        %v4099 = vpop.f32.mrf.mxu0
        %v4100 = vadd.f32 0.0, %v4099
        %4101 = vmatmul.f32.gmra.mxu0 %v4034
        %v4102 = vpop.f32.mrf.mxu0
        %v4103 = vadd.f32 0.0, %v4102
        %4104 = vmatmul.f32.gmra.mxu0 %v4035
        %v4105 = vpop.f32.mrf.mxu0
        %v4106 = vadd.f32 0.0, %v4105
        %4107 = vmatmul.f32.gmra.mxu0 %v4036
        %v4108 = vpop.f32.mrf.mxu0
        %v4109 = vadd.f32 0.0, %v4108
        %4110 = vmatmul.f32.gmra.mxu0 %v4037
        %v4111 = vpop.f32.mrf.mxu0
        %v4112 = vadd.f32 0.0, %v4111
        %4113 = vmatmul.f32.gmra.mxu0 %v4038
        %v4114 = vpop.f32.mrf.mxu0
        %v4115 = vadd.f32 0.0, %v4114
        %4116 = vmatmul.f32.gmra.mxu0 %v4039
        %v4117 = vpop.f32.mrf.mxu0
        %v4118 = vadd.f32 0.0, %v4117
        %4119 = vmatmul.f32.gmra.mxu0 %v4040
        %v4120 = vpop.f32.mrf.mxu0
        %v4121 = vadd.f32 0.0, %v4120
        %4122 = vdwg.mxu0
        %v4123 = vadd.f32 %v3692, %v4076
        %v4124 = vadd.f32 %v3693, %v4079
        %v4125 = vadd.f32 %v3694, %v4082
        %v4126 = vadd.f32 %v3695, %v4085
        %v4127 = vadd.f32 %v3696, %v4088
        %v4128 = vadd.f32 %v3697, %v4091
        %v4129 = vadd.f32 %v3698, %v4094
        %v4130 = vadd.f32 %v3699, %v4097
        %v4131 = vadd.f32 %v3700, %v4100
        %v4132 = vadd.f32 %v3701, %v4103
        %v4133 = vadd.f32 %v3702, %v4106
        %v4134 = vadd.f32 %v3703, %v4109
        %v4135 = vadd.f32 %v3704, %v4112
        %v4136 = vadd.f32 %v3705, %v4115
        %v4137 = vadd.f32 %v3706, %v4118
        %v4138 = vadd.f32 %v3707, %v4121
        %s4139 = scalar_lea.vmem [#allocation7], 1024
        %v4140 = vld [vmem:[%s4139] sm:$0xff]
        %v4141 = vld [vmem:[%s4139 + $0x8] sm:$0xff]
        %v4142 = vld [vmem:[%s4139 + $0x10] sm:$0xff]
        %v4143 = vld [vmem:[%s4139 + $0x18] sm:$0xff]
        %v4144 = vld [vmem:[%s4139 + $0x20] sm:$0xff]
        %v4145 = vld [vmem:[%s4139 + $0x28] sm:$0xff]
        %v4146 = vld [vmem:[%s4139 + $0x30] sm:$0xff]
        %v4147 = vld [vmem:[%s4139 + $0x38] sm:$0xff]
        %v4148 = vld [vmem:[%s4139 + $0x40] sm:$0xff]
        %v4149 = vld [vmem:[%s4139 + $0x48] sm:$0xff]
        %v4150 = vld [vmem:[%s4139 + $0x50] sm:$0xff]
        %v4151 = vld [vmem:[%s4139 + $0x58] sm:$0xff]
        %v4152 = vld [vmem:[%s4139 + $0x60] sm:$0xff]
        %v4153 = vld [vmem:[%s4139 + $0x68] sm:$0xff]
        %v4154 = vld [vmem:[%s4139 + $0x70] sm:$0xff]
        %v4155 = vld [vmem:[%s4139 + $0x78] sm:$0xff]
        %s4156 = scalar_lea.vmem %s492, 1024 [#allocation5]
        %v4157 = vld [vmem:[%s4156] sm:$0xff]
        %v4158 = vld [vmem:[%s4156 + $0x8] sm:$0xff]
        %v4159 = vld [vmem:[%s4156 + $0x10] sm:$0xff]
        %v4160 = vld [vmem:[%s4156 + $0x18] sm:$0xff]
        %v4161 = vld [vmem:[%s4156 + $0x20] sm:$0xff]
        %v4162 = vld [vmem:[%s4156 + $0x28] sm:$0xff]
        %v4163 = vld [vmem:[%s4156 + $0x30] sm:$0xff]
        %v4164 = vld [vmem:[%s4156 + $0x38] sm:$0xff]
        %v4165 = vld [vmem:[%s4156 + $0x40] sm:$0xff]
        %v4166 = vld [vmem:[%s4156 + $0x48] sm:$0xff]
        %v4167 = vld [vmem:[%s4156 + $0x50] sm:$0xff]
        %v4168 = vld [vmem:[%s4156 + $0x58] sm:$0xff]
        %v4169 = vld [vmem:[%s4156 + $0x60] sm:$0xff]
        %v4170 = vld [vmem:[%s4156 + $0x68] sm:$0xff]
        %v4171 = vld [vmem:[%s4156 + $0x70] sm:$0xff]
        %v4172 = vld [vmem:[%s4156 + $0x78] sm:$0xff]
        %4173 = vmatpush.msra.mxu0 %v4155
        %4174 = vmatpush.msra.mxu0 %v4154
        %4175 = vmatpush.msra.mxu0 %v4153
        %4176 = vmatpush.msra.mxu0 %v4152
        %4177 = vmatpush.msra.mxu0 %v4151
        %4178 = vmatpush.msra.mxu0 %v4150
        %4179 = vmatpush.msra.mxu0 %v4149
        %4180 = vmatpush.msra.mxu0 %v4148
        %4181 = vmatpush.msra.mxu0 %v4147
        %4182 = vmatpush.msra.mxu0 %v4146
        %4183 = vmatpush.msra.mxu0 %v4145
        %4184 = vmatpush.msra.mxu0 %v4144
        %4185 = vmatpush.msra.mxu0 %v4143
        %4186 = vmatpush.msra.mxu0 %v4142
        %4187 = vmatpush.msra.mxu0 %v4141
        %4188 = vmatpush.msra.mxu0 %v4140
        %4189 = vmatmul.f32.gmra.mxu0 %v578
        %v4190 = vpop.f32.mrf.mxu0
        %v4191 = vadd.f32 %v4157, %v4190
        %4192 = vmatmul.f32.gmra.mxu0 %v579
        %v4193 = vpop.f32.mrf.mxu0
        %v4194 = vadd.f32 %v4158, %v4193
        %4195 = vmatmul.f32.gmra.mxu0 %v580
        %v4196 = vpop.f32.mrf.mxu0
        %v4197 = vadd.f32 %v4159, %v4196
        %4198 = vmatmul.f32.gmra.mxu0 %v581
        %v4199 = vpop.f32.mrf.mxu0
        %v4200 = vadd.f32 %v4160, %v4199
        %4201 = vmatmul.f32.gmra.mxu0 %v582
        %v4202 = vpop.f32.mrf.mxu0
        %v4203 = vadd.f32 %v4161, %v4202
        %4204 = vmatmul.f32.gmra.mxu0 %v583
        %v4205 = vpop.f32.mrf.mxu0
        %v4206 = vadd.f32 %v4162, %v4205
        %4207 = vmatmul.f32.gmra.mxu0 %v584
        %v4208 = vpop.f32.mrf.mxu0
        %v4209 = vadd.f32 %v4163, %v4208
        %4210 = vmatmul.f32.gmra.mxu0 %v585
        %v4211 = vpop.f32.mrf.mxu0
        %v4212 = vadd.f32 %v4164, %v4211
        %4213 = vmatmul.f32.gmra.mxu0 %v586
        %v4214 = vpop.f32.mrf.mxu0
        %v4215 = vadd.f32 %v4165, %v4214
        %4216 = vmatmul.f32.gmra.mxu0 %v587
        %v4217 = vpop.f32.mrf.mxu0
        %v4218 = vadd.f32 %v4166, %v4217
        %4219 = vmatmul.f32.gmra.mxu0 %v588
        %v4220 = vpop.f32.mrf.mxu0
        %v4221 = vadd.f32 %v4167, %v4220
        %4222 = vmatmul.f32.gmra.mxu0 %v589
        %v4223 = vpop.f32.mrf.mxu0
        %v4224 = vadd.f32 %v4168, %v4223
        %4225 = vmatmul.f32.gmra.mxu0 %v590
        %v4226 = vpop.f32.mrf.mxu0
        %v4227 = vadd.f32 %v4169, %v4226
        %4228 = vmatmul.f32.gmra.mxu0 %v591
        %v4229 = vpop.f32.mrf.mxu0
        %v4230 = vadd.f32 %v4170, %v4229
        %4231 = vmatmul.f32.gmra.mxu0 %v592
        %v4232 = vpop.f32.mrf.mxu0
        %v4233 = vadd.f32 %v4171, %v4232
        %4234 = vmatmul.f32.gmra.mxu0 %v593
        %v4235 = vpop.f32.mrf.mxu0
        %v4236 = vadd.f32 %v4172, %v4235
        %4237 = vdwg.mxu0
        %s4238 = scalar_lea.vmem [#allocation13], 16
        %v4239 = vld [vmem:[%s4238] sm:$0x3]
        %v4241 = vperm.slane %v4239, 0
        %v4242 = vperm.slane %v4239, 1
        %4245 = vmatpush.msra.mxu0 %v709
        %4246 = vmatpush.msra.mxu0 %v707
        %4247 = vmatpush.msra.mxu0 %v705
        %4248 = vmatpush.msra.mxu0 %v703
        %4249 = vmatpush.msra.mxu0 %v701
        %4250 = vmatpush.msra.mxu0 %v699
        %4251 = vmatpush.msra.mxu0 %v697
        %4252 = vmatpush.msra.mxu0 %v695
        %4253 = vmatpush.msra.mxu0 %v693
        %4254 = vmatpush.msra.mxu0 %v691
        %4255 = vmatpush.msra.mxu0 %v689
        %4256 = vmatpush.msra.mxu0 %v687
        %4257 = vmatpush.msra.mxu0 %v685
        %4258 = vmatpush.msra.mxu0 %v683
        %4259 = vmatpush.msra.mxu0 %v681
        %4260 = vmatpush.msra.mxu0 %v679
        %4261 = vmatmul.f32.gmra.mxu0 %v4191
        %v4262 = vpop.f32.mrf.mxu0
        %v4263 = vadd.f32 %v4241, %v4262
        %4264 = vmatmul.f32.gmra.mxu0 %v4194
        %v4265 = vpop.f32.mrf.mxu0
        %v4266 = vadd.f32 %v4241, %v4265
        %4267 = vmatmul.f32.gmra.mxu0 %v4197
        %v4268 = vpop.f32.mrf.mxu0
        %v4269 = vadd.f32 %v4241, %v4268
        %4270 = vmatmul.f32.gmra.mxu0 %v4200
        %v4271 = vpop.f32.mrf.mxu0
        %v4272 = vadd.f32 %v4241, %v4271
        %4273 = vmatmul.f32.gmra.mxu0 %v4203
        %v4274 = vpop.f32.mrf.mxu0
        %v4275 = vadd.f32 %v4241, %v4274
        %4276 = vmatmul.f32.gmra.mxu0 %v4206
        %v4277 = vpop.f32.mrf.mxu0
        %v4278 = vadd.f32 %v4241, %v4277
        %4279 = vmatmul.f32.gmra.mxu0 %v4209
        %v4280 = vpop.f32.mrf.mxu0
        %v4281 = vadd.f32 %v4241, %v4280
        %4282 = vmatmul.f32.gmra.mxu0 %v4212
        %v4283 = vpop.f32.mrf.mxu0
        %v4284 = vadd.f32 %v4241, %v4283
        %4285 = vmatmul.f32.gmra.mxu0 %v4215
        %v4286 = vpop.f32.mrf.mxu0
        %v4287 = vadd.f32 %v4241, %v4286
        %4288 = vmatmul.f32.gmra.mxu0 %v4218
        %v4289 = vpop.f32.mrf.mxu0
        %v4290 = vadd.f32 %v4241, %v4289
        %4291 = vmatmul.f32.gmra.mxu0 %v4221
        %v4292 = vpop.f32.mrf.mxu0
        %v4293 = vadd.f32 %v4241, %v4292
        %4294 = vmatmul.f32.gmra.mxu0 %v4224
        %v4295 = vpop.f32.mrf.mxu0
        %v4296 = vadd.f32 %v4241, %v4295
        %4297 = vmatmul.f32.gmra.mxu0 %v4227
        %v4298 = vpop.f32.mrf.mxu0
        %v4299 = vadd.f32 %v4241, %v4298
        %4300 = vmatmul.f32.gmra.mxu0 %v4230
        %v4301 = vpop.f32.mrf.mxu0
        %v4302 = vadd.f32 %v4241, %v4301
        %4303 = vmatmul.f32.gmra.mxu0 %v4233
        %v4304 = vpop.f32.mrf.mxu0
        %v4305 = vadd.f32 %v4241, %v4304
        %4306 = vmatmul.f32.gmra.mxu0 %v4236
        %v4307 = vpop.f32.mrf.mxu0
        %v4308 = vadd.f32 %v4241, %v4307
        %4309 = vdwg.mxu0
        %4310 = vmatpush.msra.mxu0 %v710
        %4311 = vmatpush.msra.mxu0 %v708
        %4312 = vmatpush.msra.mxu0 %v706
        %4313 = vmatpush.msra.mxu0 %v704
        %4314 = vmatpush.msra.mxu0 %v702
        %4315 = vmatpush.msra.mxu0 %v700
        %4316 = vmatpush.msra.mxu0 %v698
        %4317 = vmatpush.msra.mxu0 %v696
        %4318 = vmatpush.msra.mxu0 %v694
        %4319 = vmatpush.msra.mxu0 %v692
        %4320 = vmatpush.msra.mxu0 %v690
        %4321 = vmatpush.msra.mxu0 %v688
        %4322 = vmatpush.msra.mxu0 %v686
        %4323 = vmatpush.msra.mxu0 %v684
        %4324 = vmatpush.msra.mxu0 %v682
        %4325 = vmatpush.msra.mxu0 %v680
        %4326 = vmatmul.f32.gmra.mxu0 %v4191
        %v4327 = vpop.f32.mrf.mxu0
        %v4328 = vadd.f32 %v4242, %v4327
        %4329 = vmatmul.f32.gmra.mxu0 %v4194
        %v4330 = vpop.f32.mrf.mxu0
        %v4331 = vadd.f32 %v4242, %v4330
        %4332 = vmatmul.f32.gmra.mxu0 %v4197
        %v4333 = vpop.f32.mrf.mxu0
        %v4334 = vadd.f32 %v4242, %v4333
        %4335 = vmatmul.f32.gmra.mxu0 %v4200
        %v4336 = vpop.f32.mrf.mxu0
        %v4337 = vadd.f32 %v4242, %v4336
        %4338 = vmatmul.f32.gmra.mxu0 %v4203
        %v4339 = vpop.f32.mrf.mxu0
        %v4340 = vadd.f32 %v4242, %v4339
        %4341 = vmatmul.f32.gmra.mxu0 %v4206
        %v4342 = vpop.f32.mrf.mxu0
        %v4343 = vadd.f32 %v4242, %v4342
        %4344 = vmatmul.f32.gmra.mxu0 %v4209
        %v4345 = vpop.f32.mrf.mxu0
        %v4346 = vadd.f32 %v4242, %v4345
        %4347 = vmatmul.f32.gmra.mxu0 %v4212
        %v4348 = vpop.f32.mrf.mxu0
        %v4349 = vadd.f32 %v4242, %v4348
        %4350 = vmatmul.f32.gmra.mxu0 %v4215
        %v4351 = vpop.f32.mrf.mxu0
        %v4352 = vadd.f32 %v4242, %v4351
        %4353 = vmatmul.f32.gmra.mxu0 %v4218
        %v4354 = vpop.f32.mrf.mxu0
        %v4355 = vadd.f32 %v4242, %v4354
        %4356 = vmatmul.f32.gmra.mxu0 %v4221
        %v4357 = vpop.f32.mrf.mxu0
        %v4358 = vadd.f32 %v4242, %v4357
        %4359 = vmatmul.f32.gmra.mxu0 %v4224
        %v4360 = vpop.f32.mrf.mxu0
        %v4361 = vadd.f32 %v4242, %v4360
        %4362 = vmatmul.f32.gmra.mxu0 %v4227
        %v4363 = vpop.f32.mrf.mxu0
        %v4364 = vadd.f32 %v4242, %v4363
        %4365 = vmatmul.f32.gmra.mxu0 %v4230
        %v4366 = vpop.f32.mrf.mxu0
        %v4367 = vadd.f32 %v4242, %v4366
        %4368 = vmatmul.f32.gmra.mxu0 %v4233
        %v4369 = vpop.f32.mrf.mxu0
        %v4370 = vadd.f32 %v4242, %v4369
        %4371 = vmatmul.f32.gmra.mxu0 %v4236
        %v4372 = vpop.f32.mrf.mxu0
        %v4373 = vadd.f32 %v4242, %v4372
        %4374 = vdwg.mxu0
        %v4375 = vmul.f32 %v4263, %v632
        %v4376 = vmul.f32 %v4266, %v635
        %v4377 = vmul.f32 %v4269, %v638
        %v4378 = vmul.f32 %v4272, %v641
        %v4379 = vmul.f32 %v4275, %v644
        %v4380 = vmul.f32 %v4278, %v647
        %v4381 = vmul.f32 %v4281, %v650
        %v4382 = vmul.f32 %v4284, %v653
        %v4383 = vmul.f32 %v4287, %v656
        %v4384 = vmul.f32 %v4290, %v659
        %v4385 = vmul.f32 %v4293, %v662
        %v4386 = vmul.f32 %v4296, %v665
        %v4387 = vmul.f32 %v4299, %v668
        %v4388 = vmul.f32 %v4302, %v671
        %v4389 = vmul.f32 %v4305, %v674
        %v4390 = vmul.f32 %v4308, %v677
        %4391 = vmatpush.msra.mxu0 %v726
        %4392 = vmatpush.msra.mxu0 %v725
        %4393 = vmatpush.msra.mxu0 %v724
        %4394 = vmatpush.msra.mxu0 %v723
        %4395 = vmatpush.msra.mxu0 %v722
        %4396 = vmatpush.msra.mxu0 %v721
        %4397 = vmatpush.msra.mxu0 %v720
        %4398 = vmatpush.msra.mxu0 %v719
        %4399 = vmatpush.msra.mxu0 %v718
        %4400 = vmatpush.msra.mxu0 %v717
        %4401 = vmatpush.msra.mxu0 %v716
        %4402 = vmatpush.msra.mxu0 %v715
        %4403 = vmatpush.msra.mxu0 %v714
        %4404 = vmatpush.msra.mxu0 %v713
        %4405 = vmatpush.msra.mxu0 %v712
        %4406 = vmatpush.msra.mxu0 %v711
        %4407 = vmatmul.f32.gmra.mxu0 %v4375
        %v4408 = vpop.f32.mrf.mxu0
        %v4409 = vadd.f32 0.0, %v4408
        %4410 = vmatmul.f32.gmra.mxu0 %v4376
        %v4411 = vpop.f32.mrf.mxu0
        %v4412 = vadd.f32 0.0, %v4411
        %4413 = vmatmul.f32.gmra.mxu0 %v4377
        %v4414 = vpop.f32.mrf.mxu0
        %v4415 = vadd.f32 0.0, %v4414
        %4416 = vmatmul.f32.gmra.mxu0 %v4378
        %v4417 = vpop.f32.mrf.mxu0
        %v4418 = vadd.f32 0.0, %v4417
        %4419 = vmatmul.f32.gmra.mxu0 %v4379
        %v4420 = vpop.f32.mrf.mxu0
        %v4421 = vadd.f32 0.0, %v4420
        %4422 = vmatmul.f32.gmra.mxu0 %v4380
        %v4423 = vpop.f32.mrf.mxu0
        %v4424 = vadd.f32 0.0, %v4423
        %4425 = vmatmul.f32.gmra.mxu0 %v4381
        %v4426 = vpop.f32.mrf.mxu0
        %v4427 = vadd.f32 0.0, %v4426
        %4428 = vmatmul.f32.gmra.mxu0 %v4382
        %v4429 = vpop.f32.mrf.mxu0
        %v4430 = vadd.f32 0.0, %v4429
        %4431 = vmatmul.f32.gmra.mxu0 %v4383
        %v4432 = vpop.f32.mrf.mxu0
        %v4433 = vadd.f32 0.0, %v4432
        %4434 = vmatmul.f32.gmra.mxu0 %v4384
        %v4435 = vpop.f32.mrf.mxu0
        %v4436 = vadd.f32 0.0, %v4435
        %4437 = vmatmul.f32.gmra.mxu0 %v4385
        %v4438 = vpop.f32.mrf.mxu0
        %v4439 = vadd.f32 0.0, %v4438
        %4440 = vmatmul.f32.gmra.mxu0 %v4386
        %v4441 = vpop.f32.mrf.mxu0
        %v4442 = vadd.f32 0.0, %v4441
        %4443 = vmatmul.f32.gmra.mxu0 %v4387
        %v4444 = vpop.f32.mrf.mxu0
        %v4445 = vadd.f32 0.0, %v4444
        %4446 = vmatmul.f32.gmra.mxu0 %v4388
        %v4447 = vpop.f32.mrf.mxu0
        %v4448 = vadd.f32 0.0, %v4447
        %4449 = vmatmul.f32.gmra.mxu0 %v4389
        %v4450 = vpop.f32.mrf.mxu0
        %v4451 = vadd.f32 0.0, %v4450
        %4452 = vmatmul.f32.gmra.mxu0 %v4390
        %v4453 = vpop.f32.mrf.mxu0
        %v4454 = vadd.f32 0.0, %v4453
        %4455 = vdwg.mxu0
        %v4456 = vmul.f32 %v4328, %v4409
        %v4457 = vmul.f32 %v4331, %v4412
        %v4458 = vmul.f32 %v4334, %v4415
        %v4459 = vmul.f32 %v4337, %v4418
        %v4460 = vmul.f32 %v4340, %v4421
        %v4461 = vmul.f32 %v4343, %v4424
        %v4462 = vmul.f32 %v4346, %v4427
        %v4463 = vmul.f32 %v4349, %v4430
        %v4464 = vmul.f32 %v4352, %v4433
        %v4465 = vmul.f32 %v4355, %v4436
        %v4466 = vmul.f32 %v4358, %v4439
        %v4467 = vmul.f32 %v4361, %v4442
        %v4468 = vmul.f32 %v4364, %v4445
        %v4469 = vmul.f32 %v4367, %v4448
        %v4470 = vmul.f32 %v4370, %v4451
        %v4471 = vmul.f32 %v4373, %v4454
        %s4472 = scalar_lea.vmem [#allocation14], 1024
        %v4473 = vld [vmem:[%s4472] sm:$0xff]
        %v4474 = vld [vmem:[%s4472 + $0x8] sm:$0xff]
        %v4475 = vld [vmem:[%s4472 + $0x10] sm:$0xff]
        %v4476 = vld [vmem:[%s4472 + $0x18] sm:$0xff]
        %v4477 = vld [vmem:[%s4472 + $0x20] sm:$0xff]
        %v4478 = vld [vmem:[%s4472 + $0x28] sm:$0xff]
        %v4479 = vld [vmem:[%s4472 + $0x30] sm:$0xff]
        %v4480 = vld [vmem:[%s4472 + $0x38] sm:$0xff]
        %v4481 = vld [vmem:[%s4472 + $0x40] sm:$0xff]
        %v4482 = vld [vmem:[%s4472 + $0x48] sm:$0xff]
        %v4483 = vld [vmem:[%s4472 + $0x50] sm:$0xff]
        %v4484 = vld [vmem:[%s4472 + $0x58] sm:$0xff]
        %v4485 = vld [vmem:[%s4472 + $0x60] sm:$0xff]
        %v4486 = vld [vmem:[%s4472 + $0x68] sm:$0xff]
        %v4487 = vld [vmem:[%s4472 + $0x70] sm:$0xff]
        %v4488 = vld [vmem:[%s4472 + $0x78] sm:$0xff]
        %4489 = vmatpush.msra.mxu0 %v4488
        %4490 = vmatpush.msra.mxu0 %v4487
        %4491 = vmatpush.msra.mxu0 %v4486
        %4492 = vmatpush.msra.mxu0 %v4485
        %4493 = vmatpush.msra.mxu0 %v4484
        %4494 = vmatpush.msra.mxu0 %v4483
        %4495 = vmatpush.msra.mxu0 %v4482
        %4496 = vmatpush.msra.mxu0 %v4481
        %4497 = vmatpush.msra.mxu0 %v4480
        %4498 = vmatpush.msra.mxu0 %v4479
        %4499 = vmatpush.msra.mxu0 %v4478
        %4500 = vmatpush.msra.mxu0 %v4477
        %4501 = vmatpush.msra.mxu0 %v4476
        %4502 = vmatpush.msra.mxu0 %v4475
        %4503 = vmatpush.msra.mxu0 %v4474
        %4504 = vmatpush.msra.mxu0 %v4473
        %4505 = vmatmul.f32.gmra.mxu0 %v4456
        %v4506 = vpop.f32.mrf.mxu0
        %v4507 = vadd.f32 0.0, %v4506
        %4508 = vmatmul.f32.gmra.mxu0 %v4457
        %v4509 = vpop.f32.mrf.mxu0
        %v4510 = vadd.f32 0.0, %v4509
        %4511 = vmatmul.f32.gmra.mxu0 %v4458
        %v4512 = vpop.f32.mrf.mxu0
        %v4513 = vadd.f32 0.0, %v4512
        %4514 = vmatmul.f32.gmra.mxu0 %v4459
        %v4515 = vpop.f32.mrf.mxu0
        %v4516 = vadd.f32 0.0, %v4515
        %4517 = vmatmul.f32.gmra.mxu0 %v4460
        %v4518 = vpop.f32.mrf.mxu0
        %v4519 = vadd.f32 0.0, %v4518
        %4520 = vmatmul.f32.gmra.mxu0 %v4461
        %v4521 = vpop.f32.mrf.mxu0
        %v4522 = vadd.f32 0.0, %v4521
        %4523 = vmatmul.f32.gmra.mxu0 %v4462
        %v4524 = vpop.f32.mrf.mxu0
        %v4525 = vadd.f32 0.0, %v4524
        %4526 = vmatmul.f32.gmra.mxu0 %v4463
        %v4527 = vpop.f32.mrf.mxu0
        %v4528 = vadd.f32 0.0, %v4527
        %4529 = vmatmul.f32.gmra.mxu0 %v4464
        %v4530 = vpop.f32.mrf.mxu0
        %v4531 = vadd.f32 0.0, %v4530
        %4532 = vmatmul.f32.gmra.mxu0 %v4465
        %v4533 = vpop.f32.mrf.mxu0
        %v4534 = vadd.f32 0.0, %v4533
        %4535 = vmatmul.f32.gmra.mxu0 %v4466
        %v4536 = vpop.f32.mrf.mxu0
        %v4537 = vadd.f32 0.0, %v4536
        %4538 = vmatmul.f32.gmra.mxu0 %v4467
        %v4539 = vpop.f32.mrf.mxu0
        %v4540 = vadd.f32 0.0, %v4539
        %4541 = vmatmul.f32.gmra.mxu0 %v4468
        %v4542 = vpop.f32.mrf.mxu0
        %v4543 = vadd.f32 0.0, %v4542
        %4544 = vmatmul.f32.gmra.mxu0 %v4469
        %v4545 = vpop.f32.mrf.mxu0
        %v4546 = vadd.f32 0.0, %v4545
        %4547 = vmatmul.f32.gmra.mxu0 %v4470
        %v4548 = vpop.f32.mrf.mxu0
        %v4549 = vadd.f32 0.0, %v4548
        %4550 = vmatmul.f32.gmra.mxu0 %v4471
        %v4551 = vpop.f32.mrf.mxu0
        %v4552 = vadd.f32 0.0, %v4551
        %4553 = vdwg.mxu0
        %v4554 = vadd.f32 %v4123, %v4507
        %v4555 = vadd.f32 %v4124, %v4510
        %v4556 = vadd.f32 %v4125, %v4513
        %v4557 = vadd.f32 %v4126, %v4516
        %v4558 = vadd.f32 %v4127, %v4519
        %v4559 = vadd.f32 %v4128, %v4522
        %v4560 = vadd.f32 %v4129, %v4525
        %v4561 = vadd.f32 %v4130, %v4528
        %v4562 = vadd.f32 %v4131, %v4531
        %v4563 = vadd.f32 %v4132, %v4534
        %v4564 = vadd.f32 %v4133, %v4537
        %v4565 = vadd.f32 %v4134, %v4540
        %v4566 = vadd.f32 %v4135, %v4543
        %v4567 = vadd.f32 %v4136, %v4546
        %v4568 = vadd.f32 %v4137, %v4549
        %v4569 = vadd.f32 %v4138, %v4552
        %s4570 = scalar_lea.vmem [#allocation7], 1152
        %v4571 = vld [vmem:[%s4570] sm:$0xff]
        %v4572 = vld [vmem:[%s4570 + $0x8] sm:$0xff]
        %v4573 = vld [vmem:[%s4570 + $0x10] sm:$0xff]
        %v4574 = vld [vmem:[%s4570 + $0x18] sm:$0xff]
        %v4575 = vld [vmem:[%s4570 + $0x20] sm:$0xff]
        %v4576 = vld [vmem:[%s4570 + $0x28] sm:$0xff]
        %v4577 = vld [vmem:[%s4570 + $0x30] sm:$0xff]
        %v4578 = vld [vmem:[%s4570 + $0x38] sm:$0xff]
        %v4579 = vld [vmem:[%s4570 + $0x40] sm:$0xff]
        %v4580 = vld [vmem:[%s4570 + $0x48] sm:$0xff]
        %v4581 = vld [vmem:[%s4570 + $0x50] sm:$0xff]
        %v4582 = vld [vmem:[%s4570 + $0x58] sm:$0xff]
        %v4583 = vld [vmem:[%s4570 + $0x60] sm:$0xff]
        %v4584 = vld [vmem:[%s4570 + $0x68] sm:$0xff]
        %v4585 = vld [vmem:[%s4570 + $0x70] sm:$0xff]
        %v4586 = vld [vmem:[%s4570 + $0x78] sm:$0xff]
        %s4587 = scalar_lea.vmem %s492, 1152 [#allocation5]
        %v4588 = vld [vmem:[%s4587] sm:$0xff]
        %v4589 = vld [vmem:[%s4587 + $0x8] sm:$0xff]
        %v4590 = vld [vmem:[%s4587 + $0x10] sm:$0xff]
        %v4591 = vld [vmem:[%s4587 + $0x18] sm:$0xff]
        %v4592 = vld [vmem:[%s4587 + $0x20] sm:$0xff]
        %v4593 = vld [vmem:[%s4587 + $0x28] sm:$0xff]
        %v4594 = vld [vmem:[%s4587 + $0x30] sm:$0xff]
        %v4595 = vld [vmem:[%s4587 + $0x38] sm:$0xff]
        %v4596 = vld [vmem:[%s4587 + $0x40] sm:$0xff]
        %v4597 = vld [vmem:[%s4587 + $0x48] sm:$0xff]
        %v4598 = vld [vmem:[%s4587 + $0x50] sm:$0xff]
        %v4599 = vld [vmem:[%s4587 + $0x58] sm:$0xff]
        %v4600 = vld [vmem:[%s4587 + $0x60] sm:$0xff]
        %v4601 = vld [vmem:[%s4587 + $0x68] sm:$0xff]
        %v4602 = vld [vmem:[%s4587 + $0x70] sm:$0xff]
        %v4603 = vld [vmem:[%s4587 + $0x78] sm:$0xff]
        %4604 = vmatpush.msra.mxu0 %v4586
        %4605 = vmatpush.msra.mxu0 %v4585
        %4606 = vmatpush.msra.mxu0 %v4584
        %4607 = vmatpush.msra.mxu0 %v4583
        %4608 = vmatpush.msra.mxu0 %v4582
        %4609 = vmatpush.msra.mxu0 %v4581
        %4610 = vmatpush.msra.mxu0 %v4580
        %4611 = vmatpush.msra.mxu0 %v4579
        %4612 = vmatpush.msra.mxu0 %v4578
        %4613 = vmatpush.msra.mxu0 %v4577
        %4614 = vmatpush.msra.mxu0 %v4576
        %4615 = vmatpush.msra.mxu0 %v4575
        %4616 = vmatpush.msra.mxu0 %v4574
        %4617 = vmatpush.msra.mxu0 %v4573
        %4618 = vmatpush.msra.mxu0 %v4572
        %4619 = vmatpush.msra.mxu0 %v4571
        %4620 = vmatmul.f32.gmra.mxu0 %v578
        %v4621 = vpop.f32.mrf.mxu0
        %v4622 = vadd.f32 %v4588, %v4621
        %4623 = vmatmul.f32.gmra.mxu0 %v579
        %v4624 = vpop.f32.mrf.mxu0
        %v4625 = vadd.f32 %v4589, %v4624
        %4626 = vmatmul.f32.gmra.mxu0 %v580
        %v4627 = vpop.f32.mrf.mxu0
        %v4628 = vadd.f32 %v4590, %v4627
        %4629 = vmatmul.f32.gmra.mxu0 %v581
        %v4630 = vpop.f32.mrf.mxu0
        %v4631 = vadd.f32 %v4591, %v4630
        %4632 = vmatmul.f32.gmra.mxu0 %v582
        %v4633 = vpop.f32.mrf.mxu0
        %v4634 = vadd.f32 %v4592, %v4633
        %4635 = vmatmul.f32.gmra.mxu0 %v583
        %v4636 = vpop.f32.mrf.mxu0
        %v4637 = vadd.f32 %v4593, %v4636
        %4638 = vmatmul.f32.gmra.mxu0 %v584
        %v4639 = vpop.f32.mrf.mxu0
        %v4640 = vadd.f32 %v4594, %v4639
        %4641 = vmatmul.f32.gmra.mxu0 %v585
        %v4642 = vpop.f32.mrf.mxu0
        %v4643 = vadd.f32 %v4595, %v4642
        %4644 = vmatmul.f32.gmra.mxu0 %v586
        %v4645 = vpop.f32.mrf.mxu0
        %v4646 = vadd.f32 %v4596, %v4645
        %4647 = vmatmul.f32.gmra.mxu0 %v587
        %v4648 = vpop.f32.mrf.mxu0
        %v4649 = vadd.f32 %v4597, %v4648
        %4650 = vmatmul.f32.gmra.mxu0 %v588
        %v4651 = vpop.f32.mrf.mxu0
        %v4652 = vadd.f32 %v4598, %v4651
        %4653 = vmatmul.f32.gmra.mxu0 %v589
        %v4654 = vpop.f32.mrf.mxu0
        %v4655 = vadd.f32 %v4599, %v4654
        %4656 = vmatmul.f32.gmra.mxu0 %v590
        %v4657 = vpop.f32.mrf.mxu0
        %v4658 = vadd.f32 %v4600, %v4657
        %4659 = vmatmul.f32.gmra.mxu0 %v591
        %v4660 = vpop.f32.mrf.mxu0
        %v4661 = vadd.f32 %v4601, %v4660
        %4662 = vmatmul.f32.gmra.mxu0 %v592
        %v4663 = vpop.f32.mrf.mxu0
        %v4664 = vadd.f32 %v4602, %v4663
        %4665 = vmatmul.f32.gmra.mxu0 %v593
        %v4666 = vpop.f32.mrf.mxu0
        %v4667 = vadd.f32 %v4603, %v4666
        %4668 = vdwg.mxu0
        %s4669 = scalar_lea.vmem [#allocation13], 18
        %v4670 = vld [vmem:[%s4669] sm:$0x3]
        %v4672 = vperm.slane %v4670, 0
        %v4673 = vperm.slane %v4670, 1
        %4676 = vmatpush.msra.mxu0 %v709
        %4677 = vmatpush.msra.mxu0 %v707
        %4678 = vmatpush.msra.mxu0 %v705
        %4679 = vmatpush.msra.mxu0 %v703
        %4680 = vmatpush.msra.mxu0 %v701
        %4681 = vmatpush.msra.mxu0 %v699
        %4682 = vmatpush.msra.mxu0 %v697
        %4683 = vmatpush.msra.mxu0 %v695
        %4684 = vmatpush.msra.mxu0 %v693
        %4685 = vmatpush.msra.mxu0 %v691
        %4686 = vmatpush.msra.mxu0 %v689
        %4687 = vmatpush.msra.mxu0 %v687
        %4688 = vmatpush.msra.mxu0 %v685
        %4689 = vmatpush.msra.mxu0 %v683
        %4690 = vmatpush.msra.mxu0 %v681
        %4691 = vmatpush.msra.mxu0 %v679
        %4692 = vmatmul.f32.gmra.mxu0 %v4622
        %v4693 = vpop.f32.mrf.mxu0
        %v4694 = vadd.f32 %v4672, %v4693
        %4695 = vmatmul.f32.gmra.mxu0 %v4625
        %v4696 = vpop.f32.mrf.mxu0
        %v4697 = vadd.f32 %v4672, %v4696
        %4698 = vmatmul.f32.gmra.mxu0 %v4628
        %v4699 = vpop.f32.mrf.mxu0
        %v4700 = vadd.f32 %v4672, %v4699
        %4701 = vmatmul.f32.gmra.mxu0 %v4631
        %v4702 = vpop.f32.mrf.mxu0
        %v4703 = vadd.f32 %v4672, %v4702
        %4704 = vmatmul.f32.gmra.mxu0 %v4634
        %v4705 = vpop.f32.mrf.mxu0
        %v4706 = vadd.f32 %v4672, %v4705
        %4707 = vmatmul.f32.gmra.mxu0 %v4637
        %v4708 = vpop.f32.mrf.mxu0
        %v4709 = vadd.f32 %v4672, %v4708
        %4710 = vmatmul.f32.gmra.mxu0 %v4640
        %v4711 = vpop.f32.mrf.mxu0
        %v4712 = vadd.f32 %v4672, %v4711
        %4713 = vmatmul.f32.gmra.mxu0 %v4643
        %v4714 = vpop.f32.mrf.mxu0
        %v4715 = vadd.f32 %v4672, %v4714
        %4716 = vmatmul.f32.gmra.mxu0 %v4646
        %v4717 = vpop.f32.mrf.mxu0
        %v4718 = vadd.f32 %v4672, %v4717
        %4719 = vmatmul.f32.gmra.mxu0 %v4649
        %v4720 = vpop.f32.mrf.mxu0
        %v4721 = vadd.f32 %v4672, %v4720
        %4722 = vmatmul.f32.gmra.mxu0 %v4652
        %v4723 = vpop.f32.mrf.mxu0
        %v4724 = vadd.f32 %v4672, %v4723
        %4725 = vmatmul.f32.gmra.mxu0 %v4655
        %v4726 = vpop.f32.mrf.mxu0
        %v4727 = vadd.f32 %v4672, %v4726
        %4728 = vmatmul.f32.gmra.mxu0 %v4658
        %v4729 = vpop.f32.mrf.mxu0
        %v4730 = vadd.f32 %v4672, %v4729
        %4731 = vmatmul.f32.gmra.mxu0 %v4661
        %v4732 = vpop.f32.mrf.mxu0
        %v4733 = vadd.f32 %v4672, %v4732
        %4734 = vmatmul.f32.gmra.mxu0 %v4664
        %v4735 = vpop.f32.mrf.mxu0
        %v4736 = vadd.f32 %v4672, %v4735
        %4737 = vmatmul.f32.gmra.mxu0 %v4667
        %v4738 = vpop.f32.mrf.mxu0
        %v4739 = vadd.f32 %v4672, %v4738
        %4740 = vdwg.mxu0
        %4741 = vmatpush.msra.mxu0 %v710
        %4742 = vmatpush.msra.mxu0 %v708
        %4743 = vmatpush.msra.mxu0 %v706
        %4744 = vmatpush.msra.mxu0 %v704
        %4745 = vmatpush.msra.mxu0 %v702
        %4746 = vmatpush.msra.mxu0 %v700
        %4747 = vmatpush.msra.mxu0 %v698
        %4748 = vmatpush.msra.mxu0 %v696
        %4749 = vmatpush.msra.mxu0 %v694
        %4750 = vmatpush.msra.mxu0 %v692
        %4751 = vmatpush.msra.mxu0 %v690
        %4752 = vmatpush.msra.mxu0 %v688
        %4753 = vmatpush.msra.mxu0 %v686
        %4754 = vmatpush.msra.mxu0 %v684
        %4755 = vmatpush.msra.mxu0 %v682
        %4756 = vmatpush.msra.mxu0 %v680
        %4757 = vmatmul.f32.gmra.mxu0 %v4622
        %v4758 = vpop.f32.mrf.mxu0
        %v4759 = vadd.f32 %v4673, %v4758
        %4760 = vmatmul.f32.gmra.mxu0 %v4625
        %v4761 = vpop.f32.mrf.mxu0
        %v4762 = vadd.f32 %v4673, %v4761
        %4763 = vmatmul.f32.gmra.mxu0 %v4628
        %v4764 = vpop.f32.mrf.mxu0
        %v4765 = vadd.f32 %v4673, %v4764
        %4766 = vmatmul.f32.gmra.mxu0 %v4631
        %v4767 = vpop.f32.mrf.mxu0
        %v4768 = vadd.f32 %v4673, %v4767
        %4769 = vmatmul.f32.gmra.mxu0 %v4634
        %v4770 = vpop.f32.mrf.mxu0
        %v4771 = vadd.f32 %v4673, %v4770
        %4772 = vmatmul.f32.gmra.mxu0 %v4637
        %v4773 = vpop.f32.mrf.mxu0
        %v4774 = vadd.f32 %v4673, %v4773
        %4775 = vmatmul.f32.gmra.mxu0 %v4640
        %v4776 = vpop.f32.mrf.mxu0
        %v4777 = vadd.f32 %v4673, %v4776
        %4778 = vmatmul.f32.gmra.mxu0 %v4643
        %v4779 = vpop.f32.mrf.mxu0
        %v4780 = vadd.f32 %v4673, %v4779
        %4781 = vmatmul.f32.gmra.mxu0 %v4646
        %v4782 = vpop.f32.mrf.mxu0
        %v4783 = vadd.f32 %v4673, %v4782
        %4784 = vmatmul.f32.gmra.mxu0 %v4649
        %v4785 = vpop.f32.mrf.mxu0
        %v4786 = vadd.f32 %v4673, %v4785
        %4787 = vmatmul.f32.gmra.mxu0 %v4652
        %v4788 = vpop.f32.mrf.mxu0
        %v4789 = vadd.f32 %v4673, %v4788
        %4790 = vmatmul.f32.gmra.mxu0 %v4655
        %v4791 = vpop.f32.mrf.mxu0
        %v4792 = vadd.f32 %v4673, %v4791
        %4793 = vmatmul.f32.gmra.mxu0 %v4658
        %v4794 = vpop.f32.mrf.mxu0
        %v4795 = vadd.f32 %v4673, %v4794
        %4796 = vmatmul.f32.gmra.mxu0 %v4661
        %v4797 = vpop.f32.mrf.mxu0
        %v4798 = vadd.f32 %v4673, %v4797
        %4799 = vmatmul.f32.gmra.mxu0 %v4664
        %v4800 = vpop.f32.mrf.mxu0
        %v4801 = vadd.f32 %v4673, %v4800
        %4802 = vmatmul.f32.gmra.mxu0 %v4667
        %v4803 = vpop.f32.mrf.mxu0
        %v4804 = vadd.f32 %v4673, %v4803
        %4805 = vdwg.mxu0
        %v4806 = vmul.f32 %v4694, %v632
        %v4807 = vmul.f32 %v4697, %v635
        %v4808 = vmul.f32 %v4700, %v638
        %v4809 = vmul.f32 %v4703, %v641
        %v4810 = vmul.f32 %v4706, %v644
        %v4811 = vmul.f32 %v4709, %v647
        %v4812 = vmul.f32 %v4712, %v650
        %v4813 = vmul.f32 %v4715, %v653
        %v4814 = vmul.f32 %v4718, %v656
        %v4815 = vmul.f32 %v4721, %v659
        %v4816 = vmul.f32 %v4724, %v662
        %v4817 = vmul.f32 %v4727, %v665
        %v4818 = vmul.f32 %v4730, %v668
        %v4819 = vmul.f32 %v4733, %v671
        %v4820 = vmul.f32 %v4736, %v674
        %v4821 = vmul.f32 %v4739, %v677
        %4822 = vmatpush.msra.mxu0 %v726
        %4823 = vmatpush.msra.mxu0 %v725
        %4824 = vmatpush.msra.mxu0 %v724
        %4825 = vmatpush.msra.mxu0 %v723
        %4826 = vmatpush.msra.mxu0 %v722
        %4827 = vmatpush.msra.mxu0 %v721
        %4828 = vmatpush.msra.mxu0 %v720
        %4829 = vmatpush.msra.mxu0 %v719
        %4830 = vmatpush.msra.mxu0 %v718
        %4831 = vmatpush.msra.mxu0 %v717
        %4832 = vmatpush.msra.mxu0 %v716
        %4833 = vmatpush.msra.mxu0 %v715
        %4834 = vmatpush.msra.mxu0 %v714
        %4835 = vmatpush.msra.mxu0 %v713
        %4836 = vmatpush.msra.mxu0 %v712
        %4837 = vmatpush.msra.mxu0 %v711
        %4838 = vmatmul.f32.gmra.mxu0 %v4806
        %v4839 = vpop.f32.mrf.mxu0
        %v4840 = vadd.f32 0.0, %v4839
        %4841 = vmatmul.f32.gmra.mxu0 %v4807
        %v4842 = vpop.f32.mrf.mxu0
        %v4843 = vadd.f32 0.0, %v4842
        %4844 = vmatmul.f32.gmra.mxu0 %v4808
        %v4845 = vpop.f32.mrf.mxu0
        %v4846 = vadd.f32 0.0, %v4845
        %4847 = vmatmul.f32.gmra.mxu0 %v4809
        %v4848 = vpop.f32.mrf.mxu0
        %v4849 = vadd.f32 0.0, %v4848
        %4850 = vmatmul.f32.gmra.mxu0 %v4810
        %v4851 = vpop.f32.mrf.mxu0
        %v4852 = vadd.f32 0.0, %v4851
        %4853 = vmatmul.f32.gmra.mxu0 %v4811
        %v4854 = vpop.f32.mrf.mxu0
        %v4855 = vadd.f32 0.0, %v4854
        %4856 = vmatmul.f32.gmra.mxu0 %v4812
        %v4857 = vpop.f32.mrf.mxu0
        %v4858 = vadd.f32 0.0, %v4857
        %4859 = vmatmul.f32.gmra.mxu0 %v4813
        %v4860 = vpop.f32.mrf.mxu0
        %v4861 = vadd.f32 0.0, %v4860
        %4862 = vmatmul.f32.gmra.mxu0 %v4814
        %v4863 = vpop.f32.mrf.mxu0
        %v4864 = vadd.f32 0.0, %v4863
        %4865 = vmatmul.f32.gmra.mxu0 %v4815
        %v4866 = vpop.f32.mrf.mxu0
        %v4867 = vadd.f32 0.0, %v4866
        %4868 = vmatmul.f32.gmra.mxu0 %v4816
        %v4869 = vpop.f32.mrf.mxu0
        %v4870 = vadd.f32 0.0, %v4869
        %4871 = vmatmul.f32.gmra.mxu0 %v4817
        %v4872 = vpop.f32.mrf.mxu0
        %v4873 = vadd.f32 0.0, %v4872
        %4874 = vmatmul.f32.gmra.mxu0 %v4818
        %v4875 = vpop.f32.mrf.mxu0
        %v4876 = vadd.f32 0.0, %v4875
        %4877 = vmatmul.f32.gmra.mxu0 %v4819
        %v4878 = vpop.f32.mrf.mxu0
        %v4879 = vadd.f32 0.0, %v4878
        %4880 = vmatmul.f32.gmra.mxu0 %v4820
        %v4881 = vpop.f32.mrf.mxu0
        %v4882 = vadd.f32 0.0, %v4881
        %4883 = vmatmul.f32.gmra.mxu0 %v4821
        %v4884 = vpop.f32.mrf.mxu0
        %v4885 = vadd.f32 0.0, %v4884
        %4886 = vdwg.mxu0
        %v4887 = vmul.f32 %v4759, %v4840
        %v4888 = vmul.f32 %v4762, %v4843
        %v4889 = vmul.f32 %v4765, %v4846
        %v4890 = vmul.f32 %v4768, %v4849
        %v4891 = vmul.f32 %v4771, %v4852
        %v4892 = vmul.f32 %v4774, %v4855
        %v4893 = vmul.f32 %v4777, %v4858
        %v4894 = vmul.f32 %v4780, %v4861
        %v4895 = vmul.f32 %v4783, %v4864
        %v4896 = vmul.f32 %v4786, %v4867
        %v4897 = vmul.f32 %v4789, %v4870
        %v4898 = vmul.f32 %v4792, %v4873
        %v4899 = vmul.f32 %v4795, %v4876
        %v4900 = vmul.f32 %v4798, %v4879
        %v4901 = vmul.f32 %v4801, %v4882
        %v4902 = vmul.f32 %v4804, %v4885
        %s4903 = scalar_lea.vmem [#allocation14], 1152
        %v4904 = vld [vmem:[%s4903] sm:$0xff]
        %v4905 = vld [vmem:[%s4903 + $0x8] sm:$0xff]
        %v4906 = vld [vmem:[%s4903 + $0x10] sm:$0xff]
        %v4907 = vld [vmem:[%s4903 + $0x18] sm:$0xff]
        %v4908 = vld [vmem:[%s4903 + $0x20] sm:$0xff]
        %v4909 = vld [vmem:[%s4903 + $0x28] sm:$0xff]
        %v4910 = vld [vmem:[%s4903 + $0x30] sm:$0xff]
        %v4911 = vld [vmem:[%s4903 + $0x38] sm:$0xff]
        %v4912 = vld [vmem:[%s4903 + $0x40] sm:$0xff]
        %v4913 = vld [vmem:[%s4903 + $0x48] sm:$0xff]
        %v4914 = vld [vmem:[%s4903 + $0x50] sm:$0xff]
        %v4915 = vld [vmem:[%s4903 + $0x58] sm:$0xff]
        %v4916 = vld [vmem:[%s4903 + $0x60] sm:$0xff]
        %v4917 = vld [vmem:[%s4903 + $0x68] sm:$0xff]
        %v4918 = vld [vmem:[%s4903 + $0x70] sm:$0xff]
        %v4919 = vld [vmem:[%s4903 + $0x78] sm:$0xff]
        %4920 = vmatpush.msra.mxu0 %v4919
        %4921 = vmatpush.msra.mxu0 %v4918
        %4922 = vmatpush.msra.mxu0 %v4917
        %4923 = vmatpush.msra.mxu0 %v4916
        %4924 = vmatpush.msra.mxu0 %v4915
        %4925 = vmatpush.msra.mxu0 %v4914
        %4926 = vmatpush.msra.mxu0 %v4913
        %4927 = vmatpush.msra.mxu0 %v4912
        %4928 = vmatpush.msra.mxu0 %v4911
        %4929 = vmatpush.msra.mxu0 %v4910
        %4930 = vmatpush.msra.mxu0 %v4909
        %4931 = vmatpush.msra.mxu0 %v4908
        %4932 = vmatpush.msra.mxu0 %v4907
        %4933 = vmatpush.msra.mxu0 %v4906
        %4934 = vmatpush.msra.mxu0 %v4905
        %4935 = vmatpush.msra.mxu0 %v4904
        %4936 = vmatmul.f32.gmra.mxu0 %v4887
        %v4937 = vpop.f32.mrf.mxu0
        %v4938 = vadd.f32 0.0, %v4937
        %4939 = vmatmul.f32.gmra.mxu0 %v4888
        %v4940 = vpop.f32.mrf.mxu0
        %v4941 = vadd.f32 0.0, %v4940
        %4942 = vmatmul.f32.gmra.mxu0 %v4889
        %v4943 = vpop.f32.mrf.mxu0
        %v4944 = vadd.f32 0.0, %v4943
        %4945 = vmatmul.f32.gmra.mxu0 %v4890
        %v4946 = vpop.f32.mrf.mxu0
        %v4947 = vadd.f32 0.0, %v4946
        %4948 = vmatmul.f32.gmra.mxu0 %v4891
        %v4949 = vpop.f32.mrf.mxu0
        %v4950 = vadd.f32 0.0, %v4949
        %4951 = vmatmul.f32.gmra.mxu0 %v4892
        %v4952 = vpop.f32.mrf.mxu0
        %v4953 = vadd.f32 0.0, %v4952
        %4954 = vmatmul.f32.gmra.mxu0 %v4893
        %v4955 = vpop.f32.mrf.mxu0
        %v4956 = vadd.f32 0.0, %v4955
        %4957 = vmatmul.f32.gmra.mxu0 %v4894
        %v4958 = vpop.f32.mrf.mxu0
        %v4959 = vadd.f32 0.0, %v4958
        %4960 = vmatmul.f32.gmra.mxu0 %v4895
        %v4961 = vpop.f32.mrf.mxu0
        %v4962 = vadd.f32 0.0, %v4961
        %4963 = vmatmul.f32.gmra.mxu0 %v4896
        %v4964 = vpop.f32.mrf.mxu0
        %v4965 = vadd.f32 0.0, %v4964
        %4966 = vmatmul.f32.gmra.mxu0 %v4897
        %v4967 = vpop.f32.mrf.mxu0
        %v4968 = vadd.f32 0.0, %v4967
        %4969 = vmatmul.f32.gmra.mxu0 %v4898
        %v4970 = vpop.f32.mrf.mxu0
        %v4971 = vadd.f32 0.0, %v4970
        %4972 = vmatmul.f32.gmra.mxu0 %v4899
        %v4973 = vpop.f32.mrf.mxu0
        %v4974 = vadd.f32 0.0, %v4973
        %4975 = vmatmul.f32.gmra.mxu0 %v4900
        %v4976 = vpop.f32.mrf.mxu0
        %v4977 = vadd.f32 0.0, %v4976
        %4978 = vmatmul.f32.gmra.mxu0 %v4901
        %v4979 = vpop.f32.mrf.mxu0
        %v4980 = vadd.f32 0.0, %v4979
        %4981 = vmatmul.f32.gmra.mxu0 %v4902
        %v4982 = vpop.f32.mrf.mxu0
        %v4983 = vadd.f32 0.0, %v4982
        %4984 = vdwg.mxu0
        %v4985 = vadd.f32 %v4554, %v4938
        %v4986 = vadd.f32 %v4555, %v4941
        %v4987 = vadd.f32 %v4556, %v4944
        %v4988 = vadd.f32 %v4557, %v4947
        %v4989 = vadd.f32 %v4558, %v4950
        %v4990 = vadd.f32 %v4559, %v4953
        %v4991 = vadd.f32 %v4560, %v4956
        %v4992 = vadd.f32 %v4561, %v4959
        %v4993 = vadd.f32 %v4562, %v4962
        %v4994 = vadd.f32 %v4563, %v4965
        %v4995 = vadd.f32 %v4564, %v4968
        %v4996 = vadd.f32 %v4565, %v4971
        %v4997 = vadd.f32 %v4566, %v4974
        %v4998 = vadd.f32 %v4567, %v4977
        %v4999 = vadd.f32 %v4568, %v4980
        %v5000 = vadd.f32 %v4569, %v4983
        %s5001 = scalar_lea.vmem [#allocation7], 1280
        %v5002 = vld [vmem:[%s5001] sm:$0xff]
        %v5003 = vld [vmem:[%s5001 + $0x8] sm:$0xff]
        %v5004 = vld [vmem:[%s5001 + $0x10] sm:$0xff]
        %v5005 = vld [vmem:[%s5001 + $0x18] sm:$0xff]
        %v5006 = vld [vmem:[%s5001 + $0x20] sm:$0xff]
        %v5007 = vld [vmem:[%s5001 + $0x28] sm:$0xff]
        %v5008 = vld [vmem:[%s5001 + $0x30] sm:$0xff]
        %v5009 = vld [vmem:[%s5001 + $0x38] sm:$0xff]
        %v5010 = vld [vmem:[%s5001 + $0x40] sm:$0xff]
        %v5011 = vld [vmem:[%s5001 + $0x48] sm:$0xff]
        %v5012 = vld [vmem:[%s5001 + $0x50] sm:$0xff]
        %v5013 = vld [vmem:[%s5001 + $0x58] sm:$0xff]
        %v5014 = vld [vmem:[%s5001 + $0x60] sm:$0xff]
        %v5015 = vld [vmem:[%s5001 + $0x68] sm:$0xff]
        %v5016 = vld [vmem:[%s5001 + $0x70] sm:$0xff]
        %v5017 = vld [vmem:[%s5001 + $0x78] sm:$0xff]
        %s5018 = scalar_lea.vmem %s492, 1280 [#allocation5]
        %v5019 = vld [vmem:[%s5018] sm:$0xff]
        %v5020 = vld [vmem:[%s5018 + $0x8] sm:$0xff]
        %v5021 = vld [vmem:[%s5018 + $0x10] sm:$0xff]
        %v5022 = vld [vmem:[%s5018 + $0x18] sm:$0xff]
        %v5023 = vld [vmem:[%s5018 + $0x20] sm:$0xff]
        %v5024 = vld [vmem:[%s5018 + $0x28] sm:$0xff]
        %v5025 = vld [vmem:[%s5018 + $0x30] sm:$0xff]
        %v5026 = vld [vmem:[%s5018 + $0x38] sm:$0xff]
        %v5027 = vld [vmem:[%s5018 + $0x40] sm:$0xff]
        %v5028 = vld [vmem:[%s5018 + $0x48] sm:$0xff]
        %v5029 = vld [vmem:[%s5018 + $0x50] sm:$0xff]
        %v5030 = vld [vmem:[%s5018 + $0x58] sm:$0xff]
        %v5031 = vld [vmem:[%s5018 + $0x60] sm:$0xff]
        %v5032 = vld [vmem:[%s5018 + $0x68] sm:$0xff]
        %v5033 = vld [vmem:[%s5018 + $0x70] sm:$0xff]
        %v5034 = vld [vmem:[%s5018 + $0x78] sm:$0xff]
        %5035 = vmatpush.msra.mxu0 %v5017
        %5036 = vmatpush.msra.mxu0 %v5016
        %5037 = vmatpush.msra.mxu0 %v5015
        %5038 = vmatpush.msra.mxu0 %v5014
        %5039 = vmatpush.msra.mxu0 %v5013
        %5040 = vmatpush.msra.mxu0 %v5012
        %5041 = vmatpush.msra.mxu0 %v5011
        %5042 = vmatpush.msra.mxu0 %v5010
        %5043 = vmatpush.msra.mxu0 %v5009
        %5044 = vmatpush.msra.mxu0 %v5008
        %5045 = vmatpush.msra.mxu0 %v5007
        %5046 = vmatpush.msra.mxu0 %v5006
        %5047 = vmatpush.msra.mxu0 %v5005
        %5048 = vmatpush.msra.mxu0 %v5004
        %5049 = vmatpush.msra.mxu0 %v5003
        %5050 = vmatpush.msra.mxu0 %v5002
        %5051 = vmatmul.f32.gmra.mxu0 %v578
        %v5052 = vpop.f32.mrf.mxu0
        %v5053 = vadd.f32 %v5019, %v5052
        %5054 = vmatmul.f32.gmra.mxu0 %v579
        %v5055 = vpop.f32.mrf.mxu0
        %v5056 = vadd.f32 %v5020, %v5055
        %5057 = vmatmul.f32.gmra.mxu0 %v580
        %v5058 = vpop.f32.mrf.mxu0
        %v5059 = vadd.f32 %v5021, %v5058
        %5060 = vmatmul.f32.gmra.mxu0 %v581
        %v5061 = vpop.f32.mrf.mxu0
        %v5062 = vadd.f32 %v5022, %v5061
        %5063 = vmatmul.f32.gmra.mxu0 %v582
        %v5064 = vpop.f32.mrf.mxu0
        %v5065 = vadd.f32 %v5023, %v5064
        %5066 = vmatmul.f32.gmra.mxu0 %v583
        %v5067 = vpop.f32.mrf.mxu0
        %v5068 = vadd.f32 %v5024, %v5067
        %5069 = vmatmul.f32.gmra.mxu0 %v584
        %v5070 = vpop.f32.mrf.mxu0
        %v5071 = vadd.f32 %v5025, %v5070
        %5072 = vmatmul.f32.gmra.mxu0 %v585
        %v5073 = vpop.f32.mrf.mxu0
        %v5074 = vadd.f32 %v5026, %v5073
        %5075 = vmatmul.f32.gmra.mxu0 %v586
        %v5076 = vpop.f32.mrf.mxu0
        %v5077 = vadd.f32 %v5027, %v5076
        %5078 = vmatmul.f32.gmra.mxu0 %v587
        %v5079 = vpop.f32.mrf.mxu0
        %v5080 = vadd.f32 %v5028, %v5079
        %5081 = vmatmul.f32.gmra.mxu0 %v588
        %v5082 = vpop.f32.mrf.mxu0
        %v5083 = vadd.f32 %v5029, %v5082
        %5084 = vmatmul.f32.gmra.mxu0 %v589
        %v5085 = vpop.f32.mrf.mxu0
        %v5086 = vadd.f32 %v5030, %v5085
        %5087 = vmatmul.f32.gmra.mxu0 %v590
        %v5088 = vpop.f32.mrf.mxu0
        %v5089 = vadd.f32 %v5031, %v5088
        %5090 = vmatmul.f32.gmra.mxu0 %v591
        %v5091 = vpop.f32.mrf.mxu0
        %v5092 = vadd.f32 %v5032, %v5091
        %5093 = vmatmul.f32.gmra.mxu0 %v592
        %v5094 = vpop.f32.mrf.mxu0
        %v5095 = vadd.f32 %v5033, %v5094
        %5096 = vmatmul.f32.gmra.mxu0 %v593
        %v5097 = vpop.f32.mrf.mxu0
        %v5098 = vadd.f32 %v5034, %v5097
        %5099 = vdwg.mxu0
        %s5100 = scalar_lea.vmem [#allocation13], 20
        %v5101 = vld [vmem:[%s5100] sm:$0x3]
        %v5103 = vperm.slane %v5101, 0
        %v5104 = vperm.slane %v5101, 1
        %5107 = vmatpush.msra.mxu0 %v709
        %5108 = vmatpush.msra.mxu0 %v707
        %5109 = vmatpush.msra.mxu0 %v705
        %5110 = vmatpush.msra.mxu0 %v703
        %5111 = vmatpush.msra.mxu0 %v701
        %5112 = vmatpush.msra.mxu0 %v699
        %5113 = vmatpush.msra.mxu0 %v697
        %5114 = vmatpush.msra.mxu0 %v695
        %5115 = vmatpush.msra.mxu0 %v693
        %5116 = vmatpush.msra.mxu0 %v691
        %5117 = vmatpush.msra.mxu0 %v689
        %5118 = vmatpush.msra.mxu0 %v687
        %5119 = vmatpush.msra.mxu0 %v685
        %5120 = vmatpush.msra.mxu0 %v683
        %5121 = vmatpush.msra.mxu0 %v681
        %5122 = vmatpush.msra.mxu0 %v679
        %5123 = vmatmul.f32.gmra.mxu0 %v5053
        %v5124 = vpop.f32.mrf.mxu0
        %v5125 = vadd.f32 %v5103, %v5124
        %5126 = vmatmul.f32.gmra.mxu0 %v5056
        %v5127 = vpop.f32.mrf.mxu0
        %v5128 = vadd.f32 %v5103, %v5127
        %5129 = vmatmul.f32.gmra.mxu0 %v5059
        %v5130 = vpop.f32.mrf.mxu0
        %v5131 = vadd.f32 %v5103, %v5130
        %5132 = vmatmul.f32.gmra.mxu0 %v5062
        %v5133 = vpop.f32.mrf.mxu0
        %v5134 = vadd.f32 %v5103, %v5133
        %5135 = vmatmul.f32.gmra.mxu0 %v5065
        %v5136 = vpop.f32.mrf.mxu0
        %v5137 = vadd.f32 %v5103, %v5136
        %5138 = vmatmul.f32.gmra.mxu0 %v5068
        %v5139 = vpop.f32.mrf.mxu0
        %v5140 = vadd.f32 %v5103, %v5139
        %5141 = vmatmul.f32.gmra.mxu0 %v5071
        %v5142 = vpop.f32.mrf.mxu0
        %v5143 = vadd.f32 %v5103, %v5142
        %5144 = vmatmul.f32.gmra.mxu0 %v5074
        %v5145 = vpop.f32.mrf.mxu0
        %v5146 = vadd.f32 %v5103, %v5145
        %5147 = vmatmul.f32.gmra.mxu0 %v5077
        %v5148 = vpop.f32.mrf.mxu0
        %v5149 = vadd.f32 %v5103, %v5148
        %5150 = vmatmul.f32.gmra.mxu0 %v5080
        %v5151 = vpop.f32.mrf.mxu0
        %v5152 = vadd.f32 %v5103, %v5151
        %5153 = vmatmul.f32.gmra.mxu0 %v5083
        %v5154 = vpop.f32.mrf.mxu0
        %v5155 = vadd.f32 %v5103, %v5154
        %5156 = vmatmul.f32.gmra.mxu0 %v5086
        %v5157 = vpop.f32.mrf.mxu0
        %v5158 = vadd.f32 %v5103, %v5157
        %5159 = vmatmul.f32.gmra.mxu0 %v5089
        %v5160 = vpop.f32.mrf.mxu0
        %v5161 = vadd.f32 %v5103, %v5160
        %5162 = vmatmul.f32.gmra.mxu0 %v5092
        %v5163 = vpop.f32.mrf.mxu0
        %v5164 = vadd.f32 %v5103, %v5163
        %5165 = vmatmul.f32.gmra.mxu0 %v5095
        %v5166 = vpop.f32.mrf.mxu0
        %v5167 = vadd.f32 %v5103, %v5166
        %5168 = vmatmul.f32.gmra.mxu0 %v5098
        %v5169 = vpop.f32.mrf.mxu0
        %v5170 = vadd.f32 %v5103, %v5169
        %5171 = vdwg.mxu0
        %5172 = vmatpush.msra.mxu0 %v710
        %5173 = vmatpush.msra.mxu0 %v708
        %5174 = vmatpush.msra.mxu0 %v706
        %5175 = vmatpush.msra.mxu0 %v704
        %5176 = vmatpush.msra.mxu0 %v702
        %5177 = vmatpush.msra.mxu0 %v700
        %5178 = vmatpush.msra.mxu0 %v698
        %5179 = vmatpush.msra.mxu0 %v696
        %5180 = vmatpush.msra.mxu0 %v694
        %5181 = vmatpush.msra.mxu0 %v692
        %5182 = vmatpush.msra.mxu0 %v690
        %5183 = vmatpush.msra.mxu0 %v688
        %5184 = vmatpush.msra.mxu0 %v686
        %5185 = vmatpush.msra.mxu0 %v684
        %5186 = vmatpush.msra.mxu0 %v682
        %5187 = vmatpush.msra.mxu0 %v680
        %5188 = vmatmul.f32.gmra.mxu0 %v5053
        %v5189 = vpop.f32.mrf.mxu0
        %v5190 = vadd.f32 %v5104, %v5189
        %5191 = vmatmul.f32.gmra.mxu0 %v5056
        %v5192 = vpop.f32.mrf.mxu0
        %v5193 = vadd.f32 %v5104, %v5192
        %5194 = vmatmul.f32.gmra.mxu0 %v5059
        %v5195 = vpop.f32.mrf.mxu0
        %v5196 = vadd.f32 %v5104, %v5195
        %5197 = vmatmul.f32.gmra.mxu0 %v5062
        %v5198 = vpop.f32.mrf.mxu0
        %v5199 = vadd.f32 %v5104, %v5198
        %5200 = vmatmul.f32.gmra.mxu0 %v5065
        %v5201 = vpop.f32.mrf.mxu0
        %v5202 = vadd.f32 %v5104, %v5201
        %5203 = vmatmul.f32.gmra.mxu0 %v5068
        %v5204 = vpop.f32.mrf.mxu0
        %v5205 = vadd.f32 %v5104, %v5204
        %5206 = vmatmul.f32.gmra.mxu0 %v5071
        %v5207 = vpop.f32.mrf.mxu0
        %v5208 = vadd.f32 %v5104, %v5207
        %5209 = vmatmul.f32.gmra.mxu0 %v5074
        %v5210 = vpop.f32.mrf.mxu0
        %v5211 = vadd.f32 %v5104, %v5210
        %5212 = vmatmul.f32.gmra.mxu0 %v5077
        %v5213 = vpop.f32.mrf.mxu0
        %v5214 = vadd.f32 %v5104, %v5213
        %5215 = vmatmul.f32.gmra.mxu0 %v5080
        %v5216 = vpop.f32.mrf.mxu0
        %v5217 = vadd.f32 %v5104, %v5216
        %5218 = vmatmul.f32.gmra.mxu0 %v5083
        %v5219 = vpop.f32.mrf.mxu0
        %v5220 = vadd.f32 %v5104, %v5219
        %5221 = vmatmul.f32.gmra.mxu0 %v5086
        %v5222 = vpop.f32.mrf.mxu0
        %v5223 = vadd.f32 %v5104, %v5222
        %5224 = vmatmul.f32.gmra.mxu0 %v5089
        %v5225 = vpop.f32.mrf.mxu0
        %v5226 = vadd.f32 %v5104, %v5225
        %5227 = vmatmul.f32.gmra.mxu0 %v5092
        %v5228 = vpop.f32.mrf.mxu0
        %v5229 = vadd.f32 %v5104, %v5228
        %5230 = vmatmul.f32.gmra.mxu0 %v5095
        %v5231 = vpop.f32.mrf.mxu0
        %v5232 = vadd.f32 %v5104, %v5231
        %5233 = vmatmul.f32.gmra.mxu0 %v5098
        %v5234 = vpop.f32.mrf.mxu0
        %v5235 = vadd.f32 %v5104, %v5234
        %5236 = vdwg.mxu0
        %v5237 = vmul.f32 %v5125, %v632
        %v5238 = vmul.f32 %v5128, %v635
        %v5239 = vmul.f32 %v5131, %v638
        %v5240 = vmul.f32 %v5134, %v641
        %v5241 = vmul.f32 %v5137, %v644
        %v5242 = vmul.f32 %v5140, %v647
        %v5243 = vmul.f32 %v5143, %v650
        %v5244 = vmul.f32 %v5146, %v653
        %v5245 = vmul.f32 %v5149, %v656
        %v5246 = vmul.f32 %v5152, %v659
        %v5247 = vmul.f32 %v5155, %v662
        %v5248 = vmul.f32 %v5158, %v665
        %v5249 = vmul.f32 %v5161, %v668
        %v5250 = vmul.f32 %v5164, %v671
        %v5251 = vmul.f32 %v5167, %v674
        %v5252 = vmul.f32 %v5170, %v677
        %5253 = vmatpush.msra.mxu0 %v726
        %5254 = vmatpush.msra.mxu0 %v725
        %5255 = vmatpush.msra.mxu0 %v724
        %5256 = vmatpush.msra.mxu0 %v723
        %5257 = vmatpush.msra.mxu0 %v722
        %5258 = vmatpush.msra.mxu0 %v721
        %5259 = vmatpush.msra.mxu0 %v720
        %5260 = vmatpush.msra.mxu0 %v719
        %5261 = vmatpush.msra.mxu0 %v718
        %5262 = vmatpush.msra.mxu0 %v717
        %5263 = vmatpush.msra.mxu0 %v716
        %5264 = vmatpush.msra.mxu0 %v715
        %5265 = vmatpush.msra.mxu0 %v714
        %5266 = vmatpush.msra.mxu0 %v713
        %5267 = vmatpush.msra.mxu0 %v712
        %5268 = vmatpush.msra.mxu0 %v711
        %5269 = vmatmul.f32.gmra.mxu0 %v5237
        %v5270 = vpop.f32.mrf.mxu0
        %v5271 = vadd.f32 0.0, %v5270
        %5272 = vmatmul.f32.gmra.mxu0 %v5238
        %v5273 = vpop.f32.mrf.mxu0
        %v5274 = vadd.f32 0.0, %v5273
        %5275 = vmatmul.f32.gmra.mxu0 %v5239
        %v5276 = vpop.f32.mrf.mxu0
        %v5277 = vadd.f32 0.0, %v5276
        %5278 = vmatmul.f32.gmra.mxu0 %v5240
        %v5279 = vpop.f32.mrf.mxu0
        %v5280 = vadd.f32 0.0, %v5279
        %5281 = vmatmul.f32.gmra.mxu0 %v5241
        %v5282 = vpop.f32.mrf.mxu0
        %v5283 = vadd.f32 0.0, %v5282
        %5284 = vmatmul.f32.gmra.mxu0 %v5242
        %v5285 = vpop.f32.mrf.mxu0
        %v5286 = vadd.f32 0.0, %v5285
        %5287 = vmatmul.f32.gmra.mxu0 %v5243
        %v5288 = vpop.f32.mrf.mxu0
        %v5289 = vadd.f32 0.0, %v5288
        %5290 = vmatmul.f32.gmra.mxu0 %v5244
        %v5291 = vpop.f32.mrf.mxu0
        %v5292 = vadd.f32 0.0, %v5291
        %5293 = vmatmul.f32.gmra.mxu0 %v5245
        %v5294 = vpop.f32.mrf.mxu0
        %v5295 = vadd.f32 0.0, %v5294
        %5296 = vmatmul.f32.gmra.mxu0 %v5246
        %v5297 = vpop.f32.mrf.mxu0
        %v5298 = vadd.f32 0.0, %v5297
        %5299 = vmatmul.f32.gmra.mxu0 %v5247
        %v5300 = vpop.f32.mrf.mxu0
        %v5301 = vadd.f32 0.0, %v5300
        %5302 = vmatmul.f32.gmra.mxu0 %v5248
        %v5303 = vpop.f32.mrf.mxu0
        %v5304 = vadd.f32 0.0, %v5303
        %5305 = vmatmul.f32.gmra.mxu0 %v5249
        %v5306 = vpop.f32.mrf.mxu0
        %v5307 = vadd.f32 0.0, %v5306
        %5308 = vmatmul.f32.gmra.mxu0 %v5250
        %v5309 = vpop.f32.mrf.mxu0
        %v5310 = vadd.f32 0.0, %v5309
        %5311 = vmatmul.f32.gmra.mxu0 %v5251
        %v5312 = vpop.f32.mrf.mxu0
        %v5313 = vadd.f32 0.0, %v5312
        %5314 = vmatmul.f32.gmra.mxu0 %v5252
        %v5315 = vpop.f32.mrf.mxu0
        %v5316 = vadd.f32 0.0, %v5315
        %5317 = vdwg.mxu0
        %v5318 = vmul.f32 %v5190, %v5271
        %v5319 = vmul.f32 %v5193, %v5274
        %v5320 = vmul.f32 %v5196, %v5277
        %v5321 = vmul.f32 %v5199, %v5280
        %v5322 = vmul.f32 %v5202, %v5283
        %v5323 = vmul.f32 %v5205, %v5286
        %v5324 = vmul.f32 %v5208, %v5289
        %v5325 = vmul.f32 %v5211, %v5292
        %v5326 = vmul.f32 %v5214, %v5295
        %v5327 = vmul.f32 %v5217, %v5298
        %v5328 = vmul.f32 %v5220, %v5301
        %v5329 = vmul.f32 %v5223, %v5304
        %v5330 = vmul.f32 %v5226, %v5307
        %v5331 = vmul.f32 %v5229, %v5310
        %v5332 = vmul.f32 %v5232, %v5313
        %v5333 = vmul.f32 %v5235, %v5316
        %s5334 = scalar_lea.vmem [#allocation14], 1280
        %v5335 = vld [vmem:[%s5334] sm:$0xff]
        %v5336 = vld [vmem:[%s5334 + $0x8] sm:$0xff]
        %v5337 = vld [vmem:[%s5334 + $0x10] sm:$0xff]
        %v5338 = vld [vmem:[%s5334 + $0x18] sm:$0xff]
        %v5339 = vld [vmem:[%s5334 + $0x20] sm:$0xff]
        %v5340 = vld [vmem:[%s5334 + $0x28] sm:$0xff]
        %v5341 = vld [vmem:[%s5334 + $0x30] sm:$0xff]
        %v5342 = vld [vmem:[%s5334 + $0x38] sm:$0xff]
        %v5343 = vld [vmem:[%s5334 + $0x40] sm:$0xff]
        %v5344 = vld [vmem:[%s5334 + $0x48] sm:$0xff]
        %v5345 = vld [vmem:[%s5334 + $0x50] sm:$0xff]
        %v5346 = vld [vmem:[%s5334 + $0x58] sm:$0xff]
        %v5347 = vld [vmem:[%s5334 + $0x60] sm:$0xff]
        %v5348 = vld [vmem:[%s5334 + $0x68] sm:$0xff]
        %v5349 = vld [vmem:[%s5334 + $0x70] sm:$0xff]
        %v5350 = vld [vmem:[%s5334 + $0x78] sm:$0xff]
        %5351 = vmatpush.msra.mxu0 %v5350
        %5352 = vmatpush.msra.mxu0 %v5349
        %5353 = vmatpush.msra.mxu0 %v5348
        %5354 = vmatpush.msra.mxu0 %v5347
        %5355 = vmatpush.msra.mxu0 %v5346
        %5356 = vmatpush.msra.mxu0 %v5345
        %5357 = vmatpush.msra.mxu0 %v5344
        %5358 = vmatpush.msra.mxu0 %v5343
        %5359 = vmatpush.msra.mxu0 %v5342
        %5360 = vmatpush.msra.mxu0 %v5341
        %5361 = vmatpush.msra.mxu0 %v5340
        %5362 = vmatpush.msra.mxu0 %v5339
        %5363 = vmatpush.msra.mxu0 %v5338
        %5364 = vmatpush.msra.mxu0 %v5337
        %5365 = vmatpush.msra.mxu0 %v5336
        %5366 = vmatpush.msra.mxu0 %v5335
        %5367 = vmatmul.f32.gmra.mxu0 %v5318
        %v5368 = vpop.f32.mrf.mxu0
        %v5369 = vadd.f32 0.0, %v5368
        %5370 = vmatmul.f32.gmra.mxu0 %v5319
        %v5371 = vpop.f32.mrf.mxu0
        %v5372 = vadd.f32 0.0, %v5371
        %5373 = vmatmul.f32.gmra.mxu0 %v5320
        %v5374 = vpop.f32.mrf.mxu0
        %v5375 = vadd.f32 0.0, %v5374
        %5376 = vmatmul.f32.gmra.mxu0 %v5321
        %v5377 = vpop.f32.mrf.mxu0
        %v5378 = vadd.f32 0.0, %v5377
        %5379 = vmatmul.f32.gmra.mxu0 %v5322
        %v5380 = vpop.f32.mrf.mxu0
        %v5381 = vadd.f32 0.0, %v5380
        %5382 = vmatmul.f32.gmra.mxu0 %v5323
        %v5383 = vpop.f32.mrf.mxu0
        %v5384 = vadd.f32 0.0, %v5383
        %5385 = vmatmul.f32.gmra.mxu0 %v5324
        %v5386 = vpop.f32.mrf.mxu0
        %v5387 = vadd.f32 0.0, %v5386
        %5388 = vmatmul.f32.gmra.mxu0 %v5325
        %v5389 = vpop.f32.mrf.mxu0
        %v5390 = vadd.f32 0.0, %v5389
        %5391 = vmatmul.f32.gmra.mxu0 %v5326
        %v5392 = vpop.f32.mrf.mxu0
        %v5393 = vadd.f32 0.0, %v5392
        %5394 = vmatmul.f32.gmra.mxu0 %v5327
        %v5395 = vpop.f32.mrf.mxu0
        %v5396 = vadd.f32 0.0, %v5395
        %5397 = vmatmul.f32.gmra.mxu0 %v5328
        %v5398 = vpop.f32.mrf.mxu0
        %v5399 = vadd.f32 0.0, %v5398
        %5400 = vmatmul.f32.gmra.mxu0 %v5329
        %v5401 = vpop.f32.mrf.mxu0
        %v5402 = vadd.f32 0.0, %v5401
        %5403 = vmatmul.f32.gmra.mxu0 %v5330
        %v5404 = vpop.f32.mrf.mxu0
        %v5405 = vadd.f32 0.0, %v5404
        %5406 = vmatmul.f32.gmra.mxu0 %v5331
        %v5407 = vpop.f32.mrf.mxu0
        %v5408 = vadd.f32 0.0, %v5407
        %5409 = vmatmul.f32.gmra.mxu0 %v5332
        %v5410 = vpop.f32.mrf.mxu0
        %v5411 = vadd.f32 0.0, %v5410
        %5412 = vmatmul.f32.gmra.mxu0 %v5333
        %v5413 = vpop.f32.mrf.mxu0
        %v5414 = vadd.f32 0.0, %v5413
        %5415 = vdwg.mxu0
        %v5416 = vadd.f32 %v4985, %v5369
        %v5417 = vadd.f32 %v4986, %v5372
        %v5418 = vadd.f32 %v4987, %v5375
        %v5419 = vadd.f32 %v4988, %v5378
        %v5420 = vadd.f32 %v4989, %v5381
        %v5421 = vadd.f32 %v4990, %v5384
        %v5422 = vadd.f32 %v4991, %v5387
        %v5423 = vadd.f32 %v4992, %v5390
        %v5424 = vadd.f32 %v4993, %v5393
        %v5425 = vadd.f32 %v4994, %v5396
        %v5426 = vadd.f32 %v4995, %v5399
        %v5427 = vadd.f32 %v4996, %v5402
        %v5428 = vadd.f32 %v4997, %v5405
        %v5429 = vadd.f32 %v4998, %v5408
        %v5430 = vadd.f32 %v4999, %v5411
        %v5431 = vadd.f32 %v5000, %v5414
        %s5432 = scalar_lea.vmem [#allocation7], 1408
        %v5433 = vld [vmem:[%s5432] sm:$0xff]
        %v5434 = vld [vmem:[%s5432 + $0x8] sm:$0xff]
        %v5435 = vld [vmem:[%s5432 + $0x10] sm:$0xff]
        %v5436 = vld [vmem:[%s5432 + $0x18] sm:$0xff]
        %v5437 = vld [vmem:[%s5432 + $0x20] sm:$0xff]
        %v5438 = vld [vmem:[%s5432 + $0x28] sm:$0xff]
        %v5439 = vld [vmem:[%s5432 + $0x30] sm:$0xff]
        %v5440 = vld [vmem:[%s5432 + $0x38] sm:$0xff]
        %v5441 = vld [vmem:[%s5432 + $0x40] sm:$0xff]
        %v5442 = vld [vmem:[%s5432 + $0x48] sm:$0xff]
        %v5443 = vld [vmem:[%s5432 + $0x50] sm:$0xff]
        %v5444 = vld [vmem:[%s5432 + $0x58] sm:$0xff]
        %v5445 = vld [vmem:[%s5432 + $0x60] sm:$0xff]
        %v5446 = vld [vmem:[%s5432 + $0x68] sm:$0xff]
        %v5447 = vld [vmem:[%s5432 + $0x70] sm:$0xff]
        %v5448 = vld [vmem:[%s5432 + $0x78] sm:$0xff]
        %s5449 = scalar_lea.vmem %s492, 1408 [#allocation5]
        %v5450 = vld [vmem:[%s5449] sm:$0xff]
        %v5451 = vld [vmem:[%s5449 + $0x8] sm:$0xff]
        %v5452 = vld [vmem:[%s5449 + $0x10] sm:$0xff]
        %v5453 = vld [vmem:[%s5449 + $0x18] sm:$0xff]
        %v5454 = vld [vmem:[%s5449 + $0x20] sm:$0xff]
        %v5455 = vld [vmem:[%s5449 + $0x28] sm:$0xff]
        %v5456 = vld [vmem:[%s5449 + $0x30] sm:$0xff]
        %v5457 = vld [vmem:[%s5449 + $0x38] sm:$0xff]
        %v5458 = vld [vmem:[%s5449 + $0x40] sm:$0xff]
        %v5459 = vld [vmem:[%s5449 + $0x48] sm:$0xff]
        %v5460 = vld [vmem:[%s5449 + $0x50] sm:$0xff]
        %v5461 = vld [vmem:[%s5449 + $0x58] sm:$0xff]
        %v5462 = vld [vmem:[%s5449 + $0x60] sm:$0xff]
        %v5463 = vld [vmem:[%s5449 + $0x68] sm:$0xff]
        %v5464 = vld [vmem:[%s5449 + $0x70] sm:$0xff]
        %v5465 = vld [vmem:[%s5449 + $0x78] sm:$0xff]
        %5466 = vmatpush.msra.mxu0 %v5448
        %5467 = vmatpush.msra.mxu0 %v5447
        %5468 = vmatpush.msra.mxu0 %v5446
        %5469 = vmatpush.msra.mxu0 %v5445
        %5470 = vmatpush.msra.mxu0 %v5444
        %5471 = vmatpush.msra.mxu0 %v5443
        %5472 = vmatpush.msra.mxu0 %v5442
        %5473 = vmatpush.msra.mxu0 %v5441
        %5474 = vmatpush.msra.mxu0 %v5440
        %5475 = vmatpush.msra.mxu0 %v5439
        %5476 = vmatpush.msra.mxu0 %v5438
        %5477 = vmatpush.msra.mxu0 %v5437
        %5478 = vmatpush.msra.mxu0 %v5436
        %5479 = vmatpush.msra.mxu0 %v5435
        %5480 = vmatpush.msra.mxu0 %v5434
        %5481 = vmatpush.msra.mxu0 %v5433
        %5482 = vmatmul.f32.gmra.mxu0 %v578
        %v5483 = vpop.f32.mrf.mxu0
        %v5484 = vadd.f32 %v5450, %v5483
        %5485 = vmatmul.f32.gmra.mxu0 %v579
        %v5486 = vpop.f32.mrf.mxu0
        %v5487 = vadd.f32 %v5451, %v5486
        %5488 = vmatmul.f32.gmra.mxu0 %v580
        %v5489 = vpop.f32.mrf.mxu0
        %v5490 = vadd.f32 %v5452, %v5489
        %5491 = vmatmul.f32.gmra.mxu0 %v581
        %v5492 = vpop.f32.mrf.mxu0
        %v5493 = vadd.f32 %v5453, %v5492
        %5494 = vmatmul.f32.gmra.mxu0 %v582
        %v5495 = vpop.f32.mrf.mxu0
        %v5496 = vadd.f32 %v5454, %v5495
        %5497 = vmatmul.f32.gmra.mxu0 %v583
        %v5498 = vpop.f32.mrf.mxu0
        %v5499 = vadd.f32 %v5455, %v5498
        %5500 = vmatmul.f32.gmra.mxu0 %v584
        %v5501 = vpop.f32.mrf.mxu0
        %v5502 = vadd.f32 %v5456, %v5501
        %5503 = vmatmul.f32.gmra.mxu0 %v585
        %v5504 = vpop.f32.mrf.mxu0
        %v5505 = vadd.f32 %v5457, %v5504
        %5506 = vmatmul.f32.gmra.mxu0 %v586
        %v5507 = vpop.f32.mrf.mxu0
        %v5508 = vadd.f32 %v5458, %v5507
        %5509 = vmatmul.f32.gmra.mxu0 %v587
        %v5510 = vpop.f32.mrf.mxu0
        %v5511 = vadd.f32 %v5459, %v5510
        %5512 = vmatmul.f32.gmra.mxu0 %v588
        %v5513 = vpop.f32.mrf.mxu0
        %v5514 = vadd.f32 %v5460, %v5513
        %5515 = vmatmul.f32.gmra.mxu0 %v589
        %v5516 = vpop.f32.mrf.mxu0
        %v5517 = vadd.f32 %v5461, %v5516
        %5518 = vmatmul.f32.gmra.mxu0 %v590
        %v5519 = vpop.f32.mrf.mxu0
        %v5520 = vadd.f32 %v5462, %v5519
        %5521 = vmatmul.f32.gmra.mxu0 %v591
        %v5522 = vpop.f32.mrf.mxu0
        %v5523 = vadd.f32 %v5463, %v5522
        %5524 = vmatmul.f32.gmra.mxu0 %v592
        %v5525 = vpop.f32.mrf.mxu0
        %v5526 = vadd.f32 %v5464, %v5525
        %5527 = vmatmul.f32.gmra.mxu0 %v593
        %v5528 = vpop.f32.mrf.mxu0
        %v5529 = vadd.f32 %v5465, %v5528
        %5530 = vdwg.mxu0
        %s5531 = scalar_lea.vmem [#allocation13], 22
        %v5532 = vld [vmem:[%s5531] sm:$0x3]
        %v5534 = vperm.slane %v5532, 0
        %v5535 = vperm.slane %v5532, 1
        %5538 = vmatpush.msra.mxu0 %v709
        %5539 = vmatpush.msra.mxu0 %v707
        %5540 = vmatpush.msra.mxu0 %v705
        %5541 = vmatpush.msra.mxu0 %v703
        %5542 = vmatpush.msra.mxu0 %v701
        %5543 = vmatpush.msra.mxu0 %v699
        %5544 = vmatpush.msra.mxu0 %v697
        %5545 = vmatpush.msra.mxu0 %v695
        %5546 = vmatpush.msra.mxu0 %v693
        %5547 = vmatpush.msra.mxu0 %v691
        %5548 = vmatpush.msra.mxu0 %v689
        %5549 = vmatpush.msra.mxu0 %v687
        %5550 = vmatpush.msra.mxu0 %v685
        %5551 = vmatpush.msra.mxu0 %v683
        %5552 = vmatpush.msra.mxu0 %v681
        %5553 = vmatpush.msra.mxu0 %v679
        %5554 = vmatmul.f32.gmra.mxu0 %v5484
        %v5555 = vpop.f32.mrf.mxu0
        %v5556 = vadd.f32 %v5534, %v5555
        %5557 = vmatmul.f32.gmra.mxu0 %v5487
        %v5558 = vpop.f32.mrf.mxu0
        %v5559 = vadd.f32 %v5534, %v5558
        %5560 = vmatmul.f32.gmra.mxu0 %v5490
        %v5561 = vpop.f32.mrf.mxu0
        %v5562 = vadd.f32 %v5534, %v5561
        %5563 = vmatmul.f32.gmra.mxu0 %v5493
        %v5564 = vpop.f32.mrf.mxu0
        %v5565 = vadd.f32 %v5534, %v5564
        %5566 = vmatmul.f32.gmra.mxu0 %v5496
        %v5567 = vpop.f32.mrf.mxu0
        %v5568 = vadd.f32 %v5534, %v5567
        %5569 = vmatmul.f32.gmra.mxu0 %v5499
        %v5570 = vpop.f32.mrf.mxu0
        %v5571 = vadd.f32 %v5534, %v5570
        %5572 = vmatmul.f32.gmra.mxu0 %v5502
        %v5573 = vpop.f32.mrf.mxu0
        %v5574 = vadd.f32 %v5534, %v5573
        %5575 = vmatmul.f32.gmra.mxu0 %v5505
        %v5576 = vpop.f32.mrf.mxu0
        %v5577 = vadd.f32 %v5534, %v5576
        %5578 = vmatmul.f32.gmra.mxu0 %v5508
        %v5579 = vpop.f32.mrf.mxu0
        %v5580 = vadd.f32 %v5534, %v5579
        %5581 = vmatmul.f32.gmra.mxu0 %v5511
        %v5582 = vpop.f32.mrf.mxu0
        %v5583 = vadd.f32 %v5534, %v5582
        %5584 = vmatmul.f32.gmra.mxu0 %v5514
        %v5585 = vpop.f32.mrf.mxu0
        %v5586 = vadd.f32 %v5534, %v5585
        %5587 = vmatmul.f32.gmra.mxu0 %v5517
        %v5588 = vpop.f32.mrf.mxu0
        %v5589 = vadd.f32 %v5534, %v5588
        %5590 = vmatmul.f32.gmra.mxu0 %v5520
        %v5591 = vpop.f32.mrf.mxu0
        %v5592 = vadd.f32 %v5534, %v5591
        %5593 = vmatmul.f32.gmra.mxu0 %v5523
        %v5594 = vpop.f32.mrf.mxu0
        %v5595 = vadd.f32 %v5534, %v5594
        %5596 = vmatmul.f32.gmra.mxu0 %v5526
        %v5597 = vpop.f32.mrf.mxu0
        %v5598 = vadd.f32 %v5534, %v5597
        %5599 = vmatmul.f32.gmra.mxu0 %v5529
        %v5600 = vpop.f32.mrf.mxu0
        %v5601 = vadd.f32 %v5534, %v5600
        %5602 = vdwg.mxu0
        %5603 = vmatpush.msra.mxu0 %v710
        %5604 = vmatpush.msra.mxu0 %v708
        %5605 = vmatpush.msra.mxu0 %v706
        %5606 = vmatpush.msra.mxu0 %v704
        %5607 = vmatpush.msra.mxu0 %v702
        %5608 = vmatpush.msra.mxu0 %v700
        %5609 = vmatpush.msra.mxu0 %v698
        %5610 = vmatpush.msra.mxu0 %v696
        %5611 = vmatpush.msra.mxu0 %v694
        %5612 = vmatpush.msra.mxu0 %v692
        %5613 = vmatpush.msra.mxu0 %v690
        %5614 = vmatpush.msra.mxu0 %v688
        %5615 = vmatpush.msra.mxu0 %v686
        %5616 = vmatpush.msra.mxu0 %v684
        %5617 = vmatpush.msra.mxu0 %v682
        %5618 = vmatpush.msra.mxu0 %v680
        %5619 = vmatmul.f32.gmra.mxu0 %v5484
        %v5620 = vpop.f32.mrf.mxu0
        %v5621 = vadd.f32 %v5535, %v5620
        %5622 = vmatmul.f32.gmra.mxu0 %v5487
        %v5623 = vpop.f32.mrf.mxu0
        %v5624 = vadd.f32 %v5535, %v5623
        %5625 = vmatmul.f32.gmra.mxu0 %v5490
        %v5626 = vpop.f32.mrf.mxu0
        %v5627 = vadd.f32 %v5535, %v5626
        %5628 = vmatmul.f32.gmra.mxu0 %v5493
        %v5629 = vpop.f32.mrf.mxu0
        %v5630 = vadd.f32 %v5535, %v5629
        %5631 = vmatmul.f32.gmra.mxu0 %v5496
        %v5632 = vpop.f32.mrf.mxu0
        %v5633 = vadd.f32 %v5535, %v5632
        %5634 = vmatmul.f32.gmra.mxu0 %v5499
        %v5635 = vpop.f32.mrf.mxu0
        %v5636 = vadd.f32 %v5535, %v5635
        %5637 = vmatmul.f32.gmra.mxu0 %v5502
        %v5638 = vpop.f32.mrf.mxu0
        %v5639 = vadd.f32 %v5535, %v5638
        %5640 = vmatmul.f32.gmra.mxu0 %v5505
        %v5641 = vpop.f32.mrf.mxu0
        %v5642 = vadd.f32 %v5535, %v5641
        %5643 = vmatmul.f32.gmra.mxu0 %v5508
        %v5644 = vpop.f32.mrf.mxu0
        %v5645 = vadd.f32 %v5535, %v5644
        %5646 = vmatmul.f32.gmra.mxu0 %v5511
        %v5647 = vpop.f32.mrf.mxu0
        %v5648 = vadd.f32 %v5535, %v5647
        %5649 = vmatmul.f32.gmra.mxu0 %v5514
        %v5650 = vpop.f32.mrf.mxu0
        %v5651 = vadd.f32 %v5535, %v5650
        %5652 = vmatmul.f32.gmra.mxu0 %v5517
        %v5653 = vpop.f32.mrf.mxu0
        %v5654 = vadd.f32 %v5535, %v5653
        %5655 = vmatmul.f32.gmra.mxu0 %v5520
        %v5656 = vpop.f32.mrf.mxu0
        %v5657 = vadd.f32 %v5535, %v5656
        %5658 = vmatmul.f32.gmra.mxu0 %v5523
        %v5659 = vpop.f32.mrf.mxu0
        %v5660 = vadd.f32 %v5535, %v5659
        %5661 = vmatmul.f32.gmra.mxu0 %v5526
        %v5662 = vpop.f32.mrf.mxu0
        %v5663 = vadd.f32 %v5535, %v5662
        %5664 = vmatmul.f32.gmra.mxu0 %v5529
        %v5665 = vpop.f32.mrf.mxu0
        %v5666 = vadd.f32 %v5535, %v5665
        %5667 = vdwg.mxu0
        %v5668 = vmul.f32 %v5556, %v632
        %v5669 = vmul.f32 %v5559, %v635
        %v5670 = vmul.f32 %v5562, %v638
        %v5671 = vmul.f32 %v5565, %v641
        %v5672 = vmul.f32 %v5568, %v644
        %v5673 = vmul.f32 %v5571, %v647
        %v5674 = vmul.f32 %v5574, %v650
        %v5675 = vmul.f32 %v5577, %v653
        %v5676 = vmul.f32 %v5580, %v656
        %v5677 = vmul.f32 %v5583, %v659
        %v5678 = vmul.f32 %v5586, %v662
        %v5679 = vmul.f32 %v5589, %v665
        %v5680 = vmul.f32 %v5592, %v668
        %v5681 = vmul.f32 %v5595, %v671
        %v5682 = vmul.f32 %v5598, %v674
        %v5683 = vmul.f32 %v5601, %v677
        %5684 = vmatpush.msra.mxu0 %v726
        %5685 = vmatpush.msra.mxu0 %v725
        %5686 = vmatpush.msra.mxu0 %v724
        %5687 = vmatpush.msra.mxu0 %v723
        %5688 = vmatpush.msra.mxu0 %v722
        %5689 = vmatpush.msra.mxu0 %v721
        %5690 = vmatpush.msra.mxu0 %v720
        %5691 = vmatpush.msra.mxu0 %v719
        %5692 = vmatpush.msra.mxu0 %v718
        %5693 = vmatpush.msra.mxu0 %v717
        %5694 = vmatpush.msra.mxu0 %v716
        %5695 = vmatpush.msra.mxu0 %v715
        %5696 = vmatpush.msra.mxu0 %v714
        %5697 = vmatpush.msra.mxu0 %v713
        %5698 = vmatpush.msra.mxu0 %v712
        %5699 = vmatpush.msra.mxu0 %v711
        %5700 = vmatmul.f32.gmra.mxu0 %v5668
        %v5701 = vpop.f32.mrf.mxu0
        %v5702 = vadd.f32 0.0, %v5701
        %5703 = vmatmul.f32.gmra.mxu0 %v5669
        %v5704 = vpop.f32.mrf.mxu0
        %v5705 = vadd.f32 0.0, %v5704
        %5706 = vmatmul.f32.gmra.mxu0 %v5670
        %v5707 = vpop.f32.mrf.mxu0
        %v5708 = vadd.f32 0.0, %v5707
        %5709 = vmatmul.f32.gmra.mxu0 %v5671
        %v5710 = vpop.f32.mrf.mxu0
        %v5711 = vadd.f32 0.0, %v5710
        %5712 = vmatmul.f32.gmra.mxu0 %v5672
        %v5713 = vpop.f32.mrf.mxu0
        %v5714 = vadd.f32 0.0, %v5713
        %5715 = vmatmul.f32.gmra.mxu0 %v5673
        %v5716 = vpop.f32.mrf.mxu0
        %v5717 = vadd.f32 0.0, %v5716
        %5718 = vmatmul.f32.gmra.mxu0 %v5674
        %v5719 = vpop.f32.mrf.mxu0
        %v5720 = vadd.f32 0.0, %v5719
        %5721 = vmatmul.f32.gmra.mxu0 %v5675
        %v5722 = vpop.f32.mrf.mxu0
        %v5723 = vadd.f32 0.0, %v5722
        %5724 = vmatmul.f32.gmra.mxu0 %v5676
        %v5725 = vpop.f32.mrf.mxu0
        %v5726 = vadd.f32 0.0, %v5725
        %5727 = vmatmul.f32.gmra.mxu0 %v5677
        %v5728 = vpop.f32.mrf.mxu0
        %v5729 = vadd.f32 0.0, %v5728
        %5730 = vmatmul.f32.gmra.mxu0 %v5678
        %v5731 = vpop.f32.mrf.mxu0
        %v5732 = vadd.f32 0.0, %v5731
        %5733 = vmatmul.f32.gmra.mxu0 %v5679
        %v5734 = vpop.f32.mrf.mxu0
        %v5735 = vadd.f32 0.0, %v5734
        %5736 = vmatmul.f32.gmra.mxu0 %v5680
        %v5737 = vpop.f32.mrf.mxu0
        %v5738 = vadd.f32 0.0, %v5737
        %5739 = vmatmul.f32.gmra.mxu0 %v5681
        %v5740 = vpop.f32.mrf.mxu0
        %v5741 = vadd.f32 0.0, %v5740
        %5742 = vmatmul.f32.gmra.mxu0 %v5682
        %v5743 = vpop.f32.mrf.mxu0
        %v5744 = vadd.f32 0.0, %v5743
        %5745 = vmatmul.f32.gmra.mxu0 %v5683
        %v5746 = vpop.f32.mrf.mxu0
        %v5747 = vadd.f32 0.0, %v5746
        %5748 = vdwg.mxu0
        %v5749 = vmul.f32 %v5621, %v5702
        %v5750 = vmul.f32 %v5624, %v5705
        %v5751 = vmul.f32 %v5627, %v5708
        %v5752 = vmul.f32 %v5630, %v5711
        %v5753 = vmul.f32 %v5633, %v5714
        %v5754 = vmul.f32 %v5636, %v5717
        %v5755 = vmul.f32 %v5639, %v5720
        %v5756 = vmul.f32 %v5642, %v5723
        %v5757 = vmul.f32 %v5645, %v5726
        %v5758 = vmul.f32 %v5648, %v5729
        %v5759 = vmul.f32 %v5651, %v5732
        %v5760 = vmul.f32 %v5654, %v5735
        %v5761 = vmul.f32 %v5657, %v5738
        %v5762 = vmul.f32 %v5660, %v5741
        %v5763 = vmul.f32 %v5663, %v5744
        %v5764 = vmul.f32 %v5666, %v5747
        %s5765 = scalar_lea.vmem [#allocation14], 1408
        %v5766 = vld [vmem:[%s5765] sm:$0xff]
        %v5767 = vld [vmem:[%s5765 + $0x8] sm:$0xff]
        %v5768 = vld [vmem:[%s5765 + $0x10] sm:$0xff]
        %v5769 = vld [vmem:[%s5765 + $0x18] sm:$0xff]
        %v5770 = vld [vmem:[%s5765 + $0x20] sm:$0xff]
        %v5771 = vld [vmem:[%s5765 + $0x28] sm:$0xff]
        %v5772 = vld [vmem:[%s5765 + $0x30] sm:$0xff]
        %v5773 = vld [vmem:[%s5765 + $0x38] sm:$0xff]
        %v5774 = vld [vmem:[%s5765 + $0x40] sm:$0xff]
        %v5775 = vld [vmem:[%s5765 + $0x48] sm:$0xff]
        %v5776 = vld [vmem:[%s5765 + $0x50] sm:$0xff]
        %v5777 = vld [vmem:[%s5765 + $0x58] sm:$0xff]
        %v5778 = vld [vmem:[%s5765 + $0x60] sm:$0xff]
        %v5779 = vld [vmem:[%s5765 + $0x68] sm:$0xff]
        %v5780 = vld [vmem:[%s5765 + $0x70] sm:$0xff]
        %v5781 = vld [vmem:[%s5765 + $0x78] sm:$0xff]
        %5782 = vmatpush.msra.mxu0 %v5781
        %5783 = vmatpush.msra.mxu0 %v5780
        %5784 = vmatpush.msra.mxu0 %v5779
        %5785 = vmatpush.msra.mxu0 %v5778
        %5786 = vmatpush.msra.mxu0 %v5777
        %5787 = vmatpush.msra.mxu0 %v5776
        %5788 = vmatpush.msra.mxu0 %v5775
        %5789 = vmatpush.msra.mxu0 %v5774
        %5790 = vmatpush.msra.mxu0 %v5773
        %5791 = vmatpush.msra.mxu0 %v5772
        %5792 = vmatpush.msra.mxu0 %v5771
        %5793 = vmatpush.msra.mxu0 %v5770
        %5794 = vmatpush.msra.mxu0 %v5769
        %5795 = vmatpush.msra.mxu0 %v5768
        %5796 = vmatpush.msra.mxu0 %v5767
        %5797 = vmatpush.msra.mxu0 %v5766
        %5798 = vmatmul.f32.gmra.mxu0 %v5749
        %v5799 = vpop.f32.mrf.mxu0
        %v5800 = vadd.f32 0.0, %v5799
        %5801 = vmatmul.f32.gmra.mxu0 %v5750
        %v5802 = vpop.f32.mrf.mxu0
        %v5803 = vadd.f32 0.0, %v5802
        %5804 = vmatmul.f32.gmra.mxu0 %v5751
        %v5805 = vpop.f32.mrf.mxu0
        %v5806 = vadd.f32 0.0, %v5805
        %5807 = vmatmul.f32.gmra.mxu0 %v5752
        %v5808 = vpop.f32.mrf.mxu0
        %v5809 = vadd.f32 0.0, %v5808
        %5810 = vmatmul.f32.gmra.mxu0 %v5753
        %v5811 = vpop.f32.mrf.mxu0
        %v5812 = vadd.f32 0.0, %v5811
        %5813 = vmatmul.f32.gmra.mxu0 %v5754
        %v5814 = vpop.f32.mrf.mxu0
        %v5815 = vadd.f32 0.0, %v5814
        %5816 = vmatmul.f32.gmra.mxu0 %v5755
        %v5817 = vpop.f32.mrf.mxu0
        %v5818 = vadd.f32 0.0, %v5817
        %5819 = vmatmul.f32.gmra.mxu0 %v5756
        %v5820 = vpop.f32.mrf.mxu0
        %v5821 = vadd.f32 0.0, %v5820
        %5822 = vmatmul.f32.gmra.mxu0 %v5757
        %v5823 = vpop.f32.mrf.mxu0
        %v5824 = vadd.f32 0.0, %v5823
        %5825 = vmatmul.f32.gmra.mxu0 %v5758
        %v5826 = vpop.f32.mrf.mxu0
        %v5827 = vadd.f32 0.0, %v5826
        %5828 = vmatmul.f32.gmra.mxu0 %v5759
        %v5829 = vpop.f32.mrf.mxu0
        %v5830 = vadd.f32 0.0, %v5829
        %5831 = vmatmul.f32.gmra.mxu0 %v5760
        %v5832 = vpop.f32.mrf.mxu0
        %v5833 = vadd.f32 0.0, %v5832
        %5834 = vmatmul.f32.gmra.mxu0 %v5761
        %v5835 = vpop.f32.mrf.mxu0
        %v5836 = vadd.f32 0.0, %v5835
        %5837 = vmatmul.f32.gmra.mxu0 %v5762
        %v5838 = vpop.f32.mrf.mxu0
        %v5839 = vadd.f32 0.0, %v5838
        %5840 = vmatmul.f32.gmra.mxu0 %v5763
        %v5841 = vpop.f32.mrf.mxu0
        %v5842 = vadd.f32 0.0, %v5841
        %5843 = vmatmul.f32.gmra.mxu0 %v5764
        %v5844 = vpop.f32.mrf.mxu0
        %v5845 = vadd.f32 0.0, %v5844
        %5846 = vdwg.mxu0
        %v5847 = vadd.f32 %v5416, %v5800
        %v5848 = vadd.f32 %v5417, %v5803
        %v5849 = vadd.f32 %v5418, %v5806
        %v5850 = vadd.f32 %v5419, %v5809
        %v5851 = vadd.f32 %v5420, %v5812
        %v5852 = vadd.f32 %v5421, %v5815
        %v5853 = vadd.f32 %v5422, %v5818
        %v5854 = vadd.f32 %v5423, %v5821
        %v5855 = vadd.f32 %v5424, %v5824
        %v5856 = vadd.f32 %v5425, %v5827
        %v5857 = vadd.f32 %v5426, %v5830
        %v5858 = vadd.f32 %v5427, %v5833
        %v5859 = vadd.f32 %v5428, %v5836
        %v5860 = vadd.f32 %v5429, %v5839
        %v5861 = vadd.f32 %v5430, %v5842
        %v5862 = vadd.f32 %v5431, %v5845
        %s5863 = scalar_lea.vmem [#allocation7], 1536
        %v5864 = vld [vmem:[%s5863] sm:$0xff]
        %v5865 = vld [vmem:[%s5863 + $0x8] sm:$0xff]
        %v5866 = vld [vmem:[%s5863 + $0x10] sm:$0xff]
        %v5867 = vld [vmem:[%s5863 + $0x18] sm:$0xff]
        %v5868 = vld [vmem:[%s5863 + $0x20] sm:$0xff]
        %v5869 = vld [vmem:[%s5863 + $0x28] sm:$0xff]
        %v5870 = vld [vmem:[%s5863 + $0x30] sm:$0xff]
        %v5871 = vld [vmem:[%s5863 + $0x38] sm:$0xff]
        %v5872 = vld [vmem:[%s5863 + $0x40] sm:$0xff]
        %v5873 = vld [vmem:[%s5863 + $0x48] sm:$0xff]
        %v5874 = vld [vmem:[%s5863 + $0x50] sm:$0xff]
        %v5875 = vld [vmem:[%s5863 + $0x58] sm:$0xff]
        %v5876 = vld [vmem:[%s5863 + $0x60] sm:$0xff]
        %v5877 = vld [vmem:[%s5863 + $0x68] sm:$0xff]
        %v5878 = vld [vmem:[%s5863 + $0x70] sm:$0xff]
        %v5879 = vld [vmem:[%s5863 + $0x78] sm:$0xff]
        %s5880 = scalar_lea.vmem %s492, 1536 [#allocation5]
        %v5881 = vld [vmem:[%s5880] sm:$0xff]
        %v5882 = vld [vmem:[%s5880 + $0x8] sm:$0xff]
        %v5883 = vld [vmem:[%s5880 + $0x10] sm:$0xff]
        %v5884 = vld [vmem:[%s5880 + $0x18] sm:$0xff]
        %v5885 = vld [vmem:[%s5880 + $0x20] sm:$0xff]
        %v5886 = vld [vmem:[%s5880 + $0x28] sm:$0xff]
        %v5887 = vld [vmem:[%s5880 + $0x30] sm:$0xff]
        %v5888 = vld [vmem:[%s5880 + $0x38] sm:$0xff]
        %v5889 = vld [vmem:[%s5880 + $0x40] sm:$0xff]
        %v5890 = vld [vmem:[%s5880 + $0x48] sm:$0xff]
        %v5891 = vld [vmem:[%s5880 + $0x50] sm:$0xff]
        %v5892 = vld [vmem:[%s5880 + $0x58] sm:$0xff]
        %v5893 = vld [vmem:[%s5880 + $0x60] sm:$0xff]
        %v5894 = vld [vmem:[%s5880 + $0x68] sm:$0xff]
        %v5895 = vld [vmem:[%s5880 + $0x70] sm:$0xff]
        %v5896 = vld [vmem:[%s5880 + $0x78] sm:$0xff]
        %5897 = vmatpush.msra.mxu0 %v5879
        %5898 = vmatpush.msra.mxu0 %v5878
        %5899 = vmatpush.msra.mxu0 %v5877
        %5900 = vmatpush.msra.mxu0 %v5876
        %5901 = vmatpush.msra.mxu0 %v5875
        %5902 = vmatpush.msra.mxu0 %v5874
        %5903 = vmatpush.msra.mxu0 %v5873
        %5904 = vmatpush.msra.mxu0 %v5872
        %5905 = vmatpush.msra.mxu0 %v5871
        %5906 = vmatpush.msra.mxu0 %v5870
        %5907 = vmatpush.msra.mxu0 %v5869
        %5908 = vmatpush.msra.mxu0 %v5868
        %5909 = vmatpush.msra.mxu0 %v5867
        %5910 = vmatpush.msra.mxu0 %v5866
        %5911 = vmatpush.msra.mxu0 %v5865
        %5912 = vmatpush.msra.mxu0 %v5864
        %5913 = vmatmul.f32.gmra.mxu0 %v578
        %v5914 = vpop.f32.mrf.mxu0
        %v5915 = vadd.f32 %v5881, %v5914
        %5916 = vmatmul.f32.gmra.mxu0 %v579
        %v5917 = vpop.f32.mrf.mxu0
        %v5918 = vadd.f32 %v5882, %v5917
        %5919 = vmatmul.f32.gmra.mxu0 %v580
        %v5920 = vpop.f32.mrf.mxu0
        %v5921 = vadd.f32 %v5883, %v5920
        %5922 = vmatmul.f32.gmra.mxu0 %v581
        %v5923 = vpop.f32.mrf.mxu0
        %v5924 = vadd.f32 %v5884, %v5923
        %5925 = vmatmul.f32.gmra.mxu0 %v582
        %v5926 = vpop.f32.mrf.mxu0
        %v5927 = vadd.f32 %v5885, %v5926
        %5928 = vmatmul.f32.gmra.mxu0 %v583
        %v5929 = vpop.f32.mrf.mxu0
        %v5930 = vadd.f32 %v5886, %v5929
        %5931 = vmatmul.f32.gmra.mxu0 %v584
        %v5932 = vpop.f32.mrf.mxu0
        %v5933 = vadd.f32 %v5887, %v5932
        %5934 = vmatmul.f32.gmra.mxu0 %v585
        %v5935 = vpop.f32.mrf.mxu0
        %v5936 = vadd.f32 %v5888, %v5935
        %5937 = vmatmul.f32.gmra.mxu0 %v586
        %v5938 = vpop.f32.mrf.mxu0
        %v5939 = vadd.f32 %v5889, %v5938
        %5940 = vmatmul.f32.gmra.mxu0 %v587
        %v5941 = vpop.f32.mrf.mxu0
        %v5942 = vadd.f32 %v5890, %v5941
        %5943 = vmatmul.f32.gmra.mxu0 %v588
        %v5944 = vpop.f32.mrf.mxu0
        %v5945 = vadd.f32 %v5891, %v5944
        %5946 = vmatmul.f32.gmra.mxu0 %v589
        %v5947 = vpop.f32.mrf.mxu0
        %v5948 = vadd.f32 %v5892, %v5947
        %5949 = vmatmul.f32.gmra.mxu0 %v590
        %v5950 = vpop.f32.mrf.mxu0
        %v5951 = vadd.f32 %v5893, %v5950
        %5952 = vmatmul.f32.gmra.mxu0 %v591
        %v5953 = vpop.f32.mrf.mxu0
        %v5954 = vadd.f32 %v5894, %v5953
        %5955 = vmatmul.f32.gmra.mxu0 %v592
        %v5956 = vpop.f32.mrf.mxu0
        %v5957 = vadd.f32 %v5895, %v5956
        %5958 = vmatmul.f32.gmra.mxu0 %v593
        %v5959 = vpop.f32.mrf.mxu0
        %v5960 = vadd.f32 %v5896, %v5959
        %5961 = vdwg.mxu0
        %s5962 = scalar_lea.vmem [#allocation13], 24
        %v5963 = vld [vmem:[%s5962] sm:$0x3]
        %v5965 = vperm.slane %v5963, 0
        %v5966 = vperm.slane %v5963, 1
        %5969 = vmatpush.msra.mxu0 %v709
        %5970 = vmatpush.msra.mxu0 %v707
        %5971 = vmatpush.msra.mxu0 %v705
        %5972 = vmatpush.msra.mxu0 %v703
        %5973 = vmatpush.msra.mxu0 %v701
        %5974 = vmatpush.msra.mxu0 %v699
        %5975 = vmatpush.msra.mxu0 %v697
        %5976 = vmatpush.msra.mxu0 %v695
        %5977 = vmatpush.msra.mxu0 %v693
        %5978 = vmatpush.msra.mxu0 %v691
        %5979 = vmatpush.msra.mxu0 %v689
        %5980 = vmatpush.msra.mxu0 %v687
        %5981 = vmatpush.msra.mxu0 %v685
        %5982 = vmatpush.msra.mxu0 %v683
        %5983 = vmatpush.msra.mxu0 %v681
        %5984 = vmatpush.msra.mxu0 %v679
        %5985 = vmatmul.f32.gmra.mxu0 %v5915
        %v5986 = vpop.f32.mrf.mxu0
        %v5987 = vadd.f32 %v5965, %v5986
        %5988 = vmatmul.f32.gmra.mxu0 %v5918
        %v5989 = vpop.f32.mrf.mxu0
        %v5990 = vadd.f32 %v5965, %v5989
        %5991 = vmatmul.f32.gmra.mxu0 %v5921
        %v5992 = vpop.f32.mrf.mxu0
        %v5993 = vadd.f32 %v5965, %v5992
        %5994 = vmatmul.f32.gmra.mxu0 %v5924
        %v5995 = vpop.f32.mrf.mxu0
        %v5996 = vadd.f32 %v5965, %v5995
        %5997 = vmatmul.f32.gmra.mxu0 %v5927
        %v5998 = vpop.f32.mrf.mxu0
        %v5999 = vadd.f32 %v5965, %v5998
        %6000 = vmatmul.f32.gmra.mxu0 %v5930
        %v6001 = vpop.f32.mrf.mxu0
        %v6002 = vadd.f32 %v5965, %v6001
        %6003 = vmatmul.f32.gmra.mxu0 %v5933
        %v6004 = vpop.f32.mrf.mxu0
        %v6005 = vadd.f32 %v5965, %v6004
        %6006 = vmatmul.f32.gmra.mxu0 %v5936
        %v6007 = vpop.f32.mrf.mxu0
        %v6008 = vadd.f32 %v5965, %v6007
        %6009 = vmatmul.f32.gmra.mxu0 %v5939
        %v6010 = vpop.f32.mrf.mxu0
        %v6011 = vadd.f32 %v5965, %v6010
        %6012 = vmatmul.f32.gmra.mxu0 %v5942
        %v6013 = vpop.f32.mrf.mxu0
        %v6014 = vadd.f32 %v5965, %v6013
        %6015 = vmatmul.f32.gmra.mxu0 %v5945
        %v6016 = vpop.f32.mrf.mxu0
        %v6017 = vadd.f32 %v5965, %v6016
        %6018 = vmatmul.f32.gmra.mxu0 %v5948
        %v6019 = vpop.f32.mrf.mxu0
        %v6020 = vadd.f32 %v5965, %v6019
        %6021 = vmatmul.f32.gmra.mxu0 %v5951
        %v6022 = vpop.f32.mrf.mxu0
        %v6023 = vadd.f32 %v5965, %v6022
        %6024 = vmatmul.f32.gmra.mxu0 %v5954
        %v6025 = vpop.f32.mrf.mxu0
        %v6026 = vadd.f32 %v5965, %v6025
        %6027 = vmatmul.f32.gmra.mxu0 %v5957
        %v6028 = vpop.f32.mrf.mxu0
        %v6029 = vadd.f32 %v5965, %v6028
        %6030 = vmatmul.f32.gmra.mxu0 %v5960
        %v6031 = vpop.f32.mrf.mxu0
        %v6032 = vadd.f32 %v5965, %v6031
        %6033 = vdwg.mxu0
        %6034 = vmatpush.msra.mxu0 %v710
        %6035 = vmatpush.msra.mxu0 %v708
        %6036 = vmatpush.msra.mxu0 %v706
        %6037 = vmatpush.msra.mxu0 %v704
        %6038 = vmatpush.msra.mxu0 %v702
        %6039 = vmatpush.msra.mxu0 %v700
        %6040 = vmatpush.msra.mxu0 %v698
        %6041 = vmatpush.msra.mxu0 %v696
        %6042 = vmatpush.msra.mxu0 %v694
        %6043 = vmatpush.msra.mxu0 %v692
        %6044 = vmatpush.msra.mxu0 %v690
        %6045 = vmatpush.msra.mxu0 %v688
        %6046 = vmatpush.msra.mxu0 %v686
        %6047 = vmatpush.msra.mxu0 %v684
        %6048 = vmatpush.msra.mxu0 %v682
        %6049 = vmatpush.msra.mxu0 %v680
        %6050 = vmatmul.f32.gmra.mxu0 %v5915
        %v6051 = vpop.f32.mrf.mxu0
        %v6052 = vadd.f32 %v5966, %v6051
        %6053 = vmatmul.f32.gmra.mxu0 %v5918
        %v6054 = vpop.f32.mrf.mxu0
        %v6055 = vadd.f32 %v5966, %v6054
        %6056 = vmatmul.f32.gmra.mxu0 %v5921
        %v6057 = vpop.f32.mrf.mxu0
        %v6058 = vadd.f32 %v5966, %v6057
        %6059 = vmatmul.f32.gmra.mxu0 %v5924
        %v6060 = vpop.f32.mrf.mxu0
        %v6061 = vadd.f32 %v5966, %v6060
        %6062 = vmatmul.f32.gmra.mxu0 %v5927
        %v6063 = vpop.f32.mrf.mxu0
        %v6064 = vadd.f32 %v5966, %v6063
        %6065 = vmatmul.f32.gmra.mxu0 %v5930
        %v6066 = vpop.f32.mrf.mxu0
        %v6067 = vadd.f32 %v5966, %v6066
        %6068 = vmatmul.f32.gmra.mxu0 %v5933
        %v6069 = vpop.f32.mrf.mxu0
        %v6070 = vadd.f32 %v5966, %v6069
        %6071 = vmatmul.f32.gmra.mxu0 %v5936
        %v6072 = vpop.f32.mrf.mxu0
        %v6073 = vadd.f32 %v5966, %v6072
        %6074 = vmatmul.f32.gmra.mxu0 %v5939
        %v6075 = vpop.f32.mrf.mxu0
        %v6076 = vadd.f32 %v5966, %v6075
        %6077 = vmatmul.f32.gmra.mxu0 %v5942
        %v6078 = vpop.f32.mrf.mxu0
        %v6079 = vadd.f32 %v5966, %v6078
        %6080 = vmatmul.f32.gmra.mxu0 %v5945
        %v6081 = vpop.f32.mrf.mxu0
        %v6082 = vadd.f32 %v5966, %v6081
        %6083 = vmatmul.f32.gmra.mxu0 %v5948
        %v6084 = vpop.f32.mrf.mxu0
        %v6085 = vadd.f32 %v5966, %v6084
        %6086 = vmatmul.f32.gmra.mxu0 %v5951
        %v6087 = vpop.f32.mrf.mxu0
        %v6088 = vadd.f32 %v5966, %v6087
        %6089 = vmatmul.f32.gmra.mxu0 %v5954
        %v6090 = vpop.f32.mrf.mxu0
        %v6091 = vadd.f32 %v5966, %v6090
        %6092 = vmatmul.f32.gmra.mxu0 %v5957
        %v6093 = vpop.f32.mrf.mxu0
        %v6094 = vadd.f32 %v5966, %v6093
        %6095 = vmatmul.f32.gmra.mxu0 %v5960
        %v6096 = vpop.f32.mrf.mxu0
        %v6097 = vadd.f32 %v5966, %v6096
        %6098 = vdwg.mxu0
        %v6099 = vmul.f32 %v5987, %v632
        %v6100 = vmul.f32 %v5990, %v635
        %v6101 = vmul.f32 %v5993, %v638
        %v6102 = vmul.f32 %v5996, %v641
        %v6103 = vmul.f32 %v5999, %v644
        %v6104 = vmul.f32 %v6002, %v647
        %v6105 = vmul.f32 %v6005, %v650
        %v6106 = vmul.f32 %v6008, %v653
        %v6107 = vmul.f32 %v6011, %v656
        %v6108 = vmul.f32 %v6014, %v659
        %v6109 = vmul.f32 %v6017, %v662
        %v6110 = vmul.f32 %v6020, %v665
        %v6111 = vmul.f32 %v6023, %v668
        %v6112 = vmul.f32 %v6026, %v671
        %v6113 = vmul.f32 %v6029, %v674
        %v6114 = vmul.f32 %v6032, %v677
        %6115 = vmatpush.msra.mxu0 %v726
        %6116 = vmatpush.msra.mxu0 %v725
        %6117 = vmatpush.msra.mxu0 %v724
        %6118 = vmatpush.msra.mxu0 %v723
        %6119 = vmatpush.msra.mxu0 %v722
        %6120 = vmatpush.msra.mxu0 %v721
        %6121 = vmatpush.msra.mxu0 %v720
        %6122 = vmatpush.msra.mxu0 %v719
        %6123 = vmatpush.msra.mxu0 %v718
        %6124 = vmatpush.msra.mxu0 %v717
        %6125 = vmatpush.msra.mxu0 %v716
        %6126 = vmatpush.msra.mxu0 %v715
        %6127 = vmatpush.msra.mxu0 %v714
        %6128 = vmatpush.msra.mxu0 %v713
        %6129 = vmatpush.msra.mxu0 %v712
        %6130 = vmatpush.msra.mxu0 %v711
        %6131 = vmatmul.f32.gmra.mxu0 %v6099
        %v6132 = vpop.f32.mrf.mxu0
        %v6133 = vadd.f32 0.0, %v6132
        %6134 = vmatmul.f32.gmra.mxu0 %v6100
        %v6135 = vpop.f32.mrf.mxu0
        %v6136 = vadd.f32 0.0, %v6135
        %6137 = vmatmul.f32.gmra.mxu0 %v6101
        %v6138 = vpop.f32.mrf.mxu0
        %v6139 = vadd.f32 0.0, %v6138
        %6140 = vmatmul.f32.gmra.mxu0 %v6102
        %v6141 = vpop.f32.mrf.mxu0
        %v6142 = vadd.f32 0.0, %v6141
        %6143 = vmatmul.f32.gmra.mxu0 %v6103
        %v6144 = vpop.f32.mrf.mxu0
        %v6145 = vadd.f32 0.0, %v6144
        %6146 = vmatmul.f32.gmra.mxu0 %v6104
        %v6147 = vpop.f32.mrf.mxu0
        %v6148 = vadd.f32 0.0, %v6147
        %6149 = vmatmul.f32.gmra.mxu0 %v6105
        %v6150 = vpop.f32.mrf.mxu0
        %v6151 = vadd.f32 0.0, %v6150
        %6152 = vmatmul.f32.gmra.mxu0 %v6106
        %v6153 = vpop.f32.mrf.mxu0
        %v6154 = vadd.f32 0.0, %v6153
        %6155 = vmatmul.f32.gmra.mxu0 %v6107
        %v6156 = vpop.f32.mrf.mxu0
        %v6157 = vadd.f32 0.0, %v6156
        %6158 = vmatmul.f32.gmra.mxu0 %v6108
        %v6159 = vpop.f32.mrf.mxu0
        %v6160 = vadd.f32 0.0, %v6159
        %6161 = vmatmul.f32.gmra.mxu0 %v6109
        %v6162 = vpop.f32.mrf.mxu0
        %v6163 = vadd.f32 0.0, %v6162
        %6164 = vmatmul.f32.gmra.mxu0 %v6110
        %v6165 = vpop.f32.mrf.mxu0
        %v6166 = vadd.f32 0.0, %v6165
        %6167 = vmatmul.f32.gmra.mxu0 %v6111
        %v6168 = vpop.f32.mrf.mxu0
        %v6169 = vadd.f32 0.0, %v6168
        %6170 = vmatmul.f32.gmra.mxu0 %v6112
        %v6171 = vpop.f32.mrf.mxu0
        %v6172 = vadd.f32 0.0, %v6171
        %6173 = vmatmul.f32.gmra.mxu0 %v6113
        %v6174 = vpop.f32.mrf.mxu0
        %v6175 = vadd.f32 0.0, %v6174
        %6176 = vmatmul.f32.gmra.mxu0 %v6114
        %v6177 = vpop.f32.mrf.mxu0
        %v6178 = vadd.f32 0.0, %v6177
        %6179 = vdwg.mxu0
        %v6180 = vmul.f32 %v6052, %v6133
        %v6181 = vmul.f32 %v6055, %v6136
        %v6182 = vmul.f32 %v6058, %v6139
        %v6183 = vmul.f32 %v6061, %v6142
        %v6184 = vmul.f32 %v6064, %v6145
        %v6185 = vmul.f32 %v6067, %v6148
        %v6186 = vmul.f32 %v6070, %v6151
        %v6187 = vmul.f32 %v6073, %v6154
        %v6188 = vmul.f32 %v6076, %v6157
        %v6189 = vmul.f32 %v6079, %v6160
        %v6190 = vmul.f32 %v6082, %v6163
        %v6191 = vmul.f32 %v6085, %v6166
        %v6192 = vmul.f32 %v6088, %v6169
        %v6193 = vmul.f32 %v6091, %v6172
        %v6194 = vmul.f32 %v6094, %v6175
        %v6195 = vmul.f32 %v6097, %v6178
        %s6196 = scalar_lea.vmem [#allocation14], 1536
        %v6197 = vld [vmem:[%s6196] sm:$0xff]
        %v6198 = vld [vmem:[%s6196 + $0x8] sm:$0xff]
        %v6199 = vld [vmem:[%s6196 + $0x10] sm:$0xff]
        %v6200 = vld [vmem:[%s6196 + $0x18] sm:$0xff]
        %v6201 = vld [vmem:[%s6196 + $0x20] sm:$0xff]
        %v6202 = vld [vmem:[%s6196 + $0x28] sm:$0xff]
        %v6203 = vld [vmem:[%s6196 + $0x30] sm:$0xff]
        %v6204 = vld [vmem:[%s6196 + $0x38] sm:$0xff]
        %v6205 = vld [vmem:[%s6196 + $0x40] sm:$0xff]
        %v6206 = vld [vmem:[%s6196 + $0x48] sm:$0xff]
        %v6207 = vld [vmem:[%s6196 + $0x50] sm:$0xff]
        %v6208 = vld [vmem:[%s6196 + $0x58] sm:$0xff]
        %v6209 = vld [vmem:[%s6196 + $0x60] sm:$0xff]
        %v6210 = vld [vmem:[%s6196 + $0x68] sm:$0xff]
        %v6211 = vld [vmem:[%s6196 + $0x70] sm:$0xff]
        %v6212 = vld [vmem:[%s6196 + $0x78] sm:$0xff]
        %6213 = vmatpush.msra.mxu0 %v6212
        %6214 = vmatpush.msra.mxu0 %v6211
        %6215 = vmatpush.msra.mxu0 %v6210
        %6216 = vmatpush.msra.mxu0 %v6209
        %6217 = vmatpush.msra.mxu0 %v6208
        %6218 = vmatpush.msra.mxu0 %v6207
        %6219 = vmatpush.msra.mxu0 %v6206
        %6220 = vmatpush.msra.mxu0 %v6205
        %6221 = vmatpush.msra.mxu0 %v6204
        %6222 = vmatpush.msra.mxu0 %v6203
        %6223 = vmatpush.msra.mxu0 %v6202
        %6224 = vmatpush.msra.mxu0 %v6201
        %6225 = vmatpush.msra.mxu0 %v6200
        %6226 = vmatpush.msra.mxu0 %v6199
        %6227 = vmatpush.msra.mxu0 %v6198
        %6228 = vmatpush.msra.mxu0 %v6197
        %6229 = vmatmul.f32.gmra.mxu0 %v6180
        %v6230 = vpop.f32.mrf.mxu0
        %v6231 = vadd.f32 0.0, %v6230
        %6232 = vmatmul.f32.gmra.mxu0 %v6181
        %v6233 = vpop.f32.mrf.mxu0
        %v6234 = vadd.f32 0.0, %v6233
        %6235 = vmatmul.f32.gmra.mxu0 %v6182
        %v6236 = vpop.f32.mrf.mxu0
        %v6237 = vadd.f32 0.0, %v6236
        %6238 = vmatmul.f32.gmra.mxu0 %v6183
        %v6239 = vpop.f32.mrf.mxu0
        %v6240 = vadd.f32 0.0, %v6239
        %6241 = vmatmul.f32.gmra.mxu0 %v6184
        %v6242 = vpop.f32.mrf.mxu0
        %v6243 = vadd.f32 0.0, %v6242
        %6244 = vmatmul.f32.gmra.mxu0 %v6185
        %v6245 = vpop.f32.mrf.mxu0
        %v6246 = vadd.f32 0.0, %v6245
        %6247 = vmatmul.f32.gmra.mxu0 %v6186
        %v6248 = vpop.f32.mrf.mxu0
        %v6249 = vadd.f32 0.0, %v6248
        %6250 = vmatmul.f32.gmra.mxu0 %v6187
        %v6251 = vpop.f32.mrf.mxu0
        %v6252 = vadd.f32 0.0, %v6251
        %6253 = vmatmul.f32.gmra.mxu0 %v6188
        %v6254 = vpop.f32.mrf.mxu0
        %v6255 = vadd.f32 0.0, %v6254
        %6256 = vmatmul.f32.gmra.mxu0 %v6189
        %v6257 = vpop.f32.mrf.mxu0
        %v6258 = vadd.f32 0.0, %v6257
        %6259 = vmatmul.f32.gmra.mxu0 %v6190
        %v6260 = vpop.f32.mrf.mxu0
        %v6261 = vadd.f32 0.0, %v6260
        %6262 = vmatmul.f32.gmra.mxu0 %v6191
        %v6263 = vpop.f32.mrf.mxu0
        %v6264 = vadd.f32 0.0, %v6263
        %6265 = vmatmul.f32.gmra.mxu0 %v6192
        %v6266 = vpop.f32.mrf.mxu0
        %v6267 = vadd.f32 0.0, %v6266
        %6268 = vmatmul.f32.gmra.mxu0 %v6193
        %v6269 = vpop.f32.mrf.mxu0
        %v6270 = vadd.f32 0.0, %v6269
        %6271 = vmatmul.f32.gmra.mxu0 %v6194
        %v6272 = vpop.f32.mrf.mxu0
        %v6273 = vadd.f32 0.0, %v6272
        %6274 = vmatmul.f32.gmra.mxu0 %v6195
        %v6275 = vpop.f32.mrf.mxu0
        %v6276 = vadd.f32 0.0, %v6275
        %6277 = vdwg.mxu0
        %v6278 = vadd.f32 %v5847, %v6231
        %v6279 = vadd.f32 %v5848, %v6234
        %v6280 = vadd.f32 %v5849, %v6237
        %v6281 = vadd.f32 %v5850, %v6240
        %v6282 = vadd.f32 %v5851, %v6243
        %v6283 = vadd.f32 %v5852, %v6246
        %v6284 = vadd.f32 %v5853, %v6249
        %v6285 = vadd.f32 %v5854, %v6252
        %v6286 = vadd.f32 %v5855, %v6255
        %v6287 = vadd.f32 %v5856, %v6258
        %v6288 = vadd.f32 %v5857, %v6261
        %v6289 = vadd.f32 %v5858, %v6264
        %v6290 = vadd.f32 %v5859, %v6267
        %v6291 = vadd.f32 %v5860, %v6270
        %v6292 = vadd.f32 %v5861, %v6273
        %v6293 = vadd.f32 %v5862, %v6276
        %s6294 = scalar_lea.vmem [#allocation7], 1664
        %v6295 = vld [vmem:[%s6294] sm:$0xff]
        %v6296 = vld [vmem:[%s6294 + $0x8] sm:$0xff]
        %v6297 = vld [vmem:[%s6294 + $0x10] sm:$0xff]
        %v6298 = vld [vmem:[%s6294 + $0x18] sm:$0xff]
        %v6299 = vld [vmem:[%s6294 + $0x20] sm:$0xff]
        %v6300 = vld [vmem:[%s6294 + $0x28] sm:$0xff]
        %v6301 = vld [vmem:[%s6294 + $0x30] sm:$0xff]
        %v6302 = vld [vmem:[%s6294 + $0x38] sm:$0xff]
        %v6303 = vld [vmem:[%s6294 + $0x40] sm:$0xff]
        %v6304 = vld [vmem:[%s6294 + $0x48] sm:$0xff]
        %v6305 = vld [vmem:[%s6294 + $0x50] sm:$0xff]
        %v6306 = vld [vmem:[%s6294 + $0x58] sm:$0xff]
        %v6307 = vld [vmem:[%s6294 + $0x60] sm:$0xff]
        %v6308 = vld [vmem:[%s6294 + $0x68] sm:$0xff]
        %v6309 = vld [vmem:[%s6294 + $0x70] sm:$0xff]
        %v6310 = vld [vmem:[%s6294 + $0x78] sm:$0xff]
        %s6311 = scalar_lea.vmem %s492, 1664 [#allocation5]
        %v6312 = vld [vmem:[%s6311] sm:$0xff]
        %v6313 = vld [vmem:[%s6311 + $0x8] sm:$0xff]
        %v6314 = vld [vmem:[%s6311 + $0x10] sm:$0xff]
        %v6315 = vld [vmem:[%s6311 + $0x18] sm:$0xff]
        %v6316 = vld [vmem:[%s6311 + $0x20] sm:$0xff]
        %v6317 = vld [vmem:[%s6311 + $0x28] sm:$0xff]
        %v6318 = vld [vmem:[%s6311 + $0x30] sm:$0xff]
        %v6319 = vld [vmem:[%s6311 + $0x38] sm:$0xff]
        %v6320 = vld [vmem:[%s6311 + $0x40] sm:$0xff]
        %v6321 = vld [vmem:[%s6311 + $0x48] sm:$0xff]
        %v6322 = vld [vmem:[%s6311 + $0x50] sm:$0xff]
        %v6323 = vld [vmem:[%s6311 + $0x58] sm:$0xff]
        %v6324 = vld [vmem:[%s6311 + $0x60] sm:$0xff]
        %v6325 = vld [vmem:[%s6311 + $0x68] sm:$0xff]
        %v6326 = vld [vmem:[%s6311 + $0x70] sm:$0xff]
        %v6327 = vld [vmem:[%s6311 + $0x78] sm:$0xff]
        %6328 = vmatpush.msra.mxu0 %v6310
        %6329 = vmatpush.msra.mxu0 %v6309
        %6330 = vmatpush.msra.mxu0 %v6308
        %6331 = vmatpush.msra.mxu0 %v6307
        %6332 = vmatpush.msra.mxu0 %v6306
        %6333 = vmatpush.msra.mxu0 %v6305
        %6334 = vmatpush.msra.mxu0 %v6304
        %6335 = vmatpush.msra.mxu0 %v6303
        %6336 = vmatpush.msra.mxu0 %v6302
        %6337 = vmatpush.msra.mxu0 %v6301
        %6338 = vmatpush.msra.mxu0 %v6300
        %6339 = vmatpush.msra.mxu0 %v6299
        %6340 = vmatpush.msra.mxu0 %v6298
        %6341 = vmatpush.msra.mxu0 %v6297
        %6342 = vmatpush.msra.mxu0 %v6296
        %6343 = vmatpush.msra.mxu0 %v6295
        %6344 = vmatmul.f32.gmra.mxu0 %v578
        %v6345 = vpop.f32.mrf.mxu0
        %v6346 = vadd.f32 %v6312, %v6345
        %6347 = vmatmul.f32.gmra.mxu0 %v579
        %v6348 = vpop.f32.mrf.mxu0
        %v6349 = vadd.f32 %v6313, %v6348
        %6350 = vmatmul.f32.gmra.mxu0 %v580
        %v6351 = vpop.f32.mrf.mxu0
        %v6352 = vadd.f32 %v6314, %v6351
        %6353 = vmatmul.f32.gmra.mxu0 %v581
        %v6354 = vpop.f32.mrf.mxu0
        %v6355 = vadd.f32 %v6315, %v6354
        %6356 = vmatmul.f32.gmra.mxu0 %v582
        %v6357 = vpop.f32.mrf.mxu0
        %v6358 = vadd.f32 %v6316, %v6357
        %6359 = vmatmul.f32.gmra.mxu0 %v583
        %v6360 = vpop.f32.mrf.mxu0
        %v6361 = vadd.f32 %v6317, %v6360
        %6362 = vmatmul.f32.gmra.mxu0 %v584
        %v6363 = vpop.f32.mrf.mxu0
        %v6364 = vadd.f32 %v6318, %v6363
        %6365 = vmatmul.f32.gmra.mxu0 %v585
        %v6366 = vpop.f32.mrf.mxu0
        %v6367 = vadd.f32 %v6319, %v6366
        %6368 = vmatmul.f32.gmra.mxu0 %v586
        %v6369 = vpop.f32.mrf.mxu0
        %v6370 = vadd.f32 %v6320, %v6369
        %6371 = vmatmul.f32.gmra.mxu0 %v587
        %v6372 = vpop.f32.mrf.mxu0
        %v6373 = vadd.f32 %v6321, %v6372
        %6374 = vmatmul.f32.gmra.mxu0 %v588
        %v6375 = vpop.f32.mrf.mxu0
        %v6376 = vadd.f32 %v6322, %v6375
        %6377 = vmatmul.f32.gmra.mxu0 %v589
        %v6378 = vpop.f32.mrf.mxu0
        %v6379 = vadd.f32 %v6323, %v6378
        %6380 = vmatmul.f32.gmra.mxu0 %v590
        %v6381 = vpop.f32.mrf.mxu0
        %v6382 = vadd.f32 %v6324, %v6381
        %6383 = vmatmul.f32.gmra.mxu0 %v591
        %v6384 = vpop.f32.mrf.mxu0
        %v6385 = vadd.f32 %v6325, %v6384
        %6386 = vmatmul.f32.gmra.mxu0 %v592
        %v6387 = vpop.f32.mrf.mxu0
        %v6388 = vadd.f32 %v6326, %v6387
        %6389 = vmatmul.f32.gmra.mxu0 %v593
        %v6390 = vpop.f32.mrf.mxu0
        %v6391 = vadd.f32 %v6327, %v6390
        %6392 = vdwg.mxu0
        %s6393 = scalar_lea.vmem [#allocation13], 26
        %v6394 = vld [vmem:[%s6393] sm:$0x3]
        %v6396 = vperm.slane %v6394, 0
        %v6397 = vperm.slane %v6394, 1
        %6400 = vmatpush.msra.mxu0 %v709
        %6401 = vmatpush.msra.mxu0 %v707
        %6402 = vmatpush.msra.mxu0 %v705
        %6403 = vmatpush.msra.mxu0 %v703
        %6404 = vmatpush.msra.mxu0 %v701
        %6405 = vmatpush.msra.mxu0 %v699
        %6406 = vmatpush.msra.mxu0 %v697
        %6407 = vmatpush.msra.mxu0 %v695
        %6408 = vmatpush.msra.mxu0 %v693
        %6409 = vmatpush.msra.mxu0 %v691
        %6410 = vmatpush.msra.mxu0 %v689
        %6411 = vmatpush.msra.mxu0 %v687
        %6412 = vmatpush.msra.mxu0 %v685
        %6413 = vmatpush.msra.mxu0 %v683
        %6414 = vmatpush.msra.mxu0 %v681
        %6415 = vmatpush.msra.mxu0 %v679
        %6416 = vmatmul.f32.gmra.mxu0 %v6346
        %v6417 = vpop.f32.mrf.mxu0
        %v6418 = vadd.f32 %v6396, %v6417
        %6419 = vmatmul.f32.gmra.mxu0 %v6349
        %v6420 = vpop.f32.mrf.mxu0
        %v6421 = vadd.f32 %v6396, %v6420
        %6422 = vmatmul.f32.gmra.mxu0 %v6352
        %v6423 = vpop.f32.mrf.mxu0
        %v6424 = vadd.f32 %v6396, %v6423
        %6425 = vmatmul.f32.gmra.mxu0 %v6355
        %v6426 = vpop.f32.mrf.mxu0
        %v6427 = vadd.f32 %v6396, %v6426
        %6428 = vmatmul.f32.gmra.mxu0 %v6358
        %v6429 = vpop.f32.mrf.mxu0
        %v6430 = vadd.f32 %v6396, %v6429
        %6431 = vmatmul.f32.gmra.mxu0 %v6361
        %v6432 = vpop.f32.mrf.mxu0
        %v6433 = vadd.f32 %v6396, %v6432
        %6434 = vmatmul.f32.gmra.mxu0 %v6364
        %v6435 = vpop.f32.mrf.mxu0
        %v6436 = vadd.f32 %v6396, %v6435
        %6437 = vmatmul.f32.gmra.mxu0 %v6367
        %v6438 = vpop.f32.mrf.mxu0
        %v6439 = vadd.f32 %v6396, %v6438
        %6440 = vmatmul.f32.gmra.mxu0 %v6370
        %v6441 = vpop.f32.mrf.mxu0
        %v6442 = vadd.f32 %v6396, %v6441
        %6443 = vmatmul.f32.gmra.mxu0 %v6373
        %v6444 = vpop.f32.mrf.mxu0
        %v6445 = vadd.f32 %v6396, %v6444
        %6446 = vmatmul.f32.gmra.mxu0 %v6376
        %v6447 = vpop.f32.mrf.mxu0
        %v6448 = vadd.f32 %v6396, %v6447
        %6449 = vmatmul.f32.gmra.mxu0 %v6379
        %v6450 = vpop.f32.mrf.mxu0
        %v6451 = vadd.f32 %v6396, %v6450
        %6452 = vmatmul.f32.gmra.mxu0 %v6382
        %v6453 = vpop.f32.mrf.mxu0
        %v6454 = vadd.f32 %v6396, %v6453
        %6455 = vmatmul.f32.gmra.mxu0 %v6385
        %v6456 = vpop.f32.mrf.mxu0
        %v6457 = vadd.f32 %v6396, %v6456
        %6458 = vmatmul.f32.gmra.mxu0 %v6388
        %v6459 = vpop.f32.mrf.mxu0
        %v6460 = vadd.f32 %v6396, %v6459
        %6461 = vmatmul.f32.gmra.mxu0 %v6391
        %v6462 = vpop.f32.mrf.mxu0
        %v6463 = vadd.f32 %v6396, %v6462
        %6464 = vdwg.mxu0
        %6465 = vmatpush.msra.mxu0 %v710
        %6466 = vmatpush.msra.mxu0 %v708
        %6467 = vmatpush.msra.mxu0 %v706
        %6468 = vmatpush.msra.mxu0 %v704
        %6469 = vmatpush.msra.mxu0 %v702
        %6470 = vmatpush.msra.mxu0 %v700
        %6471 = vmatpush.msra.mxu0 %v698
        %6472 = vmatpush.msra.mxu0 %v696
        %6473 = vmatpush.msra.mxu0 %v694
        %6474 = vmatpush.msra.mxu0 %v692
        %6475 = vmatpush.msra.mxu0 %v690
        %6476 = vmatpush.msra.mxu0 %v688
        %6477 = vmatpush.msra.mxu0 %v686
        %6478 = vmatpush.msra.mxu0 %v684
        %6479 = vmatpush.msra.mxu0 %v682
        %6480 = vmatpush.msra.mxu0 %v680
        %6481 = vmatmul.f32.gmra.mxu0 %v6346
        %v6482 = vpop.f32.mrf.mxu0
        %v6483 = vadd.f32 %v6397, %v6482
        %6484 = vmatmul.f32.gmra.mxu0 %v6349
        %v6485 = vpop.f32.mrf.mxu0
        %v6486 = vadd.f32 %v6397, %v6485
        %6487 = vmatmul.f32.gmra.mxu0 %v6352
        %v6488 = vpop.f32.mrf.mxu0
        %v6489 = vadd.f32 %v6397, %v6488
        %6490 = vmatmul.f32.gmra.mxu0 %v6355
        %v6491 = vpop.f32.mrf.mxu0
        %v6492 = vadd.f32 %v6397, %v6491
        %6493 = vmatmul.f32.gmra.mxu0 %v6358
        %v6494 = vpop.f32.mrf.mxu0
        %v6495 = vadd.f32 %v6397, %v6494
        %6496 = vmatmul.f32.gmra.mxu0 %v6361
        %v6497 = vpop.f32.mrf.mxu0
        %v6498 = vadd.f32 %v6397, %v6497
        %6499 = vmatmul.f32.gmra.mxu0 %v6364
        %v6500 = vpop.f32.mrf.mxu0
        %v6501 = vadd.f32 %v6397, %v6500
        %6502 = vmatmul.f32.gmra.mxu0 %v6367
        %v6503 = vpop.f32.mrf.mxu0
        %v6504 = vadd.f32 %v6397, %v6503
        %6505 = vmatmul.f32.gmra.mxu0 %v6370
        %v6506 = vpop.f32.mrf.mxu0
        %v6507 = vadd.f32 %v6397, %v6506
        %6508 = vmatmul.f32.gmra.mxu0 %v6373
        %v6509 = vpop.f32.mrf.mxu0
        %v6510 = vadd.f32 %v6397, %v6509
        %6511 = vmatmul.f32.gmra.mxu0 %v6376
        %v6512 = vpop.f32.mrf.mxu0
        %v6513 = vadd.f32 %v6397, %v6512
        %6514 = vmatmul.f32.gmra.mxu0 %v6379
        %v6515 = vpop.f32.mrf.mxu0
        %v6516 = vadd.f32 %v6397, %v6515
        %6517 = vmatmul.f32.gmra.mxu0 %v6382
        %v6518 = vpop.f32.mrf.mxu0
        %v6519 = vadd.f32 %v6397, %v6518
        %6520 = vmatmul.f32.gmra.mxu0 %v6385
        %v6521 = vpop.f32.mrf.mxu0
        %v6522 = vadd.f32 %v6397, %v6521
        %6523 = vmatmul.f32.gmra.mxu0 %v6388
        %v6524 = vpop.f32.mrf.mxu0
        %v6525 = vadd.f32 %v6397, %v6524
        %6526 = vmatmul.f32.gmra.mxu0 %v6391
        %v6527 = vpop.f32.mrf.mxu0
        %v6528 = vadd.f32 %v6397, %v6527
        %6529 = vdwg.mxu0
        %v6530 = vmul.f32 %v6418, %v632
        %v6531 = vmul.f32 %v6421, %v635
        %v6532 = vmul.f32 %v6424, %v638
        %v6533 = vmul.f32 %v6427, %v641
        %v6534 = vmul.f32 %v6430, %v644
        %v6535 = vmul.f32 %v6433, %v647
        %v6536 = vmul.f32 %v6436, %v650
        %v6537 = vmul.f32 %v6439, %v653
        %v6538 = vmul.f32 %v6442, %v656
        %v6539 = vmul.f32 %v6445, %v659
        %v6540 = vmul.f32 %v6448, %v662
        %v6541 = vmul.f32 %v6451, %v665
        %v6542 = vmul.f32 %v6454, %v668
        %v6543 = vmul.f32 %v6457, %v671
        %v6544 = vmul.f32 %v6460, %v674
        %v6545 = vmul.f32 %v6463, %v677
        %6546 = vmatpush.msra.mxu0 %v726
        %6547 = vmatpush.msra.mxu0 %v725
        %6548 = vmatpush.msra.mxu0 %v724
        %6549 = vmatpush.msra.mxu0 %v723
        %6550 = vmatpush.msra.mxu0 %v722
        %6551 = vmatpush.msra.mxu0 %v721
        %6552 = vmatpush.msra.mxu0 %v720
        %6553 = vmatpush.msra.mxu0 %v719
        %6554 = vmatpush.msra.mxu0 %v718
        %6555 = vmatpush.msra.mxu0 %v717
        %6556 = vmatpush.msra.mxu0 %v716
        %6557 = vmatpush.msra.mxu0 %v715
        %6558 = vmatpush.msra.mxu0 %v714
        %6559 = vmatpush.msra.mxu0 %v713
        %6560 = vmatpush.msra.mxu0 %v712
        %6561 = vmatpush.msra.mxu0 %v711
        %6562 = vmatmul.f32.gmra.mxu0 %v6530
        %v6563 = vpop.f32.mrf.mxu0
        %v6564 = vadd.f32 0.0, %v6563
        %6565 = vmatmul.f32.gmra.mxu0 %v6531
        %v6566 = vpop.f32.mrf.mxu0
        %v6567 = vadd.f32 0.0, %v6566
        %6568 = vmatmul.f32.gmra.mxu0 %v6532
        %v6569 = vpop.f32.mrf.mxu0
        %v6570 = vadd.f32 0.0, %v6569
        %6571 = vmatmul.f32.gmra.mxu0 %v6533
        %v6572 = vpop.f32.mrf.mxu0
        %v6573 = vadd.f32 0.0, %v6572
        %6574 = vmatmul.f32.gmra.mxu0 %v6534
        %v6575 = vpop.f32.mrf.mxu0
        %v6576 = vadd.f32 0.0, %v6575
        %6577 = vmatmul.f32.gmra.mxu0 %v6535
        %v6578 = vpop.f32.mrf.mxu0
        %v6579 = vadd.f32 0.0, %v6578
        %6580 = vmatmul.f32.gmra.mxu0 %v6536
        %v6581 = vpop.f32.mrf.mxu0
        %v6582 = vadd.f32 0.0, %v6581
        %6583 = vmatmul.f32.gmra.mxu0 %v6537
        %v6584 = vpop.f32.mrf.mxu0
        %v6585 = vadd.f32 0.0, %v6584
        %6586 = vmatmul.f32.gmra.mxu0 %v6538
        %v6587 = vpop.f32.mrf.mxu0
        %v6588 = vadd.f32 0.0, %v6587
        %6589 = vmatmul.f32.gmra.mxu0 %v6539
        %v6590 = vpop.f32.mrf.mxu0
        %v6591 = vadd.f32 0.0, %v6590
        %6592 = vmatmul.f32.gmra.mxu0 %v6540
        %v6593 = vpop.f32.mrf.mxu0
        %v6594 = vadd.f32 0.0, %v6593
        %6595 = vmatmul.f32.gmra.mxu0 %v6541
        %v6596 = vpop.f32.mrf.mxu0
        %v6597 = vadd.f32 0.0, %v6596
        %6598 = vmatmul.f32.gmra.mxu0 %v6542
        %v6599 = vpop.f32.mrf.mxu0
        %v6600 = vadd.f32 0.0, %v6599
        %6601 = vmatmul.f32.gmra.mxu0 %v6543
        %v6602 = vpop.f32.mrf.mxu0
        %v6603 = vadd.f32 0.0, %v6602
        %6604 = vmatmul.f32.gmra.mxu0 %v6544
        %v6605 = vpop.f32.mrf.mxu0
        %v6606 = vadd.f32 0.0, %v6605
        %6607 = vmatmul.f32.gmra.mxu0 %v6545
        %v6608 = vpop.f32.mrf.mxu0
        %v6609 = vadd.f32 0.0, %v6608
        %6610 = vdwg.mxu0
        %v6611 = vmul.f32 %v6483, %v6564
        %v6612 = vmul.f32 %v6486, %v6567
        %v6613 = vmul.f32 %v6489, %v6570
        %v6614 = vmul.f32 %v6492, %v6573
        %v6615 = vmul.f32 %v6495, %v6576
        %v6616 = vmul.f32 %v6498, %v6579
        %v6617 = vmul.f32 %v6501, %v6582
        %v6618 = vmul.f32 %v6504, %v6585
        %v6619 = vmul.f32 %v6507, %v6588
        %v6620 = vmul.f32 %v6510, %v6591
        %v6621 = vmul.f32 %v6513, %v6594
        %v6622 = vmul.f32 %v6516, %v6597
        %v6623 = vmul.f32 %v6519, %v6600
        %v6624 = vmul.f32 %v6522, %v6603
        %v6625 = vmul.f32 %v6525, %v6606
        %v6626 = vmul.f32 %v6528, %v6609
        %s6627 = scalar_lea.vmem [#allocation14], 1664
        %v6628 = vld [vmem:[%s6627] sm:$0xff]
        %v6629 = vld [vmem:[%s6627 + $0x8] sm:$0xff]
        %v6630 = vld [vmem:[%s6627 + $0x10] sm:$0xff]
        %v6631 = vld [vmem:[%s6627 + $0x18] sm:$0xff]
        %v6632 = vld [vmem:[%s6627 + $0x20] sm:$0xff]
        %v6633 = vld [vmem:[%s6627 + $0x28] sm:$0xff]
        %v6634 = vld [vmem:[%s6627 + $0x30] sm:$0xff]
        %v6635 = vld [vmem:[%s6627 + $0x38] sm:$0xff]
        %v6636 = vld [vmem:[%s6627 + $0x40] sm:$0xff]
        %v6637 = vld [vmem:[%s6627 + $0x48] sm:$0xff]
        %v6638 = vld [vmem:[%s6627 + $0x50] sm:$0xff]
        %v6639 = vld [vmem:[%s6627 + $0x58] sm:$0xff]
        %v6640 = vld [vmem:[%s6627 + $0x60] sm:$0xff]
        %v6641 = vld [vmem:[%s6627 + $0x68] sm:$0xff]
        %v6642 = vld [vmem:[%s6627 + $0x70] sm:$0xff]
        %v6643 = vld [vmem:[%s6627 + $0x78] sm:$0xff]
        %6644 = vmatpush.msra.mxu0 %v6643
        %6645 = vmatpush.msra.mxu0 %v6642
        %6646 = vmatpush.msra.mxu0 %v6641
        %6647 = vmatpush.msra.mxu0 %v6640
        %6648 = vmatpush.msra.mxu0 %v6639
        %6649 = vmatpush.msra.mxu0 %v6638
        %6650 = vmatpush.msra.mxu0 %v6637
        %6651 = vmatpush.msra.mxu0 %v6636
        %6652 = vmatpush.msra.mxu0 %v6635
        %6653 = vmatpush.msra.mxu0 %v6634
        %6654 = vmatpush.msra.mxu0 %v6633
        %6655 = vmatpush.msra.mxu0 %v6632
        %6656 = vmatpush.msra.mxu0 %v6631
        %6657 = vmatpush.msra.mxu0 %v6630
        %6658 = vmatpush.msra.mxu0 %v6629
        %6659 = vmatpush.msra.mxu0 %v6628
        %6660 = vmatmul.f32.gmra.mxu0 %v6611
        %v6661 = vpop.f32.mrf.mxu0
        %v6662 = vadd.f32 0.0, %v6661
        %6663 = vmatmul.f32.gmra.mxu0 %v6612
        %v6664 = vpop.f32.mrf.mxu0
        %v6665 = vadd.f32 0.0, %v6664
        %6666 = vmatmul.f32.gmra.mxu0 %v6613
        %v6667 = vpop.f32.mrf.mxu0
        %v6668 = vadd.f32 0.0, %v6667
        %6669 = vmatmul.f32.gmra.mxu0 %v6614
        %v6670 = vpop.f32.mrf.mxu0
        %v6671 = vadd.f32 0.0, %v6670
        %6672 = vmatmul.f32.gmra.mxu0 %v6615
        %v6673 = vpop.f32.mrf.mxu0
        %v6674 = vadd.f32 0.0, %v6673
        %6675 = vmatmul.f32.gmra.mxu0 %v6616
        %v6676 = vpop.f32.mrf.mxu0
        %v6677 = vadd.f32 0.0, %v6676
        %6678 = vmatmul.f32.gmra.mxu0 %v6617
        %v6679 = vpop.f32.mrf.mxu0
        %v6680 = vadd.f32 0.0, %v6679
        %6681 = vmatmul.f32.gmra.mxu0 %v6618
        %v6682 = vpop.f32.mrf.mxu0
        %v6683 = vadd.f32 0.0, %v6682
        %6684 = vmatmul.f32.gmra.mxu0 %v6619
        %v6685 = vpop.f32.mrf.mxu0
        %v6686 = vadd.f32 0.0, %v6685
        %6687 = vmatmul.f32.gmra.mxu0 %v6620
        %v6688 = vpop.f32.mrf.mxu0
        %v6689 = vadd.f32 0.0, %v6688
        %6690 = vmatmul.f32.gmra.mxu0 %v6621
        %v6691 = vpop.f32.mrf.mxu0
        %v6692 = vadd.f32 0.0, %v6691
        %6693 = vmatmul.f32.gmra.mxu0 %v6622
        %v6694 = vpop.f32.mrf.mxu0
        %v6695 = vadd.f32 0.0, %v6694
        %6696 = vmatmul.f32.gmra.mxu0 %v6623
        %v6697 = vpop.f32.mrf.mxu0
        %v6698 = vadd.f32 0.0, %v6697
        %6699 = vmatmul.f32.gmra.mxu0 %v6624
        %v6700 = vpop.f32.mrf.mxu0
        %v6701 = vadd.f32 0.0, %v6700
        %6702 = vmatmul.f32.gmra.mxu0 %v6625
        %v6703 = vpop.f32.mrf.mxu0
        %v6704 = vadd.f32 0.0, %v6703
        %6705 = vmatmul.f32.gmra.mxu0 %v6626
        %v6706 = vpop.f32.mrf.mxu0
        %v6707 = vadd.f32 0.0, %v6706
        %6708 = vdwg.mxu0
        %v6709 = vadd.f32 %v6278, %v6662
        %v6710 = vadd.f32 %v6279, %v6665
        %v6711 = vadd.f32 %v6280, %v6668
        %v6712 = vadd.f32 %v6281, %v6671
        %v6713 = vadd.f32 %v6282, %v6674
        %v6714 = vadd.f32 %v6283, %v6677
        %v6715 = vadd.f32 %v6284, %v6680
        %v6716 = vadd.f32 %v6285, %v6683
        %v6717 = vadd.f32 %v6286, %v6686
        %v6718 = vadd.f32 %v6287, %v6689
        %v6719 = vadd.f32 %v6288, %v6692
        %v6720 = vadd.f32 %v6289, %v6695
        %v6721 = vadd.f32 %v6290, %v6698
        %v6722 = vadd.f32 %v6291, %v6701
        %v6723 = vadd.f32 %v6292, %v6704
        %v6724 = vadd.f32 %v6293, %v6707
        %s6725 = scalar_lea.vmem [#allocation7], 1792
        %v6726 = vld [vmem:[%s6725] sm:$0xff]
        %v6727 = vld [vmem:[%s6725 + $0x8] sm:$0xff]
        %v6728 = vld [vmem:[%s6725 + $0x10] sm:$0xff]
        %v6729 = vld [vmem:[%s6725 + $0x18] sm:$0xff]
        %v6730 = vld [vmem:[%s6725 + $0x20] sm:$0xff]
        %v6731 = vld [vmem:[%s6725 + $0x28] sm:$0xff]
        %v6732 = vld [vmem:[%s6725 + $0x30] sm:$0xff]
        %v6733 = vld [vmem:[%s6725 + $0x38] sm:$0xff]
        %v6734 = vld [vmem:[%s6725 + $0x40] sm:$0xff]
        %v6735 = vld [vmem:[%s6725 + $0x48] sm:$0xff]
        %v6736 = vld [vmem:[%s6725 + $0x50] sm:$0xff]
        %v6737 = vld [vmem:[%s6725 + $0x58] sm:$0xff]
        %v6738 = vld [vmem:[%s6725 + $0x60] sm:$0xff]
        %v6739 = vld [vmem:[%s6725 + $0x68] sm:$0xff]
        %v6740 = vld [vmem:[%s6725 + $0x70] sm:$0xff]
        %v6741 = vld [vmem:[%s6725 + $0x78] sm:$0xff]
        %s6742 = scalar_lea.vmem %s492, 1792 [#allocation5]
        %v6743 = vld [vmem:[%s6742] sm:$0xff]
        %v6744 = vld [vmem:[%s6742 + $0x8] sm:$0xff]
        %v6745 = vld [vmem:[%s6742 + $0x10] sm:$0xff]
        %v6746 = vld [vmem:[%s6742 + $0x18] sm:$0xff]
        %v6747 = vld [vmem:[%s6742 + $0x20] sm:$0xff]
        %v6748 = vld [vmem:[%s6742 + $0x28] sm:$0xff]
        %v6749 = vld [vmem:[%s6742 + $0x30] sm:$0xff]
        %v6750 = vld [vmem:[%s6742 + $0x38] sm:$0xff]
        %v6751 = vld [vmem:[%s6742 + $0x40] sm:$0xff]
        %v6752 = vld [vmem:[%s6742 + $0x48] sm:$0xff]
        %v6753 = vld [vmem:[%s6742 + $0x50] sm:$0xff]
        %v6754 = vld [vmem:[%s6742 + $0x58] sm:$0xff]
        %v6755 = vld [vmem:[%s6742 + $0x60] sm:$0xff]
        %v6756 = vld [vmem:[%s6742 + $0x68] sm:$0xff]
        %v6757 = vld [vmem:[%s6742 + $0x70] sm:$0xff]
        %v6758 = vld [vmem:[%s6742 + $0x78] sm:$0xff]
        %6759 = vmatpush.msra.mxu0 %v6741
        %6760 = vmatpush.msra.mxu0 %v6740
        %6761 = vmatpush.msra.mxu0 %v6739
        %6762 = vmatpush.msra.mxu0 %v6738
        %6763 = vmatpush.msra.mxu0 %v6737
        %6764 = vmatpush.msra.mxu0 %v6736
        %6765 = vmatpush.msra.mxu0 %v6735
        %6766 = vmatpush.msra.mxu0 %v6734
        %6767 = vmatpush.msra.mxu0 %v6733
        %6768 = vmatpush.msra.mxu0 %v6732
        %6769 = vmatpush.msra.mxu0 %v6731
        %6770 = vmatpush.msra.mxu0 %v6730
        %6771 = vmatpush.msra.mxu0 %v6729
        %6772 = vmatpush.msra.mxu0 %v6728
        %6773 = vmatpush.msra.mxu0 %v6727
        %6774 = vmatpush.msra.mxu0 %v6726
        %6775 = vmatmul.f32.gmra.mxu0 %v578
        %v6776 = vpop.f32.mrf.mxu0
        %v6777 = vadd.f32 %v6743, %v6776
        %6778 = vmatmul.f32.gmra.mxu0 %v579
        %v6779 = vpop.f32.mrf.mxu0
        %v6780 = vadd.f32 %v6744, %v6779
        %6781 = vmatmul.f32.gmra.mxu0 %v580
        %v6782 = vpop.f32.mrf.mxu0
        %v6783 = vadd.f32 %v6745, %v6782
        %6784 = vmatmul.f32.gmra.mxu0 %v581
        %v6785 = vpop.f32.mrf.mxu0
        %v6786 = vadd.f32 %v6746, %v6785
        %6787 = vmatmul.f32.gmra.mxu0 %v582
        %v6788 = vpop.f32.mrf.mxu0
        %v6789 = vadd.f32 %v6747, %v6788
        %6790 = vmatmul.f32.gmra.mxu0 %v583
        %v6791 = vpop.f32.mrf.mxu0
        %v6792 = vadd.f32 %v6748, %v6791
        %6793 = vmatmul.f32.gmra.mxu0 %v584
        %v6794 = vpop.f32.mrf.mxu0
        %v6795 = vadd.f32 %v6749, %v6794
        %6796 = vmatmul.f32.gmra.mxu0 %v585
        %v6797 = vpop.f32.mrf.mxu0
        %v6798 = vadd.f32 %v6750, %v6797
        %6799 = vmatmul.f32.gmra.mxu0 %v586
        %v6800 = vpop.f32.mrf.mxu0
        %v6801 = vadd.f32 %v6751, %v6800
        %6802 = vmatmul.f32.gmra.mxu0 %v587
        %v6803 = vpop.f32.mrf.mxu0
        %v6804 = vadd.f32 %v6752, %v6803
        %6805 = vmatmul.f32.gmra.mxu0 %v588
        %v6806 = vpop.f32.mrf.mxu0
        %v6807 = vadd.f32 %v6753, %v6806
        %6808 = vmatmul.f32.gmra.mxu0 %v589
        %v6809 = vpop.f32.mrf.mxu0
        %v6810 = vadd.f32 %v6754, %v6809
        %6811 = vmatmul.f32.gmra.mxu0 %v590
        %v6812 = vpop.f32.mrf.mxu0
        %v6813 = vadd.f32 %v6755, %v6812
        %6814 = vmatmul.f32.gmra.mxu0 %v591
        %v6815 = vpop.f32.mrf.mxu0
        %v6816 = vadd.f32 %v6756, %v6815
        %6817 = vmatmul.f32.gmra.mxu0 %v592
        %v6818 = vpop.f32.mrf.mxu0
        %v6819 = vadd.f32 %v6757, %v6818
        %6820 = vmatmul.f32.gmra.mxu0 %v593
        %v6821 = vpop.f32.mrf.mxu0
        %v6822 = vadd.f32 %v6758, %v6821
        %6823 = vdwg.mxu0
        %s6824 = scalar_lea.vmem [#allocation13], 28
        %v6825 = vld [vmem:[%s6824] sm:$0x3]
        %v6827 = vperm.slane %v6825, 0
        %v6828 = vperm.slane %v6825, 1
        %6831 = vmatpush.msra.mxu0 %v709
        %6832 = vmatpush.msra.mxu0 %v707
        %6833 = vmatpush.msra.mxu0 %v705
        %6834 = vmatpush.msra.mxu0 %v703
        %6835 = vmatpush.msra.mxu0 %v701
        %6836 = vmatpush.msra.mxu0 %v699
        %6837 = vmatpush.msra.mxu0 %v697
        %6838 = vmatpush.msra.mxu0 %v695
        %6839 = vmatpush.msra.mxu0 %v693
        %6840 = vmatpush.msra.mxu0 %v691
        %6841 = vmatpush.msra.mxu0 %v689
        %6842 = vmatpush.msra.mxu0 %v687
        %6843 = vmatpush.msra.mxu0 %v685
        %6844 = vmatpush.msra.mxu0 %v683
        %6845 = vmatpush.msra.mxu0 %v681
        %6846 = vmatpush.msra.mxu0 %v679
        %6847 = vmatmul.f32.gmra.mxu0 %v6777
        %v6848 = vpop.f32.mrf.mxu0
        %v6849 = vadd.f32 %v6827, %v6848
        %6850 = vmatmul.f32.gmra.mxu0 %v6780
        %v6851 = vpop.f32.mrf.mxu0
        %v6852 = vadd.f32 %v6827, %v6851
        %6853 = vmatmul.f32.gmra.mxu0 %v6783
        %v6854 = vpop.f32.mrf.mxu0
        %v6855 = vadd.f32 %v6827, %v6854
        %6856 = vmatmul.f32.gmra.mxu0 %v6786
        %v6857 = vpop.f32.mrf.mxu0
        %v6858 = vadd.f32 %v6827, %v6857
        %6859 = vmatmul.f32.gmra.mxu0 %v6789
        %v6860 = vpop.f32.mrf.mxu0
        %v6861 = vadd.f32 %v6827, %v6860
        %6862 = vmatmul.f32.gmra.mxu0 %v6792
        %v6863 = vpop.f32.mrf.mxu0
        %v6864 = vadd.f32 %v6827, %v6863
        %6865 = vmatmul.f32.gmra.mxu0 %v6795
        %v6866 = vpop.f32.mrf.mxu0
        %v6867 = vadd.f32 %v6827, %v6866
        %6868 = vmatmul.f32.gmra.mxu0 %v6798
        %v6869 = vpop.f32.mrf.mxu0
        %v6870 = vadd.f32 %v6827, %v6869
        %6871 = vmatmul.f32.gmra.mxu0 %v6801
        %v6872 = vpop.f32.mrf.mxu0
        %v6873 = vadd.f32 %v6827, %v6872
        %6874 = vmatmul.f32.gmra.mxu0 %v6804
        %v6875 = vpop.f32.mrf.mxu0
        %v6876 = vadd.f32 %v6827, %v6875
        %6877 = vmatmul.f32.gmra.mxu0 %v6807
        %v6878 = vpop.f32.mrf.mxu0
        %v6879 = vadd.f32 %v6827, %v6878
        %6880 = vmatmul.f32.gmra.mxu0 %v6810
        %v6881 = vpop.f32.mrf.mxu0
        %v6882 = vadd.f32 %v6827, %v6881
        %6883 = vmatmul.f32.gmra.mxu0 %v6813
        %v6884 = vpop.f32.mrf.mxu0
        %v6885 = vadd.f32 %v6827, %v6884
        %6886 = vmatmul.f32.gmra.mxu0 %v6816
        %v6887 = vpop.f32.mrf.mxu0
        %v6888 = vadd.f32 %v6827, %v6887
        %6889 = vmatmul.f32.gmra.mxu0 %v6819
        %v6890 = vpop.f32.mrf.mxu0
        %v6891 = vadd.f32 %v6827, %v6890
        %6892 = vmatmul.f32.gmra.mxu0 %v6822
        %v6893 = vpop.f32.mrf.mxu0
        %v6894 = vadd.f32 %v6827, %v6893
        %6895 = vdwg.mxu0
        %6896 = vmatpush.msra.mxu0 %v710
        %6897 = vmatpush.msra.mxu0 %v708
        %6898 = vmatpush.msra.mxu0 %v706
        %6899 = vmatpush.msra.mxu0 %v704
        %6900 = vmatpush.msra.mxu0 %v702
        %6901 = vmatpush.msra.mxu0 %v700
        %6902 = vmatpush.msra.mxu0 %v698
        %6903 = vmatpush.msra.mxu0 %v696
        %6904 = vmatpush.msra.mxu0 %v694
        %6905 = vmatpush.msra.mxu0 %v692
        %6906 = vmatpush.msra.mxu0 %v690
        %6907 = vmatpush.msra.mxu0 %v688
        %6908 = vmatpush.msra.mxu0 %v686
        %6909 = vmatpush.msra.mxu0 %v684
        %6910 = vmatpush.msra.mxu0 %v682
        %6911 = vmatpush.msra.mxu0 %v680
        %6912 = vmatmul.f32.gmra.mxu0 %v6777
        %v6913 = vpop.f32.mrf.mxu0
        %v6914 = vadd.f32 %v6828, %v6913
        %6915 = vmatmul.f32.gmra.mxu0 %v6780
        %v6916 = vpop.f32.mrf.mxu0
        %v6917 = vadd.f32 %v6828, %v6916
        %6918 = vmatmul.f32.gmra.mxu0 %v6783
        %v6919 = vpop.f32.mrf.mxu0
        %v6920 = vadd.f32 %v6828, %v6919
        %6921 = vmatmul.f32.gmra.mxu0 %v6786
        %v6922 = vpop.f32.mrf.mxu0
        %v6923 = vadd.f32 %v6828, %v6922
        %6924 = vmatmul.f32.gmra.mxu0 %v6789
        %v6925 = vpop.f32.mrf.mxu0
        %v6926 = vadd.f32 %v6828, %v6925
        %6927 = vmatmul.f32.gmra.mxu0 %v6792
        %v6928 = vpop.f32.mrf.mxu0
        %v6929 = vadd.f32 %v6828, %v6928
        %6930 = vmatmul.f32.gmra.mxu0 %v6795
        %v6931 = vpop.f32.mrf.mxu0
        %v6932 = vadd.f32 %v6828, %v6931
        %6933 = vmatmul.f32.gmra.mxu0 %v6798
        %v6934 = vpop.f32.mrf.mxu0
        %v6935 = vadd.f32 %v6828, %v6934
        %6936 = vmatmul.f32.gmra.mxu0 %v6801
        %v6937 = vpop.f32.mrf.mxu0
        %v6938 = vadd.f32 %v6828, %v6937
        %6939 = vmatmul.f32.gmra.mxu0 %v6804
        %v6940 = vpop.f32.mrf.mxu0
        %v6941 = vadd.f32 %v6828, %v6940
        %6942 = vmatmul.f32.gmra.mxu0 %v6807
        %v6943 = vpop.f32.mrf.mxu0
        %v6944 = vadd.f32 %v6828, %v6943
        %6945 = vmatmul.f32.gmra.mxu0 %v6810
        %v6946 = vpop.f32.mrf.mxu0
        %v6947 = vadd.f32 %v6828, %v6946
        %6948 = vmatmul.f32.gmra.mxu0 %v6813
        %v6949 = vpop.f32.mrf.mxu0
        %v6950 = vadd.f32 %v6828, %v6949
        %6951 = vmatmul.f32.gmra.mxu0 %v6816
        %v6952 = vpop.f32.mrf.mxu0
        %v6953 = vadd.f32 %v6828, %v6952
        %6954 = vmatmul.f32.gmra.mxu0 %v6819
        %v6955 = vpop.f32.mrf.mxu0
        %v6956 = vadd.f32 %v6828, %v6955
        %6957 = vmatmul.f32.gmra.mxu0 %v6822
        %v6958 = vpop.f32.mrf.mxu0
        %v6959 = vadd.f32 %v6828, %v6958
        %6960 = vdwg.mxu0
        %v6961 = vmul.f32 %v6849, %v632
        %v6962 = vmul.f32 %v6852, %v635
        %v6963 = vmul.f32 %v6855, %v638
        %v6964 = vmul.f32 %v6858, %v641
        %v6965 = vmul.f32 %v6861, %v644
        %v6966 = vmul.f32 %v6864, %v647
        %v6967 = vmul.f32 %v6867, %v650
        %v6968 = vmul.f32 %v6870, %v653
        %v6969 = vmul.f32 %v6873, %v656
        %v6970 = vmul.f32 %v6876, %v659
        %v6971 = vmul.f32 %v6879, %v662
        %v6972 = vmul.f32 %v6882, %v665
        %v6973 = vmul.f32 %v6885, %v668
        %v6974 = vmul.f32 %v6888, %v671
        %v6975 = vmul.f32 %v6891, %v674
        %v6976 = vmul.f32 %v6894, %v677
        %6977 = vmatpush.msra.mxu0 %v726
        %6978 = vmatpush.msra.mxu0 %v725
        %6979 = vmatpush.msra.mxu0 %v724
        %6980 = vmatpush.msra.mxu0 %v723
        %6981 = vmatpush.msra.mxu0 %v722
        %6982 = vmatpush.msra.mxu0 %v721
        %6983 = vmatpush.msra.mxu0 %v720
        %6984 = vmatpush.msra.mxu0 %v719
        %6985 = vmatpush.msra.mxu0 %v718
        %6986 = vmatpush.msra.mxu0 %v717
        %6987 = vmatpush.msra.mxu0 %v716
        %6988 = vmatpush.msra.mxu0 %v715
        %6989 = vmatpush.msra.mxu0 %v714
        %6990 = vmatpush.msra.mxu0 %v713
        %6991 = vmatpush.msra.mxu0 %v712
        %6992 = vmatpush.msra.mxu0 %v711
        %6993 = vmatmul.f32.gmra.mxu0 %v6961
        %v6994 = vpop.f32.mrf.mxu0
        %v6995 = vadd.f32 0.0, %v6994
        %6996 = vmatmul.f32.gmra.mxu0 %v6962
        %v6997 = vpop.f32.mrf.mxu0
        %v6998 = vadd.f32 0.0, %v6997
        %6999 = vmatmul.f32.gmra.mxu0 %v6963
        %v7000 = vpop.f32.mrf.mxu0
        %v7001 = vadd.f32 0.0, %v7000
        %7002 = vmatmul.f32.gmra.mxu0 %v6964
        %v7003 = vpop.f32.mrf.mxu0
        %v7004 = vadd.f32 0.0, %v7003
        %7005 = vmatmul.f32.gmra.mxu0 %v6965
        %v7006 = vpop.f32.mrf.mxu0
        %v7007 = vadd.f32 0.0, %v7006
        %7008 = vmatmul.f32.gmra.mxu0 %v6966
        %v7009 = vpop.f32.mrf.mxu0
        %v7010 = vadd.f32 0.0, %v7009
        %7011 = vmatmul.f32.gmra.mxu0 %v6967
        %v7012 = vpop.f32.mrf.mxu0
        %v7013 = vadd.f32 0.0, %v7012
        %7014 = vmatmul.f32.gmra.mxu0 %v6968
        %v7015 = vpop.f32.mrf.mxu0
        %v7016 = vadd.f32 0.0, %v7015
        %7017 = vmatmul.f32.gmra.mxu0 %v6969
        %v7018 = vpop.f32.mrf.mxu0
        %v7019 = vadd.f32 0.0, %v7018
        %7020 = vmatmul.f32.gmra.mxu0 %v6970
        %v7021 = vpop.f32.mrf.mxu0
        %v7022 = vadd.f32 0.0, %v7021
        %7023 = vmatmul.f32.gmra.mxu0 %v6971
        %v7024 = vpop.f32.mrf.mxu0
        %v7025 = vadd.f32 0.0, %v7024
        %7026 = vmatmul.f32.gmra.mxu0 %v6972
        %v7027 = vpop.f32.mrf.mxu0
        %v7028 = vadd.f32 0.0, %v7027
        %7029 = vmatmul.f32.gmra.mxu0 %v6973
        %v7030 = vpop.f32.mrf.mxu0
        %v7031 = vadd.f32 0.0, %v7030
        %7032 = vmatmul.f32.gmra.mxu0 %v6974
        %v7033 = vpop.f32.mrf.mxu0
        %v7034 = vadd.f32 0.0, %v7033
        %7035 = vmatmul.f32.gmra.mxu0 %v6975
        %v7036 = vpop.f32.mrf.mxu0
        %v7037 = vadd.f32 0.0, %v7036
        %7038 = vmatmul.f32.gmra.mxu0 %v6976
        %v7039 = vpop.f32.mrf.mxu0
        %v7040 = vadd.f32 0.0, %v7039
        %7041 = vdwg.mxu0
        %v7042 = vmul.f32 %v6914, %v6995
        %v7043 = vmul.f32 %v6917, %v6998
        %v7044 = vmul.f32 %v6920, %v7001
        %v7045 = vmul.f32 %v6923, %v7004
        %v7046 = vmul.f32 %v6926, %v7007
        %v7047 = vmul.f32 %v6929, %v7010
        %v7048 = vmul.f32 %v6932, %v7013
        %v7049 = vmul.f32 %v6935, %v7016
        %v7050 = vmul.f32 %v6938, %v7019
        %v7051 = vmul.f32 %v6941, %v7022
        %v7052 = vmul.f32 %v6944, %v7025
        %v7053 = vmul.f32 %v6947, %v7028
        %v7054 = vmul.f32 %v6950, %v7031
        %v7055 = vmul.f32 %v6953, %v7034
        %v7056 = vmul.f32 %v6956, %v7037
        %v7057 = vmul.f32 %v6959, %v7040
        %s7058 = scalar_lea.vmem [#allocation14], 1792
        %v7059 = vld [vmem:[%s7058] sm:$0xff]
        %v7060 = vld [vmem:[%s7058 + $0x8] sm:$0xff]
        %v7061 = vld [vmem:[%s7058 + $0x10] sm:$0xff]
        %v7062 = vld [vmem:[%s7058 + $0x18] sm:$0xff]
        %v7063 = vld [vmem:[%s7058 + $0x20] sm:$0xff]
        %v7064 = vld [vmem:[%s7058 + $0x28] sm:$0xff]
        %v7065 = vld [vmem:[%s7058 + $0x30] sm:$0xff]
        %v7066 = vld [vmem:[%s7058 + $0x38] sm:$0xff]
        %v7067 = vld [vmem:[%s7058 + $0x40] sm:$0xff]
        %v7068 = vld [vmem:[%s7058 + $0x48] sm:$0xff]
        %v7069 = vld [vmem:[%s7058 + $0x50] sm:$0xff]
        %v7070 = vld [vmem:[%s7058 + $0x58] sm:$0xff]
        %v7071 = vld [vmem:[%s7058 + $0x60] sm:$0xff]
        %v7072 = vld [vmem:[%s7058 + $0x68] sm:$0xff]
        %v7073 = vld [vmem:[%s7058 + $0x70] sm:$0xff]
        %v7074 = vld [vmem:[%s7058 + $0x78] sm:$0xff]
        %7075 = vmatpush.msra.mxu0 %v7074
        %7076 = vmatpush.msra.mxu0 %v7073
        %7077 = vmatpush.msra.mxu0 %v7072
        %7078 = vmatpush.msra.mxu0 %v7071
        %7079 = vmatpush.msra.mxu0 %v7070
        %7080 = vmatpush.msra.mxu0 %v7069
        %7081 = vmatpush.msra.mxu0 %v7068
        %7082 = vmatpush.msra.mxu0 %v7067
        %7083 = vmatpush.msra.mxu0 %v7066
        %7084 = vmatpush.msra.mxu0 %v7065
        %7085 = vmatpush.msra.mxu0 %v7064
        %7086 = vmatpush.msra.mxu0 %v7063
        %7087 = vmatpush.msra.mxu0 %v7062
        %7088 = vmatpush.msra.mxu0 %v7061
        %7089 = vmatpush.msra.mxu0 %v7060
        %7090 = vmatpush.msra.mxu0 %v7059
        %7091 = vmatmul.f32.gmra.mxu0 %v7042
        %v7092 = vpop.f32.mrf.mxu0
        %v7093 = vadd.f32 0.0, %v7092
        %7094 = vmatmul.f32.gmra.mxu0 %v7043
        %v7095 = vpop.f32.mrf.mxu0
        %v7096 = vadd.f32 0.0, %v7095
        %7097 = vmatmul.f32.gmra.mxu0 %v7044
        %v7098 = vpop.f32.mrf.mxu0
        %v7099 = vadd.f32 0.0, %v7098
        %7100 = vmatmul.f32.gmra.mxu0 %v7045
        %v7101 = vpop.f32.mrf.mxu0
        %v7102 = vadd.f32 0.0, %v7101
        %7103 = vmatmul.f32.gmra.mxu0 %v7046
        %v7104 = vpop.f32.mrf.mxu0
        %v7105 = vadd.f32 0.0, %v7104
        %7106 = vmatmul.f32.gmra.mxu0 %v7047
        %v7107 = vpop.f32.mrf.mxu0
        %v7108 = vadd.f32 0.0, %v7107
        %7109 = vmatmul.f32.gmra.mxu0 %v7048
        %v7110 = vpop.f32.mrf.mxu0
        %v7111 = vadd.f32 0.0, %v7110
        %7112 = vmatmul.f32.gmra.mxu0 %v7049
        %v7113 = vpop.f32.mrf.mxu0
        %v7114 = vadd.f32 0.0, %v7113
        %7115 = vmatmul.f32.gmra.mxu0 %v7050
        %v7116 = vpop.f32.mrf.mxu0
        %v7117 = vadd.f32 0.0, %v7116
        %7118 = vmatmul.f32.gmra.mxu0 %v7051
        %v7119 = vpop.f32.mrf.mxu0
        %v7120 = vadd.f32 0.0, %v7119
        %7121 = vmatmul.f32.gmra.mxu0 %v7052
        %v7122 = vpop.f32.mrf.mxu0
        %v7123 = vadd.f32 0.0, %v7122
        %7124 = vmatmul.f32.gmra.mxu0 %v7053
        %v7125 = vpop.f32.mrf.mxu0
        %v7126 = vadd.f32 0.0, %v7125
        %7127 = vmatmul.f32.gmra.mxu0 %v7054
        %v7128 = vpop.f32.mrf.mxu0
        %v7129 = vadd.f32 0.0, %v7128
        %7130 = vmatmul.f32.gmra.mxu0 %v7055
        %v7131 = vpop.f32.mrf.mxu0
        %v7132 = vadd.f32 0.0, %v7131
        %7133 = vmatmul.f32.gmra.mxu0 %v7056
        %v7134 = vpop.f32.mrf.mxu0
        %v7135 = vadd.f32 0.0, %v7134
        %7136 = vmatmul.f32.gmra.mxu0 %v7057
        %v7137 = vpop.f32.mrf.mxu0
        %v7138 = vadd.f32 0.0, %v7137
        %7139 = vdwg.mxu0
        %v7140 = vadd.f32 %v6709, %v7093
        %v7141 = vadd.f32 %v6710, %v7096
        %v7142 = vadd.f32 %v6711, %v7099
        %v7143 = vadd.f32 %v6712, %v7102
        %v7144 = vadd.f32 %v6713, %v7105
        %v7145 = vadd.f32 %v6714, %v7108
        %v7146 = vadd.f32 %v6715, %v7111
        %v7147 = vadd.f32 %v6716, %v7114
        %v7148 = vadd.f32 %v6717, %v7117
        %v7149 = vadd.f32 %v6718, %v7120
        %v7150 = vadd.f32 %v6719, %v7123
        %v7151 = vadd.f32 %v6720, %v7126
        %v7152 = vadd.f32 %v6721, %v7129
        %v7153 = vadd.f32 %v6722, %v7132
        %v7154 = vadd.f32 %v6723, %v7135
        %v7155 = vadd.f32 %v6724, %v7138
        %s7156 = scalar_lea.vmem [#allocation7], 1920
        %v7157 = vld [vmem:[%s7156] sm:$0xff]
        %v7158 = vld [vmem:[%s7156 + $0x8] sm:$0xff]
        %v7159 = vld [vmem:[%s7156 + $0x10] sm:$0xff]
        %v7160 = vld [vmem:[%s7156 + $0x18] sm:$0xff]
        %v7161 = vld [vmem:[%s7156 + $0x20] sm:$0xff]
        %v7162 = vld [vmem:[%s7156 + $0x28] sm:$0xff]
        %v7163 = vld [vmem:[%s7156 + $0x30] sm:$0xff]
        %v7164 = vld [vmem:[%s7156 + $0x38] sm:$0xff]
        %v7165 = vld [vmem:[%s7156 + $0x40] sm:$0xff]
        %v7166 = vld [vmem:[%s7156 + $0x48] sm:$0xff]
        %v7167 = vld [vmem:[%s7156 + $0x50] sm:$0xff]
        %v7168 = vld [vmem:[%s7156 + $0x58] sm:$0xff]
        %v7169 = vld [vmem:[%s7156 + $0x60] sm:$0xff]
        %v7170 = vld [vmem:[%s7156 + $0x68] sm:$0xff]
        %v7171 = vld [vmem:[%s7156 + $0x70] sm:$0xff]
        %v7172 = vld [vmem:[%s7156 + $0x78] sm:$0xff]
        %s7173 = scalar_lea.vmem %s492, 1920 [#allocation5]
        %v7174 = vld [vmem:[%s7173] sm:$0xff]
        %v7175 = vld [vmem:[%s7173 + $0x8] sm:$0xff]
        %v7176 = vld [vmem:[%s7173 + $0x10] sm:$0xff]
        %v7177 = vld [vmem:[%s7173 + $0x18] sm:$0xff]
        %v7178 = vld [vmem:[%s7173 + $0x20] sm:$0xff]
        %v7179 = vld [vmem:[%s7173 + $0x28] sm:$0xff]
        %v7180 = vld [vmem:[%s7173 + $0x30] sm:$0xff]
        %v7181 = vld [vmem:[%s7173 + $0x38] sm:$0xff]
        %v7182 = vld [vmem:[%s7173 + $0x40] sm:$0xff]
        %v7183 = vld [vmem:[%s7173 + $0x48] sm:$0xff]
        %v7184 = vld [vmem:[%s7173 + $0x50] sm:$0xff]
        %v7185 = vld [vmem:[%s7173 + $0x58] sm:$0xff]
        %v7186 = vld [vmem:[%s7173 + $0x60] sm:$0xff]
        %v7187 = vld [vmem:[%s7173 + $0x68] sm:$0xff]
        %v7188 = vld [vmem:[%s7173 + $0x70] sm:$0xff]
        %v7189 = vld [vmem:[%s7173 + $0x78] sm:$0xff]
        %7190 = vmatpush.msra.mxu0 %v7172
        %7191 = vmatpush.msra.mxu0 %v7171
        %7192 = vmatpush.msra.mxu0 %v7170
        %7193 = vmatpush.msra.mxu0 %v7169
        %7194 = vmatpush.msra.mxu0 %v7168
        %7195 = vmatpush.msra.mxu0 %v7167
        %7196 = vmatpush.msra.mxu0 %v7166
        %7197 = vmatpush.msra.mxu0 %v7165
        %7198 = vmatpush.msra.mxu0 %v7164
        %7199 = vmatpush.msra.mxu0 %v7163
        %7200 = vmatpush.msra.mxu0 %v7162
        %7201 = vmatpush.msra.mxu0 %v7161
        %7202 = vmatpush.msra.mxu0 %v7160
        %7203 = vmatpush.msra.mxu0 %v7159
        %7204 = vmatpush.msra.mxu0 %v7158
        %7205 = vmatpush.msra.mxu0 %v7157
        %7206 = vmatmul.f32.gmra.mxu0 %v578
        %v7207 = vpop.f32.mrf.mxu0
        %v7208 = vadd.f32 %v7174, %v7207
        %7209 = vmatmul.f32.gmra.mxu0 %v579
        %v7210 = vpop.f32.mrf.mxu0
        %v7211 = vadd.f32 %v7175, %v7210
        %7212 = vmatmul.f32.gmra.mxu0 %v580
        %v7213 = vpop.f32.mrf.mxu0
        %v7214 = vadd.f32 %v7176, %v7213
        %7215 = vmatmul.f32.gmra.mxu0 %v581
        %v7216 = vpop.f32.mrf.mxu0
        %v7217 = vadd.f32 %v7177, %v7216
        %7218 = vmatmul.f32.gmra.mxu0 %v582
        %v7219 = vpop.f32.mrf.mxu0
        %v7220 = vadd.f32 %v7178, %v7219
        %7221 = vmatmul.f32.gmra.mxu0 %v583
        %v7222 = vpop.f32.mrf.mxu0
        %v7223 = vadd.f32 %v7179, %v7222
        %7224 = vmatmul.f32.gmra.mxu0 %v584
        %v7225 = vpop.f32.mrf.mxu0
        %v7226 = vadd.f32 %v7180, %v7225
        %7227 = vmatmul.f32.gmra.mxu0 %v585
        %v7228 = vpop.f32.mrf.mxu0
        %v7229 = vadd.f32 %v7181, %v7228
        %7230 = vmatmul.f32.gmra.mxu0 %v586
        %v7231 = vpop.f32.mrf.mxu0
        %v7232 = vadd.f32 %v7182, %v7231
        %7233 = vmatmul.f32.gmra.mxu0 %v587
        %v7234 = vpop.f32.mrf.mxu0
        %v7235 = vadd.f32 %v7183, %v7234
        %7236 = vmatmul.f32.gmra.mxu0 %v588
        %v7237 = vpop.f32.mrf.mxu0
        %v7238 = vadd.f32 %v7184, %v7237
        %7239 = vmatmul.f32.gmra.mxu0 %v589
        %v7240 = vpop.f32.mrf.mxu0
        %v7241 = vadd.f32 %v7185, %v7240
        %7242 = vmatmul.f32.gmra.mxu0 %v590
        %v7243 = vpop.f32.mrf.mxu0
        %v7244 = vadd.f32 %v7186, %v7243
        %7245 = vmatmul.f32.gmra.mxu0 %v591
        %v7246 = vpop.f32.mrf.mxu0
        %v7247 = vadd.f32 %v7187, %v7246
        %7248 = vmatmul.f32.gmra.mxu0 %v592
        %v7249 = vpop.f32.mrf.mxu0
        %v7250 = vadd.f32 %v7188, %v7249
        %7251 = vmatmul.f32.gmra.mxu0 %v593
        %v7252 = vpop.f32.mrf.mxu0
        %v7253 = vadd.f32 %v7189, %v7252
        %7254 = vdwg.mxu0
        %s7255 = scalar_lea.vmem [#allocation13], 30
        %v7256 = vld [vmem:[%s7255] sm:$0x3]
        %v7258 = vperm.slane %v7256, 0
        %v7259 = vperm.slane %v7256, 1
        %7262 = vmatpush.msra.mxu0 %v709
        %7263 = vmatpush.msra.mxu0 %v707
        %7264 = vmatpush.msra.mxu0 %v705
        %7265 = vmatpush.msra.mxu0 %v703
        %7266 = vmatpush.msra.mxu0 %v701
        %7267 = vmatpush.msra.mxu0 %v699
        %7268 = vmatpush.msra.mxu0 %v697
        %7269 = vmatpush.msra.mxu0 %v695
        %7270 = vmatpush.msra.mxu0 %v693
        %7271 = vmatpush.msra.mxu0 %v691
        %7272 = vmatpush.msra.mxu0 %v689
        %7273 = vmatpush.msra.mxu0 %v687
        %7274 = vmatpush.msra.mxu0 %v685
        %7275 = vmatpush.msra.mxu0 %v683
        %7276 = vmatpush.msra.mxu0 %v681
        %7277 = vmatpush.msra.mxu0 %v679
        %7278 = vmatmul.f32.gmra.mxu0 %v7208
        %v7279 = vpop.f32.mrf.mxu0
        %v7280 = vadd.f32 %v7258, %v7279
        %7281 = vmatmul.f32.gmra.mxu0 %v7211
        %v7282 = vpop.f32.mrf.mxu0
        %v7283 = vadd.f32 %v7258, %v7282
        %7284 = vmatmul.f32.gmra.mxu0 %v7214
        %v7285 = vpop.f32.mrf.mxu0
        %v7286 = vadd.f32 %v7258, %v7285
        %7287 = vmatmul.f32.gmra.mxu0 %v7217
        %v7288 = vpop.f32.mrf.mxu0
        %v7289 = vadd.f32 %v7258, %v7288
        %7290 = vmatmul.f32.gmra.mxu0 %v7220
        %v7291 = vpop.f32.mrf.mxu0
        %v7292 = vadd.f32 %v7258, %v7291
        %7293 = vmatmul.f32.gmra.mxu0 %v7223
        %v7294 = vpop.f32.mrf.mxu0
        %v7295 = vadd.f32 %v7258, %v7294
        %7296 = vmatmul.f32.gmra.mxu0 %v7226
        %v7297 = vpop.f32.mrf.mxu0
        %v7298 = vadd.f32 %v7258, %v7297
        %7299 = vmatmul.f32.gmra.mxu0 %v7229
        %v7300 = vpop.f32.mrf.mxu0
        %v7301 = vadd.f32 %v7258, %v7300
        %7302 = vmatmul.f32.gmra.mxu0 %v7232
        %v7303 = vpop.f32.mrf.mxu0
        %v7304 = vadd.f32 %v7258, %v7303
        %7305 = vmatmul.f32.gmra.mxu0 %v7235
        %v7306 = vpop.f32.mrf.mxu0
        %v7307 = vadd.f32 %v7258, %v7306
        %7308 = vmatmul.f32.gmra.mxu0 %v7238
        %v7309 = vpop.f32.mrf.mxu0
        %v7310 = vadd.f32 %v7258, %v7309
        %7311 = vmatmul.f32.gmra.mxu0 %v7241
        %v7312 = vpop.f32.mrf.mxu0
        %v7313 = vadd.f32 %v7258, %v7312
        %7314 = vmatmul.f32.gmra.mxu0 %v7244
        %v7315 = vpop.f32.mrf.mxu0
        %v7316 = vadd.f32 %v7258, %v7315
        %7317 = vmatmul.f32.gmra.mxu0 %v7247
        %v7318 = vpop.f32.mrf.mxu0
        %v7319 = vadd.f32 %v7258, %v7318
        %7320 = vmatmul.f32.gmra.mxu0 %v7250
        %v7321 = vpop.f32.mrf.mxu0
        %v7322 = vadd.f32 %v7258, %v7321
        %7323 = vmatmul.f32.gmra.mxu0 %v7253
        %v7324 = vpop.f32.mrf.mxu0
        %v7325 = vadd.f32 %v7258, %v7324
        %7326 = vdwg.mxu0
        %7327 = vmatpush.msra.mxu0 %v710
        %7328 = vmatpush.msra.mxu0 %v708
        %7329 = vmatpush.msra.mxu0 %v706
        %7330 = vmatpush.msra.mxu0 %v704
        %7331 = vmatpush.msra.mxu0 %v702
        %7332 = vmatpush.msra.mxu0 %v700
        %7333 = vmatpush.msra.mxu0 %v698
        %7334 = vmatpush.msra.mxu0 %v696
        %7335 = vmatpush.msra.mxu0 %v694
        %7336 = vmatpush.msra.mxu0 %v692
        %7337 = vmatpush.msra.mxu0 %v690
        %7338 = vmatpush.msra.mxu0 %v688
        %7339 = vmatpush.msra.mxu0 %v686
        %7340 = vmatpush.msra.mxu0 %v684
        %7341 = vmatpush.msra.mxu0 %v682
        %7342 = vmatpush.msra.mxu0 %v680
        %7343 = vmatmul.f32.gmra.mxu0 %v7208
        %v7344 = vpop.f32.mrf.mxu0
        %v7345 = vadd.f32 %v7259, %v7344
        %7346 = vmatmul.f32.gmra.mxu0 %v7211
        %v7347 = vpop.f32.mrf.mxu0
        %v7348 = vadd.f32 %v7259, %v7347
        %7349 = vmatmul.f32.gmra.mxu0 %v7214
        %v7350 = vpop.f32.mrf.mxu0
        %v7351 = vadd.f32 %v7259, %v7350
        %7352 = vmatmul.f32.gmra.mxu0 %v7217
        %v7353 = vpop.f32.mrf.mxu0
        %v7354 = vadd.f32 %v7259, %v7353
        %7355 = vmatmul.f32.gmra.mxu0 %v7220
        %v7356 = vpop.f32.mrf.mxu0
        %v7357 = vadd.f32 %v7259, %v7356
        %7358 = vmatmul.f32.gmra.mxu0 %v7223
        %v7359 = vpop.f32.mrf.mxu0
        %v7360 = vadd.f32 %v7259, %v7359
        %7361 = vmatmul.f32.gmra.mxu0 %v7226
        %v7362 = vpop.f32.mrf.mxu0
        %v7363 = vadd.f32 %v7259, %v7362
        %7364 = vmatmul.f32.gmra.mxu0 %v7229
        %v7365 = vpop.f32.mrf.mxu0
        %v7366 = vadd.f32 %v7259, %v7365
        %7367 = vmatmul.f32.gmra.mxu0 %v7232
        %v7368 = vpop.f32.mrf.mxu0
        %v7369 = vadd.f32 %v7259, %v7368
        %7370 = vmatmul.f32.gmra.mxu0 %v7235
        %v7371 = vpop.f32.mrf.mxu0
        %v7372 = vadd.f32 %v7259, %v7371
        %7373 = vmatmul.f32.gmra.mxu0 %v7238
        %v7374 = vpop.f32.mrf.mxu0
        %v7375 = vadd.f32 %v7259, %v7374
        %7376 = vmatmul.f32.gmra.mxu0 %v7241
        %v7377 = vpop.f32.mrf.mxu0
        %v7378 = vadd.f32 %v7259, %v7377
        %7379 = vmatmul.f32.gmra.mxu0 %v7244
        %v7380 = vpop.f32.mrf.mxu0
        %v7381 = vadd.f32 %v7259, %v7380
        %7382 = vmatmul.f32.gmra.mxu0 %v7247
        %v7383 = vpop.f32.mrf.mxu0
        %v7384 = vadd.f32 %v7259, %v7383
        %7385 = vmatmul.f32.gmra.mxu0 %v7250
        %v7386 = vpop.f32.mrf.mxu0
        %v7387 = vadd.f32 %v7259, %v7386
        %7388 = vmatmul.f32.gmra.mxu0 %v7253
        %v7389 = vpop.f32.mrf.mxu0
        %v7390 = vadd.f32 %v7259, %v7389
        %7391 = vdwg.mxu0
        %v7392 = vmul.f32 %v7280, %v632
        %v7393 = vmul.f32 %v7283, %v635
        %v7394 = vmul.f32 %v7286, %v638
        %v7395 = vmul.f32 %v7289, %v641
        %v7396 = vmul.f32 %v7292, %v644
        %v7397 = vmul.f32 %v7295, %v647
        %v7398 = vmul.f32 %v7298, %v650
        %v7399 = vmul.f32 %v7301, %v653
        %v7400 = vmul.f32 %v7304, %v656
        %v7401 = vmul.f32 %v7307, %v659
        %v7402 = vmul.f32 %v7310, %v662
        %v7403 = vmul.f32 %v7313, %v665
        %v7404 = vmul.f32 %v7316, %v668
        %v7405 = vmul.f32 %v7319, %v671
        %v7406 = vmul.f32 %v7322, %v674
        %v7407 = vmul.f32 %v7325, %v677
        %7408 = vmatpush.msra.mxu0 %v726
        %7409 = vmatpush.msra.mxu0 %v725
        %7410 = vmatpush.msra.mxu0 %v724
        %7411 = vmatpush.msra.mxu0 %v723
        %7412 = vmatpush.msra.mxu0 %v722
        %7413 = vmatpush.msra.mxu0 %v721
        %7414 = vmatpush.msra.mxu0 %v720
        %7415 = vmatpush.msra.mxu0 %v719
        %7416 = vmatpush.msra.mxu0 %v718
        %7417 = vmatpush.msra.mxu0 %v717
        %7418 = vmatpush.msra.mxu0 %v716
        %7419 = vmatpush.msra.mxu0 %v715
        %7420 = vmatpush.msra.mxu0 %v714
        %7421 = vmatpush.msra.mxu0 %v713
        %7422 = vmatpush.msra.mxu0 %v712
        %7423 = vmatpush.msra.mxu0 %v711
        %7424 = vmatmul.f32.gmra.mxu0 %v7392
        %v7425 = vpop.f32.mrf.mxu0
        %v7426 = vadd.f32 0.0, %v7425
        %7427 = vmatmul.f32.gmra.mxu0 %v7393
        %v7428 = vpop.f32.mrf.mxu0
        %v7429 = vadd.f32 0.0, %v7428
        %7430 = vmatmul.f32.gmra.mxu0 %v7394
        %v7431 = vpop.f32.mrf.mxu0
        %v7432 = vadd.f32 0.0, %v7431
        %7433 = vmatmul.f32.gmra.mxu0 %v7395
        %v7434 = vpop.f32.mrf.mxu0
        %v7435 = vadd.f32 0.0, %v7434
        %7436 = vmatmul.f32.gmra.mxu0 %v7396
        %v7437 = vpop.f32.mrf.mxu0
        %v7438 = vadd.f32 0.0, %v7437
        %7439 = vmatmul.f32.gmra.mxu0 %v7397
        %v7440 = vpop.f32.mrf.mxu0
        %v7441 = vadd.f32 0.0, %v7440
        %7442 = vmatmul.f32.gmra.mxu0 %v7398
        %v7443 = vpop.f32.mrf.mxu0
        %v7444 = vadd.f32 0.0, %v7443
        %7445 = vmatmul.f32.gmra.mxu0 %v7399
        %v7446 = vpop.f32.mrf.mxu0
        %v7447 = vadd.f32 0.0, %v7446
        %7448 = vmatmul.f32.gmra.mxu0 %v7400
        %v7449 = vpop.f32.mrf.mxu0
        %v7450 = vadd.f32 0.0, %v7449
        %7451 = vmatmul.f32.gmra.mxu0 %v7401
        %v7452 = vpop.f32.mrf.mxu0
        %v7453 = vadd.f32 0.0, %v7452
        %7454 = vmatmul.f32.gmra.mxu0 %v7402
        %v7455 = vpop.f32.mrf.mxu0
        %v7456 = vadd.f32 0.0, %v7455
        %7457 = vmatmul.f32.gmra.mxu0 %v7403
        %v7458 = vpop.f32.mrf.mxu0
        %v7459 = vadd.f32 0.0, %v7458
        %7460 = vmatmul.f32.gmra.mxu0 %v7404
        %v7461 = vpop.f32.mrf.mxu0
        %v7462 = vadd.f32 0.0, %v7461
        %7463 = vmatmul.f32.gmra.mxu0 %v7405
        %v7464 = vpop.f32.mrf.mxu0
        %v7465 = vadd.f32 0.0, %v7464
        %7466 = vmatmul.f32.gmra.mxu0 %v7406
        %v7467 = vpop.f32.mrf.mxu0
        %v7468 = vadd.f32 0.0, %v7467
        %7469 = vmatmul.f32.gmra.mxu0 %v7407
        %v7470 = vpop.f32.mrf.mxu0
        %v7471 = vadd.f32 0.0, %v7470
        %7472 = vdwg.mxu0
        %v7473 = vmul.f32 %v7345, %v7426
        %v7474 = vmul.f32 %v7348, %v7429
        %v7475 = vmul.f32 %v7351, %v7432
        %v7476 = vmul.f32 %v7354, %v7435
        %v7477 = vmul.f32 %v7357, %v7438
        %v7478 = vmul.f32 %v7360, %v7441
        %v7479 = vmul.f32 %v7363, %v7444
        %v7480 = vmul.f32 %v7366, %v7447
        %v7481 = vmul.f32 %v7369, %v7450
        %v7482 = vmul.f32 %v7372, %v7453
        %v7483 = vmul.f32 %v7375, %v7456
        %v7484 = vmul.f32 %v7378, %v7459
        %v7485 = vmul.f32 %v7381, %v7462
        %v7486 = vmul.f32 %v7384, %v7465
        %v7487 = vmul.f32 %v7387, %v7468
        %v7488 = vmul.f32 %v7390, %v7471
        %s7489 = scalar_lea.vmem [#allocation14], 1920
        %v7490 = vld [vmem:[%s7489] sm:$0xff]
        %v7491 = vld [vmem:[%s7489 + $0x8] sm:$0xff]
        %v7492 = vld [vmem:[%s7489 + $0x10] sm:$0xff]
        %v7493 = vld [vmem:[%s7489 + $0x18] sm:$0xff]
        %v7494 = vld [vmem:[%s7489 + $0x20] sm:$0xff]
        %v7495 = vld [vmem:[%s7489 + $0x28] sm:$0xff]
        %v7496 = vld [vmem:[%s7489 + $0x30] sm:$0xff]
        %v7497 = vld [vmem:[%s7489 + $0x38] sm:$0xff]
        %v7498 = vld [vmem:[%s7489 + $0x40] sm:$0xff]
        %v7499 = vld [vmem:[%s7489 + $0x48] sm:$0xff]
        %v7500 = vld [vmem:[%s7489 + $0x50] sm:$0xff]
        %v7501 = vld [vmem:[%s7489 + $0x58] sm:$0xff]
        %v7502 = vld [vmem:[%s7489 + $0x60] sm:$0xff]
        %v7503 = vld [vmem:[%s7489 + $0x68] sm:$0xff]
        %v7504 = vld [vmem:[%s7489 + $0x70] sm:$0xff]
        %v7505 = vld [vmem:[%s7489 + $0x78] sm:$0xff]
        %7506 = vmatpush.msra.mxu0 %v7505
        %7507 = vmatpush.msra.mxu0 %v7504
        %7508 = vmatpush.msra.mxu0 %v7503
        %7509 = vmatpush.msra.mxu0 %v7502
        %7510 = vmatpush.msra.mxu0 %v7501
        %7511 = vmatpush.msra.mxu0 %v7500
        %7512 = vmatpush.msra.mxu0 %v7499
        %7513 = vmatpush.msra.mxu0 %v7498
        %7514 = vmatpush.msra.mxu0 %v7497
        %7515 = vmatpush.msra.mxu0 %v7496
        %7516 = vmatpush.msra.mxu0 %v7495
        %7517 = vmatpush.msra.mxu0 %v7494
        %7518 = vmatpush.msra.mxu0 %v7493
        %7519 = vmatpush.msra.mxu0 %v7492
        %7520 = vmatpush.msra.mxu0 %v7491
        %7521 = vmatpush.msra.mxu0 %v7490
        %7522 = vmatmul.f32.gmra.mxu0 %v7473
        %v7523 = vpop.f32.mrf.mxu0
        %v7524 = vadd.f32 0.0, %v7523
        %7525 = vmatmul.f32.gmra.mxu0 %v7474
        %v7526 = vpop.f32.mrf.mxu0
        %v7527 = vadd.f32 0.0, %v7526
        %7528 = vmatmul.f32.gmra.mxu0 %v7475
        %v7529 = vpop.f32.mrf.mxu0
        %v7530 = vadd.f32 0.0, %v7529
        %7531 = vmatmul.f32.gmra.mxu0 %v7476
        %v7532 = vpop.f32.mrf.mxu0
        %v7533 = vadd.f32 0.0, %v7532
        %7534 = vmatmul.f32.gmra.mxu0 %v7477
        %v7535 = vpop.f32.mrf.mxu0
        %v7536 = vadd.f32 0.0, %v7535
        %7537 = vmatmul.f32.gmra.mxu0 %v7478
        %v7538 = vpop.f32.mrf.mxu0
        %v7539 = vadd.f32 0.0, %v7538
        %7540 = vmatmul.f32.gmra.mxu0 %v7479
        %v7541 = vpop.f32.mrf.mxu0
        %v7542 = vadd.f32 0.0, %v7541
        %7543 = vmatmul.f32.gmra.mxu0 %v7480
        %v7544 = vpop.f32.mrf.mxu0
        %v7545 = vadd.f32 0.0, %v7544
        %7546 = vmatmul.f32.gmra.mxu0 %v7481
        %v7547 = vpop.f32.mrf.mxu0
        %v7548 = vadd.f32 0.0, %v7547
        %7549 = vmatmul.f32.gmra.mxu0 %v7482
        %v7550 = vpop.f32.mrf.mxu0
        %v7551 = vadd.f32 0.0, %v7550
        %7552 = vmatmul.f32.gmra.mxu0 %v7483
        %v7553 = vpop.f32.mrf.mxu0
        %v7554 = vadd.f32 0.0, %v7553
        %7555 = vmatmul.f32.gmra.mxu0 %v7484
        %v7556 = vpop.f32.mrf.mxu0
        %v7557 = vadd.f32 0.0, %v7556
        %7558 = vmatmul.f32.gmra.mxu0 %v7485
        %v7559 = vpop.f32.mrf.mxu0
        %v7560 = vadd.f32 0.0, %v7559
        %7561 = vmatmul.f32.gmra.mxu0 %v7486
        %v7562 = vpop.f32.mrf.mxu0
        %v7563 = vadd.f32 0.0, %v7562
        %7564 = vmatmul.f32.gmra.mxu0 %v7487
        %v7565 = vpop.f32.mrf.mxu0
        %v7566 = vadd.f32 0.0, %v7565
        %7567 = vmatmul.f32.gmra.mxu0 %v7488
        %v7568 = vpop.f32.mrf.mxu0
        %v7569 = vadd.f32 0.0, %v7568
        %7570 = vdwg.mxu0
        %v7571 = vadd.f32 %v7140, %v7524
        %v7572 = vadd.f32 %v7141, %v7527
        %v7573 = vadd.f32 %v7142, %v7530
        %v7574 = vadd.f32 %v7143, %v7533
        %v7575 = vadd.f32 %v7144, %v7536
        %v7576 = vadd.f32 %v7145, %v7539
        %v7577 = vadd.f32 %v7146, %v7542
        %v7578 = vadd.f32 %v7147, %v7545
        %v7579 = vadd.f32 %v7148, %v7548
        %v7580 = vadd.f32 %v7149, %v7551
        %v7581 = vadd.f32 %v7150, %v7554
        %v7582 = vadd.f32 %v7151, %v7557
        %v7583 = vadd.f32 %v7152, %v7560
        %v7584 = vadd.f32 %v7153, %v7563
        %v7585 = vadd.f32 %v7154, %v7566
        %v7586 = vadd.f32 %v7155, %v7569
        %v7587 = vld [vmem:[#allocation16] sm:$0x1]
        %v7589 = vperm.slane %v7587, 0
        %v7591 = vadd.f32 %v7571, %v7589
        %v7592 = vadd.f32 %v7572, %v7589
        %v7593 = vadd.f32 %v7573, %v7589
        %v7594 = vadd.f32 %v7574, %v7589
        %v7595 = vadd.f32 %v7575, %v7589
        %v7596 = vadd.f32 %v7576, %v7589
        %v7597 = vadd.f32 %v7577, %v7589
        %v7598 = vadd.f32 %v7578, %v7589
        %v7599 = vadd.f32 %v7579, %v7589
        %v7600 = vadd.f32 %v7580, %v7589
        %v7601 = vadd.f32 %v7581, %v7589
        %v7602 = vadd.f32 %v7582, %v7589
        %v7603 = vadd.f32 %v7583, %v7589
        %v7604 = vadd.f32 %v7584, %v7589
        %v7605 = vadd.f32 %v7585, %v7589
        %v7606 = vadd.f32 %v7586, %v7589
        %7607 = vst [vmem:[%s574] sm:$0xff] %v7591
        %7608 = vst [vmem:[%s574 + $0x8] sm:$0xff] %v7592
        %7609 = vst [vmem:[%s574 + $0x10] sm:$0xff] %v7593
        %7610 = vst [vmem:[%s574 + $0x18] sm:$0xff] %v7594
        %7611 = vst [vmem:[%s574 + $0x20] sm:$0xff] %v7595
        %7612 = vst [vmem:[%s574 + $0x28] sm:$0xff] %v7596
        %7613 = vst [vmem:[%s574 + $0x30] sm:$0xff] %v7597
        %7614 = vst [vmem:[%s574 + $0x38] sm:$0xff] %v7598
        %7615 = vst [vmem:[%s574 + $0x40] sm:$0xff] %v7599
        %7616 = vst [vmem:[%s574 + $0x48] sm:$0xff] %v7600
        %7617 = vst [vmem:[%s574 + $0x50] sm:$0xff] %v7601
        %7618 = vst [vmem:[%s574 + $0x58] sm:$0xff] %v7602
        %7619 = vst [vmem:[%s574 + $0x60] sm:$0xff] %v7603
        %7620 = vst [vmem:[%s574 + $0x68] sm:$0xff] %v7604
        %7621 = vst [vmem:[%s574 + $0x70] sm:$0xff] %v7605
        %7622 = vst [vmem:[%s574 + $0x78] sm:$0xff] %v7606
        %s7623 = sand.u32 %s262, 1
        %s7624 = scalar_lea.sflag [#allocation4], %s7623
        %s7625 = sand.u32 %s262, 1
        %s7626 = smul.addr %s7625, 128
        %s7627 = scalar_lea.vmem [#allocation19], %s7626
        // Predicated region
        $region101: #{tpu_custom_call.1} parent=59 // pred_check
          %p7628 = pneg %p272
        $region102: #{tpu_custom_call.1} parent=59 // pred_check_branch
          %7630 = sbr.rel (%p7628) target = $region104
        $region103: #{tpu_custom_call.1} parent=59 // pred_region
          %s7631 = smul.u32 16, %s34
          %7633 = vsyncadd %s7624, 0
          %s7634 = smul.addr %s7631, 8
          %s7635 = scalar_lea.hbm %s10, %s7634
          %s7636 = sshll.u32 %s7627, 4
          %s7637 = int_to_ptr.vmem [resolvable:$true] %s7636
          %s7638 = sshll.u32 %s7635, 4
          %s7639 = int_to_ptr.hbm [resolvable:$true] %s7638
          %7644 = dma.vmem_to_hbm [thread:$0]  %s7637, 2048, %s7639, %s7624, 128, 128, 8
        $region104: #{tpu_custom_call.1} parent=59 // pred_fallthru
          _
      $region60: #{tpu_custom_call.1} parent=5 // pred_fallthru
        _
      %p7645 = scmp.le.s32.totalorder 2, %s29
      // Predicated region
      $region105: #{tpu_custom_call.1} parent=5 // pred_check
        %p7646 = pneg %p7645
      $region106: #{tpu_custom_call.1} parent=5 // pred_check_branch
        %7648 = sbr.rel (%p7646) target = $region108
      $region107: #{tpu_custom_call.1} parent=5 // pred_region
        %s7649 = ssub.s32 %s29, 2
        // Predicated region
        $region109: #{tpu_custom_call.1} parent=107 // pred_check
          %p7650 = pneg %p278
        $region110: #{tpu_custom_call.1} parent=107 // pred_check_branch
          %7652 = sbr.rel (%p7650) target = $region112
        $region111: #{tpu_custom_call.1} parent=107 // pred_region
          %s7653 = sand.u32 %s263, 1
          %s7654 = scalar_lea.sflag [#allocation4], %s7653
          %s7655 = sand.u32 %s263, 1
          %s7656 = smul.addr %s7655, 128
          %s7657 = scalar_lea.vmem [#allocation19], %s7656
          %7659 = dma.done %s7654, 2048
        $region112: #{tpu_custom_call.1} parent=107 // pred_fallthru
          _
      $region108: #{tpu_custom_call.1} parent=5 // pred_fallthru
        _
    $region6: #{tpu_custom_call.1} parent=1 // loop_footer
      %s33 = sadd.s32 1, %s29
    $region7: #{tpu_custom_call.1} parent=1 // loop_footer_branch
      %28 = sbr.rel target = $region3
    $region8: #{tpu_custom_call.1} parent=1 // loop_exit
      _
    %7660 = vsyncpa [#allocation3], 1
    %s7661 = scalar_lea.sflag [#allocation3], 1
    %7662 = vsyncpa %s7661, 1
    %7663 = vsyncpa [#allocation6], 1
    %s7664 = scalar_lea.sflag [#allocation6], 1
    %7665 = vsyncpa %s7664, 1
    %7666 = vsyncpa [#allocation9], 1
    %7667 = vsyncpa [#allocation12], 1
    %7668 = vsyncpa [#allocation15], 1
    %7669 = vsyncpa [#allocation18], 1
    %7670 = vsyncpa [#allocation4], 1
    %s7671 = scalar_lea.sflag [#allocation4], 1
    %7672 = vsyncpa %s7671, 1

</llo_original>
